<compile_context>
chip_gen: v7x
topology: tpu7x:2x2x1
jax: 0.10.0
libtpu: 0.0.40
codegen_flags: <defaults>
</compile_context>

<pallas_src>
import numpy as np
import jax
import jax.numpy as jnp
from jax.experimental import pallas as pl
from jax.experimental.pallas import tpu as pltpu


# ----------------------------------------------------------------------------
# XLA-side helpers (layout, interp matrices, masks, weight reshapes)
# ----------------------------------------------------------------------------
def _interp_matrix(in_size, out_size):
    """Dense 1-D linear-interp matrix matching F.interpolate(mode='trilinear',
    align_corners=False) along one axis."""
    scale = in_size / out_size
    dst = np.arange(out_size, dtype=np.float64)
    src = np.maximum(scale * (dst + 0.5) - 0.5, 0.0)
    i0 = np.minimum(np.floor(src).astype(np.int64), in_size - 1)
    i1 = np.minimum(i0 + 1, in_size - 1)
    l1 = src - i0
    l0 = 1.0 - l1
    u = np.zeros((out_size, in_size), dtype=np.float64)
    np.add.at(u, (np.arange(out_size), i0), l0)
    np.add.at(u, (np.arange(out_size), i1), l1)
    return jnp.asarray(u, dtype=jnp.float32)


def _tap_masks(yl, tl):
    """(9, Y*T) 0/1 masks: row ky*3+kt is 1 where output voxel (y, t) has an
    in-range source voxel (y+ky-1, t+kt-1).  Exact 0/1 values in bf16."""
    y = np.arange(yl).reshape(yl, 1)
    t = np.arange(tl).reshape(1, tl)
    rows = []
    for ky in range(3):
        dy = ky - 1
        for kt in range(3):
            dt = kt - 1
            ok = ((y + dy >= 0) & (y + dy < yl) &
                  (t + dt >= 0) & (t + dt < tl))
            rows.append(ok.reshape(-1))
    m = np.stack(rows, axis=0).astype(np.float32)
    return jnp.asarray(m, dtype=jnp.bfloat16)


def _w_taps(w):
    """PyTorch conv weight (Cout, Cin, 3, 3, 3) -> (27, Cout, Cin),
    tap index k = kx*9 + ky*3 + kt."""
    cout, cin = w.shape[:2]
    return jnp.transpose(w.reshape(cout, cin, 27), (2, 0, 1))


def _to_lane_layout(x, pad_x):
    """(B, C, X, Y, T) f32 -> bf16 (B, X(+2), C, Y*T); lane axis = plane."""
    b, c, xl, yl, tl = x.shape
    xt = jnp.transpose(x, (0, 2, 1, 3, 4)).astype(jnp.bfloat16)
    xt = xt.reshape(b, xl, c, yl * tl)
    if pad_x:
        xt = jnp.pad(xt, ((0, 0), (1, 1), (0, 0), (0, 0)))
    return xt


def _from_lane_layout(out, yl, tl):
    """(B, X, Cout, Y*T) -> (B, Cout, X, Y, T)."""
    b, xl, cout, _ = out.shape
    out = out.reshape(b, xl, cout, yl, tl)
    # TODO(synk): removable with a manual-DMA scatter store from the kernel.
    return jnp.transpose(out, (0, 2, 1, 3, 4))


def _lane_shift(x, d):
    """out[:, j] = x[:, j + d] for columns whose source stays in range; the
    wrapped columns are garbage and must be zeroed by the caller's mask."""
    p = x.shape[-1]
    d = d % p
    if d == 0:
        return x
    return jnp.concatenate([x[:, d:], x[:, :d]], axis=1)


# ----------------------------------------------------------------------------
# Pallas kernels
# ----------------------------------------------------------------------------
def _make_conv_kernel(yl, tl, cout, cin, has_diag, has_res):
    """3x3x3 conv on one output X-plane: 27 (Cout,Cin)@(Cin,Y*T) MXU matmuls
    built from lane-shifted, border-masked copies of the 3 halo planes,
    accumulated in f32.  Optional f32 1x1x1 diag conv + bf16 residual add."""

    def kernel(*refs):
        o_ref = refs[-1]
        it = iter(refs[:-1])
        w_ref = next(it)                          # (27, Cout, Cin) bf16
        diag_ref = next(it) if has_diag else None  # (Cout, Cin) f32
        b_ref = next(it)                          # (Cout, 1) f32
        m_ref = next(it)                          # (9, P) bf16 border masks
        x_refs = (next(it), next(it), next(it))   # 3 x (Cin, P) bf16 planes
        r_ref = next(it) if has_res else None     # (Cout, P) bf16

        p = yl * tl
        acc = jnp.zeros((cout, p), jnp.float32)
        for kx in range(3):
            xpl = x_refs[kx][...]                 # (Cin, P)
            for ky in range(3):
                dy = ky - 1
                if yl == 1 and dy != 0:
                    continue                      # fully outside -> zero
                for kt in range(3):
                    dt = kt - 1
                    if tl == 1 and dt != 0:
                        continue
                    xs = _lane_shift(xpl, dy * tl + dt)
                    if dy != 0 or dt != 0:
                        m = ky * 3 + kt
                        xs = xs * m_ref[m:m + 1, :]   # zero-padding borders
                    k = kx * 9 + ky * 3 + kt
                    acc = acc + jnp.dot(w_ref[k], xs,
                                        preferred_element_type=jnp.float32)
        if has_diag:
            # 1x1x1 pointwise conv kept at f32 weight precision (center plane)
            acc = acc + jnp.dot(diag_ref[...],
                                x_refs[1][...].astype(jnp.float32),
                                preferred_element_type=jnp.float32)
        acc = acc + b_ref[...]
        if has_res:
            acc = acc + r_ref[...].astype(jnp.float32)
        o_ref[...] = acc.astype(o_ref.dtype)

    return kernel


def _conv3_level(xpad, w27, yl, tl, bias, diag=None, res=None,
                 out_dtype=jnp.float32):
    """3x3x3 conv (+ optional diag / bias / residual) on an X-padded volume.
    xpad: (B, X+2, Cin, Y*T) bf16.  Returns (B, X, Cout, Y*T) out_dtype."""
    b, xp2, cin, p = xpad.shape
    xl = xp2 - 2
    ntaps, cout, cin2 = w27.shape
    assert ntaps == 27 and cin2 == cin and p == yl * tl

    kernel = _make_conv_kernel(yl, tl, cout, cin,
                               has_diag=diag is not None,
                               has_res=res is not None)

    in_specs = [pl.BlockSpec((27, cout, cin), lambda bb, xi: (0, 0, 0))]
    args = [w27.astype(jnp.bfloat16)]
    if diag is not None:
        in_specs.append(pl.BlockSpec((cout, cin), lambda bb, xi: (0, 0)))
        args.append(diag.astype(jnp.float32))
    in_specs.append(pl.BlockSpec((cout, 1), lambda bb, xi: (0, 0)))
    args.append(bias.astype(jnp.float32).reshape(cout, 1))
    in_specs.append(pl.BlockSpec((9, p), lambda bb, xi: (0, 0)))
    args.append(_tap_masks(yl, tl))
    # Three views of the same X-padded array: halo planes x-1, x, x+1.
    for k in range(3):
        in_specs.append(pl.BlockSpec((None, None, cin, p),
                                     lambda bb, xi, k=k: (bb, xi + k, 0, 0)))
        args.append(xpad)
    if res is not None:
        in_specs.append(pl.BlockSpec((None, None, cout, p),
                                     lambda bb, xi: (bb, xi, 0, 0)))
        args.append(res.astype(jnp.bfloat16))

    return pl.pallas_call(
        kernel,
        out_shape=jax.ShapeDtypeStruct((b, xl, cout, p), out_dtype),
        grid_spec=pltpu.PrefetchScalarGridSpec(
            num_scalar_prefetch=0,
            grid=(b, xl),
            in_specs=in_specs,
            out_specs=pl.BlockSpec((None, None, cout, p),
                                   lambda bb, xi: (bb, xi, 0, 0))),
        compiler_params=pltpu.CompilerParams(
            dimension_semantics=("parallel", "parallel")),
    )(*args)


def _pointwise_kernel(w_ref, b_ref, x_ref, o_ref):
    acc = jnp.dot(w_ref[...], x_ref[...].astype(jnp.float32),
                  preferred_element_type=jnp.float32)
    o_ref[...] = (acc + b_ref[...]).astype(o_ref.dtype)


def _pointwise(xflat, w, bias):
    """1x1x1 conv + bias.  xflat: (B, X, Cin, Y*T) bf16 -> (B, X, Cout, Y*T)."""
    b, xl, cin, p = xflat.shape
    cout = w.shape[0]
    return pl.pallas_call(
        _pointwise_kernel,
        out_shape=jax.ShapeDtypeStruct((b, xl, cout, p), jnp.float32),
        grid_spec=pltpu.PrefetchScalarGridSpec(
            num_scalar_prefetch=0,
            grid=(b, xl),
            in_specs=[
                pl.BlockSpec((cout, cin), lambda bb, xi: (0, 0)),
                pl.BlockSpec((cout, 1), lambda bb, xi: (0, 0)),
                pl.BlockSpec((None, None, cin, p),
                             lambda bb, xi: (bb, xi, 0, 0)),
            ],
            out_specs=pl.BlockSpec((None, None, cout, p),
                                   lambda bb, xi: (bb, xi, 0, 0))),
        compiler_params=pltpu.CompilerParams(
            dimension_semantics=("parallel", "parallel")),
    )(w.astype(jnp.float32), bias.astype(jnp.float32).reshape(cout, 1), xflat)


# ----------------------------------------------------------------------------
# MultiLevelLayer3d forward
# ----------------------------------------------------------------------------
def init_params(key, width, nlevel):
    k1, k2, k3 = jax.random.split(key, 3)
    params = {
        # diag = nn.Conv3d(width, width, 1): weight (Cout, Cin), bias (Cout,)
        "diag_w": 0.1 * jax.random.normal(k1, (width, width), jnp.float32),
        "diag_b": 0.1 * jax.random.normal(k2, (width,), jnp.float32),
    }
    if nlevel > 0:
        # PyTorch zero-inits these 3x3x3 weights; use nonzero deterministic
        # values so the conv path is exercised. PyTorch layout (Cout,Cin,3,3,3)
        params["conv_w"] = 0.1 * jax.random.normal(
            k3, (nlevel, width, width, 3, 3, 3), jnp.float32)
    return params


def multi_level_layer_3d(x, params, nlevel):
    """x: (B, C, X, Y, T) NCDHW float32. Matches MultiLevelLayer3d.forward."""
    if nlevel < 0:
        return jnp.zeros_like(x)
    b, c, xl, yl, tl = x.shape
    diag_w = params["diag_w"]                     # (Cout, Cin)
    diag_b = params["diag_b"]                     # (Cout,)
    cout = diag_w.shape[0]

    if nlevel == 0:
        xflat = _to_lane_layout(x, pad_x=False)
        out = _pointwise(xflat, diag_w, diag_b)
        return _from_lane_layout(out, yl, tl)

    conv_w = params["conv_w"]                     # (nlevel, Cout, Cin, 3,3,3)

    # Coarse levels i >= 1: conv on strided volume, trilinear upsample, sum.
    res = None
    for i in range(1, nlevel):
        s = 2 ** i
        xh = x[:, :, ::s, ::s, ::s]
        _, _, xc, yc, tc = xh.shape
        xh_pad = _to_lane_layout(xh, pad_x=True)
        yh = _conv3_level(xh_pad, _w_taps(conv_w[i]), yc, tc,
                          bias=jnp.zeros((cout,), jnp.float32),
                          out_dtype=jnp.bfloat16)      # (B, xc, Cout, yc*tc)
        yh = yh.reshape(b, xc, cout, yc, tc)
        up = jnp.einsum("bxcyt,Xx,Yy,Tt->bXcYT", yh,
                        _interp_matrix(xc, xl).astype(jnp.bfloat16),
                        _interp_matrix(yc, yl).astype(jnp.bfloat16),
                        _interp_matrix(tc, tl).astype(jnp.bfloat16))
        up = up.astype(jnp.bfloat16)
        res = up if res is None else res + up
    if res is not None:
        res = res.reshape(b, xl, cout, yl * tl)

    # Level 0 at full resolution: 3x3x3 conv (bf16 taps) + f32 1x1x1 diag conv
    # + bias + accumulated bf16 coarse residual, fused in one Pallas pass.
    x_pad = _to_lane_layout(x, pad_x=True)
    out = _conv3_level(x_pad, _w_taps(conv_w[0]), yl, tl,
                       bias=diag_b, diag=diag_w, res=res,
                       out_dtype=jnp.float32)          # (B, X, Cout, Y*T)
    return _from_lane_layout(out, yl, tl)


# ----------------------------------------------------------------------------
# pure-jnp f32 reference (no Pallas) for numerical sanity check
# ----------------------------------------------------------------------------
def _ref_forward(x, params, nlevel):
    if nlevel < 0:
        return jnp.zeros_like(x)
    _, _, xx, yy, tt = x.shape
    w = (jnp.einsum("bcxyt,dc->bdxyt", x, params["diag_w"])
         + params["diag_b"].reshape(1, -1, 1, 1, 1))
    if nlevel == 0:
        return w

    def conv3(xc, wt):   # wt: (Cout, Cin, 3, 3, 3)
        bb, cc, xs_, ys_, ts_ = xc.shape
        xp = jnp.pad(xc, ((0, 0), (0, 0), (1, 1), (1, 1), (1, 1)))
        out = jnp.zeros((bb, wt.shape[0], xs_, ys_, ts_), jnp.float32)
        for kx in range(3):
            for ky in range(3):
                for kt in range(3):
                    out = out + jnp.einsum(
                        "bcxyt,dc->bdxyt",
                        xp[:, :, kx:kx + xs_, ky:ky + ys_, kt:kt + ts_],
                        wt[:, :, kx, ky, kt])
        return out

    for i in range(nlevel):
        if i == 0:
            w = w + conv3(x, params["conv_w"][0])
        else:
            s = 2 ** i
            yh = conv3(x[:, :, ::s, ::s, ::s], params["conv_w"][i])
            _, _, xc, yc, tc = yh.shape
            w = w + jnp.einsum("bcxyt,Xx,Yy,Tt->bcXYT", yh,
                               _interp_matrix(xc, xx), _interp_matrix(yc, yy),
                               _interp_matrix(tc, tt))
    return w


if __name__ == "__main__":
    key = jax.random.PRNGKey(0)
    k_x, k_p = jax.random.split(key)
    width, nlevel = 4, 3
    B, X, Y, T = 2, 8, 8, 8
    x = jax.random.normal(k_x, (B, width, X, Y, T), jnp.float32)
    params = init_params(k_p, width, nlevel)

    fwd = jax.jit(lambda xi: multi_level_layer_3d(xi, params, nlevel))
    out = jax.block_until_ready(fwd(x))
    assert out.shape == (B, width, X, Y, T)
    ref = _ref_forward(x, params, nlevel)
    np.testing.assert_allclose(np.asarray(out), np.asarray(ref),
                               rtol=3e-2, atol=3e-2)

    # also exercise the nlevel == 0 (pointwise-only) path
    out0 = jax.block_until_ready(
        jax.jit(lambda xi: multi_level_layer_3d(xi, params, 0))(x))
    ref0 = _ref_forward(x, params, 0)
    np.testing.assert_allclose(np.asarray(out0), np.asarray(ref0),
                               rtol=3e-2, atol=3e-2)

    print("KERNEL_OK")
</pallas_src>

<mosaic_0001>
module attributes {stable_mosaic.version = 11 : i64} {
  func.func @kernel(%arg0: i32, %arg1: i32, %arg2: memref<27x4x4xbf16, #tpu.memory_space<vmem>>, %arg3: memref<4x1xf32, #tpu.memory_space<vmem>>, %arg4: memref<9x4xbf16, #tpu.memory_space<vmem>>, %arg5: memref<1x1x4x4xbf16, #tpu.memory_space<vmem>>, %arg6: memref<1x1x4x4xbf16, #tpu.memory_space<vmem>>, %arg7: memref<1x1x4x4xbf16, #tpu.memory_space<vmem>>, %arg8: memref<1x1x4x4xbf16, #tpu.memory_space<vmem>>) attributes {dimension_semantics = [#tpu.dimension_semantics<parallel>, #tpu.dimension_semantics<parallel>], iteration_bounds = array<i64: 2, 2>, scalar_prefetch = 0 : i64, scratch_operands = 0 : i64, tpu.core_type = #tpu.core_type<tc>, window_params = [{pipeline_mode = #tpu.pipeline_mode<synchronous>, transform_indices = @transform_0, window_bounds = array<i64: 27, 4, 4>}, {pipeline_mode = #tpu.pipeline_mode<synchronous>, transform_indices = @transform_1, window_bounds = array<i64: 4, 1>}, {pipeline_mode = #tpu.pipeline_mode<synchronous>, transform_indices = @transform_2, window_bounds = array<i64: 9, 4>}, {transform_indices = @transform_3, window_bounds = array<i64: 1, 1, 4, 4>}, {transform_indices = @transform_4, window_bounds = array<i64: 1, 1, 4, 4>}, {transform_indices = @transform_5, window_bounds = array<i64: 1, 1, 4, 4>}, {transform_indices = @transform_6, window_bounds = array<i64: 1, 1, 4, 4>}]} {
    %cst = arith.constant 0.000000e+00 : f32
    %0 = vector.broadcast %cst : f32 to vector<4x4xf32>
    %c0 = arith.constant 0 : index
    %c0_0 = arith.constant 0 : index
    %c0_1 = arith.constant 0 : index
    %c0_2 = arith.constant 0 : index
    %1 = vector.load %arg5[%c0, %c0_0, %c0_1, %c0_2] : memref<1x1x4x4xbf16, #tpu.memory_space<vmem>>, vector<1x1x4x4xbf16>
    %2 = vector.shape_cast %1 : vector<1x1x4x4xbf16> to vector<4x4xbf16>
    %3 = vector.extract_strided_slice %2 {offsets = [0, 1], sizes = [4, 3], strides = [1, 1]} : vector<4x4xbf16> to vector<4x3xbf16>
    %4 = vector.extract_strided_slice %2 {offsets = [0, 0], sizes = [4, 1], strides = [1, 1]} : vector<4x4xbf16> to vector<4x1xbf16>
    %5 = tpu.concatenate %3, %4 in 1 : vector<4x3xbf16>, vector<4x1xbf16> -> vector<4x4xbf16>
    %c0_3 = arith.constant 0 : index
    %c0_4 = arith.constant 0 : index
    %6 = vector.load %arg4[%c0_3, %c0_4] : memref<9x4xbf16, #tpu.memory_space<vmem>>, vector<1x4xbf16>
    %7 = vector.broadcast %6 : vector<1x4xbf16> to vector<4x4xbf16>
    %8 = arith.mulf %5, %7 : vector<4x4xbf16>
    %c0_5 = arith.constant 0 : index
    %c0_6 = arith.constant 0 : index
    %c0_7 = arith.constant 0 : index
    %9 = vector.load %arg2[%c0_5, %c0_6, %c0_7] : memref<27x4x4xbf16, #tpu.memory_space<vmem>>, vector<1x4x4xbf16>
    %10 = vector.shape_cast %9 : vector<1x4x4xbf16> to vector<4x4xbf16>
    %cst_8 = arith.constant dense<0.000000e+00> : vector<4x4xf32>
    %11 = tpu.matmul %10, %8, %cst_8 {dimension_numbers = #tpu.dot_dimension_numbers<[1], [0], [0], [1], [0, 0, 1, 1], [], []>} : vector<4x4xbf16>, vector<4x4xbf16>, vector<4x4xf32> -> vector<4x4xf32>
    %12 = arith.addf %0, %11 : vector<4x4xf32>
    %13 = vector.extract_strided_slice %2 {offsets = [0, 2], sizes = [4, 2], strides = [1, 1]} : vector<4x4xbf16> to vector<4x2xbf16>
    %14 = vector.extract_strided_slice %2 {offsets = [0, 0], sizes = [4, 2], strides = [1, 1]} : vector<4x4xbf16> to vector<4x2xbf16>
    %15 = tpu.concatenate %13, %14 in 1 : vector<4x2xbf16>, vector<4x2xbf16> -> vector<4x4xbf16>
    %c1 = arith.constant 1 : index
    %c0_9 = arith.constant 0 : index
    %16 = vector.load %arg4[%c1, %c0_9] : memref<9x4xbf16, #tpu.memory_space<vmem>>, vector<1x4xbf16>
    %17 = vector.broadcast %16 : vector<1x4xbf16> to vector<4x4xbf16>
    %18 = arith.mulf %15, %17 : vector<4x4xbf16>
    %c1_10 = arith.constant 1 : index
    %c0_11 = arith.constant 0 : index
    %c0_12 = arith.constant 0 : index
    %19 = vector.load %arg2[%c1_10, %c0_11, %c0_12] : memref<27x4x4xbf16, #tpu.memory_space<vmem>>, vector<1x4x4xbf16>
    %20 = vector.shape_cast %19 : vector<1x4x4xbf16> to vector<4x4xbf16>
    %cst_13 = arith.constant dense<0.000000e+00> : vector<4x4xf32>
    %21 = tpu.matmul %20, %18, %cst_13 {dimension_numbers = #tpu.dot_dimension_numbers<[1], [0], [0], [1], [0, 0, 1, 1], [], []>} : vector<4x4xbf16>, vector<4x4xbf16>, vector<4x4xf32> -> vector<4x4xf32>
    %22 = arith.addf %12, %21 : vector<4x4xf32>
    %23 = vector.extract_strided_slice %2 {offsets = [0, 3], sizes = [4, 1], strides = [1, 1]} : vector<4x4xbf16> to vector<4x1xbf16>
    %24 = vector.extract_strided_slice %2 {offsets = [0, 0], sizes = [4, 3], strides = [1, 1]} : vector<4x4xbf16> to vector<4x3xbf16>
    %25 = tpu.concatenate %23, %24 in 1 : vector<4x1xbf16>, vector<4x3xbf16> -> vector<4x4xbf16>
    %c2 = arith.constant 2 : index
    %c0_14 = arith.constant 0 : index
    %26 = vector.load %arg4[%c2, %c0_14] : memref<9x4xbf16, #tpu.memory_space<vmem>>, vector<1x4xbf16>
    %27 = vector.broadcast %26 : vector<1x4xbf16> to vector<4x4xbf16>
    %28 = arith.mulf %25, %27 : vector<4x4xbf16>
    %c2_15 = arith.constant 2 : index
    %c0_16 = arith.constant 0 : index
    %c0_17 = arith.constant 0 : index
    %29 = vector.load %arg2[%c2_15, %c0_16, %c0_17] : memref<27x4x4xbf16, #tpu.memory_space<vmem>>, vector<1x4x4xbf16>
    %30 = vector.shape_cast %29 : vector<1x4x4xbf16> to vector<4x4xbf16>
    %cst_18 = arith.constant dense<0.000000e+00> : vector<4x4xf32>
    %31 = tpu.matmul %30, %28, %cst_18 {dimension_numbers = #tpu.dot_dimension_numbers<[1], [0], [0], [1], [0, 0, 1, 1], [], []>} : vector<4x4xbf16>, vector<4x4xbf16>, vector<4x4xf32> -> vector<4x4xf32>
    %32 = arith.addf %22, %31 : vector<4x4xf32>
    %33 = vector.extract_strided_slice %2 {offsets = [0, 3], sizes = [4, 1], strides = [1, 1]} : vector<4x4xbf16> to vector<4x1xbf16>
    %34 = vector.extract_strided_slice %2 {offsets = [0, 0], sizes = [4, 3], strides = [1, 1]} : vector<4x4xbf16> to vector<4x3xbf16>
    %35 = tpu.concatenate %33, %34 in 1 : vector<4x1xbf16>, vector<4x3xbf16> -> vector<4x4xbf16>
    %c3 = arith.constant 3 : index
    %c0_19 = arith.constant 0 : index
    %36 = vector.load %arg4[%c3, %c0_19] : memref<9x4xbf16, #tpu.memory_space<vmem>>, vector<1x4xbf16>
    %37 = vector.broadcast %36 : vector<1x4xbf16> to vector<4x4xbf16>
    %38 = arith.mulf %35, %37 : vector<4x4xbf16>
    %c3_20 = arith.constant 3 : index
    %c0_21 = arith.constant 0 : index
    %c0_22 = arith.constant 0 : index
    %39 = vector.load %arg2[%c3_20, %c0_21, %c0_22] : memref<27x4x4xbf16, #tpu.memory_space<vmem>>, vector<1x4x4xbf16>
    %40 = vector.shape_cast %39 : vector<1x4x4xbf16> to vector<4x4xbf16>
    %cst_23 = arith.constant dense<0.000000e+00> : vector<4x4xf32>
    %41 = tpu.matmul %40, %38, %cst_23 {dimension_numbers = #tpu.dot_dimension_numbers<[1], [0], [0], [1], [0, 0, 1, 1], [], []>} : vector<4x4xbf16>, vector<4x4xbf16>, vector<4x4xf32> -> vector<4x4xf32>
    %42 = arith.addf %32, %41 : vector<4x4xf32>
    %c4 = arith.constant 4 : index
    %c0_24 = arith.constant 0 : index
    %c0_25 = arith.constant 0 : index
    %43 = vector.load %arg2[%c4, %c0_24, %c0_25] : memref<27x4x4xbf16, #tpu.memory_space<vmem>>, vector<1x4x4xbf16>
    %44 = vector.shape_cast %43 : vector<1x4x4xbf16> to vector<4x4xbf16>
    %cst_26 = arith.constant dense<0.000000e+00> : vector<4x4xf32>
    %45 = tpu.matmul %44, %2, %cst_26 {dimension_numbers = #tpu.dot_dimension_numbers<[1], [0], [0], [1], [0, 0, 1, 1], [], []>} : vector<4x4xbf16>, vector<4x4xbf16>, vector<4x4xf32> -> vector<4x4xf32>
    %46 = arith.addf %42, %45 : vector<4x4xf32>
    %47 = vector.extract_strided_slice %2 {offsets = [0, 1], sizes = [4, 3], strides = [1, 1]} : vector<4x4xbf16> to vector<4x3xbf16>
    %48 = vector.extract_strided_slice %2 {offsets = [0, 0], sizes = [4, 1], strides = [1, 1]} : vector<4x4xbf16> to vector<4x1xbf16>
    %49 = tpu.concatenate %47, %48 in 1 : vector<4x3xbf16>, vector<4x1xbf16> -> vector<4x4xbf16>
    %c5 = arith.constant 5 : index
    %c0_27 = arith.constant 0 : index
    %50 = vector.load %arg4[%c5, %c0_27] : memref<9x4xbf16, #tpu.memory_space<vmem>>, vector<1x4xbf16>
    %51 = vector.broadcast %50 : vector<1x4xbf16> to vector<4x4xbf16>
    %52 = arith.mulf %49, %51 : vector<4x4xbf16>
    %c5_28 = arith.constant 5 : index
    %c0_29 = arith.constant 0 : index
    %c0_30 = arith.constant 0 : index
    %53 = vector.load %arg2[%c5_28, %c0_29, %c0_30] : memref<27x4x4xbf16, #tpu.memory_space<vmem>>, vector<1x4x4xbf16>
    %54 = vector.shape_cast %53 : vector<1x4x4xbf16> to vector<4x4xbf16>
    %cst_31 = arith.constant dense<0.000000e+00> : vector<4x4xf32>
    %55 = tpu.matmul %54, %52, %cst_31 {dimension_numbers = #tpu.dot_dimension_numbers<[1], [0], [0], [1], [0, 0, 1, 1], [], []>} : vector<4x4xbf16>, vector<4x4xbf16>, vector<4x4xf32> -> vector<4x4xf32>
    %56 = arith.addf %46, %55 : vector<4x4xf32>
    %57 = vector.extract_strided_slice %2 {offsets = [0, 1], sizes = [4, 3], strides = [1, 1]} : vector<4x4xbf16> to vector<4x3xbf16>
    %58 = vector.extract_strided_slice %2 {offsets = [0, 0], sizes = [4, 1], strides = [1, 1]} : vector<4x4xbf16> to vector<4x1xbf16>
    %59 = tpu.concatenate %57, %58 in 1 : vector<4x3xbf16>, vector<4x1xbf16> -> vector<4x4xbf16>
    %c6 = arith.constant 6 : index
    %c0_32 = arith.constant 0 : index
    %60 = vector.load %arg4[%c6, %c0_32] : memref<9x4xbf16, #tpu.memory_space<vmem>>, vector<1x4xbf16>
    %61 = vector.broadcast %60 : vector<1x4xbf16> to vector<4x4xbf16>
    %62 = arith.mulf %59, %61 : vector<4x4xbf16>
    %c6_33 = arith.constant 6 : index
    %c0_34 = arith.constant 0 : index
    %c0_35 = arith.constant 0 : index
    %63 = vector.load %arg2[%c6_33, %c0_34, %c0_35] : memref<27x4x4xbf16, #tpu.memory_space<vmem>>, vector<1x4x4xbf16>
    %64 = vector.shape_cast %63 : vector<1x4x4xbf16> to vector<4x4xbf16>
    %cst_36 = arith.constant dense<0.000000e+00> : vector<4x4xf32>
    %65 = tpu.matmul %64, %62, %cst_36 {dimension_numbers = #tpu.dot_dimension_numbers<[1], [0], [0], [1], [0, 0, 1, 1], [], []>} : vector<4x4xbf16>, vector<4x4xbf16>, vector<4x4xf32> -> vector<4x4xf32>
    %66 = arith.addf %56, %65 : vector<4x4xf32>
    %67 = vector.extract_strided_slice %2 {offsets = [0, 2], sizes = [4, 2], strides = [1, 1]} : vector<4x4xbf16> to vector<4x2xbf16>
    %68 = vector.extract_strided_slice %2 {offsets = [0, 0], sizes = [4, 2], strides = [1, 1]} : vector<4x4xbf16> to vector<4x2xbf16>
    %69 = tpu.concatenate %67, %68 in 1 : vector<4x2xbf16>, vector<4x2xbf16> -> vector<4x4xbf16>
    %c7 = arith.constant 7 : index
    %c0_37 = arith.constant 0 : index
    %70 = vector.load %arg4[%c7, %c0_37] : memref<9x4xbf16, #tpu.memory_space<vmem>>, vector<1x4xbf16>
    %71 = vector.broadcast %70 : vector<1x4xbf16> to vector<4x4xbf16>
    %72 = arith.mulf %69, %71 : vector<4x4xbf16>
    %c7_38 = arith.constant 7 : index
    %c0_39 = arith.constant 0 : index
    %c0_40 = arith.constant 0 : index
    %73 = vector.load %arg2[%c7_38, %c0_39, %c0_40] : memref<27x4x4xbf16, #tpu.memory_space<vmem>>, vector<1x4x4xbf16>
    %74 = vector.shape_cast %73 : vector<1x4x4xbf16> to vector<4x4xbf16>
    %cst_41 = arith.constant dense<0.000000e+00> : vector<4x4xf32>
    %75 = tpu.matmul %74, %72, %cst_41 {dimension_numbers = #tpu.dot_dimension_numbers<[1], [0], [0], [1], [0, 0, 1, 1], [], []>} : vector<4x4xbf16>, vector<4x4xbf16>, vector<4x4xf32> -> vector<4x4xf32>
    %76 = arith.addf %66, %75 : vector<4x4xf32>
    %77 = vector.extract_strided_slice %2 {offsets = [0, 3], sizes = [4, 1], strides = [1, 1]} : vector<4x4xbf16> to vector<4x1xbf16>
    %78 = vector.extract_strided_slice %2 {offsets = [0, 0], sizes = [4, 3], strides = [1, 1]} : vector<4x4xbf16> to vector<4x3xbf16>
    %79 = tpu.concatenate %77, %78 in 1 : vector<4x1xbf16>, vector<4x3xbf16> -> vector<4x4xbf16>
    %c8 = arith.constant 8 : index
    %c0_42 = arith.constant 0 : index
    %80 = vector.load %arg4[%c8, %c0_42] : memref<9x4xbf16, #tpu.memory_space<vmem>>, vector<1x4xbf16>
    %81 = vector.broadcast %80 : vector<1x4xbf16> to vector<4x4xbf16>
    %82 = arith.mulf %79, %81 : vector<4x4xbf16>
    %c8_43 = arith.constant 8 : index
    %c0_44 = arith.constant 0 : index
    %c0_45 = arith.constant 0 : index
    %83 = vector.load %arg2[%c8_43, %c0_44, %c0_45] : memref<27x4x4xbf16, #tpu.memory_space<vmem>>, vector<1x4x4xbf16>
    %84 = vector.shape_cast %83 : vector<1x4x4xbf16> to vector<4x4xbf16>
    %cst_46 = arith.constant dense<0.000000e+00> : vector<4x4xf32>
    %85 = tpu.matmul %84, %82, %cst_46 {dimension_numbers = #tpu.dot_dimension_numbers<[1], [0], [0], [1], [0, 0, 1, 1], [], []>} : vector<4x4xbf16>, vector<4x4xbf16>, vector<4x4xf32> -> vector<4x4xf32>
    %86 = arith.addf %76, %85 : vector<4x4xf32>
    %c0_47 = arith.constant 0 : index
    %c0_48 = arith.constant 0 : index
    %c0_49 = arith.constant 0 : index
    %c0_50 = arith.constant 0 : index
    %87 = vector.load %arg6[%c0_47, %c0_48, %c0_49, %c0_50] : memref<1x1x4x4xbf16, #tpu.memory_space<vmem>>, vector<1x1x4x4xbf16>
    %88 = vector.shape_cast %87 : vector<1x1x4x4xbf16> to vector<4x4xbf16>
    %89 = vector.extract_strided_slice %88 {offsets = [0, 1], sizes = [4, 3], strides = [1, 1]} : vector<4x4xbf16> to vector<4x3xbf16>
    %90 = vector.extract_strided_slice %88 {offsets = [0, 0], sizes = [4, 1], strides = [1, 1]} : vector<4x4xbf16> to vector<4x1xbf16>
    %91 = tpu.concatenate %89, %90 in 1 : vector<4x3xbf16>, vector<4x1xbf16> -> vector<4x4xbf16>
    %c0_51 = arith.constant 0 : index
    %c0_52 = arith.constant 0 : index
    %92 = vector.load %arg4[%c0_51, %c0_52] : memref<9x4xbf16, #tpu.memory_space<vmem>>, vector<1x4xbf16>
    %93 = vector.broadcast %92 : vector<1x4xbf16> to vector<4x4xbf16>
    %94 = arith.mulf %91, %93 : vector<4x4xbf16>
    %c9 = arith.constant 9 : index
    %c0_53 = arith.constant 0 : index
    %c0_54 = arith.constant 0 : index
    %95 = vector.load %arg2[%c9, %c0_53, %c0_54] : memref<27x4x4xbf16, #tpu.memory_space<vmem>>, vector<1x4x4xbf16>
    %96 = vector.shape_cast %95 : vector<1x4x4xbf16> to vector<4x4xbf16>
    %cst_55 = arith.constant dense<0.000000e+00> : vector<4x4xf32>
    %97 = tpu.matmul %96, %94, %cst_55 {dimension_numbers = #tpu.dot_dimension_numbers<[1], [0], [0], [1], [0, 0, 1, 1], [], []>} : vector<4x4xbf16>, vector<4x4xbf16>, vector<4x4xf32> -> vector<4x4xf32>
    %98 = arith.addf %86, %97 : vector<4x4xf32>
    %99 = vector.extract_strided_slice %88 {offsets = [0, 2], sizes = [4, 2], strides = [1, 1]} : vector<4x4xbf16> to vector<4x2xbf16>
    %100 = vector.extract_strided_slice %88 {offsets = [0, 0], sizes = [4, 2], strides = [1, 1]} : vector<4x4xbf16> to vector<4x2xbf16>
    %101 = tpu.concatenate %99, %100 in 1 : vector<4x2xbf16>, vector<4x2xbf16> -> vector<4x4xbf16>
    %c1_56 = arith.constant 1 : index
    %c0_57 = arith.constant 0 : index
    %102 = vector.load %arg4[%c1_56, %c0_57] : memref<9x4xbf16, #tpu.memory_space<vmem>>, vector<1x4xbf16>
    %103 = vector.broadcast %102 : vector<1x4xbf16> to vector<4x4xbf16>
    %104 = arith.mulf %101, %103 : vector<4x4xbf16>
    %c10 = arith.constant 10 : index
    %c0_58 = arith.constant 0 : index
    %c0_59 = arith.constant 0 : index
    %105 = vector.load %arg2[%c10, %c0_58, %c0_59] : memref<27x4x4xbf16, #tpu.memory_space<vmem>>, vector<1x4x4xbf16>
    %106 = vector.shape_cast %105 : vector<1x4x4xbf16> to vector<4x4xbf16>
    %cst_60 = arith.constant dense<0.000000e+00> : vector<4x4xf32>
    %107 = tpu.matmul %106, %104, %cst_60 {dimension_numbers = #tpu.dot_dimension_numbers<[1], [0], [0], [1], [0, 0, 1, 1], [], []>} : vector<4x4xbf16>, vector<4x4xbf16>, vector<4x4xf32> -> vector<4x4xf32>
    %108 = arith.addf %98, %107 : vector<4x4xf32>
    %109 = vector.extract_strided_slice %88 {offsets = [0, 3], sizes = [4, 1], strides = [1, 1]} : vector<4x4xbf16> to vector<4x1xbf16>
    %110 = vector.extract_strided_slice %88 {offsets = [0, 0], sizes = [4, 3], strides = [1, 1]} : vector<4x4xbf16> to vector<4x3xbf16>
    %111 = tpu.concatenate %109, %110 in 1 : vector<4x1xbf16>, vector<4x3xbf16> -> vector<4x4xbf16>
    %c2_61 = arith.constant 2 : index
    %c0_62 = arith.constant 0 : index
    %112 = vector.load %arg4[%c2_61, %c0_62] : memref<9x4xbf16, #tpu.memory_space<vmem>>, vector<1x4xbf16>
    %113 = vector.broadcast %112 : vector<1x4xbf16> to vector<4x4xbf16>
    %114 = arith.mulf %111, %113 : vector<4x4xbf16>
    %c11 = arith.constant 11 : index
    %c0_63 = arith.constant 0 : index
    %c0_64 = arith.constant 0 : index
    %115 = vector.load %arg2[%c11, %c0_63, %c0_64] : memref<27x4x4xbf16, #tpu.memory_space<vmem>>, vector<1x4x4xbf16>
    %116 = vector.shape_cast %115 : vector<1x4x4xbf16> to vector<4x4xbf16>
    %cst_65 = arith.constant dense<0.000000e+00> : vector<4x4xf32>
    %117 = tpu.matmul %116, %114, %cst_65 {dimension_numbers = #tpu.dot_dimension_numbers<[1], [0], [0], [1], [0, 0, 1, 1], [], []>} : vector<4x4xbf16>, vector<4x4xbf16>, vector<4x4xf32> -> vector<4x4xf32>
    %118 = arith.addf %108, %117 : vector<4x4xf32>
    %119 = vector.extract_strided_slice %88 {offsets = [0, 3], sizes = [4, 1], strides = [1, 1]} : vector<4x4xbf16> to vector<4x1xbf16>
    %120 = vector.extract_strided_slice %88 {offsets = [0, 0], sizes = [4, 3], strides = [1, 1]} : vector<4x4xbf16> to vector<4x3xbf16>
    %121 = tpu.concatenate %119, %120 in 1 : vector<4x1xbf16>, vector<4x3xbf16> -> vector<4x4xbf16>
    %c3_66 = arith.constant 3 : index
    %c0_67 = arith.constant 0 : index
    %122 = vector.load %arg4[%c3_66, %c0_67] : memref<9x4xbf16, #tpu.memory_space<vmem>>, vector<1x4xbf16>
    %123 = vector.broadcast %122 : vector<1x4xbf16> to vector<4x4xbf16>
    %124 = arith.mulf %121, %123 : vector<4x4xbf16>
    %c12 = arith.constant 12 : index
    %c0_68 = arith.constant 0 : index
    %c0_69 = arith.constant 0 : index
    %125 = vector.load %arg2[%c12, %c0_68, %c0_69] : memref<27x4x4xbf16, #tpu.memory_space<vmem>>, vector<1x4x4xbf16>
    %126 = vector.shape_cast %125 : vector<1x4x4xbf16> to vector<4x4xbf16>
    %cst_70 = arith.constant dense<0.000000e+00> : vector<4x4xf32>
    %127 = tpu.matmul %126, %124, %cst_70 {dimension_numbers = #tpu.dot_dimension_numbers<[1], [0], [0], [1], [0, 0, 1, 1], [], []>} : vector<4x4xbf16>, vector<4x4xbf16>, vector<4x4xf32> -> vector<4x4xf32>
    %128 = arith.addf %118, %127 : vector<4x4xf32>
    %c13 = arith.constant 13 : index
    %c0_71 = arith.constant 0 : index
    %c0_72 = arith.constant 0 : index
    %129 = vector.load %arg2[%c13, %c0_71, %c0_72] : memref<27x4x4xbf16, #tpu.memory_space<vmem>>, vector<1x4x4xbf16>
    %130 = vector.shape_cast %129 : vector<1x4x4xbf16> to vector<4x4xbf16>
    %cst_73 = arith.constant dense<0.000000e+00> : vector<4x4xf32>
    %131 = tpu.matmul %130, %88, %cst_73 {dimension_numbers = #tpu.dot_dimension_numbers<[1], [0], [0], [1], [0, 0, 1, 1], [], []>} : vector<4x4xbf16>, vector<4x4xbf16>, vector<4x4xf32> -> vector<4x4xf32>
    %132 = arith.addf %128, %131 : vector<4x4xf32>
    %133 = vector.extract_strided_slice %88 {offsets = [0, 1], sizes = [4, 3], strides = [1, 1]} : vector<4x4xbf16> to vector<4x3xbf16>
    %134 = vector.extract_strided_slice %88 {offsets = [0, 0], sizes = [4, 1], strides = [1, 1]} : vector<4x4xbf16> to vector<4x1xbf16>
    %135 = tpu.concatenate %133, %134 in 1 : vector<4x3xbf16>, vector<4x1xbf16> -> vector<4x4xbf16>
    %c5_74 = arith.constant 5 : index
    %c0_75 = arith.constant 0 : index
    %136 = vector.load %arg4[%c5_74, %c0_75] : memref<9x4xbf16, #tpu.memory_space<vmem>>, vector<1x4xbf16>
    %137 = vector.broadcast %136 : vector<1x4xbf16> to vector<4x4xbf16>
    %138 = arith.mulf %135, %137 : vector<4x4xbf16>
    %c14 = arith.constant 14 : index
    %c0_76 = arith.constant 0 : index
    %c0_77 = arith.constant 0 : index
    %139 = vector.load %arg2[%c14, %c0_76, %c0_77] : memref<27x4x4xbf16, #tpu.memory_space<vmem>>, vector<1x4x4xbf16>
    %140 = vector.shape_cast %139 : vector<1x4x4xbf16> to vector<4x4xbf16>
    %cst_78 = arith.constant dense<0.000000e+00> : vector<4x4xf32>
    %141 = tpu.matmul %140, %138, %cst_78 {dimension_numbers = #tpu.dot_dimension_numbers<[1], [0], [0], [1], [0, 0, 1, 1], [], []>} : vector<4x4xbf16>, vector<4x4xbf16>, vector<4x4xf32> -> vector<4x4xf32>
    %142 = arith.addf %132, %141 : vector<4x4xf32>
    %143 = vector.extract_strided_slice %88 {offsets = [0, 1], sizes = [4, 3], strides = [1, 1]} : vector<4x4xbf16> to vector<4x3xbf16>
    %144 = vector.extract_strided_slice %88 {offsets = [0, 0], sizes = [4, 1], strides = [1, 1]} : vector<4x4xbf16> to vector<4x1xbf16>
    %145 = tpu.concatenate %143, %144 in 1 : vector<4x3xbf16>, vector<4x1xbf16> -> vector<4x4xbf16>
    %c6_79 = arith.constant 6 : index
    %c0_80 = arith.constant 0 : index
    %146 = vector.load %arg4[%c6_79, %c0_80] : memref<9x4xbf16, #tpu.memory_space<vmem>>, vector<1x4xbf16>
    %147 = vector.broadcast %146 : vector<1x4xbf16> to vector<4x4xbf16>
    %148 = arith.mulf %145, %147 : vector<4x4xbf16>
    %c15 = arith.constant 15 : index
    %c0_81 = arith.constant 0 : index
    %c0_82 = arith.constant 0 : index
    %149 = vector.load %arg2[%c15, %c0_81, %c0_82] : memref<27x4x4xbf16, #tpu.memory_space<vmem>>, vector<1x4x4xbf16>
    %150 = vector.shape_cast %149 : vector<1x4x4xbf16> to vector<4x4xbf16>
    %cst_83 = arith.constant dense<0.000000e+00> : vector<4x4xf32>
    %151 = tpu.matmul %150, %148, %cst_83 {dimension_numbers = #tpu.dot_dimension_numbers<[1], [0], [0], [1], [0, 0, 1, 1], [], []>} : vector<4x4xbf16>, vector<4x4xbf16>, vector<4x4xf32> -> vector<4x4xf32>
    %152 = arith.addf %142, %151 : vector<4x4xf32>
    %153 = vector.extract_strided_slice %88 {offsets = [0, 2], sizes = [4, 2], strides = [1, 1]} : vector<4x4xbf16> to vector<4x2xbf16>
    %154 = vector.extract_strided_slice %88 {offsets = [0, 0], sizes = [4, 2], strides = [1, 1]} : vector<4x4xbf16> to vector<4x2xbf16>
    %155 = tpu.concatenate %153, %154 in 1 : vector<4x2xbf16>, vector<4x2xbf16> -> vector<4x4xbf16>
    %c7_84 = arith.constant 7 : index
    %c0_85 = arith.constant 0 : index
    %156 = vector.load %arg4[%c7_84, %c0_85] : memref<9x4xbf16, #tpu.memory_space<vmem>>, vector<1x4xbf16>
    %157 = vector.broadcast %156 : vector<1x4xbf16> to vector<4x4xbf16>
    %158 = arith.mulf %155, %157 : vector<4x4xbf16>
    %c16 = arith.constant 16 : index
    %c0_86 = arith.constant 0 : index
    %c0_87 = arith.constant 0 : index
    %159 = vector.load %arg2[%c16, %c0_86, %c0_87] : memref<27x4x4xbf16, #tpu.memory_space<vmem>>, vector<1x4x4xbf16>
    %160 = vector.shape_cast %159 : vector<1x4x4xbf16> to vector<4x4xbf16>
    %cst_88 = arith.constant dense<0.000000e+00> : vector<4x4xf32>
    %161 = tpu.matmul %160, %158, %cst_88 {dimension_numbers = #tpu.dot_dimension_numbers<[1], [0], [0], [1], [0, 0, 1, 1], [], []>} : vector<4x4xbf16>, vector<4x4xbf16>, vector<4x4xf32> -> vector<4x4xf32>
    %162 = arith.addf %152, %161 : vector<4x4xf32>
    %163 = vector.extract_strided_slice %88 {offsets = [0, 3], sizes = [4, 1], strides = [1, 1]} : vector<4x4xbf16> to vector<4x1xbf16>
    %164 = vector.extract_strided_slice %88 {offsets = [0, 0], sizes = [4, 3], strides = [1, 1]} : vector<4x4xbf16> to vector<4x3xbf16>
    %165 = tpu.concatenate %163, %164 in 1 : vector<4x1xbf16>, vector<4x3xbf16> -> vector<4x4xbf16>
    %c8_89 = arith.constant 8 : index
    %c0_90 = arith.constant 0 : index
    %166 = vector.load %arg4[%c8_89, %c0_90] : memref<9x4xbf16, #tpu.memory_space<vmem>>, vector<1x4xbf16>
    %167 = vector.broadcast %166 : vector<1x4xbf16> to vector<4x4xbf16>
    %168 = arith.mulf %165, %167 : vector<4x4xbf16>
    %c17 = arith.constant 17 : index
    %c0_91 = arith.constant 0 : index
    %c0_92 = arith.constant 0 : index
    %169 = vector.load %arg2[%c17, %c0_91, %c0_92] : memref<27x4x4xbf16, #tpu.memory_space<vmem>>, vector<1x4x4xbf16>
    %170 = vector.shape_cast %169 : vector<1x4x4xbf16> to vector<4x4xbf16>
    %cst_93 = arith.constant dense<0.000000e+00> : vector<4x4xf32>
    %171 = tpu.matmul %170, %168, %cst_93 {dimension_numbers = #tpu.dot_dimension_numbers<[1], [0], [0], [1], [0, 0, 1, 1], [], []>} : vector<4x4xbf16>, vector<4x4xbf16>, vector<4x4xf32> -> vector<4x4xf32>
    %172 = arith.addf %162, %171 : vector<4x4xf32>
    %c0_94 = arith.constant 0 : index
    %c0_95 = arith.constant 0 : index
    %c0_96 = arith.constant 0 : index
    %c0_97 = arith.constant 0 : index
    %173 = vector.load %arg7[%c0_94, %c0_95, %c0_96, %c0_97] : memref<1x1x4x4xbf16, #tpu.memory_space<vmem>>, vector<1x1x4x4xbf16>
    %174 = vector.shape_cast %173 : vector<1x1x4x4xbf16> to vector<4x4xbf16>
    %175 = vector.extract_strided_slice %174 {offsets = [0, 1], sizes = [4, 3], strides = [1, 1]} : vector<4x4xbf16> to vector<4x3xbf16>
    %176 = vector.extract_strided_slice %174 {offsets = [0, 0], sizes = [4, 1], strides = [1, 1]} : vector<4x4xbf16> to vector<4x1xbf16>
    %177 = tpu.concatenate %175, %176 in 1 : vector<4x3xbf16>, vector<4x1xbf16> -> vector<4x4xbf16>
    %c0_98 = arith.constant 0 : index
    %c0_99 = arith.constant 0 : index
    %178 = vector.load %arg4[%c0_98, %c0_99] : memref<9x4xbf16, #tpu.memory_space<vmem>>, vector<1x4xbf16>
    %179 = vector.broadcast %178 : vector<1x4xbf16> to vector<4x4xbf16>
    %180 = arith.mulf %177, %179 : vector<4x4xbf16>
    %c18 = arith.constant 18 : index
    %c0_100 = arith.constant 0 : index
    %c0_101 = arith.constant 0 : index
    %181 = vector.load %arg2[%c18, %c0_100, %c0_101] : memref<27x4x4xbf16, #tpu.memory_space<vmem>>, vector<1x4x4xbf16>
    %182 = vector.shape_cast %181 : vector<1x4x4xbf16> to vector<4x4xbf16>
    %cst_102 = arith.constant dense<0.000000e+00> : vector<4x4xf32>
    %183 = tpu.matmul %182, %180, %cst_102 {dimension_numbers = #tpu.dot_dimension_numbers<[1], [0], [0], [1], [0, 0, 1, 1], [], []>} : vector<4x4xbf16>, vector<4x4xbf16>, vector<4x4xf32> -> vector<4x4xf32>
    %184 = arith.addf %172, %183 : vector<4x4xf32>
    %185 = vector.extract_strided_slice %174 {offsets = [0, 2], sizes = [4, 2], strides = [1, 1]} : vector<4x4xbf16> to vector<4x2xbf16>
    %186 = vector.extract_strided_slice %174 {offsets = [0, 0], sizes = [4, 2], strides = [1, 1]} : vector<4x4xbf16> to vector<4x2xbf16>
    %187 = tpu.concatenate %185, %186 in 1 : vector<4x2xbf16>, vector<4x2xbf16> -> vector<4x4xbf16>
    %c1_103 = arith.constant 1 : index
    %c0_104 = arith.constant 0 : index
    %188 = vector.load %arg4[%c1_103, %c0_104] : memref<9x4xbf16, #tpu.memory_space<vmem>>, vector<1x4xbf16>
    %189 = vector.broadcast %188 : vector<1x4xbf16> to vector<4x4xbf16>
    %190 = arith.mulf %187, %189 : vector<4x4xbf16>
    %c19 = arith.constant 19 : index
    %c0_105 = arith.constant 0 : index
    %c0_106 = arith.constant 0 : index
    %191 = vector.load %arg2[%c19, %c0_105, %c0_106] : memref<27x4x4xbf16, #tpu.memory_space<vmem>>, vector<1x4x4xbf16>
    %192 = vector.shape_cast %191 : vector<1x4x4xbf16> to vector<4x4xbf16>
    %cst_107 = arith.constant dense<0.000000e+00> : vector<4x4xf32>
    %193 = tpu.matmul %192, %190, %cst_107 {dimension_numbers = #tpu.dot_dimension_numbers<[1], [0], [0], [1], [0, 0, 1, 1], [], []>} : vector<4x4xbf16>, vector<4x4xbf16>, vector<4x4xf32> -> vector<4x4xf32>
    %194 = arith.addf %184, %193 : vector<4x4xf32>
    %195 = vector.extract_strided_slice %174 {offsets = [0, 3], sizes = [4, 1], strides = [1, 1]} : vector<4x4xbf16> to vector<4x1xbf16>
    %196 = vector.extract_strided_slice %174 {offsets = [0, 0], sizes = [4, 3], strides = [1, 1]} : vector<4x4xbf16> to vector<4x3xbf16>
    %197 = tpu.concatenate %195, %196 in 1 : vector<4x1xbf16>, vector<4x3xbf16> -> vector<4x4xbf16>
    %c2_108 = arith.constant 2 : index
    %c0_109 = arith.constant 0 : index
    %198 = vector.load %arg4[%c2_108, %c0_109] : memref<9x4xbf16, #tpu.memory_space<vmem>>, vector<1x4xbf16>
    %199 = vector.broadcast %198 : vector<1x4xbf16> to vector<4x4xbf16>
    %200 = arith.mulf %197, %199 : vector<4x4xbf16>
    %c20 = arith.constant 20 : index
    %c0_110 = arith.constant 0 : index
    %c0_111 = arith.constant 0 : index
    %201 = vector.load %arg2[%c20, %c0_110, %c0_111] : memref<27x4x4xbf16, #tpu.memory_space<vmem>>, vector<1x4x4xbf16>
    %202 = vector.shape_cast %201 : vector<1x4x4xbf16> to vector<4x4xbf16>
    %cst_112 = arith.constant dense<0.000000e+00> : vector<4x4xf32>
    %203 = tpu.matmul %202, %200, %cst_112 {dimension_numbers = #tpu.dot_dimension_numbers<[1], [0], [0], [1], [0, 0, 1, 1], [], []>} : vector<4x4xbf16>, vector<4x4xbf16>, vector<4x4xf32> -> vector<4x4xf32>
    %204 = arith.addf %194, %203 : vector<4x4xf32>
    %205 = vector.extract_strided_slice %174 {offsets = [0, 3], sizes = [4, 1], strides = [1, 1]} : vector<4x4xbf16> to vector<4x1xbf16>
    %206 = vector.extract_strided_slice %174 {offsets = [0, 0], sizes = [4, 3], strides = [1, 1]} : vector<4x4xbf16> to vector<4x3xbf16>
    %207 = tpu.concatenate %205, %206 in 1 : vector<4x1xbf16>, vector<4x3xbf16> -> vector<4x4xbf16>
    %c3_113 = arith.constant 3 : index
    %c0_114 = arith.constant 0 : index
    %208 = vector.load %arg4[%c3_113, %c0_114] : memref<9x4xbf16, #tpu.memory_space<vmem>>, vector<1x4xbf16>
    %209 = vector.broadcast %208 : vector<1x4xbf16> to vector<4x4xbf16>
    %210 = arith.mulf %207, %209 : vector<4x4xbf16>
    %c21 = arith.constant 21 : index
    %c0_115 = arith.constant 0 : index
    %c0_116 = arith.constant 0 : index
    %211 = vector.load %arg2[%c21, %c0_115, %c0_116] : memref<27x4x4xbf16, #tpu.memory_space<vmem>>, vector<1x4x4xbf16>
    %212 = vector.shape_cast %211 : vector<1x4x4xbf16> to vector<4x4xbf16>
    %cst_117 = arith.constant dense<0.000000e+00> : vector<4x4xf32>
    %213 = tpu.matmul %212, %210, %cst_117 {dimension_numbers = #tpu.dot_dimension_numbers<[1], [0], [0], [1], [0, 0, 1, 1], [], []>} : vector<4x4xbf16>, vector<4x4xbf16>, vector<4x4xf32> -> vector<4x4xf32>
    %214 = arith.addf %204, %213 : vector<4x4xf32>
    %c22 = arith.constant 22 : index
    %c0_118 = arith.constant 0 : index
    %c0_119 = arith.constant 0 : index
    %215 = vector.load %arg2[%c22, %c0_118, %c0_119] : memref<27x4x4xbf16, #tpu.memory_space<vmem>>, vector<1x4x4xbf16>
    %216 = vector.shape_cast %215 : vector<1x4x4xbf16> to vector<4x4xbf16>
    %cst_120 = arith.constant dense<0.000000e+00> : vector<4x4xf32>
    %217 = tpu.matmul %216, %174, %cst_120 {dimension_numbers = #tpu.dot_dimension_numbers<[1], [0], [0], [1], [0, 0, 1, 1], [], []>} : vector<4x4xbf16>, vector<4x4xbf16>, vector<4x4xf32> -> vector<4x4xf32>
    %218 = arith.addf %214, %217 : vector<4x4xf32>
    %219 = vector.extract_strided_slice %174 {offsets = [0, 1], sizes = [4, 3], strides = [1, 1]} : vector<4x4xbf16> to vector<4x3xbf16>
    %220 = vector.extract_strided_slice %174 {offsets = [0, 0], sizes = [4, 1], strides = [1, 1]} : vector<4x4xbf16> to vector<4x1xbf16>
    %221 = tpu.concatenate %219, %220 in 1 : vector<4x3xbf16>, vector<4x1xbf16> -> vector<4x4xbf16>
    %c5_121 = arith.constant 5 : index
    %c0_122 = arith.constant 0 : index
    %222 = vector.load %arg4[%c5_121, %c0_122] : memref<9x4xbf16, #tpu.memory_space<vmem>>, vector<1x4xbf16>
    %223 = vector.broadcast %222 : vector<1x4xbf16> to vector<4x4xbf16>
    %224 = arith.mulf %221, %223 : vector<4x4xbf16>
    %c23 = arith.constant 23 : index
    %c0_123 = arith.constant 0 : index
    %c0_124 = arith.constant 0 : index
    %225 = vector.load %arg2[%c23, %c0_123, %c0_124] : memref<27x4x4xbf16, #tpu.memory_space<vmem>>, vector<1x4x4xbf16>
    %226 = vector.shape_cast %225 : vector<1x4x4xbf16> to vector<4x4xbf16>
    %cst_125 = arith.constant dense<0.000000e+00> : vector<4x4xf32>
    %227 = tpu.matmul %226, %224, %cst_125 {dimension_numbers = #tpu.dot_dimension_numbers<[1], [0], [0], [1], [0, 0, 1, 1], [], []>} : vector<4x4xbf16>, vector<4x4xbf16>, vector<4x4xf32> -> vector<4x4xf32>
    %228 = arith.addf %218, %227 : vector<4x4xf32>
    %229 = vector.extract_strided_slice %174 {offsets = [0, 1], sizes = [4, 3], strides = [1, 1]} : vector<4x4xbf16> to vector<4x3xbf16>
    %230 = vector.extract_strided_slice %174 {offsets = [0, 0], sizes = [4, 1], strides = [1, 1]} : vector<4x4xbf16> to vector<4x1xbf16>
    %231 = tpu.concatenate %229, %230 in 1 : vector<4x3xbf16>, vector<4x1xbf16> -> vector<4x4xbf16>
    %c6_126 = arith.constant 6 : index
    %c0_127 = arith.constant 0 : index
    %232 = vector.load %arg4[%c6_126, %c0_127] : memref<9x4xbf16, #tpu.memory_space<vmem>>, vector<1x4xbf16>
    %233 = vector.broadcast %232 : vector<1x4xbf16> to vector<4x4xbf16>
    %234 = arith.mulf %231, %233 : vector<4x4xbf16>
    %c24 = arith.constant 24 : index
    %c0_128 = arith.constant 0 : index
    %c0_129 = arith.constant 0 : index
    %235 = vector.load %arg2[%c24, %c0_128, %c0_129] : memref<27x4x4xbf16, #tpu.memory_space<vmem>>, vector<1x4x4xbf16>
    %236 = vector.shape_cast %235 : vector<1x4x4xbf16> to vector<4x4xbf16>
    %cst_130 = arith.constant dense<0.000000e+00> : vector<4x4xf32>
    %237 = tpu.matmul %236, %234, %cst_130 {dimension_numbers = #tpu.dot_dimension_numbers<[1], [0], [0], [1], [0, 0, 1, 1], [], []>} : vector<4x4xbf16>, vector<4x4xbf16>, vector<4x4xf32> -> vector<4x4xf32>
    %238 = arith.addf %228, %237 : vector<4x4xf32>
    %239 = vector.extract_strided_slice %174 {offsets = [0, 2], sizes = [4, 2], strides = [1, 1]} : vector<4x4xbf16> to vector<4x2xbf16>
    %240 = vector.extract_strided_slice %174 {offsets = [0, 0], sizes = [4, 2], strides = [1, 1]} : vector<4x4xbf16> to vector<4x2xbf16>
    %241 = tpu.concatenate %239, %240 in 1 : vector<4x2xbf16>, vector<4x2xbf16> -> vector<4x4xbf16>
    %c7_131 = arith.constant 7 : index
    %c0_132 = arith.constant 0 : index
    %242 = vector.load %arg4[%c7_131, %c0_132] : memref<9x4xbf16, #tpu.memory_space<vmem>>, vector<1x4xbf16>
    %243 = vector.broadcast %242 : vector<1x4xbf16> to vector<4x4xbf16>
    %244 = arith.mulf %241, %243 : vector<4x4xbf16>
    %c25 = arith.constant 25 : index
    %c0_133 = arith.constant 0 : index
    %c0_134 = arith.constant 0 : index
    %245 = vector.load %arg2[%c25, %c0_133, %c0_134] : memref<27x4x4xbf16, #tpu.memory_space<vmem>>, vector<1x4x4xbf16>
    %246 = vector.shape_cast %245 : vector<1x4x4xbf16> to vector<4x4xbf16>
    %cst_135 = arith.constant dense<0.000000e+00> : vector<4x4xf32>
    %247 = tpu.matmul %246, %244, %cst_135 {dimension_numbers = #tpu.dot_dimension_numbers<[1], [0], [0], [1], [0, 0, 1, 1], [], []>} : vector<4x4xbf16>, vector<4x4xbf16>, vector<4x4xf32> -> vector<4x4xf32>
    %248 = arith.addf %238, %247 : vector<4x4xf32>
    %249 = vector.extract_strided_slice %174 {offsets = [0, 3], sizes = [4, 1], strides = [1, 1]} : vector<4x4xbf16> to vector<4x1xbf16>
    %250 = vector.extract_strided_slice %174 {offsets = [0, 0], sizes = [4, 3], strides = [1, 1]} : vector<4x4xbf16> to vector<4x3xbf16>
    %251 = tpu.concatenate %249, %250 in 1 : vector<4x1xbf16>, vector<4x3xbf16> -> vector<4x4xbf16>
    %c8_136 = arith.constant 8 : index
    %c0_137 = arith.constant 0 : index
    %252 = vector.load %arg4[%c8_136, %c0_137] : memref<9x4xbf16, #tpu.memory_space<vmem>>, vector<1x4xbf16>
    %253 = vector.broadcast %252 : vector<1x4xbf16> to vector<4x4xbf16>
    %254 = arith.mulf %251, %253 : vector<4x4xbf16>
    %c26 = arith.constant 26 : index
    %c0_138 = arith.constant 0 : index
    %c0_139 = arith.constant 0 : index
    %255 = vector.load %arg2[%c26, %c0_138, %c0_139] : memref<27x4x4xbf16, #tpu.memory_space<vmem>>, vector<1x4x4xbf16>
    %256 = vector.shape_cast %255 : vector<1x4x4xbf16> to vector<4x4xbf16>
    %cst_140 = arith.constant dense<0.000000e+00> : vector<4x4xf32>
    %257 = tpu.matmul %256, %254, %cst_140 {dimension_numbers = #tpu.dot_dimension_numbers<[1], [0], [0], [1], [0, 0, 1, 1], [], []>} : vector<4x4xbf16>, vector<4x4xbf16>, vector<4x4xf32> -> vector<4x4xf32>
    %258 = arith.addf %248, %257 : vector<4x4xf32>
    %c0_141 = arith.constant 0 : index
    %c0_142 = arith.constant 0 : index
    %259 = vector.load %arg3[%c0_141, %c0_142] : memref<4x1xf32, #tpu.memory_space<vmem>>, vector<4x1xf32>
    %260 = vector.broadcast %259 : vector<4x1xf32> to vector<4x4xf32>
    %261 = arith.addf %258, %260 : vector<4x4xf32>
    %262 = arith.truncf %261 : vector<4x4xf32> to vector<4x4xbf16>
    %c0_143 = arith.constant 0 : index
    %c0_144 = arith.constant 0 : index
    %c0_145 = arith.constant 0 : index
    %c0_146 = arith.constant 0 : index
    %263 = vector.load %arg8[%c0_143, %c0_144, %c0_145, %c0_146] : memref<1x1x4x4xbf16, #tpu.memory_space<vmem>>, vector<1x1x4x4xbf16>
    %264 = vector.shape_cast %263 : vector<1x1x4x4xbf16> to vector<4x4xbf16>
    %265 = vector.shape_cast %262 : vector<4x4xbf16> to vector<1x1x4x4xbf16>
    tpu.vector_store %arg8[%c0_143, %c0_144, %c0_145, %c0_146], %265 {strides = array<i32>} : memref<1x1x4x4xbf16, #tpu.memory_space<vmem>>, vector<1x1x4x4xbf16>,
    return
  }
  func.func @transform_0(%arg0: i32, %arg1: i32) -> (i32, i32, i32) {
    %c0_i32 = arith.constant 0 : i32
    %c0_i32_0 = arith.constant 0 : i32
    %c0_i32_1 = arith.constant 0 : i32
    %c0_i32_2 = arith.constant 0 : i32
    return %c0_i32, %c0_i32_0, %c0_i32_1 : i32, i32, i32
  }
  func.func @transform_1(%arg0: i32, %arg1: i32) -> (i32, i32) {
    %c0_i32 = arith.constant 0 : i32
    %c0_i32_0 = arith.constant 0 : i32
    %c0_i32_1 = arith.constant 0 : i32
    return %c0_i32, %c0_i32_0 : i32, i32
  }
  func.func @transform_2(%arg0: i32, %arg1: i32) -> (i32, i32) {
    %c0_i32 = arith.constant 0 : i32
    %c0_i32_0 = arith.constant 0 : i32
    %c0_i32_1 = arith.constant 0 : i32
    return %c0_i32, %c0_i32_0 : i32, i32
  }
  func.func @transform_3(%arg0: i32, %arg1: i32) -> (i32, i32, i32, i32) {
    %c0_i32 = arith.constant 0 : i32
    %0 = arith.addi %arg1, %c0_i32 : i32
    %c0_i32_0 = arith.constant 0 : i32
    %c0_i32_1 = arith.constant 0 : i32
    %c0_i32_2 = arith.constant 0 : i32
    return %arg0, %0, %c0_i32_0, %c0_i32_1 : i32, i32, i32, i32
  }
  func.func @transform_4(%arg0: i32, %arg1: i32) -> (i32, i32, i32, i32) {
    %c1_i32 = arith.constant 1 : i32
    %0 = arith.addi %arg1, %c1_i32 : i32
    %c0_i32 = arith.constant 0 : i32
    %c0_i32_0 = arith.constant 0 : i32
    %c0_i32_1 = arith.constant 0 : i32
    return %arg0, %0, %c0_i32, %c0_i32_0 : i32, i32, i32, i32
  }
  func.func @transform_5(%arg0: i32, %arg1: i32) -> (i32, i32, i32, i32) {
    %c2_i32 = arith.constant 2 : i32
    %0 = arith.addi %arg1, %c2_i32 : i32
    %c0_i32 = arith.constant 0 : i32
    %c0_i32_0 = arith.constant 0 : i32
    %c0_i32_1 = arith.constant 0 : i32
    return %arg0, %0, %c0_i32, %c0_i32_0 : i32, i32, i32, i32
  }
  func.func @transform_6(%arg0: i32, %arg1: i32) -> (i32, i32, i32, i32) {
    %c0_i32 = arith.constant 0 : i32
    %c0_i32_0 = arith.constant 0 : i32
    %c0_i32_1 = arith.constant 0 : i32
    return %arg0, %arg1, %c0_i32, %c0_i32_0 : i32, i32, i32, i32
  }
}

module attributes {stable_mosaic.version = 11 : i64} {
  func.func @kernel(%arg0: i32, %arg1: i32, %arg2: memref<27x4x4xbf16, #tpu.memory_space<vmem>>, %arg3: memref<4x1xf32, #tpu.memory_space<vmem>>, %arg4: memref<9x16xbf16, #tpu.memory_space<vmem>>, %arg5: memref<1x1x4x16xbf16, #tpu.memory_space<vmem>>, %arg6: memref<1x1x4x16xbf16, #tpu.memory_space<vmem>>, %arg7: memref<1x1x4x16xbf16, #tpu.memory_space<vmem>>, %arg8: memref<1x1x4x16xbf16, #tpu.memory_space<vmem>>) attributes {dimension_semantics = [#tpu.dimension_semantics<parallel>, #tpu.dimension_semantics<parallel>], iteration_bounds = array<i64: 2, 4>, scalar_prefetch = 0 : i64, scratch_operands = 0 : i64, tpu.core_type = #tpu.core_type<tc>, window_params = [{pipeline_mode = #tpu.pipeline_mode<synchronous>, transform_indices = @transform_0, window_bounds = array<i64: 27, 4, 4>}, {pipeline_mode = #tpu.pipeline_mode<synchronous>, transform_indices = @transform_1, window_bounds = array<i64: 4, 1>}, {pipeline_mode = #tpu.pipeline_mode<synchronous>, transform_indices = @transform_2, window_bounds = array<i64: 9, 16>}, {transform_indices = @transform_3, window_bounds = array<i64: 1, 1, 4, 16>}, {transform_indices = @transform_4, window_bounds = array<i64: 1, 1, 4, 16>}, {transform_indices = @transform_5, window_bounds = array<i64: 1, 1, 4, 16>}, {transform_indices = @transform_6, window_bounds = array<i64: 1, 1, 4, 16>}]} {
    %cst = arith.constant 0.000000e+00 : f32
    %0 = vector.broadcast %cst : f32 to vector<4x16xf32>
    %c0 = arith.constant 0 : index
    %c0_0 = arith.constant 0 : index
    %c0_1 = arith.constant 0 : index
    %c0_2 = arith.constant 0 : index
    %1 = vector.load %arg5[%c0, %c0_0, %c0_1, %c0_2] : memref<1x1x4x16xbf16, #tpu.memory_space<vmem>>, vector<1x1x4x16xbf16>
    %2 = vector.shape_cast %1 : vector<1x1x4x16xbf16> to vector<4x16xbf16>
    %3 = vector.extract_strided_slice %2 {offsets = [0, 11], sizes = [4, 5], strides = [1, 1]} : vector<4x16xbf16> to vector<4x5xbf16>
    %4 = vector.extract_strided_slice %2 {offsets = [0, 0], sizes = [4, 11], strides = [1, 1]} : vector<4x16xbf16> to vector<4x11xbf16>
    %5 = tpu.concatenate %3, %4 in 1 : vector<4x5xbf16>, vector<4x11xbf16> -> vector<4x16xbf16>
    %c0_3 = arith.constant 0 : index
    %c0_4 = arith.constant 0 : index
    %6 = vector.load %arg4[%c0_3, %c0_4] : memref<9x16xbf16, #tpu.memory_space<vmem>>, vector<1x16xbf16>
    %7 = vector.broadcast %6 : vector<1x16xbf16> to vector<4x16xbf16>
    %8 = arith.mulf %5, %7 : vector<4x16xbf16>
    %c0_5 = arith.constant 0 : index
    %c0_6 = arith.constant 0 : index
    %c0_7 = arith.constant 0 : index
    %9 = vector.load %arg2[%c0_5, %c0_6, %c0_7] : memref<27x4x4xbf16, #tpu.memory_space<vmem>>, vector<1x4x4xbf16>
    %10 = vector.shape_cast %9 : vector<1x4x4xbf16> to vector<4x4xbf16>
    %cst_8 = arith.constant dense<0.000000e+00> : vector<4x16xf32>
    %11 = tpu.matmul %10, %8, %cst_8 {dimension_numbers = #tpu.dot_dimension_numbers<[1], [0], [0], [1], [0, 0, 1, 1], [], []>} : vector<4x4xbf16>, vector<4x16xbf16>, vector<4x16xf32> -> vector<4x16xf32>
    %12 = arith.addf %0, %11 : vector<4x16xf32>
    %13 = vector.extract_strided_slice %2 {offsets = [0, 12], sizes = [4, 4], strides = [1, 1]} : vector<4x16xbf16> to vector<4x4xbf16>
    %14 = vector.extract_strided_slice %2 {offsets = [0, 0], sizes = [4, 12], strides = [1, 1]} : vector<4x16xbf16> to vector<4x12xbf16>
    %15 = tpu.concatenate %13, %14 in 1 : vector<4x4xbf16>, vector<4x12xbf16> -> vector<4x16xbf16>
    %c1 = arith.constant 1 : index
    %c0_9 = arith.constant 0 : index
    %16 = vector.load %arg4[%c1, %c0_9] : memref<9x16xbf16, #tpu.memory_space<vmem>>, vector<1x16xbf16>
    %17 = vector.broadcast %16 : vector<1x16xbf16> to vector<4x16xbf16>
    %18 = arith.mulf %15, %17 : vector<4x16xbf16>
    %c1_10 = arith.constant 1 : index
    %c0_11 = arith.constant 0 : index
    %c0_12 = arith.constant 0 : index
    %19 = vector.load %arg2[%c1_10, %c0_11, %c0_12] : memref<27x4x4xbf16, #tpu.memory_space<vmem>>, vector<1x4x4xbf16>
    %20 = vector.shape_cast %19 : vector<1x4x4xbf16> to vector<4x4xbf16>
    %cst_13 = arith.constant dense<0.000000e+00> : vector<4x16xf32>
    %21 = tpu.matmul %20, %18, %cst_13 {dimension_numbers = #tpu.dot_dimension_numbers<[1], [0], [0], [1], [0, 0, 1, 1], [], []>} : vector<4x4xbf16>, vector<4x16xbf16>, vector<4x16xf32> -> vector<4x16xf32>
    %22 = arith.addf %12, %21 : vector<4x16xf32>
    %23 = vector.extract_strided_slice %2 {offsets = [0, 13], sizes = [4, 3], strides = [1, 1]} : vector<4x16xbf16> to vector<4x3xbf16>
    %24 = vector.extract_strided_slice %2 {offsets = [0, 0], sizes = [4, 13], strides = [1, 1]} : vector<4x16xbf16> to vector<4x13xbf16>
    %25 = tpu.concatenate %23, %24 in 1 : vector<4x3xbf16>, vector<4x13xbf16> -> vector<4x16xbf16>
    %c2 = arith.constant 2 : index
    %c0_14 = arith.constant 0 : index
    %26 = vector.load %arg4[%c2, %c0_14] : memref<9x16xbf16, #tpu.memory_space<vmem>>, vector<1x16xbf16>
    %27 = vector.broadcast %26 : vector<1x16xbf16> to vector<4x16xbf16>
    %28 = arith.mulf %25, %27 : vector<4x16xbf16>
    %c2_15 = arith.constant 2 : index
    %c0_16 = arith.constant 0 : index
    %c0_17 = arith.constant 0 : index
    %29 = vector.load %arg2[%c2_15, %c0_16, %c0_17] : memref<27x4x4xbf16, #tpu.memory_space<vmem>>, vector<1x4x4xbf16>
    %30 = vector.shape_cast %29 : vector<1x4x4xbf16> to vector<4x4xbf16>
    %cst_18 = arith.constant dense<0.000000e+00> : vector<4x16xf32>
    %31 = tpu.matmul %30, %28, %cst_18 {dimension_numbers = #tpu.dot_dimension_numbers<[1], [0], [0], [1], [0, 0, 1, 1], [], []>} : vector<4x4xbf16>, vector<4x16xbf16>, vector<4x16xf32> -> vector<4x16xf32>
    %32 = arith.addf %22, %31 : vector<4x16xf32>
    %33 = vector.extract_strided_slice %2 {offsets = [0, 15], sizes = [4, 1], strides = [1, 1]} : vector<4x16xbf16> to vector<4x1xbf16>
    %34 = vector.extract_strided_slice %2 {offsets = [0, 0], sizes = [4, 15], strides = [1, 1]} : vector<4x16xbf16> to vector<4x15xbf16>
    %35 = tpu.concatenate %33, %34 in 1 : vector<4x1xbf16>, vector<4x15xbf16> -> vector<4x16xbf16>
    %c3 = arith.constant 3 : index
    %c0_19 = arith.constant 0 : index
    %36 = vector.load %arg4[%c3, %c0_19] : memref<9x16xbf16, #tpu.memory_space<vmem>>, vector<1x16xbf16>
    %37 = vector.broadcast %36 : vector<1x16xbf16> to vector<4x16xbf16>
    %38 = arith.mulf %35, %37 : vector<4x16xbf16>
    %c3_20 = arith.constant 3 : index
    %c0_21 = arith.constant 0 : index
    %c0_22 = arith.constant 0 : index
    %39 = vector.load %arg2[%c3_20, %c0_21, %c0_22] : memref<27x4x4xbf16, #tpu.memory_space<vmem>>, vector<1x4x4xbf16>
    %40 = vector.shape_cast %39 : vector<1x4x4xbf16> to vector<4x4xbf16>
    %cst_23 = arith.constant dense<0.000000e+00> : vector<4x16xf32>
    %41 = tpu.matmul %40, %38, %cst_23 {dimension_numbers = #tpu.dot_dimension_numbers<[1], [0], [0], [1], [0, 0, 1, 1], [], []>} : vector<4x4xbf16>, vector<4x16xbf16>, vector<4x16xf32> -> vector<4x16xf32>
    %42 = arith.addf %32, %41 : vector<4x16xf32>
    %c4 = arith.constant 4 : index
    %c0_24 = arith.constant 0 : index
    %c0_25 = arith.constant 0 : index
    %43 = vector.load %arg2[%c4, %c0_24, %c0_25] : memref<27x4x4xbf16, #tpu.memory_space<vmem>>, vector<1x4x4xbf16>
    %44 = vector.shape_cast %43 : vector<1x4x4xbf16> to vector<4x4xbf16>
    %cst_26 = arith.constant dense<0.000000e+00> : vector<4x16xf32>
    %45 = tpu.matmul %44, %2, %cst_26 {dimension_numbers = #tpu.dot_dimension_numbers<[1], [0], [0], [1], [0, 0, 1, 1], [], []>} : vector<4x4xbf16>, vector<4x16xbf16>, vector<4x16xf32> -> vector<4x16xf32>
    %46 = arith.addf %42, %45 : vector<4x16xf32>
    %47 = vector.extract_strided_slice %2 {offsets = [0, 1], sizes = [4, 15], strides = [1, 1]} : vector<4x16xbf16> to vector<4x15xbf16>
    %48 = vector.extract_strided_slice %2 {offsets = [0, 0], sizes = [4, 1], strides = [1, 1]} : vector<4x16xbf16> to vector<4x1xbf16>
    %49 = tpu.concatenate %47, %48 in 1 : vector<4x15xbf16>, vector<4x1xbf16> -> vector<4x16xbf16>
    %c5 = arith.constant 5 : index
    %c0_27 = arith.constant 0 : index
    %50 = vector.load %arg4[%c5, %c0_27] : memref<9x16xbf16, #tpu.memory_space<vmem>>, vector<1x16xbf16>
    %51 = vector.broadcast %50 : vector<1x16xbf16> to vector<4x16xbf16>
    %52 = arith.mulf %49, %51 : vector<4x16xbf16>
    %c5_28 = arith.constant 5 : index
    %c0_29 = arith.constant 0 : index
    %c0_30 = arith.constant 0 : index
    %53 = vector.load %arg2[%c5_28, %c0_29, %c0_30] : memref<27x4x4xbf16, #tpu.memory_space<vmem>>, vector<1x4x4xbf16>
    %54 = vector.shape_cast %53 : vector<1x4x4xbf16> to vector<4x4xbf16>
    %cst_31 = arith.constant dense<0.000000e+00> : vector<4x16xf32>
    %55 = tpu.matmul %54, %52, %cst_31 {dimension_numbers = #tpu.dot_dimension_numbers<[1], [0], [0], [1], [0, 0, 1, 1], [], []>} : vector<4x4xbf16>, vector<4x16xbf16>, vector<4x16xf32> -> vector<4x16xf32>
    %56 = arith.addf %46, %55 : vector<4x16xf32>
    %57 = vector.extract_strided_slice %2 {offsets = [0, 3], sizes = [4, 13], strides = [1, 1]} : vector<4x16xbf16> to vector<4x13xbf16>
    %58 = vector.extract_strided_slice %2 {offsets = [0, 0], sizes = [4, 3], strides = [1, 1]} : vector<4x16xbf16> to vector<4x3xbf16>
    %59 = tpu.concatenate %57, %58 in 1 : vector<4x13xbf16>, vector<4x3xbf16> -> vector<4x16xbf16>
    %c6 = arith.constant 6 : index
    %c0_32 = arith.constant 0 : index
    %60 = vector.load %arg4[%c6, %c0_32] : memref<9x16xbf16, #tpu.memory_space<vmem>>, vector<1x16xbf16>
    %61 = vector.broadcast %60 : vector<1x16xbf16> to vector<4x16xbf16>
    %62 = arith.mulf %59, %61 : vector<4x16xbf16>
    %c6_33 = arith.constant 6 : index
    %c0_34 = arith.constant 0 : index
    %c0_35 = arith.constant 0 : index
    %63 = vector.load %arg2[%c6_33, %c0_34, %c0_35] : memref<27x4x4xbf16, #tpu.memory_space<vmem>>, vector<1x4x4xbf16>
    %64 = vector.shape_cast %63 : vector<1x4x4xbf16> to vector<4x4xbf16>
    %cst_36 = arith.constant dense<0.000000e+00> : vector<4x16xf32>
    %65 = tpu.matmul %64, %62, %cst_36 {dimension_numbers = #tpu.dot_dimension_numbers<[1], [0], [0], [1], [0, 0, 1, 1], [], []>} : vector<4x4xbf16>, vector<4x16xbf16>, vector<4x16xf32> -> vector<4x16xf32>
    %66 = arith.addf %56, %65 : vector<4x16xf32>
    %67 = vector.extract_strided_slice %2 {offsets = [0, 4], sizes = [4, 12], strides = [1, 1]} : vector<4x16xbf16> to vector<4x12xbf16>
    %68 = vector.extract_strided_slice %2 {offsets = [0, 0], sizes = [4, 4], strides = [1, 1]} : vector<4x16xbf16> to vector<4x4xbf16>
    %69 = tpu.concatenate %67, %68 in 1 : vector<4x12xbf16>, vector<4x4xbf16> -> vector<4x16xbf16>
    %c7 = arith.constant 7 : index
    %c0_37 = arith.constant 0 : index
    %70 = vector.load %arg4[%c7, %c0_37] : memref<9x16xbf16, #tpu.memory_space<vmem>>, vector<1x16xbf16>
    %71 = vector.broadcast %70 : vector<1x16xbf16> to vector<4x16xbf16>
    %72 = arith.mulf %69, %71 : vector<4x16xbf16>
    %c7_38 = arith.constant 7 : index
    %c0_39 = arith.constant 0 : index
    %c0_40 = arith.constant 0 : index
    %73 = vector.load %arg2[%c7_38, %c0_39, %c0_40] : memref<27x4x4xbf16, #tpu.memory_space<vmem>>, vector<1x4x4xbf16>
    %74 = vector.shape_cast %73 : vector<1x4x4xbf16> to vector<4x4xbf16>
    %cst_41 = arith.constant dense<0.000000e+00> : vector<4x16xf32>
    %75 = tpu.matmul %74, %72, %cst_41 {dimension_numbers = #tpu.dot_dimension_numbers<[1], [0], [0], [1], [0, 0, 1, 1], [], []>} : vector<4x4xbf16>, vector<4x16xbf16>, vector<4x16xf32> -> vector<4x16xf32>
    %76 = arith.addf %66, %75 : vector<4x16xf32>
    %77 = vector.extract_strided_slice %2 {offsets = [0, 5], sizes = [4, 11], strides = [1, 1]} : vector<4x16xbf16> to vector<4x11xbf16>
    %78 = vector.extract_strided_slice %2 {offsets = [0, 0], sizes = [4, 5], strides = [1, 1]} : vector<4x16xbf16> to vector<4x5xbf16>
    %79 = tpu.concatenate %77, %78 in 1 : vector<4x11xbf16>, vector<4x5xbf16> -> vector<4x16xbf16>
    %c8 = arith.constant 8 : index
    %c0_42 = arith.constant 0 : index
    %80 = vector.load %arg4[%c8, %c0_42] : memref<9x16xbf16, #tpu.memory_space<vmem>>, vector<1x16xbf16>
    %81 = vector.broadcast %80 : vector<1x16xbf16> to vector<4x16xbf16>
    %82 = arith.mulf %79, %81 : vector<4x16xbf16>
    %c8_43 = arith.constant 8 : index
    %c0_44 = arith.constant 0 : index
    %c0_45 = arith.constant 0 : index
    %83 = vector.load %arg2[%c8_43, %c0_44, %c0_45] : memref<27x4x4xbf16, #tpu.memory_space<vmem>>, vector<1x4x4xbf16>
    %84 = vector.shape_cast %83 : vector<1x4x4xbf16> to vector<4x4xbf16>
    %cst_46 = arith.constant dense<0.000000e+00> : vector<4x16xf32>
    %85 = tpu.matmul %84, %82, %cst_46 {dimension_numbers = #tpu.dot_dimension_numbers<[1], [0], [0], [1], [0, 0, 1, 1], [], []>} : vector<4x4xbf16>, vector<4x16xbf16>, vector<4x16xf32> -> vector<4x16xf32>
    %86 = arith.addf %76, %85 : vector<4x16xf32>
    %c0_47 = arith.constant 0 : index
    %c0_48 = arith.constant 0 : index
    %c0_49 = arith.constant 0 : index
    %c0_50 = arith.constant 0 : index
    %87 = vector.load %arg6[%c0_47, %c0_48, %c0_49, %c0_50] : memref<1x1x4x16xbf16, #tpu.memory_space<vmem>>, vector<1x1x4x16xbf16>
    %88 = vector.shape_cast %87 : vector<1x1x4x16xbf16> to vector<4x16xbf16>
    %89 = vector.extract_strided_slice %88 {offsets = [0, 11], sizes = [4, 5], strides = [1, 1]} : vector<4x16xbf16> to vector<4x5xbf16>
    %90 = vector.extract_strided_slice %88 {offsets = [0, 0], sizes = [4, 11], strides = [1, 1]} : vector<4x16xbf16> to vector<4x11xbf16>
    %91 = tpu.concatenate %89, %90 in 1 : vector<4x5xbf16>, vector<4x11xbf16> -> vector<4x16xbf16>
    %c0_51 = arith.constant 0 : index
    %c0_52 = arith.constant 0 : index
    %92 = vector.load %arg4[%c0_51, %c0_52] : memref<9x16xbf16, #tpu.memory_space<vmem>>, vector<1x16xbf16>
    %93 = vector.broadcast %92 : vector<1x16xbf16> to vector<4x16xbf16>
    %94 = arith.mulf %91, %93 : vector<4x16xbf16>
    %c9 = arith.constant 9 : index
    %c0_53 = arith.constant 0 : index
    %c0_54 = arith.constant 0 : index
    %95 = vector.load %arg2[%c9, %c0_53, %c0_54] : memref<27x4x4xbf16, #tpu.memory_space<vmem>>, vector<1x4x4xbf16>
    %96 = vector.shape_cast %95 : vector<1x4x4xbf16> to vector<4x4xbf16>
    %cst_55 = arith.constant dense<0.000000e+00> : vector<4x16xf32>
    %97 = tpu.matmul %96, %94, %cst_55 {dimension_numbers = #tpu.dot_dimension_numbers<[1], [0], [0], [1], [0, 0, 1, 1], [], []>} : vector<4x4xbf16>, vector<4x16xbf16>, vector<4x16xf32> -> vector<4x16xf32>
    %98 = arith.addf %86, %97 : vector<4x16xf32>
    %99 = vector.extract_strided_slice %88 {offsets = [0, 12], sizes = [4, 4], strides = [1, 1]} : vector<4x16xbf16> to vector<4x4xbf16>
    %100 = vector.extract_strided_slice %88 {offsets = [0, 0], sizes = [4, 12], strides = [1, 1]} : vector<4x16xbf16> to vector<4x12xbf16>
    %101 = tpu.concatenate %99, %100 in 1 : vector<4x4xbf16>, vector<4x12xbf16> -> vector<4x16xbf16>
    %c1_56 = arith.constant 1 : index
    %c0_57 = arith.constant 0 : index
    %102 = vector.load %arg4[%c1_56, %c0_57] : memref<9x16xbf16, #tpu.memory_space<vmem>>, vector<1x16xbf16>
    %103 = vector.broadcast %102 : vector<1x16xbf16> to vector<4x16xbf16>
    %104 = arith.mulf %101, %103 : vector<4x16xbf16>
    %c10 = arith.constant 10 : index
    %c0_58 = arith.constant 0 : index
    %c0_59 = arith.constant 0 : index
    %105 = vector.load %arg2[%c10, %c0_58, %c0_59] : memref<27x4x4xbf16, #tpu.memory_space<vmem>>, vector<1x4x4xbf16>
    %106 = vector.shape_cast %105 : vector<1x4x4xbf16> to vector<4x4xbf16>
    %cst_60 = arith.constant dense<0.000000e+00> : vector<4x16xf32>
    %107 = tpu.matmul %106, %104, %cst_60 {dimension_numbers = #tpu.dot_dimension_numbers<[1], [0], [0], [1], [0, 0, 1, 1], [], []>} : vector<4x4xbf16>, vector<4x16xbf16>, vector<4x16xf32> -> vector<4x16xf32>
    %108 = arith.addf %98, %107 : vector<4x16xf32>
    %109 = vector.extract_strided_slice %88 {offsets = [0, 13], sizes = [4, 3], strides = [1, 1]} : vector<4x16xbf16> to vector<4x3xbf16>
    %110 = vector.extract_strided_slice %88 {offsets = [0, 0], sizes = [4, 13], strides = [1, 1]} : vector<4x16xbf16> to vector<4x13xbf16>
    %111 = tpu.concatenate %109, %110 in 1 : vector<4x3xbf16>, vector<4x13xbf16> -> vector<4x16xbf16>
    %c2_61 = arith.constant 2 : index
    %c0_62 = arith.constant 0 : index
    %112 = vector.load %arg4[%c2_61, %c0_62] : memref<9x16xbf16, #tpu.memory_space<vmem>>, vector<1x16xbf16>
    %113 = vector.broadcast %112 : vector<1x16xbf16> to vector<4x16xbf16>
    %114 = arith.mulf %111, %113 : vector<4x16xbf16>
    %c11 = arith.constant 11 : index
    %c0_63 = arith.constant 0 : index
    %c0_64 = arith.constant 0 : index
    %115 = vector.load %arg2[%c11, %c0_63, %c0_64] : memref<27x4x4xbf16, #tpu.memory_space<vmem>>, vector<1x4x4xbf16>
    %116 = vector.shape_cast %115 : vector<1x4x4xbf16> to vector<4x4xbf16>
    %cst_65 = arith.constant dense<0.000000e+00> : vector<4x16xf32>
    %117 = tpu.matmul %116, %114, %cst_65 {dimension_numbers = #tpu.dot_dimension_numbers<[1], [0], [0], [1], [0, 0, 1, 1], [], []>} : vector<4x4xbf16>, vector<4x16xbf16>, vector<4x16xf32> -> vector<4x16xf32>
    %118 = arith.addf %108, %117 : vector<4x16xf32>
    %119 = vector.extract_strided_slice %88 {offsets = [0, 15], sizes = [4, 1], strides = [1, 1]} : vector<4x16xbf16> to vector<4x1xbf16>
    %120 = vector.extract_strided_slice %88 {offsets = [0, 0], sizes = [4, 15], strides = [1, 1]} : vector<4x16xbf16> to vector<4x15xbf16>
    %121 = tpu.concatenate %119, %120 in 1 : vector<4x1xbf16>, vector<4x15xbf16> -> vector<4x16xbf16>
    %c3_66 = arith.constant 3 : index
    %c0_67 = arith.constant 0 : index
    %122 = vector.load %arg4[%c3_66, %c0_67] : memref<9x16xbf16, #tpu.memory_space<vmem>>, vector<1x16xbf16>
    %123 = vector.broadcast %122 : vector<1x16xbf16> to vector<4x16xbf16>
    %124 = arith.mulf %121, %123 : vector<4x16xbf16>
    %c12 = arith.constant 12 : index
    %c0_68 = arith.constant 0 : index
    %c0_69 = arith.constant 0 : index
    %125 = vector.load %arg2[%c12, %c0_68, %c0_69] : memref<27x4x4xbf16, #tpu.memory_space<vmem>>, vector<1x4x4xbf16>
    %126 = vector.shape_cast %125 : vector<1x4x4xbf16> to vector<4x4xbf16>
    %cst_70 = arith.constant dense<0.000000e+00> : vector<4x16xf32>
    %127 = tpu.matmul %126, %124, %cst_70 {dimension_numbers = #tpu.dot_dimension_numbers<[1], [0], [0], [1], [0, 0, 1, 1], [], []>} : vector<4x4xbf16>, vector<4x16xbf16>, vector<4x16xf32> -> vector<4x16xf32>
    %128 = arith.addf %118, %127 : vector<4x16xf32>
    %c13 = arith.constant 13 : index
    %c0_71 = arith.constant 0 : index
    %c0_72 = arith.constant 0 : index
    %129 = vector.load %arg2[%c13, %c0_71, %c0_72] : memref<27x4x4xbf16, #tpu.memory_space<vmem>>, vector<1x4x4xbf16>
    %130 = vector.shape_cast %129 : vector<1x4x4xbf16> to vector<4x4xbf16>
    %cst_73 = arith.constant dense<0.000000e+00> : vector<4x16xf32>
    %131 = tpu.matmul %130, %88, %cst_73 {dimension_numbers = #tpu.dot_dimension_numbers<[1], [0], [0], [1], [0, 0, 1, 1], [], []>} : vector<4x4xbf16>, vector<4x16xbf16>, vector<4x16xf32> -> vector<4x16xf32>
    %132 = arith.addf %128, %131 : vector<4x16xf32>
    %133 = vector.extract_strided_slice %88 {offsets = [0, 1], sizes = [4, 15], strides = [1, 1]} : vector<4x16xbf16> to vector<4x15xbf16>
    %134 = vector.extract_strided_slice %88 {offsets = [0, 0], sizes = [4, 1], strides = [1, 1]} : vector<4x16xbf16> to vector<4x1xbf16>
    %135 = tpu.concatenate %133, %134 in 1 : vector<4x15xbf16>, vector<4x1xbf16> -> vector<4x16xbf16>
    %c5_74 = arith.constant 5 : index
    %c0_75 = arith.constant 0 : index
    %136 = vector.load %arg4[%c5_74, %c0_75] : memref<9x16xbf16, #tpu.memory_space<vmem>>, vector<1x16xbf16>
    %137 = vector.broadcast %136 : vector<1x16xbf16> to vector<4x16xbf16>
    %138 = arith.mulf %135, %137 : vector<4x16xbf16>
    %c14 = arith.constant 14 : index
    %c0_76 = arith.constant 0 : index
    %c0_77 = arith.constant 0 : index
    %139 = vector.load %arg2[%c14, %c0_76, %c0_77] : memref<27x4x4xbf16, #tpu.memory_space<vmem>>, vector<1x4x4xbf16>
    %140 = vector.shape_cast %139 : vector<1x4x4xbf16> to vector<4x4xbf16>
    %cst_78 = arith.constant dense<0.000000e+00> : vector<4x16xf32>
    %141 = tpu.matmul %140, %138, %cst_78 {dimension_numbers = #tpu.dot_dimension_numbers<[1], [0], [0], [1], [0, 0, 1, 1], [], []>} : vector<4x4xbf16>, vector<4x16xbf16>, vector<4x16xf32> -> vector<4x16xf32>
    %142 = arith.addf %132, %141 : vector<4x16xf32>
    %143 = vector.extract_strided_slice %88 {offsets = [0, 3], sizes = [4, 13], strides = [1, 1]} : vector<4x16xbf16> to vector<4x13xbf16>
    %144 = vector.extract_strided_slice %88 {offsets = [0, 0], sizes = [4, 3], strides = [1, 1]} : vector<4x16xbf16> to vector<4x3xbf16>
    %145 = tpu.concatenate %143, %144 in 1 : vector<4x13xbf16>, vector<4x3xbf16> -> vector<4x16xbf16>
    %c6_79 = arith.constant 6 : index
    %c0_80 = arith.constant 0 : index
    %146 = vector.load %arg4[%c6_79, %c0_80] : memref<9x16xbf16, #tpu.memory_space<vmem>>, vector<1x16xbf16>
    %147 = vector.broadcast %146 : vector<1x16xbf16> to vector<4x16xbf16>
    %148 = arith.mulf %145, %147 : vector<4x16xbf16>
    %c15 = arith.constant 15 : index
    %c0_81 = arith.constant 0 : index
    %c0_82 = arith.constant 0 : index
    %149 = vector.load %arg2[%c15, %c0_81, %c0_82] : memref<27x4x4xbf16, #tpu.memory_space<vmem>>, vector<1x4x4xbf16>
    %150 = vector.shape_cast %149 : vector<1x4x4xbf16> to vector<4x4xbf16>
    %cst_83 = arith.constant dense<0.000000e+00> : vector<4x16xf32>
    %151 = tpu.matmul %150, %148, %cst_83 {dimension_numbers = #tpu.dot_dimension_numbers<[1], [0], [0], [1], [0, 0, 1, 1], [], []>} : vector<4x4xbf16>, vector<4x16xbf16>, vector<4x16xf32> -> vector<4x16xf32>
    %152 = arith.addf %142, %151 : vector<4x16xf32>
    %153 = vector.extract_strided_slice %88 {offsets = [0, 4], sizes = [4, 12], strides = [1, 1]} : vector<4x16xbf16> to vector<4x12xbf16>
    %154 = vector.extract_strided_slice %88 {offsets = [0, 0], sizes = [4, 4], strides = [1, 1]} : vector<4x16xbf16> to vector<4x4xbf16>
    %155 = tpu.concatenate %153, %154 in 1 : vector<4x12xbf16>, vector<4x4xbf16> -> vector<4x16xbf16>
    %c7_84 = arith.constant 7 : index
    %c0_85 = arith.constant 0 : index
    %156 = vector.load %arg4[%c7_84, %c0_85] : memref<9x16xbf16, #tpu.memory_space<vmem>>, vector<1x16xbf16>
    %157 = vector.broadcast %156 : vector<1x16xbf16> to vector<4x16xbf16>
    %158 = arith.mulf %155, %157 : vector<4x16xbf16>
    %c16 = arith.constant 16 : index
    %c0_86 = arith.constant 0 : index
    %c0_87 = arith.constant 0 : index
    %159 = vector.load %arg2[%c16, %c0_86, %c0_87] : memref<27x4x4xbf16, #tpu.memory_space<vmem>>, vector<1x4x4xbf16>
    %160 = vector.shape_cast %159 : vector<1x4x4xbf16> to vector<4x4xbf16>
    %cst_88 = arith.constant dense<0.000000e+00> : vector<4x16xf32>
    %161 = tpu.matmul %160, %158, %cst_88 {dimension_numbers = #tpu.dot_dimension_numbers<[1], [0], [0], [1], [0, 0, 1, 1], [], []>} : vector<4x4xbf16>, vector<4x16xbf16>, vector<4x16xf32> -> vector<4x16xf32>
    %162 = arith.addf %152, %161 : vector<4x16xf32>
    %163 = vector.extract_strided_slice %88 {offsets = [0, 5], sizes = [4, 11], strides = [1, 1]} : vector<4x16xbf16> to vector<4x11xbf16>
    %164 = vector.extract_strided_slice %88 {offsets = [0, 0], sizes = [4, 5], strides = [1, 1]} : vector<4x16xbf16> to vector<4x5xbf16>
    %165 = tpu.concatenate %163, %164 in 1 : vector<4x11xbf16>, vector<4x5xbf16> -> vector<4x16xbf16>
    %c8_89 = arith.constant 8 : index
    %c0_90 = arith.constant 0 : index
    %166 = vector.load %arg4[%c8_89, %c0_90] : memref<9x16xbf16, #tpu.memory_space<vmem>>, vector<1x16xbf16>
    %167 = vector.broadcast %166 : vector<1x16xbf16> to vector<4x16xbf16>
    %168 = arith.mulf %165, %167 : vector<4x16xbf16>
    %c17 = arith.constant 17 : index
    %c0_91 = arith.constant 0 : index
    %c0_92 = arith.constant 0 : index
    %169 = vector.load %arg2[%c17, %c0_91, %c0_92] : memref<27x4x4xbf16, #tpu.memory_space<vmem>>, vector<1x4x4xbf16>
    %170 = vector.shape_cast %169 : vector<1x4x4xbf16> to vector<4x4xbf16>
    %cst_93 = arith.constant dense<0.000000e+00> : vector<4x16xf32>
    %171 = tpu.matmul %170, %168, %cst_93 {dimension_numbers = #tpu.dot_dimension_numbers<[1], [0], [0], [1], [0, 0, 1, 1], [], []>} : vector<4x4xbf16>, vector<4x16xbf16>, vector<4x16xf32> -> vector<4x16xf32>
    %172 = arith.addf %162, %171 : vector<4x16xf32>
    %c0_94 = arith.constant 0 : index
    %c0_95 = arith.constant 0 : index
    %c0_96 = arith.constant 0 : index
    %c0_97 = arith.constant 0 : index
    %173 = vector.load %arg7[%c0_94, %c0_95, %c0_96, %c0_97] : memref<1x1x4x16xbf16, #tpu.memory_space<vmem>>, vector<1x1x4x16xbf16>
    %174 = vector.shape_cast %173 : vector<1x1x4x16xbf16> to vector<4x16xbf16>
    %175 = vector.extract_strided_slice %174 {offsets = [0, 11], sizes = [4, 5], strides = [1, 1]} : vector<4x16xbf16> to vector<4x5xbf16>
    %176 = vector.extract_strided_slice %174 {offsets = [0, 0], sizes = [4, 11], strides = [1, 1]} : vector<4x16xbf16> to vector<4x11xbf16>
    %177 = tpu.concatenate %175, %176 in 1 : vector<4x5xbf16>, vector<4x11xbf16> -> vector<4x16xbf16>
    %c0_98 = arith.constant 0 : index
    %c0_99 = arith.constant 0 : index
    %178 = vector.load %arg4[%c0_98, %c0_99] : memref<9x16xbf16, #tpu.memory_space<vmem>>, vector<1x16xbf16>
    %179 = vector.broadcast %178 : vector<1x16xbf16> to vector<4x16xbf16>
    %180 = arith.mulf %177, %179 : vector<4x16xbf16>
    %c18 = arith.constant 18 : index
    %c0_100 = arith.constant 0 : index
    %c0_101 = arith.constant 0 : index
    %181 = vector.load %arg2[%c18, %c0_100, %c0_101] : memref<27x4x4xbf16, #tpu.memory_space<vmem>>, vector<1x4x4xbf16>
    %182 = vector.shape_cast %181 : vector<1x4x4xbf16> to vector<4x4xbf16>
    %cst_102 = arith.constant dense<0.000000e+00> : vector<4x16xf32>
    %183 = tpu.matmul %182, %180, %cst_102 {dimension_numbers = #tpu.dot_dimension_numbers<[1], [0], [0], [1], [0, 0, 1, 1], [], []>} : vector<4x4xbf16>, vector<4x16xbf16>, vector<4x16xf32> -> vector<4x16xf32>
    %184 = arith.addf %172, %183 : vector<4x16xf32>
    %185 = vector.extract_strided_slice %174 {offsets = [0, 12], sizes = [4, 4], strides = [1, 1]} : vector<4x16xbf16> to vector<4x4xbf16>
    %186 = vector.extract_strided_slice %174 {offsets = [0, 0], sizes = [4, 12], strides = [1, 1]} : vector<4x16xbf16> to vector<4x12xbf16>
    %187 = tpu.concatenate %185, %186 in 1 : vector<4x4xbf16>, vector<4x12xbf16> -> vector<4x16xbf16>
    %c1_103 = arith.constant 1 : index
    %c0_104 = arith.constant 0 : index
    %188 = vector.load %arg4[%c1_103, %c0_104] : memref<9x16xbf16, #tpu.memory_space<vmem>>, vector<1x16xbf16>
    %189 = vector.broadcast %188 : vector<1x16xbf16> to vector<4x16xbf16>
    %190 = arith.mulf %187, %189 : vector<4x16xbf16>
    %c19 = arith.constant 19 : index
    %c0_105 = arith.constant 0 : index
    %c0_106 = arith.constant 0 : index
    %191 = vector.load %arg2[%c19, %c0_105, %c0_106] : memref<27x4x4xbf16, #tpu.memory_space<vmem>>, vector<1x4x4xbf16>
    %192 = vector.shape_cast %191 : vector<1x4x4xbf16> to vector<4x4xbf16>
    %cst_107 = arith.constant dense<0.000000e+00> : vector<4x16xf32>
    %193 = tpu.matmul %192, %190, %cst_107 {dimension_numbers = #tpu.dot_dimension_numbers<[1], [0], [0], [1], [0, 0, 1, 1], [], []>} : vector<4x4xbf16>, vector<4x16xbf16>, vector<4x16xf32> -> vector<4x16xf32>
    %194 = arith.addf %184, %193 : vector<4x16xf32>
    %195 = vector.extract_strided_slice %174 {offsets = [0, 13], sizes = [4, 3], strides = [1, 1]} : vector<4x16xbf16> to vector<4x3xbf16>
    %196 = vector.extract_strided_slice %174 {offsets = [0, 0], sizes = [4, 13], strides = [1, 1]} : vector<4x16xbf16> to vector<4x13xbf16>
    %197 = tpu.concatenate %195, %196 in 1 : vector<4x3xbf16>, vector<4x13xbf16> -> vector<4x16xbf16>
    %c2_108 = arith.constant 2 : index
    %c0_109 = arith.constant 0 : index
    %198 = vector.load %arg4[%c2_108, %c0_109] : memref<9x16xbf16, #tpu.memory_space<vmem>>, vector<1x16xbf16>
    %199 = vector.broadcast %198 : vector<1x16xbf16> to vector<4x16xbf16>
    %200 = arith.mulf %197, %199 : vector<4x16xbf16>
    %c20 = arith.constant 20 : index
    %c0_110 = arith.constant 0 : index
    %c0_111 = arith.constant 0 : index
    %201 = vector.load %arg2[%c20, %c0_110, %c0_111] : memref<27x4x4xbf16, #tpu.memory_space<vmem>>, vector<1x4x4xbf16>
    %202 = vector.shape_cast %201 : vector<1x4x4xbf16> to vector<4x4xbf16>
    %cst_112 = arith.constant dense<0.000000e+00> : vector<4x16xf32>
    %203 = tpu.matmul %202, %200, %cst_112 {dimension_numbers = #tpu.dot_dimension_numbers<[1], [0], [0], [1], [0, 0, 1, 1], [], []>} : vector<4x4xbf16>, vector<4x16xbf16>, vector<4x16xf32> -> vector<4x16xf32>
    %204 = arith.addf %194, %203 : vector<4x16xf32>
    %205 = vector.extract_strided_slice %174 {offsets = [0, 15], sizes = [4, 1], strides = [1, 1]} : vector<4x16xbf16> to vector<4x1xbf16>
    %206 = vector.extract_strided_slice %174 {offsets = [0, 0], sizes = [4, 15], strides = [1, 1]} : vector<4x16xbf16> to vector<4x15xbf16>
    %207 = tpu.concatenate %205, %206 in 1 : vector<4x1xbf16>, vector<4x15xbf16> -> vector<4x16xbf16>
    %c3_113 = arith.constant 3 : index
    %c0_114 = arith.constant 0 : index
    %208 = vector.load %arg4[%c3_113, %c0_114] : memref<9x16xbf16, #tpu.memory_space<vmem>>, vector<1x16xbf16>
    %209 = vector.broadcast %208 : vector<1x16xbf16> to vector<4x16xbf16>
    %210 = arith.mulf %207, %209 : vector<4x16xbf16>
    %c21 = arith.constant 21 : index
    %c0_115 = arith.constant 0 : index
    %c0_116 = arith.constant 0 : index
    %211 = vector.load %arg2[%c21, %c0_115, %c0_116] : memref<27x4x4xbf16, #tpu.memory_space<vmem>>, vector<1x4x4xbf16>
    %212 = vector.shape_cast %211 : vector<1x4x4xbf16> to vector<4x4xbf16>
    %cst_117 = arith.constant dense<0.000000e+00> : vector<4x16xf32>
    %213 = tpu.matmul %212, %210, %cst_117 {dimension_numbers = #tpu.dot_dimension_numbers<[1], [0], [0], [1], [0, 0, 1, 1], [], []>} : vector<4x4xbf16>, vector<4x16xbf16>, vector<4x16xf32> -> vector<4x16xf32>
    %214 = arith.addf %204, %213 : vector<4x16xf32>
    %c22 = arith.constant 22 : index
    %c0_118 = arith.constant 0 : index
    %c0_119 = arith.constant 0 : index
    %215 = vector.load %arg2[%c22, %c0_118, %c0_119] : memref<27x4x4xbf16, #tpu.memory_space<vmem>>, vector<1x4x4xbf16>
    %216 = vector.shape_cast %215 : vector<1x4x4xbf16> to vector<4x4xbf16>
    %cst_120 = arith.constant dense<0.000000e+00> : vector<4x16xf32>
    %217 = tpu.matmul %216, %174, %cst_120 {dimension_numbers = #tpu.dot_dimension_numbers<[1], [0], [0], [1], [0, 0, 1, 1], [], []>} : vector<4x4xbf16>, vector<4x16xbf16>, vector<4x16xf32> -> vector<4x16xf32>
    %218 = arith.addf %214, %217 : vector<4x16xf32>
    %219 = vector.extract_strided_slice %174 {offsets = [0, 1], sizes = [4, 15], strides = [1, 1]} : vector<4x16xbf16> to vector<4x15xbf16>
    %220 = vector.extract_strided_slice %174 {offsets = [0, 0], sizes = [4, 1], strides = [1, 1]} : vector<4x16xbf16> to vector<4x1xbf16>
    %221 = tpu.concatenate %219, %220 in 1 : vector<4x15xbf16>, vector<4x1xbf16> -> vector<4x16xbf16>
    %c5_121 = arith.constant 5 : index
    %c0_122 = arith.constant 0 : index
    %222 = vector.load %arg4[%c5_121, %c0_122] : memref<9x16xbf16, #tpu.memory_space<vmem>>, vector<1x16xbf16>
    %223 = vector.broadcast %222 : vector<1x16xbf16> to vector<4x16xbf16>
    %224 = arith.mulf %221, %223 : vector<4x16xbf16>
    %c23 = arith.constant 23 : index
    %c0_123 = arith.constant 0 : index
    %c0_124 = arith.constant 0 : index
    %225 = vector.load %arg2[%c23, %c0_123, %c0_124] : memref<27x4x4xbf16, #tpu.memory_space<vmem>>, vector<1x4x4xbf16>
    %226 = vector.shape_cast %225 : vector<1x4x4xbf16> to vector<4x4xbf16>
    %cst_125 = arith.constant dense<0.000000e+00> : vector<4x16xf32>
    %227 = tpu.matmul %226, %224, %cst_125 {dimension_numbers = #tpu.dot_dimension_numbers<[1], [0], [0], [1], [0, 0, 1, 1], [], []>} : vector<4x4xbf16>, vector<4x16xbf16>, vector<4x16xf32> -> vector<4x16xf32>
    %228 = arith.addf %218, %227 : vector<4x16xf32>
    %229 = vector.extract_strided_slice %174 {offsets = [0, 3], sizes = [4, 13], strides = [1, 1]} : vector<4x16xbf16> to vector<4x13xbf16>
    %230 = vector.extract_strided_slice %174 {offsets = [0, 0], sizes = [4, 3], strides = [1, 1]} : vector<4x16xbf16> to vector<4x3xbf16>
    %231 = tpu.concatenate %229, %230 in 1 : vector<4x13xbf16>, vector<4x3xbf16> -> vector<4x16xbf16>
    %c6_126 = arith.constant 6 : index
    %c0_127 = arith.constant 0 : index
    %232 = vector.load %arg4[%c6_126, %c0_127] : memref<9x16xbf16, #tpu.memory_space<vmem>>, vector<1x16xbf16>
    %233 = vector.broadcast %232 : vector<1x16xbf16> to vector<4x16xbf16>
    %234 = arith.mulf %231, %233 : vector<4x16xbf16>
    %c24 = arith.constant 24 : index
    %c0_128 = arith.constant 0 : index
    %c0_129 = arith.constant 0 : index
    %235 = vector.load %arg2[%c24, %c0_128, %c0_129] : memref<27x4x4xbf16, #tpu.memory_space<vmem>>, vector<1x4x4xbf16>
    %236 = vector.shape_cast %235 : vector<1x4x4xbf16> to vector<4x4xbf16>
    %cst_130 = arith.constant dense<0.000000e+00> : vector<4x16xf32>
    %237 = tpu.matmul %236, %234, %cst_130 {dimension_numbers = #tpu.dot_dimension_numbers<[1], [0], [0], [1], [0, 0, 1, 1], [], []>} : vector<4x4xbf16>, vector<4x16xbf16>, vector<4x16xf32> -> vector<4x16xf32>
    %238 = arith.addf %228, %237 : vector<4x16xf32>
    %239 = vector.extract_strided_slice %174 {offsets = [0, 4], sizes = [4, 12], strides = [1, 1]} : vector<4x16xbf16> to vector<4x12xbf16>
    %240 = vector.extract_strided_slice %174 {offsets = [0, 0], sizes = [4, 4], strides = [1, 1]} : vector<4x16xbf16> to vector<4x4xbf16>
    %241 = tpu.concatenate %239, %240 in 1 : vector<4x12xbf16>, vector<4x4xbf16> -> vector<4x16xbf16>
    %c7_131 = arith.constant 7 : index
    %c0_132 = arith.constant 0 : index
    %242 = vector.load %arg4[%c7_131, %c0_132] : memref<9x16xbf16, #tpu.memory_space<vmem>>, vector<1x16xbf16>
    %243 = vector.broadcast %242 : vector<1x16xbf16> to vector<4x16xbf16>
    %244 = arith.mulf %241, %243 : vector<4x16xbf16>
    %c25 = arith.constant 25 : index
    %c0_133 = arith.constant 0 : index
    %c0_134 = arith.constant 0 : index
    %245 = vector.load %arg2[%c25, %c0_133, %c0_134] : memref<27x4x4xbf16, #tpu.memory_space<vmem>>, vector<1x4x4xbf16>
    %246 = vector.shape_cast %245 : vector<1x4x4xbf16> to vector<4x4xbf16>
    %cst_135 = arith.constant dense<0.000000e+00> : vector<4x16xf32>
    %247 = tpu.matmul %246, %244, %cst_135 {dimension_numbers = #tpu.dot_dimension_numbers<[1], [0], [0], [1], [0, 0, 1, 1], [], []>} : vector<4x4xbf16>, vector<4x16xbf16>, vector<4x16xf32> -> vector<4x16xf32>
    %248 = arith.addf %238, %247 : vector<4x16xf32>
    %249 = vector.extract_strided_slice %174 {offsets = [0, 5], sizes = [4, 11], strides = [1, 1]} : vector<4x16xbf16> to vector<4x11xbf16>
    %250 = vector.extract_strided_slice %174 {offsets = [0, 0], sizes = [4, 5], strides = [1, 1]} : vector<4x16xbf16> to vector<4x5xbf16>
    %251 = tpu.concatenate %249, %250 in 1 : vector<4x11xbf16>, vector<4x5xbf16> -> vector<4x16xbf16>
    %c8_136 = arith.constant 8 : index
    %c0_137 = arith.constant 0 : index
    %252 = vector.load %arg4[%c8_136, %c0_137] : memref<9x16xbf16, #tpu.memory_space<vmem>>, vector<1x16xbf16>
    %253 = vector.broadcast %252 : vector<1x16xbf16> to vector<4x16xbf16>
    %254 = arith.mulf %251, %253 : vector<4x16xbf16>
    %c26 = arith.constant 26 : index
    %c0_138 = arith.constant 0 : index
    %c0_139 = arith.constant 0 : index
    %255 = vector.load %arg2[%c26, %c0_138, %c0_139] : memref<27x4x4xbf16, #tpu.memory_space<vmem>>, vector<1x4x4xbf16>
    %256 = vector.shape_cast %255 : vector<1x4x4xbf16> to vector<4x4xbf16>
    %cst_140 = arith.constant dense<0.000000e+00> : vector<4x16xf32>
    %257 = tpu.matmul %256, %254, %cst_140 {dimension_numbers = #tpu.dot_dimension_numbers<[1], [0], [0], [1], [0, 0, 1, 1], [], []>} : vector<4x4xbf16>, vector<4x16xbf16>, vector<4x16xf32> -> vector<4x16xf32>
    %258 = arith.addf %248, %257 : vector<4x16xf32>
    %c0_141 = arith.constant 0 : index
    %c0_142 = arith.constant 0 : index
    %259 = vector.load %arg3[%c0_141, %c0_142] : memref<4x1xf32, #tpu.memory_space<vmem>>, vector<4x1xf32>
    %260 = vector.broadcast %259 : vector<4x1xf32> to vector<4x16xf32>
    %261 = arith.addf %258, %260 : vector<4x16xf32>
    %262 = arith.truncf %261 : vector<4x16xf32> to vector<4x16xbf16>
    %c0_143 = arith.constant 0 : index
    %c0_144 = arith.constant 0 : index
    %c0_145 = arith.constant 0 : index
    %c0_146 = arith.constant 0 : index
    %263 = vector.load %arg8[%c0_143, %c0_144, %c0_145, %c0_146] : memref<1x1x4x16xbf16, #tpu.memory_space<vmem>>, vector<1x1x4x16xbf16>
    %264 = vector.shape_cast %263 : vector<1x1x4x16xbf16> to vector<4x16xbf16>
    %265 = vector.shape_cast %262 : vector<4x16xbf16> to vector<1x1x4x16xbf16>
    tpu.vector_store %arg8[%c0_143, %c0_144, %c0_145, %c0_146], %265 {strides = array<i32>} : memref<1x1x4x16xbf16, #tpu.memory_space<vmem>>, vector<1x1x4x16xbf16>,
    return
  }
  func.func @transform_0(%arg0: i32, %arg1: i32) -> (i32, i32, i32) {
    %c0_i32 = arith.constant 0 : i32
    %c0_i32_0 = arith.constant 0 : i32
    %c0_i32_1 = arith.constant 0 : i32
    %c0_i32_2 = arith.constant 0 : i32
    return %c0_i32, %c0_i32_0, %c0_i32_1 : i32, i32, i32
  }
  func.func @transform_1(%arg0: i32, %arg1: i32) -> (i32, i32) {
    %c0_i32 = arith.constant 0 : i32
    %c0_i32_0 = arith.constant 0 : i32
    %c0_i32_1 = arith.constant 0 : i32
    return %c0_i32, %c0_i32_0 : i32, i32
  }
  func.func @transform_2(%arg0: i32, %arg1: i32) -> (i32, i32) {
    %c0_i32 = arith.constant 0 : i32
    %c0_i32_0 = arith.constant 0 : i32
    %c0_i32_1 = arith.constant 0 : i32
    return %c0_i32, %c0_i32_0 : i32, i32
  }
  func.func @transform_3(%arg0: i32, %arg1: i32) -> (i32, i32, i32, i32) {
    %c0_i32 = arith.constant 0 : i32
    %0 = arith.addi %arg1, %c0_i32 : i32
    %c0_i32_0 = arith.constant 0 : i32
    %c0_i32_1 = arith.constant 0 : i32
    %c0_i32_2 = arith.constant 0 : i32
    return %arg0, %0, %c0_i32_0, %c0_i32_1 : i32, i32, i32, i32
  }
  func.func @transform_4(%arg0: i32, %arg1: i32) -> (i32, i32, i32, i32) {
    %c1_i32 = arith.constant 1 : i32
    %0 = arith.addi %arg1, %c1_i32 : i32
    %c0_i32 = arith.constant 0 : i32
    %c0_i32_0 = arith.constant 0 : i32
    %c0_i32_1 = arith.constant 0 : i32
    return %arg0, %0, %c0_i32, %c0_i32_0 : i32, i32, i32, i32
  }
  func.func @transform_5(%arg0: i32, %arg1: i32) -> (i32, i32, i32, i32) {
    %c2_i32 = arith.constant 2 : i32
    %0 = arith.addi %arg1, %c2_i32 : i32
    %c0_i32 = arith.constant 0 : i32
    %c0_i32_0 = arith.constant 0 : i32
    %c0_i32_1 = arith.constant 0 : i32
    return %arg0, %0, %c0_i32, %c0_i32_0 : i32, i32, i32, i32
  }
  func.func @transform_6(%arg0: i32, %arg1: i32) -> (i32, i32, i32, i32) {
    %c0_i32 = arith.constant 0 : i32
    %c0_i32_0 = arith.constant 0 : i32
    %c0_i32_1 = arith.constant 0 : i32
    return %arg0, %arg1, %c0_i32, %c0_i32_0 : i32, i32, i32, i32
  }
}

module attributes {stable_mosaic.version = 11 : i64} {
  func.func @kernel(%arg0: i32, %arg1: i32, %arg2: memref<27x4x4xbf16, #tpu.memory_space<vmem>>, %arg3: memref<4x4xf32, #tpu.memory_space<vmem>>, %arg4: memref<4x1xf32, #tpu.memory_space<vmem>>, %arg5: memref<9x64xbf16, #tpu.memory_space<vmem>>, %arg6: memref<1x1x4x64xbf16, #tpu.memory_space<vmem>>, %arg7: memref<1x1x4x64xbf16, #tpu.memory_space<vmem>>, %arg8: memref<1x1x4x64xbf16, #tpu.memory_space<vmem>>, %arg9: memref<1x1x4x64xbf16, #tpu.memory_space<vmem>>, %arg10: memref<1x1x4x64xf32, #tpu.memory_space<vmem>>) attributes {dimension_semantics = [#tpu.dimension_semantics<parallel>, #tpu.dimension_semantics<parallel>], iteration_bounds = array<i64: 2, 8>, scalar_prefetch = 0 : i64, scratch_operands = 0 : i64, tpu.core_type = #tpu.core_type<tc>, window_params = [{pipeline_mode = #tpu.pipeline_mode<synchronous>, transform_indices = @transform_0, window_bounds = array<i64: 27, 4, 4>}, {pipeline_mode = #tpu.pipeline_mode<synchronous>, transform_indices = @transform_1, window_bounds = array<i64: 4, 4>}, {pipeline_mode = #tpu.pipeline_mode<synchronous>, transform_indices = @transform_2, window_bounds = array<i64: 4, 1>}, {pipeline_mode = #tpu.pipeline_mode<synchronous>, transform_indices = @transform_3, window_bounds = array<i64: 9, 64>}, {transform_indices = @transform_4, window_bounds = array<i64: 1, 1, 4, 64>}, {transform_indices = @transform_5, window_bounds = array<i64: 1, 1, 4, 64>}, {transform_indices = @transform_6, window_bounds = array<i64: 1, 1, 4, 64>}, {transform_indices = @transform_7, window_bounds = array<i64: 1, 1, 4, 64>}, {transform_indices = @transform_8, window_bounds = array<i64: 1, 1, 4, 64>}]} {
    %cst = arith.constant 0.000000e+00 : f32
    %0 = vector.broadcast %cst : f32 to vector<4x64xf32>
    %c0 = arith.constant 0 : index
    %c0_0 = arith.constant 0 : index
    %c0_1 = arith.constant 0 : index
    %c0_2 = arith.constant 0 : index
    %1 = vector.load %arg6[%c0, %c0_0, %c0_1, %c0_2] : memref<1x1x4x64xbf16, #tpu.memory_space<vmem>>, vector<1x1x4x64xbf16>
    %2 = vector.shape_cast %1 : vector<1x1x4x64xbf16> to vector<4x64xbf16>
    %3 = vector.extract_strided_slice %2 {offsets = [0, 55], sizes = [4, 9], strides = [1, 1]} : vector<4x64xbf16> to vector<4x9xbf16>
    %4 = vector.extract_strided_slice %2 {offsets = [0, 0], sizes = [4, 55], strides = [1, 1]} : vector<4x64xbf16> to vector<4x55xbf16>
    %5 = tpu.concatenate %3, %4 in 1 : vector<4x9xbf16>, vector<4x55xbf16> -> vector<4x64xbf16>
    %c0_3 = arith.constant 0 : index
    %c0_4 = arith.constant 0 : index
    %6 = vector.load %arg5[%c0_3, %c0_4] : memref<9x64xbf16, #tpu.memory_space<vmem>>, vector<1x64xbf16>
    %7 = vector.broadcast %6 : vector<1x64xbf16> to vector<4x64xbf16>
    %8 = arith.mulf %5, %7 : vector<4x64xbf16>
    %c0_5 = arith.constant 0 : index
    %c0_6 = arith.constant 0 : index
    %c0_7 = arith.constant 0 : index
    %9 = vector.load %arg2[%c0_5, %c0_6, %c0_7] : memref<27x4x4xbf16, #tpu.memory_space<vmem>>, vector<1x4x4xbf16>
    %10 = vector.shape_cast %9 : vector<1x4x4xbf16> to vector<4x4xbf16>
    %cst_8 = arith.constant dense<0.000000e+00> : vector<4x64xf32>
    %11 = tpu.matmul %10, %8, %cst_8 {dimension_numbers = #tpu.dot_dimension_numbers<[1], [0], [0], [1], [0, 0, 1, 1], [], []>} : vector<4x4xbf16>, vector<4x64xbf16>, vector<4x64xf32> -> vector<4x64xf32>
    %12 = arith.addf %0, %11 : vector<4x64xf32>
    %13 = vector.extract_strided_slice %2 {offsets = [0, 56], sizes = [4, 8], strides = [1, 1]} : vector<4x64xbf16> to vector<4x8xbf16>
    %14 = vector.extract_strided_slice %2 {offsets = [0, 0], sizes = [4, 56], strides = [1, 1]} : vector<4x64xbf16> to vector<4x56xbf16>
    %15 = tpu.concatenate %13, %14 in 1 : vector<4x8xbf16>, vector<4x56xbf16> -> vector<4x64xbf16>
    %c1 = arith.constant 1 : index
    %c0_9 = arith.constant 0 : index
    %16 = vector.load %arg5[%c1, %c0_9] : memref<9x64xbf16, #tpu.memory_space<vmem>>, vector<1x64xbf16>
    %17 = vector.broadcast %16 : vector<1x64xbf16> to vector<4x64xbf16>
    %18 = arith.mulf %15, %17 : vector<4x64xbf16>
    %c1_10 = arith.constant 1 : index
    %c0_11 = arith.constant 0 : index
    %c0_12 = arith.constant 0 : index
    %19 = vector.load %arg2[%c1_10, %c0_11, %c0_12] : memref<27x4x4xbf16, #tpu.memory_space<vmem>>, vector<1x4x4xbf16>
    %20 = vector.shape_cast %19 : vector<1x4x4xbf16> to vector<4x4xbf16>
    %cst_13 = arith.constant dense<0.000000e+00> : vector<4x64xf32>
    %21 = tpu.matmul %20, %18, %cst_13 {dimension_numbers = #tpu.dot_dimension_numbers<[1], [0], [0], [1], [0, 0, 1, 1], [], []>} : vector<4x4xbf16>, vector<4x64xbf16>, vector<4x64xf32> -> vector<4x64xf32>
    %22 = arith.addf %12, %21 : vector<4x64xf32>
    %23 = vector.extract_strided_slice %2 {offsets = [0, 57], sizes = [4, 7], strides = [1, 1]} : vector<4x64xbf16> to vector<4x7xbf16>
    %24 = vector.extract_strided_slice %2 {offsets = [0, 0], sizes = [4, 57], strides = [1, 1]} : vector<4x64xbf16> to vector<4x57xbf16>
    %25 = tpu.concatenate %23, %24 in 1 : vector<4x7xbf16>, vector<4x57xbf16> -> vector<4x64xbf16>
    %c2 = arith.constant 2 : index
    %c0_14 = arith.constant 0 : index
    %26 = vector.load %arg5[%c2, %c0_14] : memref<9x64xbf16, #tpu.memory_space<vmem>>, vector<1x64xbf16>
    %27 = vector.broadcast %26 : vector<1x64xbf16> to vector<4x64xbf16>
    %28 = arith.mulf %25, %27 : vector<4x64xbf16>
    %c2_15 = arith.constant 2 : index
    %c0_16 = arith.constant 0 : index
    %c0_17 = arith.constant 0 : index
    %29 = vector.load %arg2[%c2_15, %c0_16, %c0_17] : memref<27x4x4xbf16, #tpu.memory_space<vmem>>, vector<1x4x4xbf16>
    %30 = vector.shape_cast %29 : vector<1x4x4xbf16> to vector<4x4xbf16>
    %cst_18 = arith.constant dense<0.000000e+00> : vector<4x64xf32>
    %31 = tpu.matmul %30, %28, %cst_18 {dimension_numbers = #tpu.dot_dimension_numbers<[1], [0], [0], [1], [0, 0, 1, 1], [], []>} : vector<4x4xbf16>, vector<4x64xbf16>, vector<4x64xf32> -> vector<4x64xf32>
    %32 = arith.addf %22, %31 : vector<4x64xf32>
    %33 = vector.extract_strided_slice %2 {offsets = [0, 63], sizes = [4, 1], strides = [1, 1]} : vector<4x64xbf16> to vector<4x1xbf16>
    %34 = vector.extract_strided_slice %2 {offsets = [0, 0], sizes = [4, 63], strides = [1, 1]} : vector<4x64xbf16> to vector<4x63xbf16>
    %35 = tpu.concatenate %33, %34 in 1 : vector<4x1xbf16>, vector<4x63xbf16> -> vector<4x64xbf16>
    %c3 = arith.constant 3 : index
    %c0_19 = arith.constant 0 : index
    %36 = vector.load %arg5[%c3, %c0_19] : memref<9x64xbf16, #tpu.memory_space<vmem>>, vector<1x64xbf16>
    %37 = vector.broadcast %36 : vector<1x64xbf16> to vector<4x64xbf16>
    %38 = arith.mulf %35, %37 : vector<4x64xbf16>
    %c3_20 = arith.constant 3 : index
    %c0_21 = arith.constant 0 : index
    %c0_22 = arith.constant 0 : index
    %39 = vector.load %arg2[%c3_20, %c0_21, %c0_22] : memref<27x4x4xbf16, #tpu.memory_space<vmem>>, vector<1x4x4xbf16>
    %40 = vector.shape_cast %39 : vector<1x4x4xbf16> to vector<4x4xbf16>
    %cst_23 = arith.constant dense<0.000000e+00> : vector<4x64xf32>
    %41 = tpu.matmul %40, %38, %cst_23 {dimension_numbers = #tpu.dot_dimension_numbers<[1], [0], [0], [1], [0, 0, 1, 1], [], []>} : vector<4x4xbf16>, vector<4x64xbf16>, vector<4x64xf32> -> vector<4x64xf32>
    %42 = arith.addf %32, %41 : vector<4x64xf32>
    %c4 = arith.constant 4 : index
    %c0_24 = arith.constant 0 : index
    %c0_25 = arith.constant 0 : index
    %43 = vector.load %arg2[%c4, %c0_24, %c0_25] : memref<27x4x4xbf16, #tpu.memory_space<vmem>>, vector<1x4x4xbf16>
    %44 = vector.shape_cast %43 : vector<1x4x4xbf16> to vector<4x4xbf16>
    %cst_26 = arith.constant dense<0.000000e+00> : vector<4x64xf32>
    %45 = tpu.matmul %44, %2, %cst_26 {dimension_numbers = #tpu.dot_dimension_numbers<[1], [0], [0], [1], [0, 0, 1, 1], [], []>} : vector<4x4xbf16>, vector<4x64xbf16>, vector<4x64xf32> -> vector<4x64xf32>
    %46 = arith.addf %42, %45 : vector<4x64xf32>
    %47 = vector.extract_strided_slice %2 {offsets = [0, 1], sizes = [4, 63], strides = [1, 1]} : vector<4x64xbf16> to vector<4x63xbf16>
    %48 = vector.extract_strided_slice %2 {offsets = [0, 0], sizes = [4, 1], strides = [1, 1]} : vector<4x64xbf16> to vector<4x1xbf16>
    %49 = tpu.concatenate %47, %48 in 1 : vector<4x63xbf16>, vector<4x1xbf16> -> vector<4x64xbf16>
    %c5 = arith.constant 5 : index
    %c0_27 = arith.constant 0 : index
    %50 = vector.load %arg5[%c5, %c0_27] : memref<9x64xbf16, #tpu.memory_space<vmem>>, vector<1x64xbf16>
    %51 = vector.broadcast %50 : vector<1x64xbf16> to vector<4x64xbf16>
    %52 = arith.mulf %49, %51 : vector<4x64xbf16>
    %c5_28 = arith.constant 5 : index
    %c0_29 = arith.constant 0 : index
    %c0_30 = arith.constant 0 : index
    %53 = vector.load %arg2[%c5_28, %c0_29, %c0_30] : memref<27x4x4xbf16, #tpu.memory_space<vmem>>, vector<1x4x4xbf16>
    %54 = vector.shape_cast %53 : vector<1x4x4xbf16> to vector<4x4xbf16>
    %cst_31 = arith.constant dense<0.000000e+00> : vector<4x64xf32>
    %55 = tpu.matmul %54, %52, %cst_31 {dimension_numbers = #tpu.dot_dimension_numbers<[1], [0], [0], [1], [0, 0, 1, 1], [], []>} : vector<4x4xbf16>, vector<4x64xbf16>, vector<4x64xf32> -> vector<4x64xf32>
    %56 = arith.addf %46, %55 : vector<4x64xf32>
    %57 = vector.extract_strided_slice %2 {offsets = [0, 7], sizes = [4, 57], strides = [1, 1]} : vector<4x64xbf16> to vector<4x57xbf16>
    %58 = vector.extract_strided_slice %2 {offsets = [0, 0], sizes = [4, 7], strides = [1, 1]} : vector<4x64xbf16> to vector<4x7xbf16>
    %59 = tpu.concatenate %57, %58 in 1 : vector<4x57xbf16>, vector<4x7xbf16> -> vector<4x64xbf16>
    %c6 = arith.constant 6 : index
    %c0_32 = arith.constant 0 : index
    %60 = vector.load %arg5[%c6, %c0_32] : memref<9x64xbf16, #tpu.memory_space<vmem>>, vector<1x64xbf16>
    %61 = vector.broadcast %60 : vector<1x64xbf16> to vector<4x64xbf16>
    %62 = arith.mulf %59, %61 : vector<4x64xbf16>
    %c6_33 = arith.constant 6 : index
    %c0_34 = arith.constant 0 : index
    %c0_35 = arith.constant 0 : index
    %63 = vector.load %arg2[%c6_33, %c0_34, %c0_35] : memref<27x4x4xbf16, #tpu.memory_space<vmem>>, vector<1x4x4xbf16>
    %64 = vector.shape_cast %63 : vector<1x4x4xbf16> to vector<4x4xbf16>
    %cst_36 = arith.constant dense<0.000000e+00> : vector<4x64xf32>
    %65 = tpu.matmul %64, %62, %cst_36 {dimension_numbers = #tpu.dot_dimension_numbers<[1], [0], [0], [1], [0, 0, 1, 1], [], []>} : vector<4x4xbf16>, vector<4x64xbf16>, vector<4x64xf32> -> vector<4x64xf32>
    %66 = arith.addf %56, %65 : vector<4x64xf32>
    %67 = vector.extract_strided_slice %2 {offsets = [0, 8], sizes = [4, 56], strides = [1, 1]} : vector<4x64xbf16> to vector<4x56xbf16>
    %68 = vector.extract_strided_slice %2 {offsets = [0, 0], sizes = [4, 8], strides = [1, 1]} : vector<4x64xbf16> to vector<4x8xbf16>
    %69 = tpu.concatenate %67, %68 in 1 : vector<4x56xbf16>, vector<4x8xbf16> -> vector<4x64xbf16>
    %c7 = arith.constant 7 : index
    %c0_37 = arith.constant 0 : index
    %70 = vector.load %arg5[%c7, %c0_37] : memref<9x64xbf16, #tpu.memory_space<vmem>>, vector<1x64xbf16>
    %71 = vector.broadcast %70 : vector<1x64xbf16> to vector<4x64xbf16>
    %72 = arith.mulf %69, %71 : vector<4x64xbf16>
    %c7_38 = arith.constant 7 : index
    %c0_39 = arith.constant 0 : index
    %c0_40 = arith.constant 0 : index
    %73 = vector.load %arg2[%c7_38, %c0_39, %c0_40] : memref<27x4x4xbf16, #tpu.memory_space<vmem>>, vector<1x4x4xbf16>
    %74 = vector.shape_cast %73 : vector<1x4x4xbf16> to vector<4x4xbf16>
    %cst_41 = arith.constant dense<0.000000e+00> : vector<4x64xf32>
    %75 = tpu.matmul %74, %72, %cst_41 {dimension_numbers = #tpu.dot_dimension_numbers<[1], [0], [0], [1], [0, 0, 1, 1], [], []>} : vector<4x4xbf16>, vector<4x64xbf16>, vector<4x64xf32> -> vector<4x64xf32>
    %76 = arith.addf %66, %75 : vector<4x64xf32>
    %77 = vector.extract_strided_slice %2 {offsets = [0, 9], sizes = [4, 55], strides = [1, 1]} : vector<4x64xbf16> to vector<4x55xbf16>
    %78 = vector.extract_strided_slice %2 {offsets = [0, 0], sizes = [4, 9], strides = [1, 1]} : vector<4x64xbf16> to vector<4x9xbf16>
    %79 = tpu.concatenate %77, %78 in 1 : vector<4x55xbf16>, vector<4x9xbf16> -> vector<4x64xbf16>
    %c8 = arith.constant 8 : index
    %c0_42 = arith.constant 0 : index
    %80 = vector.load %arg5[%c8, %c0_42] : memref<9x64xbf16, #tpu.memory_space<vmem>>, vector<1x64xbf16>
    %81 = vector.broadcast %80 : vector<1x64xbf16> to vector<4x64xbf16>
    %82 = arith.mulf %79, %81 : vector<4x64xbf16>
    %c8_43 = arith.constant 8 : index
    %c0_44 = arith.constant 0 : index
    %c0_45 = arith.constant 0 : index
    %83 = vector.load %arg2[%c8_43, %c0_44, %c0_45] : memref<27x4x4xbf16, #tpu.memory_space<vmem>>, vector<1x4x4xbf16>
    %84 = vector.shape_cast %83 : vector<1x4x4xbf16> to vector<4x4xbf16>
    %cst_46 = arith.constant dense<0.000000e+00> : vector<4x64xf32>
    %85 = tpu.matmul %84, %82, %cst_46 {dimension_numbers = #tpu.dot_dimension_numbers<[1], [0], [0], [1], [0, 0, 1, 1], [], []>} : vector<4x4xbf16>, vector<4x64xbf16>, vector<4x64xf32> -> vector<4x64xf32>
    %86 = arith.addf %76, %85 : vector<4x64xf32>
    %c0_47 = arith.constant 0 : index
    %c0_48 = arith.constant 0 : index
    %c0_49 = arith.constant 0 : index
    %c0_50 = arith.constant 0 : index
    %87 = vector.load %arg7[%c0_47, %c0_48, %c0_49, %c0_50] : memref<1x1x4x64xbf16, #tpu.memory_space<vmem>>, vector<1x1x4x64xbf16>
    %88 = vector.shape_cast %87 : vector<1x1x4x64xbf16> to vector<4x64xbf16>
    %89 = vector.extract_strided_slice %88 {offsets = [0, 55], sizes = [4, 9], strides = [1, 1]} : vector<4x64xbf16> to vector<4x9xbf16>
    %90 = vector.extract_strided_slice %88 {offsets = [0, 0], sizes = [4, 55], strides = [1, 1]} : vector<4x64xbf16> to vector<4x55xbf16>
    %91 = tpu.concatenate %89, %90 in 1 : vector<4x9xbf16>, vector<4x55xbf16> -> vector<4x64xbf16>
    %c0_51 = arith.constant 0 : index
    %c0_52 = arith.constant 0 : index
    %92 = vector.load %arg5[%c0_51, %c0_52] : memref<9x64xbf16, #tpu.memory_space<vmem>>, vector<1x64xbf16>
    %93 = vector.broadcast %92 : vector<1x64xbf16> to vector<4x64xbf16>
    %94 = arith.mulf %91, %93 : vector<4x64xbf16>
    %c9 = arith.constant 9 : index
    %c0_53 = arith.constant 0 : index
    %c0_54 = arith.constant 0 : index
    %95 = vector.load %arg2[%c9, %c0_53, %c0_54] : memref<27x4x4xbf16, #tpu.memory_space<vmem>>, vector<1x4x4xbf16>
    %96 = vector.shape_cast %95 : vector<1x4x4xbf16> to vector<4x4xbf16>
    %cst_55 = arith.constant dense<0.000000e+00> : vector<4x64xf32>
    %97 = tpu.matmul %96, %94, %cst_55 {dimension_numbers = #tpu.dot_dimension_numbers<[1], [0], [0], [1], [0, 0, 1, 1], [], []>} : vector<4x4xbf16>, vector<4x64xbf16>, vector<4x64xf32> -> vector<4x64xf32>
    %98 = arith.addf %86, %97 : vector<4x64xf32>
    %99 = vector.extract_strided_slice %88 {offsets = [0, 56], sizes = [4, 8], strides = [1, 1]} : vector<4x64xbf16> to vector<4x8xbf16>
    %100 = vector.extract_strided_slice %88 {offsets = [0, 0], sizes = [4, 56], strides = [1, 1]} : vector<4x64xbf16> to vector<4x56xbf16>
    %101 = tpu.concatenate %99, %100 in 1 : vector<4x8xbf16>, vector<4x56xbf16> -> vector<4x64xbf16>
    %c1_56 = arith.constant 1 : index
    %c0_57 = arith.constant 0 : index
    %102 = vector.load %arg5[%c1_56, %c0_57] : memref<9x64xbf16, #tpu.memory_space<vmem>>, vector<1x64xbf16>
    %103 = vector.broadcast %102 : vector<1x64xbf16> to vector<4x64xbf16>
    %104 = arith.mulf %101, %103 : vector<4x64xbf16>
    %c10 = arith.constant 10 : index
    %c0_58 = arith.constant 0 : index
    %c0_59 = arith.constant 0 : index
    %105 = vector.load %arg2[%c10, %c0_58, %c0_59] : memref<27x4x4xbf16, #tpu.memory_space<vmem>>, vector<1x4x4xbf16>
    %106 = vector.shape_cast %105 : vector<1x4x4xbf16> to vector<4x4xbf16>
    %cst_60 = arith.constant dense<0.000000e+00> : vector<4x64xf32>
    %107 = tpu.matmul %106, %104, %cst_60 {dimension_numbers = #tpu.dot_dimension_numbers<[1], [0], [0], [1], [0, 0, 1, 1], [], []>} : vector<4x4xbf16>, vector<4x64xbf16>, vector<4x64xf32> -> vector<4x64xf32>
    %108 = arith.addf %98, %107 : vector<4x64xf32>
    %109 = vector.extract_strided_slice %88 {offsets = [0, 57], sizes = [4, 7], strides = [1, 1]} : vector<4x64xbf16> to vector<4x7xbf16>
    %110 = vector.extract_strided_slice %88 {offsets = [0, 0], sizes = [4, 57], strides = [1, 1]} : vector<4x64xbf16> to vector<4x57xbf16>
    %111 = tpu.concatenate %109, %110 in 1 : vector<4x7xbf16>, vector<4x57xbf16> -> vector<4x64xbf16>
    %c2_61 = arith.constant 2 : index
    %c0_62 = arith.constant 0 : index
    %112 = vector.load %arg5[%c2_61, %c0_62] : memref<9x64xbf16, #tpu.memory_space<vmem>>, vector<1x64xbf16>
    %113 = vector.broadcast %112 : vector<1x64xbf16> to vector<4x64xbf16>
    %114 = arith.mulf %111, %113 : vector<4x64xbf16>
    %c11 = arith.constant 11 : index
    %c0_63 = arith.constant 0 : index
    %c0_64 = arith.constant 0 : index
    %115 = vector.load %arg2[%c11, %c0_63, %c0_64] : memref<27x4x4xbf16, #tpu.memory_space<vmem>>, vector<1x4x4xbf16>
    %116 = vector.shape_cast %115 : vector<1x4x4xbf16> to vector<4x4xbf16>
    %cst_65 = arith.constant dense<0.000000e+00> : vector<4x64xf32>
    %117 = tpu.matmul %116, %114, %cst_65 {dimension_numbers = #tpu.dot_dimension_numbers<[1], [0], [0], [1], [0, 0, 1, 1], [], []>} : vector<4x4xbf16>, vector<4x64xbf16>, vector<4x64xf32> -> vector<4x64xf32>
    %118 = arith.addf %108, %117 : vector<4x64xf32>
    %119 = vector.extract_strided_slice %88 {offsets = [0, 63], sizes = [4, 1], strides = [1, 1]} : vector<4x64xbf16> to vector<4x1xbf16>
    %120 = vector.extract_strided_slice %88 {offsets = [0, 0], sizes = [4, 63], strides = [1, 1]} : vector<4x64xbf16> to vector<4x63xbf16>
    %121 = tpu.concatenate %119, %120 in 1 : vector<4x1xbf16>, vector<4x63xbf16> -> vector<4x64xbf16>
    %c3_66 = arith.constant 3 : index
    %c0_67 = arith.constant 0 : index
    %122 = vector.load %arg5[%c3_66, %c0_67] : memref<9x64xbf16, #tpu.memory_space<vmem>>, vector<1x64xbf16>
    %123 = vector.broadcast %122 : vector<1x64xbf16> to vector<4x64xbf16>
    %124 = arith.mulf %121, %123 : vector<4x64xbf16>
    %c12 = arith.constant 12 : index
    %c0_68 = arith.constant 0 : index
    %c0_69 = arith.constant 0 : index
    %125 = vector.load %arg2[%c12, %c0_68, %c0_69] : memref<27x4x4xbf16, #tpu.memory_space<vmem>>, vector<1x4x4xbf16>
    %126 = vector.shape_cast %125 : vector<1x4x4xbf16> to vector<4x4xbf16>
    %cst_70 = arith.constant dense<0.000000e+00> : vector<4x64xf32>
    %127 = tpu.matmul %126, %124, %cst_70 {dimension_numbers = #tpu.dot_dimension_numbers<[1], [0], [0], [1], [0, 0, 1, 1], [], []>} : vector<4x4xbf16>, vector<4x64xbf16>, vector<4x64xf32> -> vector<4x64xf32>
    %128 = arith.addf %118, %127 : vector<4x64xf32>
    %c13 = arith.constant 13 : index
    %c0_71 = arith.constant 0 : index
    %c0_72 = arith.constant 0 : index
    %129 = vector.load %arg2[%c13, %c0_71, %c0_72] : memref<27x4x4xbf16, #tpu.memory_space<vmem>>, vector<1x4x4xbf16>
    %130 = vector.shape_cast %129 : vector<1x4x4xbf16> to vector<4x4xbf16>
    %cst_73 = arith.constant dense<0.000000e+00> : vector<4x64xf32>
    %131 = tpu.matmul %130, %88, %cst_73 {dimension_numbers = #tpu.dot_dimension_numbers<[1], [0], [0], [1], [0, 0, 1, 1], [], []>} : vector<4x4xbf16>, vector<4x64xbf16>, vector<4x64xf32> -> vector<4x64xf32>
    %132 = arith.addf %128, %131 : vector<4x64xf32>
    %133 = vector.extract_strided_slice %88 {offsets = [0, 1], sizes = [4, 63], strides = [1, 1]} : vector<4x64xbf16> to vector<4x63xbf16>
    %134 = vector.extract_strided_slice %88 {offsets = [0, 0], sizes = [4, 1], strides = [1, 1]} : vector<4x64xbf16> to vector<4x1xbf16>
    %135 = tpu.concatenate %133, %134 in 1 : vector<4x63xbf16>, vector<4x1xbf16> -> vector<4x64xbf16>
    %c5_74 = arith.constant 5 : index
    %c0_75 = arith.constant 0 : index
    %136 = vector.load %arg5[%c5_74, %c0_75] : memref<9x64xbf16, #tpu.memory_space<vmem>>, vector<1x64xbf16>
    %137 = vector.broadcast %136 : vector<1x64xbf16> to vector<4x64xbf16>
    %138 = arith.mulf %135, %137 : vector<4x64xbf16>
    %c14 = arith.constant 14 : index
    %c0_76 = arith.constant 0 : index
    %c0_77 = arith.constant 0 : index
    %139 = vector.load %arg2[%c14, %c0_76, %c0_77] : memref<27x4x4xbf16, #tpu.memory_space<vmem>>, vector<1x4x4xbf16>
    %140 = vector.shape_cast %139 : vector<1x4x4xbf16> to vector<4x4xbf16>
    %cst_78 = arith.constant dense<0.000000e+00> : vector<4x64xf32>
    %141 = tpu.matmul %140, %138, %cst_78 {dimension_numbers = #tpu.dot_dimension_numbers<[1], [0], [0], [1], [0, 0, 1, 1], [], []>} : vector<4x4xbf16>, vector<4x64xbf16>, vector<4x64xf32> -> vector<4x64xf32>
    %142 = arith.addf %132, %141 : vector<4x64xf32>
    %143 = vector.extract_strided_slice %88 {offsets = [0, 7], sizes = [4, 57], strides = [1, 1]} : vector<4x64xbf16> to vector<4x57xbf16>
    %144 = vector.extract_strided_slice %88 {offsets = [0, 0], sizes = [4, 7], strides = [1, 1]} : vector<4x64xbf16> to vector<4x7xbf16>
    %145 = tpu.concatenate %143, %144 in 1 : vector<4x57xbf16>, vector<4x7xbf16> -> vector<4x64xbf16>
    %c6_79 = arith.constant 6 : index
    %c0_80 = arith.constant 0 : index
    %146 = vector.load %arg5[%c6_79, %c0_80] : memref<9x64xbf16, #tpu.memory_space<vmem>>, vector<1x64xbf16>
    %147 = vector.broadcast %146 : vector<1x64xbf16> to vector<4x64xbf16>
    %148 = arith.mulf %145, %147 : vector<4x64xbf16>
    %c15 = arith.constant 15 : index
    %c0_81 = arith.constant 0 : index
    %c0_82 = arith.constant 0 : index
    %149 = vector.load %arg2[%c15, %c0_81, %c0_82] : memref<27x4x4xbf16, #tpu.memory_space<vmem>>, vector<1x4x4xbf16>
    %150 = vector.shape_cast %149 : vector<1x4x4xbf16> to vector<4x4xbf16>
    %cst_83 = arith.constant dense<0.000000e+00> : vector<4x64xf32>
    %151 = tpu.matmul %150, %148, %cst_83 {dimension_numbers = #tpu.dot_dimension_numbers<[1], [0], [0], [1], [0, 0, 1, 1], [], []>} : vector<4x4xbf16>, vector<4x64xbf16>, vector<4x64xf32> -> vector<4x64xf32>
    %152 = arith.addf %142, %151 : vector<4x64xf32>
    %153 = vector.extract_strided_slice %88 {offsets = [0, 8], sizes = [4, 56], strides = [1, 1]} : vector<4x64xbf16> to vector<4x56xbf16>
    %154 = vector.extract_strided_slice %88 {offsets = [0, 0], sizes = [4, 8], strides = [1, 1]} : vector<4x64xbf16> to vector<4x8xbf16>
    %155 = tpu.concatenate %153, %154 in 1 : vector<4x56xbf16>, vector<4x8xbf16> -> vector<4x64xbf16>
    %c7_84 = arith.constant 7 : index
    %c0_85 = arith.constant 0 : index
    %156 = vector.load %arg5[%c7_84, %c0_85] : memref<9x64xbf16, #tpu.memory_space<vmem>>, vector<1x64xbf16>
    %157 = vector.broadcast %156 : vector<1x64xbf16> to vector<4x64xbf16>
    %158 = arith.mulf %155, %157 : vector<4x64xbf16>
    %c16 = arith.constant 16 : index
    %c0_86 = arith.constant 0 : index
    %c0_87 = arith.constant 0 : index
    %159 = vector.load %arg2[%c16, %c0_86, %c0_87] : memref<27x4x4xbf16, #tpu.memory_space<vmem>>, vector<1x4x4xbf16>
    %160 = vector.shape_cast %159 : vector<1x4x4xbf16> to vector<4x4xbf16>
    %cst_88 = arith.constant dense<0.000000e+00> : vector<4x64xf32>
    %161 = tpu.matmul %160, %158, %cst_88 {dimension_numbers = #tpu.dot_dimension_numbers<[1], [0], [0], [1], [0, 0, 1, 1], [], []>} : vector<4x4xbf16>, vector<4x64xbf16>, vector<4x64xf32> -> vector<4x64xf32>
    %162 = arith.addf %152, %161 : vector<4x64xf32>
    %163 = vector.extract_strided_slice %88 {offsets = [0, 9], sizes = [4, 55], strides = [1, 1]} : vector<4x64xbf16> to vector<4x55xbf16>
    %164 = vector.extract_strided_slice %88 {offsets = [0, 0], sizes = [4, 9], strides = [1, 1]} : vector<4x64xbf16> to vector<4x9xbf16>
    %165 = tpu.concatenate %163, %164 in 1 : vector<4x55xbf16>, vector<4x9xbf16> -> vector<4x64xbf16>
    %c8_89 = arith.constant 8 : index
    %c0_90 = arith.constant 0 : index
    %166 = vector.load %arg5[%c8_89, %c0_90] : memref<9x64xbf16, #tpu.memory_space<vmem>>, vector<1x64xbf16>
    %167 = vector.broadcast %166 : vector<1x64xbf16> to vector<4x64xbf16>
    %168 = arith.mulf %165, %167 : vector<4x64xbf16>
    %c17 = arith.constant 17 : index
    %c0_91 = arith.constant 0 : index
    %c0_92 = arith.constant 0 : index
    %169 = vector.load %arg2[%c17, %c0_91, %c0_92] : memref<27x4x4xbf16, #tpu.memory_space<vmem>>, vector<1x4x4xbf16>
    %170 = vector.shape_cast %169 : vector<1x4x4xbf16> to vector<4x4xbf16>
    %cst_93 = arith.constant dense<0.000000e+00> : vector<4x64xf32>
    %171 = tpu.matmul %170, %168, %cst_93 {dimension_numbers = #tpu.dot_dimension_numbers<[1], [0], [0], [1], [0, 0, 1, 1], [], []>} : vector<4x4xbf16>, vector<4x64xbf16>, vector<4x64xf32> -> vector<4x64xf32>
    %172 = arith.addf %162, %171 : vector<4x64xf32>
    %c0_94 = arith.constant 0 : index
    %c0_95 = arith.constant 0 : index
    %c0_96 = arith.constant 0 : index
    %c0_97 = arith.constant 0 : index
    %173 = vector.load %arg8[%c0_94, %c0_95, %c0_96, %c0_97] : memref<1x1x4x64xbf16, #tpu.memory_space<vmem>>, vector<1x1x4x64xbf16>
    %174 = vector.shape_cast %173 : vector<1x1x4x64xbf16> to vector<4x64xbf16>
    %175 = vector.extract_strided_slice %174 {offsets = [0, 55], sizes = [4, 9], strides = [1, 1]} : vector<4x64xbf16> to vector<4x9xbf16>
    %176 = vector.extract_strided_slice %174 {offsets = [0, 0], sizes = [4, 55], strides = [1, 1]} : vector<4x64xbf16> to vector<4x55xbf16>
    %177 = tpu.concatenate %175, %176 in 1 : vector<4x9xbf16>, vector<4x55xbf16> -> vector<4x64xbf16>
    %c0_98 = arith.constant 0 : index
    %c0_99 = arith.constant 0 : index
    %178 = vector.load %arg5[%c0_98, %c0_99] : memref<9x64xbf16, #tpu.memory_space<vmem>>, vector<1x64xbf16>
    %179 = vector.broadcast %178 : vector<1x64xbf16> to vector<4x64xbf16>
    %180 = arith.mulf %177, %179 : vector<4x64xbf16>
    %c18 = arith.constant 18 : index
    %c0_100 = arith.constant 0 : index
    %c0_101 = arith.constant 0 : index
    %181 = vector.load %arg2[%c18, %c0_100, %c0_101] : memref<27x4x4xbf16, #tpu.memory_space<vmem>>, vector<1x4x4xbf16>
    %182 = vector.shape_cast %181 : vector<1x4x4xbf16> to vector<4x4xbf16>
    %cst_102 = arith.constant dense<0.000000e+00> : vector<4x64xf32>
    %183 = tpu.matmul %182, %180, %cst_102 {dimension_numbers = #tpu.dot_dimension_numbers<[1], [0], [0], [1], [0, 0, 1, 1], [], []>} : vector<4x4xbf16>, vector<4x64xbf16>, vector<4x64xf32> -> vector<4x64xf32>
    %184 = arith.addf %172, %183 : vector<4x64xf32>
    %185 = vector.extract_strided_slice %174 {offsets = [0, 56], sizes = [4, 8], strides = [1, 1]} : vector<4x64xbf16> to vector<4x8xbf16>
    %186 = vector.extract_strided_slice %174 {offsets = [0, 0], sizes = [4, 56], strides = [1, 1]} : vector<4x64xbf16> to vector<4x56xbf16>
    %187 = tpu.concatenate %185, %186 in 1 : vector<4x8xbf16>, vector<4x56xbf16> -> vector<4x64xbf16>
    %c1_103 = arith.constant 1 : index
    %c0_104 = arith.constant 0 : index
    %188 = vector.load %arg5[%c1_103, %c0_104] : memref<9x64xbf16, #tpu.memory_space<vmem>>, vector<1x64xbf16>
    %189 = vector.broadcast %188 : vector<1x64xbf16> to vector<4x64xbf16>
    %190 = arith.mulf %187, %189 : vector<4x64xbf16>
    %c19 = arith.constant 19 : index
    %c0_105 = arith.constant 0 : index
    %c0_106 = arith.constant 0 : index
    %191 = vector.load %arg2[%c19, %c0_105, %c0_106] : memref<27x4x4xbf16, #tpu.memory_space<vmem>>, vector<1x4x4xbf16>
    %192 = vector.shape_cast %191 : vector<1x4x4xbf16> to vector<4x4xbf16>
    %cst_107 = arith.constant dense<0.000000e+00> : vector<4x64xf32>
    %193 = tpu.matmul %192, %190, %cst_107 {dimension_numbers = #tpu.dot_dimension_numbers<[1], [0], [0], [1], [0, 0, 1, 1], [], []>} : vector<4x4xbf16>, vector<4x64xbf16>, vector<4x64xf32> -> vector<4x64xf32>
    %194 = arith.addf %184, %193 : vector<4x64xf32>
    %195 = vector.extract_strided_slice %174 {offsets = [0, 57], sizes = [4, 7], strides = [1, 1]} : vector<4x64xbf16> to vector<4x7xbf16>
    %196 = vector.extract_strided_slice %174 {offsets = [0, 0], sizes = [4, 57], strides = [1, 1]} : vector<4x64xbf16> to vector<4x57xbf16>
    %197 = tpu.concatenate %195, %196 in 1 : vector<4x7xbf16>, vector<4x57xbf16> -> vector<4x64xbf16>
    %c2_108 = arith.constant 2 : index
    %c0_109 = arith.constant 0 : index
    %198 = vector.load %arg5[%c2_108, %c0_109] : memref<9x64xbf16, #tpu.memory_space<vmem>>, vector<1x64xbf16>
    %199 = vector.broadcast %198 : vector<1x64xbf16> to vector<4x64xbf16>
    %200 = arith.mulf %197, %199 : vector<4x64xbf16>
    %c20 = arith.constant 20 : index
    %c0_110 = arith.constant 0 : index
    %c0_111 = arith.constant 0 : index
    %201 = vector.load %arg2[%c20, %c0_110, %c0_111] : memref<27x4x4xbf16, #tpu.memory_space<vmem>>, vector<1x4x4xbf16>
    %202 = vector.shape_cast %201 : vector<1x4x4xbf16> to vector<4x4xbf16>
    %cst_112 = arith.constant dense<0.000000e+00> : vector<4x64xf32>
    %203 = tpu.matmul %202, %200, %cst_112 {dimension_numbers = #tpu.dot_dimension_numbers<[1], [0], [0], [1], [0, 0, 1, 1], [], []>} : vector<4x4xbf16>, vector<4x64xbf16>, vector<4x64xf32> -> vector<4x64xf32>
    %204 = arith.addf %194, %203 : vector<4x64xf32>
    %205 = vector.extract_strided_slice %174 {offsets = [0, 63], sizes = [4, 1], strides = [1, 1]} : vector<4x64xbf16> to vector<4x1xbf16>
    %206 = vector.extract_strided_slice %174 {offsets = [0, 0], sizes = [4, 63], strides = [1, 1]} : vector<4x64xbf16> to vector<4x63xbf16>
    %207 = tpu.concatenate %205, %206 in 1 : vector<4x1xbf16>, vector<4x63xbf16> -> vector<4x64xbf16>
    %c3_113 = arith.constant 3 : index
    %c0_114 = arith.constant 0 : index
    %208 = vector.load %arg5[%c3_113, %c0_114] : memref<9x64xbf16, #tpu.memory_space<vmem>>, vector<1x64xbf16>
    %209 = vector.broadcast %208 : vector<1x64xbf16> to vector<4x64xbf16>
    %210 = arith.mulf %207, %209 : vector<4x64xbf16>
    %c21 = arith.constant 21 : index
    %c0_115 = arith.constant 0 : index
    %c0_116 = arith.constant 0 : index
    %211 = vector.load %arg2[%c21, %c0_115, %c0_116] : memref<27x4x4xbf16, #tpu.memory_space<vmem>>, vector<1x4x4xbf16>
    %212 = vector.shape_cast %211 : vector<1x4x4xbf16> to vector<4x4xbf16>
    %cst_117 = arith.constant dense<0.000000e+00> : vector<4x64xf32>
    %213 = tpu.matmul %212, %210, %cst_117 {dimension_numbers = #tpu.dot_dimension_numbers<[1], [0], [0], [1], [0, 0, 1, 1], [], []>} : vector<4x4xbf16>, vector<4x64xbf16>, vector<4x64xf32> -> vector<4x64xf32>
    %214 = arith.addf %204, %213 : vector<4x64xf32>
    %c22 = arith.constant 22 : index
    %c0_118 = arith.constant 0 : index
    %c0_119 = arith.constant 0 : index
    %215 = vector.load %arg2[%c22, %c0_118, %c0_119] : memref<27x4x4xbf16, #tpu.memory_space<vmem>>, vector<1x4x4xbf16>
    %216 = vector.shape_cast %215 : vector<1x4x4xbf16> to vector<4x4xbf16>
    %cst_120 = arith.constant dense<0.000000e+00> : vector<4x64xf32>
    %217 = tpu.matmul %216, %174, %cst_120 {dimension_numbers = #tpu.dot_dimension_numbers<[1], [0], [0], [1], [0, 0, 1, 1], [], []>} : vector<4x4xbf16>, vector<4x64xbf16>, vector<4x64xf32> -> vector<4x64xf32>
    %218 = arith.addf %214, %217 : vector<4x64xf32>
    %219 = vector.extract_strided_slice %174 {offsets = [0, 1], sizes = [4, 63], strides = [1, 1]} : vector<4x64xbf16> to vector<4x63xbf16>
    %220 = vector.extract_strided_slice %174 {offsets = [0, 0], sizes = [4, 1], strides = [1, 1]} : vector<4x64xbf16> to vector<4x1xbf16>
    %221 = tpu.concatenate %219, %220 in 1 : vector<4x63xbf16>, vector<4x1xbf16> -> vector<4x64xbf16>
    %c5_121 = arith.constant 5 : index
    %c0_122 = arith.constant 0 : index
    %222 = vector.load %arg5[%c5_121, %c0_122] : memref<9x64xbf16, #tpu.memory_space<vmem>>, vector<1x64xbf16>
    %223 = vector.broadcast %222 : vector<1x64xbf16> to vector<4x64xbf16>
    %224 = arith.mulf %221, %223 : vector<4x64xbf16>
    %c23 = arith.constant 23 : index
    %c0_123 = arith.constant 0 : index
    %c0_124 = arith.constant 0 : index
    %225 = vector.load %arg2[%c23, %c0_123, %c0_124] : memref<27x4x4xbf16, #tpu.memory_space<vmem>>, vector<1x4x4xbf16>
    %226 = vector.shape_cast %225 : vector<1x4x4xbf16> to vector<4x4xbf16>
    %cst_125 = arith.constant dense<0.000000e+00> : vector<4x64xf32>
    %227 = tpu.matmul %226, %224, %cst_125 {dimension_numbers = #tpu.dot_dimension_numbers<[1], [0], [0], [1], [0, 0, 1, 1], [], []>} : vector<4x4xbf16>, vector<4x64xbf16>, vector<4x64xf32> -> vector<4x64xf32>
    %228 = arith.addf %218, %227 : vector<4x64xf32>
    %229 = vector.extract_strided_slice %174 {offsets = [0, 7], sizes = [4, 57], strides = [1, 1]} : vector<4x64xbf16> to vector<4x57xbf16>
    %230 = vector.extract_strided_slice %174 {offsets = [0, 0], sizes = [4, 7], strides = [1, 1]} : vector<4x64xbf16> to vector<4x7xbf16>
    %231 = tpu.concatenate %229, %230 in 1 : vector<4x57xbf16>, vector<4x7xbf16> -> vector<4x64xbf16>
    %c6_126 = arith.constant 6 : index
    %c0_127 = arith.constant 0 : index
    %232 = vector.load %arg5[%c6_126, %c0_127] : memref<9x64xbf16, #tpu.memory_space<vmem>>, vector<1x64xbf16>
    %233 = vector.broadcast %232 : vector<1x64xbf16> to vector<4x64xbf16>
    %234 = arith.mulf %231, %233 : vector<4x64xbf16>
    %c24 = arith.constant 24 : index
    %c0_128 = arith.constant 0 : index
    %c0_129 = arith.constant 0 : index
    %235 = vector.load %arg2[%c24, %c0_128, %c0_129] : memref<27x4x4xbf16, #tpu.memory_space<vmem>>, vector<1x4x4xbf16>
    %236 = vector.shape_cast %235 : vector<1x4x4xbf16> to vector<4x4xbf16>
    %cst_130 = arith.constant dense<0.000000e+00> : vector<4x64xf32>
    %237 = tpu.matmul %236, %234, %cst_130 {dimension_numbers = #tpu.dot_dimension_numbers<[1], [0], [0], [1], [0, 0, 1, 1], [], []>} : vector<4x4xbf16>, vector<4x64xbf16>, vector<4x64xf32> -> vector<4x64xf32>
    %238 = arith.addf %228, %237 : vector<4x64xf32>
    %239 = vector.extract_strided_slice %174 {offsets = [0, 8], sizes = [4, 56], strides = [1, 1]} : vector<4x64xbf16> to vector<4x56xbf16>
    %240 = vector.extract_strided_slice %174 {offsets = [0, 0], sizes = [4, 8], strides = [1, 1]} : vector<4x64xbf16> to vector<4x8xbf16>
    %241 = tpu.concatenate %239, %240 in 1 : vector<4x56xbf16>, vector<4x8xbf16> -> vector<4x64xbf16>
    %c7_131 = arith.constant 7 : index
    %c0_132 = arith.constant 0 : index
    %242 = vector.load %arg5[%c7_131, %c0_132] : memref<9x64xbf16, #tpu.memory_space<vmem>>, vector<1x64xbf16>
    %243 = vector.broadcast %242 : vector<1x64xbf16> to vector<4x64xbf16>
    %244 = arith.mulf %241, %243 : vector<4x64xbf16>
    %c25 = arith.constant 25 : index
    %c0_133 = arith.constant 0 : index
    %c0_134 = arith.constant 0 : index
    %245 = vector.load %arg2[%c25, %c0_133, %c0_134] : memref<27x4x4xbf16, #tpu.memory_space<vmem>>, vector<1x4x4xbf16>
    %246 = vector.shape_cast %245 : vector<1x4x4xbf16> to vector<4x4xbf16>
    %cst_135 = arith.constant dense<0.000000e+00> : vector<4x64xf32>
    %247 = tpu.matmul %246, %244, %cst_135 {dimension_numbers = #tpu.dot_dimension_numbers<[1], [0], [0], [1], [0, 0, 1, 1], [], []>} : vector<4x4xbf16>, vector<4x64xbf16>, vector<4x64xf32> -> vector<4x64xf32>
    %248 = arith.addf %238, %247 : vector<4x64xf32>
    %249 = vector.extract_strided_slice %174 {offsets = [0, 9], sizes = [4, 55], strides = [1, 1]} : vector<4x64xbf16> to vector<4x55xbf16>
    %250 = vector.extract_strided_slice %174 {offsets = [0, 0], sizes = [4, 9], strides = [1, 1]} : vector<4x64xbf16> to vector<4x9xbf16>
    %251 = tpu.concatenate %249, %250 in 1 : vector<4x55xbf16>, vector<4x9xbf16> -> vector<4x64xbf16>
    %c8_136 = arith.constant 8 : index
    %c0_137 = arith.constant 0 : index
    %252 = vector.load %arg5[%c8_136, %c0_137] : memref<9x64xbf16, #tpu.memory_space<vmem>>, vector<1x64xbf16>
    %253 = vector.broadcast %252 : vector<1x64xbf16> to vector<4x64xbf16>
    %254 = arith.mulf %251, %253 : vector<4x64xbf16>
    %c26 = arith.constant 26 : index
    %c0_138 = arith.constant 0 : index
    %c0_139 = arith.constant 0 : index
    %255 = vector.load %arg2[%c26, %c0_138, %c0_139] : memref<27x4x4xbf16, #tpu.memory_space<vmem>>, vector<1x4x4xbf16>
    %256 = vector.shape_cast %255 : vector<1x4x4xbf16> to vector<4x4xbf16>
    %cst_140 = arith.constant dense<0.000000e+00> : vector<4x64xf32>
    %257 = tpu.matmul %256, %254, %cst_140 {dimension_numbers = #tpu.dot_dimension_numbers<[1], [0], [0], [1], [0, 0, 1, 1], [], []>} : vector<4x4xbf16>, vector<4x64xbf16>, vector<4x64xf32> -> vector<4x64xf32>
    %258 = arith.addf %248, %257 : vector<4x64xf32>
    %c0_141 = arith.constant 0 : index
    %c0_142 = arith.constant 0 : index
    %259 = vector.load %arg3[%c0_141, %c0_142] : memref<4x4xf32, #tpu.memory_space<vmem>>, vector<4x4xf32>
    %c0_143 = arith.constant 0 : index
    %c0_144 = arith.constant 0 : index
    %c0_145 = arith.constant 0 : index
    %c0_146 = arith.constant 0 : index
    %260 = vector.load %arg7[%c0_143, %c0_144, %c0_145, %c0_146] : memref<1x1x4x64xbf16, #tpu.memory_space<vmem>>, vector<1x1x4x64xbf16>
    %261 = vector.shape_cast %260 : vector<1x1x4x64xbf16> to vector<4x64xbf16>
    %262 = arith.extf %261 : vector<4x64xbf16> to vector<4x64xf32>
    %cst_147 = arith.constant dense<0.000000e+00> : vector<4x64xf32>
    %263 = tpu.matmul %259, %262, %cst_147 {dimension_numbers = #tpu.dot_dimension_numbers<[1], [0], [0], [1], [0, 0, 1, 1], [], []>} : vector<4x4xf32>, vector<4x64xf32>, vector<4x64xf32> -> vector<4x64xf32>
    %264 = arith.addf %258, %263 : vector<4x64xf32>
    %c0_148 = arith.constant 0 : index
    %c0_149 = arith.constant 0 : index
    %265 = vector.load %arg4[%c0_148, %c0_149] : memref<4x1xf32, #tpu.memory_space<vmem>>, vector<4x1xf32>
    %266 = vector.broadcast %265 : vector<4x1xf32> to vector<4x64xf32>
    %267 = arith.addf %264, %266 : vector<4x64xf32>
    %c0_150 = arith.constant 0 : index
    %c0_151 = arith.constant 0 : index
    %c0_152 = arith.constant 0 : index
    %c0_153 = arith.constant 0 : index
    %268 = vector.load %arg9[%c0_150, %c0_151, %c0_152, %c0_153] : memref<1x1x4x64xbf16, #tpu.memory_space<vmem>>, vector<1x1x4x64xbf16>
    %269 = vector.shape_cast %268 : vector<1x1x4x64xbf16> to vector<4x64xbf16>
    %270 = arith.extf %269 : vector<4x64xbf16> to vector<4x64xf32>
    %271 = arith.addf %267, %270 : vector<4x64xf32>
    %c0_154 = arith.constant 0 : index
    %c0_155 = arith.constant 0 : index
    %c0_156 = arith.constant 0 : index
    %c0_157 = arith.constant 0 : index
    %272 = vector.load %arg10[%c0_154, %c0_155, %c0_156, %c0_157] : memref<1x1x4x64xf32, #tpu.memory_space<vmem>>, vector<1x1x4x64xf32>
    %273 = vector.shape_cast %272 : vector<1x1x4x64xf32> to vector<4x64xf32>
    %274 = vector.shape_cast %271 : vector<4x64xf32> to vector<1x1x4x64xf32>
    tpu.vector_store %arg10[%c0_154, %c0_155, %c0_156, %c0_157], %274 {strides = array<i32>} : memref<1x1x4x64xf32, #tpu.memory_space<vmem>>, vector<1x1x4x64xf32>,
    return
  }
  func.func @transform_0(%arg0: i32, %arg1: i32) -> (i32, i32, i32) {
    %c0_i32 = arith.constant 0 : i32
    %c0_i32_0 = arith.constant 0 : i32
    %c0_i32_1 = arith.constant 0 : i32
    %c0_i32_2 = arith.constant 0 : i32
    return %c0_i32, %c0_i32_0, %c0_i32_1 : i32, i32, i32
  }
  func.func @transform_1(%arg0: i32, %arg1: i32) -> (i32, i32) {
    %c0_i32 = arith.constant 0 : i32
    %c0_i32_0 = arith.constant 0 : i32
    %c0_i32_1 = arith.constant 0 : i32
    return %c0_i32, %c0_i32_0 : i32, i32
  }
  func.func @transform_2(%arg0: i32, %arg1: i32) -> (i32, i32) {
    %c0_i32 = arith.constant 0 : i32
    %c0_i32_0 = arith.constant 0 : i32
    %c0_i32_1 = arith.constant 0 : i32
    return %c0_i32, %c0_i32_0 : i32, i32
  }
  func.func @transform_3(%arg0: i32, %arg1: i32) -> (i32, i32) {
    %c0_i32 = arith.constant 0 : i32
    %c0_i32_0 = arith.constant 0 : i32
    %c0_i32_1 = arith.constant 0 : i32
    return %c0_i32, %c0_i32_0 : i32, i32
  }
  func.func @transform_4(%arg0: i32, %arg1: i32) -> (i32, i32, i32, i32) {
    %c0_i32 = arith.constant 0 : i32
    %0 = arith.addi %arg1, %c0_i32 : i32
    %c0_i32_0 = arith.constant 0 : i32
    %c0_i32_1 = arith.constant 0 : i32
    %c0_i32_2 = arith.constant 0 : i32
    return %arg0, %0, %c0_i32_0, %c0_i32_1 : i32, i32, i32, i32
  }
  func.func @transform_5(%arg0: i32, %arg1: i32) -> (i32, i32, i32, i32) {
    %c1_i32 = arith.constant 1 : i32
    %0 = arith.addi %arg1, %c1_i32 : i32
    %c0_i32 = arith.constant 0 : i32
    %c0_i32_0 = arith.constant 0 : i32
    %c0_i32_1 = arith.constant 0 : i32
    return %arg0, %0, %c0_i32, %c0_i32_0 : i32, i32, i32, i32
  }
  func.func @transform_6(%arg0: i32, %arg1: i32) -> (i32, i32, i32, i32) {
    %c2_i32 = arith.constant 2 : i32
    %0 = arith.addi %arg1, %c2_i32 : i32
    %c0_i32 = arith.constant 0 : i32
    %c0_i32_0 = arith.constant 0 : i32
    %c0_i32_1 = arith.constant 0 : i32
    return %arg0, %0, %c0_i32, %c0_i32_0 : i32, i32, i32, i32
  }
  func.func @transform_7(%arg0: i32, %arg1: i32) -> (i32, i32, i32, i32) {
    %c0_i32 = arith.constant 0 : i32
    %c0_i32_0 = arith.constant 0 : i32
    %c0_i32_1 = arith.constant 0 : i32
    return %arg0, %arg1, %c0_i32, %c0_i32_0 : i32, i32, i32, i32
  }
  func.func @transform_8(%arg0: i32, %arg1: i32) -> (i32, i32, i32, i32) {
    %c0_i32 = arith.constant 0 : i32
    %c0_i32_0 = arith.constant 0 : i32
    %c0_i32_1 = arith.constant 0 : i32
    return %arg0, %arg1, %c0_i32, %c0_i32_0 : i32, i32, i32, i32
  }
}

</mosaic_0001>

<llo_original>
// kernel: _lambda_.3
$region0: #{_lambda_.3}
  #allocation0 [shape = 'u32[]', space=smem, size = 0x4, offset = 0x4, fixed_abs, tag = 'smem constant byte address 0x4 - core index']
  #allocation1 [shape = 'u32[144,128]{1,0:T(1,128)}', space=vmem, size = 0x12000, scoped, tag = 'internal scratch']
  %s0 = inlined_call_operand.vmem [shape: bf16[27,4,4], index: 0, kind: input, shape index: {}]
  %s1 = inlined_call_operand.vmem [shape: f32[4,1], index: 1, kind: input, shape index: {}]
  %s2 = inlined_call_operand.vmem [shape: bf16[9,16], index: 2, kind: input, shape index: {}]
  %s3 = inlined_call_operand.vmem [shape: bf16[2,6,4,16], index: 3, kind: input, shape index: {}, may-alias: {3,4,5}]
  %s4 = inlined_call_operand.vmem [shape: bf16[2,6,4,16], index: 4, kind: input, shape index: {}, may-alias: {3,4,5}]
  %s5 = inlined_call_operand.vmem [shape: bf16[2,6,4,16], index: 5, kind: input, shape index: {}, may-alias: {3,4,5}]
  %s6 = inlined_call_operand.vmem [shape: bf16[2,4,4,16], index: 6, kind: output, shape index: {}]
  %s7 = sld [smem:[#allocation0]]
  $region57: #{_lambda_.3} parent=0
    _
  %s9 = ssub.s32 1, %s7
  %s10 = scalar_select 0, %s9, %s7
  loop: start=0, step=1, limit=10
  $region2: #{_lambda_.3} parent=0 // loop_pre_header
    _
  $region3: #{_lambda_.3} parent=0 // loop_header
    %s12 = sphi 0, %s16
    %p13 = scmp.ge.s32.totalorder %s12, 10
    %s19 = sphi 0, %s31
    %s20 = sphi 0, %s27
    %s21 = sphi 0, %s19
    %s22 = sphi 0, %s20
    %s23 = sphi 0, %s21
    %s24 = sphi 0, %s22
    %s32 = sphi 0, %s32
    %s34 = sphi 0, %s32
    %s35 = sphi 0, %s34
    %s49 = sphi 0, %s35
    %s53 = sphi 0, %s53
    %s55 = sphi 0, %s53
    %s56 = sphi 0, %s55
    %s70 = sphi 0, %s56
    %s74 = sphi 0, %s74
    %s76 = sphi 0, %s74
    %s77 = sphi 0, %s76
    %s91 = sphi 0, %s77
    %s99 = sphi 0, %s101
    %s102 = sphi 0, %s99
    %s103 = sphi 0, %s102
    %s119 = sphi 0, %s103
    %s129 = sphi 0, %s131
    %s132 = sphi 0, %s129
    %s133 = sphi 0, %s132
    %s149 = sphi 0, %s133
    %s159 = sphi 0, %s161
    %s162 = sphi 0, %s159
    %s163 = sphi 0, %s162
    %s179 = sphi 0, %s163
    %s187 = sphi 0, %s189
    %s190 = sphi 0, %s187
    %s191 = sphi 0, %s190
    %s207 = sphi 0, %s191
  $region4: #{_lambda_.3} parent=0 // loop_header_branch
    %15 = sbr.rel (%p13) target = $region8
  $region5: #{_lambda_.3} parent=0 // loop_body
    %s17 = ssub.s32 %s12, 1
    %s18 = ssub.s32 %s12, 2
    %s25 = sadd.s32 1, %s20
    %p26 = scmp.ge.s32.totalorder %s25, 4
    %s27 = scalar_select %p26, 0, %s25
    %s28 = sadd.s32 1, %s19
    %s29 = scalar_select %p26, %s28, %s19
    %p30 = scmp.ge.s32.totalorder %s29, 2
    %s31 = scalar_select %p30, 0, %s29
    %s33 = sadd.s32 %s32, 1
    %p36 = scmp.eq.s32.totalorder %s12, 7
    %p37 = scmp.ne.s32.totalorder %s32, %s34
    %p38 = scmp.eq.s32.totalorder %s12, 0
    %p39 = por %p37, %p38
    %p40 = scmp.ne.s32.totalorder %s32, %s34
    %p41 = scmp.eq.s32.totalorder %s17, 7
    %p42 = por %p40, %p41
    %p43 = scmp.ne.s32.totalorder %s34, %s35
    %p44 = scmp.eq.s32.totalorder %s17, 0
    %p45 = por %p43, %p44
    %p46 = scmp.ne.s32.totalorder %s34, %s35
    %p47 = scmp.eq.s32.totalorder %s18, 7
    %p48 = por %p46, %p47
    %p50 = scmp.ne.s32.totalorder %s35, %s49
    %p51 = scmp.eq.s32.totalorder %s18, 0
    %p52 = por %p50, %p51
    %s54 = sadd.s32 %s53, 1
    %p57 = scmp.eq.s32.totalorder %s12, 7
    %p58 = scmp.ne.s32.totalorder %s53, %s55
    %p59 = scmp.eq.s32.totalorder %s12, 0
    %p60 = por %p58, %p59
    %p61 = scmp.ne.s32.totalorder %s53, %s55
    %p62 = scmp.eq.s32.totalorder %s17, 7
    %p63 = por %p61, %p62
    %p64 = scmp.ne.s32.totalorder %s55, %s56
    %p65 = scmp.eq.s32.totalorder %s17, 0
    %p66 = por %p64, %p65
    %p67 = scmp.ne.s32.totalorder %s55, %s56
    %p68 = scmp.eq.s32.totalorder %s18, 7
    %p69 = por %p67, %p68
    %p71 = scmp.ne.s32.totalorder %s56, %s70
    %p72 = scmp.eq.s32.totalorder %s18, 0
    %p73 = por %p71, %p72
    %s75 = sadd.s32 %s74, 1
    %p78 = scmp.eq.s32.totalorder %s12, 7
    %p79 = scmp.ne.s32.totalorder %s74, %s76
    %p80 = scmp.eq.s32.totalorder %s12, 0
    %p81 = por %p79, %p80
    %p82 = scmp.ne.s32.totalorder %s74, %s76
    %p83 = scmp.eq.s32.totalorder %s17, 7
    %p84 = por %p82, %p83
    %p85 = scmp.ne.s32.totalorder %s76, %s77
    %p86 = scmp.eq.s32.totalorder %s17, 0
    %p87 = por %p85, %p86
    %p88 = scmp.ne.s32.totalorder %s76, %s77
    %p89 = scmp.eq.s32.totalorder %s18, 7
    %p90 = por %p88, %p89
    %p92 = scmp.ne.s32.totalorder %s77, %s91
    %p93 = scmp.eq.s32.totalorder %s18, 0
    %p94 = por %p92, %p93
    %s95 = ssub.s32 %s19, %s31
    %s96 = ssub.s32 %s20, %s27
    %s97 = sor.u32 %s95, %s96
    %p98 = scmp.eq.s32.totalorder %s97, 0
    %s100 = sadd.s32 %s99, 1
    %s101 = scalar_select %p98, %s99, %s100
    %p104 = pneg %p98
    %p105 = scmp.eq.s32.totalorder %s12, 7
    %p106 = por %p104, %p105
    %p107 = scmp.ne.s32.totalorder %s99, %s102
    %p108 = scmp.eq.s32.totalorder %s12, 0
    %p109 = por %p107, %p108
    %p110 = scmp.ne.s32.totalorder %s99, %s102
    %p111 = scmp.eq.s32.totalorder %s17, 7
    %p112 = por %p110, %p111
    %p113 = scmp.ne.s32.totalorder %s102, %s103
    %p114 = scmp.eq.s32.totalorder %s17, 0
    %p115 = por %p113, %p114
    %p116 = scmp.ne.s32.totalorder %s102, %s103
    %p117 = scmp.eq.s32.totalorder %s18, 7
    %p118 = por %p116, %p117
    %p120 = scmp.ne.s32.totalorder %s103, %s119
    %p121 = scmp.eq.s32.totalorder %s18, 0
    %p122 = por %p120, %p121
    %s123 = sadd.s32 %s20, 1
    %s124 = sadd.s32 %s27, 1
    %s125 = ssub.s32 %s19, %s31
    %s126 = ssub.s32 %s123, %s124
    %s127 = sor.u32 %s125, %s126
    %p128 = scmp.eq.s32.totalorder %s127, 0
    %s130 = sadd.s32 %s129, 1
    %s131 = scalar_select %p128, %s129, %s130
    %p134 = pneg %p128
    %p135 = scmp.eq.s32.totalorder %s12, 7
    %p136 = por %p134, %p135
    %p137 = scmp.ne.s32.totalorder %s129, %s132
    %p138 = scmp.eq.s32.totalorder %s12, 0
    %p139 = por %p137, %p138
    %p140 = scmp.ne.s32.totalorder %s129, %s132
    %p141 = scmp.eq.s32.totalorder %s17, 7
    %p142 = por %p140, %p141
    %p143 = scmp.ne.s32.totalorder %s132, %s133
    %p144 = scmp.eq.s32.totalorder %s17, 0
    %p145 = por %p143, %p144
    %p146 = scmp.ne.s32.totalorder %s132, %s133
    %p147 = scmp.eq.s32.totalorder %s18, 7
    %p148 = por %p146, %p147
    %p150 = scmp.ne.s32.totalorder %s133, %s149
    %p151 = scmp.eq.s32.totalorder %s18, 0
    %p152 = por %p150, %p151
    %s153 = sadd.s32 %s20, 2
    %s154 = sadd.s32 %s27, 2
    %s155 = ssub.s32 %s19, %s31
    %s156 = ssub.s32 %s153, %s154
    %s157 = sor.u32 %s155, %s156
    %p158 = scmp.eq.s32.totalorder %s157, 0
    %s160 = sadd.s32 %s159, 1
    %s161 = scalar_select %p158, %s159, %s160
    %p164 = pneg %p158
    %p165 = scmp.eq.s32.totalorder %s12, 7
    %p166 = por %p164, %p165
    %p167 = scmp.ne.s32.totalorder %s159, %s162
    %p168 = scmp.eq.s32.totalorder %s12, 0
    %p169 = por %p167, %p168
    %p170 = scmp.ne.s32.totalorder %s159, %s162
    %p171 = scmp.eq.s32.totalorder %s17, 7
    %p172 = por %p170, %p171
    %p173 = scmp.ne.s32.totalorder %s162, %s163
    %p174 = scmp.eq.s32.totalorder %s17, 0
    %p175 = por %p173, %p174
    %p176 = scmp.ne.s32.totalorder %s162, %s163
    %p177 = scmp.eq.s32.totalorder %s18, 7
    %p178 = por %p176, %p177
    %p180 = scmp.ne.s32.totalorder %s163, %s179
    %p181 = scmp.eq.s32.totalorder %s18, 0
    %p182 = por %p180, %p181
    %s183 = ssub.s32 %s19, %s31
    %s184 = ssub.s32 %s20, %s27
    %s185 = sor.u32 %s183, %s184
    %p186 = scmp.eq.s32.totalorder %s185, 0
    %s188 = sadd.s32 %s187, 1
    %s189 = scalar_select %p186, %s187, %s188
    %p192 = pneg %p186
    %p193 = scmp.eq.s32.totalorder %s12, 7
    %p194 = por %p192, %p193
    %p195 = scmp.ne.s32.totalorder %s187, %s190
    %p196 = scmp.eq.s32.totalorder %s12, 0
    %p197 = por %p195, %p196
    %p198 = scmp.ne.s32.totalorder %s187, %s190
    %p199 = scmp.eq.s32.totalorder %s17, 7
    %p200 = por %p198, %p199
    %p201 = scmp.ne.s32.totalorder %s190, %s191
    %p202 = scmp.eq.s32.totalorder %s17, 0
    %p203 = por %p201, %p202
    %p204 = scmp.ne.s32.totalorder %s190, %s191
    %p205 = scmp.eq.s32.totalorder %s18, 7
    %p206 = por %p204, %p205
    %p208 = scmp.ne.s32.totalorder %s191, %s207
    %p209 = scmp.eq.s32.totalorder %s18, 0
    %p210 = por %p208, %p209
    %p211 = scmp.le.s32.totalorder 1, %s12
    %p212 = scmp.lt.s32.totalorder %s12, 9
    %p213 = pnand %p211, %p212
    %p214 = pneg %p213
    // Predicated region
    $region9: #{_lambda_.3} parent=5 // pred_check
      _
    $region10: #{_lambda_.3} parent=5 // pred_check_branch
      %216 = sbr.rel (%p213) target = $region12
    $region11: #{_lambda_.3} parent=5 // pred_region
      %s217 = ssub.s32 %s12, 1
      // Predicated region
      $region13: #{_lambda_.3} parent=11 // pred_check
        %p218 = pneg %p45
      $region14: #{_lambda_.3} parent=11 // pred_check_branch
        %220 = sbr.rel (%p218) target = $region16
      $region15: #{_lambda_.3} parent=11 // pred_region
        _
      $region16: #{_lambda_.3} parent=11 // pred_fallthru
        _
      // Predicated region
      $region17: #{_lambda_.3} parent=11 // pred_check
        %p221 = pneg %p66
      $region18: #{_lambda_.3} parent=11 // pred_check_branch
        %223 = sbr.rel (%p221) target = $region20
      $region19: #{_lambda_.3} parent=11 // pred_region
        _
      $region20: #{_lambda_.3} parent=11 // pred_fallthru
        _
      // Predicated region
      $region21: #{_lambda_.3} parent=11 // pred_check
        %p224 = pneg %p87
      $region22: #{_lambda_.3} parent=11 // pred_check_branch
        %226 = sbr.rel (%p224) target = $region24
      $region23: #{_lambda_.3} parent=11 // pred_region
        _
      $region24: #{_lambda_.3} parent=11 // pred_fallthru
        _
    $region12: #{_lambda_.3} parent=5 // pred_fallthru
      _
    %p227 = scmp.lt.s32.totalorder %s12, 8
    // Predicated region
    $region25: #{_lambda_.3} parent=5 // pred_check
      %p228 = pneg %p227
    $region26: #{_lambda_.3} parent=5 // pred_check_branch
      %230 = sbr.rel (%p228) target = $region28
    $region27: #{_lambda_.3} parent=5 // pred_region
      // Predicated region
      $region29: #{_lambda_.3} parent=27 // pred_check
        %p231 = pneg %p109
      $region30: #{_lambda_.3} parent=27 // pred_check_branch
        %233 = sbr.rel (%p231) target = $region32
      $region31: #{_lambda_.3} parent=27 // pred_region
        %p234 = scmp.lt.s32.totalorder %s19, 1
        %s235 = scalar_select %p234, %s19, 1
        %p236 = scmp.lt.s32.totalorder %s20, 5
        %s237 = scalar_select %p236, %s20, 5
        %s238 = smul.addr %s235, 6
        %s239 = sadd.s32 %s237, %s238
        %s240 = smul.addr %s239, 2
        %s241 = scalar_lea.vmem %s3, %s240
      $region32: #{_lambda_.3} parent=27 // pred_fallthru
        _
      // Predicated region
      $region33: #{_lambda_.3} parent=27 // pred_check
        %p242 = pneg %p139
      $region34: #{_lambda_.3} parent=27 // pred_check_branch
        %244 = sbr.rel (%p242) target = $region36
      $region35: #{_lambda_.3} parent=27 // pred_region
        %s245 = sadd.s32 %s20, 1
        %p246 = scmp.lt.s32.totalorder %s19, 1
        %s247 = scalar_select %p246, %s19, 1
        %p248 = scmp.lt.s32.totalorder %s245, 5
        %s249 = scalar_select %p248, %s245, 5
        %s250 = smul.addr %s247, 6
        %s251 = sadd.s32 %s249, %s250
        %s252 = smul.addr %s251, 2
        %s253 = scalar_lea.vmem %s4, %s252
        %s254 = sadd.s32 %s20, 1
      $region36: #{_lambda_.3} parent=27 // pred_fallthru
        _
      // Predicated region
      $region37: #{_lambda_.3} parent=27 // pred_check
        %p255 = pneg %p169
      $region38: #{_lambda_.3} parent=27 // pred_check_branch
        %257 = sbr.rel (%p255) target = $region40
      $region39: #{_lambda_.3} parent=27 // pred_region
        %s258 = sadd.s32 %s20, 2
        %p259 = scmp.lt.s32.totalorder %s19, 1
        %s260 = scalar_select %p259, %s19, 1
        %p261 = scmp.lt.s32.totalorder %s258, 5
        %s262 = scalar_select %p261, %s258, 5
        %s263 = smul.addr %s260, 6
        %s264 = sadd.s32 %s262, %s263
        %s265 = smul.addr %s264, 2
        %s266 = scalar_lea.vmem %s5, %s265
        %s267 = sadd.s32 %s20, 2
      $region40: #{_lambda_.3} parent=27 // pred_fallthru
        _
    $region28: #{_lambda_.3} parent=5 // pred_fallthru
      _
    %p268 = scmp.le.s32.totalorder 1, %s12
    %p269 = scmp.lt.s32.totalorder %s12, 9
    %p270 = pnand %p268, %p269
    %p271 = pneg %p270
    // Predicated region
    $region41: #{_lambda_.3} parent=5 // pred_check
      _
    $region42: #{_lambda_.3} parent=5 // pred_check_branch
      %273 = sbr.rel (%p270) target = $region44
    $region43: #{_lambda_.3} parent=5 // pred_region
      %s274 = ssub.s32 %s12, 1
      %p275 = pneg %p45
      %p276 = pneg %p42
      %p277 = pneg %p66
      %p278 = pneg %p63
      %p279 = pneg %p87
      %p280 = pneg %p84
      %p281 = scmp.lt.s32.totalorder %s21, 1
      %s282 = scalar_select %p281, %s21, 1
      %p283 = scmp.lt.s32.totalorder %s22, 5
      %s284 = scalar_select %p283, %s22, 5
      %s285 = smul.addr %s282, 6
      %s286 = sadd.s32 %s284, %s285
      %s287 = smul.addr %s286, 2
      %s288 = scalar_lea.vmem %s3, %s287
      %p289 = pneg %p115
      %p290 = pneg %p112
      %s291 = sadd.s32 %s22, 1
      %p292 = scmp.lt.s32.totalorder %s21, 1
      %s293 = scalar_select %p292, %s21, 1
      %p294 = scmp.lt.s32.totalorder %s291, 5
      %s295 = scalar_select %p294, %s291, 5
      %s296 = smul.addr %s293, 6
      %s297 = sadd.s32 %s295, %s296
      %s298 = smul.addr %s297, 2
      %s299 = scalar_lea.vmem %s4, %s298
      %p300 = pneg %p145
      %p301 = pneg %p142
      %s302 = sadd.s32 %s22, 2
      %p303 = scmp.lt.s32.totalorder %s21, 1
      %s304 = scalar_select %p303, %s21, 1
      %p305 = scmp.lt.s32.totalorder %s302, 5
      %s306 = scalar_select %p305, %s302, 5
      %s307 = smul.addr %s304, 6
      %s308 = sadd.s32 %s306, %s307
      %s309 = smul.addr %s308, 2
      %s310 = scalar_lea.vmem %s5, %s309
      %p311 = pneg %p175
      %p312 = pneg %p172
      %p313 = pneg %p203
      %p314 = pneg %p200
      %p315 = scmp.lt.s32.totalorder %s21, 1
      %s316 = scalar_select %p315, %s21, 1
      %p317 = scmp.lt.s32.totalorder %s22, 3
      %s318 = scalar_select %p317, %s22, 3
      %s319 = smul.addr %s316, 4
      %s320 = sadd.s32 %s318, %s319
      %s321 = smul.addr %s320, 2
      %s322 = scalar_lea.vmem %s6, %s321
      %p323 = scmp.lt.s32.totalorder %s21, 1
      %s324 = scalar_select %p323, %s21, 1
      %p325 = scmp.lt.s32.totalorder %s22, 5
      %s326 = scalar_select %p325, %s22, 5
      %s327 = smul.addr %s324, 6
      %s328 = sadd.s32 %s326, %s327
      %s329 = smul.addr %s328, 2
      %s330 = scalar_lea.vmem %s3, %s329
      %s331 = sadd.s32 %s22, 1
      %p332 = scmp.lt.s32.totalorder %s21, 1
      %s333 = scalar_select %p332, %s21, 1
      %p334 = scmp.lt.s32.totalorder %s331, 5
      %s335 = scalar_select %p334, %s331, 5
      %s336 = smul.addr %s333, 6
      %s337 = sadd.s32 %s335, %s336
      %s338 = smul.addr %s337, 2
      %s339 = scalar_lea.vmem %s4, %s338
      %s340 = sadd.s32 %s22, 1
      %s341 = sadd.s32 %s22, 2
      %p342 = scmp.lt.s32.totalorder %s21, 1
      %s343 = scalar_select %p342, %s21, 1
      %p344 = scmp.lt.s32.totalorder %s341, 5
      %s345 = scalar_select %p344, %s341, 5
      %s346 = smul.addr %s343, 6
      %s347 = sadd.s32 %s345, %s346
      %s348 = smul.addr %s347, 2
      %s349 = scalar_lea.vmem %s5, %s348
      %s350 = sadd.s32 %s22, 2
      %p351 = scmp.lt.s32.totalorder %s21, 1
      %s352 = scalar_select %p351, %s21, 1
      %p353 = scmp.lt.s32.totalorder %s22, 3
      %s354 = scalar_select %p353, %s22, 3
      %s355 = smul.addr %s352, 4
      %s356 = sadd.s32 %s354, %s355
      %s357 = smul.addr %s356, 2
      %s358 = scalar_lea.vmem %s6, %s357
      %v360 = vld [vmem:[%s330] sm:$0x3]
      %v363 = vunpack.c.l.s4 1983009808
      %v364 = vunpack.c.0.s8 %v363
      %v365 = vlaneseq
      %v366 = vshrl.u32 %v365, 7
      %v367 = vsub.s32 %v364, %v366
      %v368 = vrot.slane %v360, %v367
      %369 = vrot.lane.b32.xlu0 %v368, 117
      %v370 = vpop.permute.xlu0 %369
      %371 = vrot.lane.b32.xlu0 %v368, 5
      %v372 = vpop.permute.xlu0 %371
      %vm373 = vcmask 39936
      %v376 = vsel %vm373, %v370, %v372
      %v378 = vld [vmem:[%s2] sm:$0x1]
      %v380 = vpack.i.b16 %v378, %v378
      %v382 = vlaneseq
      %v383 = vshrl.u32 %v382, 7
      %v384 = vsub.s32 0, %v383
      %v385 = vrot.slane %v380, %v384
      %v386 = vmul.bf16 %v376, %v385
      %v387 = vld [vmem:[%s0] sm:$0x3]
      %388 = vrot.lane.b32.xlu0 %v368, 116
      %v389 = vpop.permute.xlu0 %388
      %390 = vrot.lane.b32.xlu0 %v368, 4
      %v391 = vpop.permute.xlu0 %390
      %vm392 = vcmask 31744
      %v395 = vsel %vm392, %v389, %v391
      %v397 = vshrl.u32 %v378, 16
      %v398 = vpack.i.b16 %v397, %v397
      %v400 = vlaneseq
      %v401 = vshrl.u32 %v400, 7
      %v402 = vsub.s32 0, %v401
      %v403 = vrot.slane %v398, %v402
      %v404 = vmul.bf16 %v395, %v403
      %s405 = scalar_lea.vmem %s0, 2
      %v406 = vld [vmem:[%s405] sm:$0x3]
      %v408 = vsel %vm392, %v406, 0
      %vm410 = vcmask 1041408
      %v412 = vsel %vm410, %v404, 0
      %414 = vmatprep.subr.bf16.mxu0 0
      %415 = vmatpush1.bf16.msra.mxu0 %v412
      %416 = vmatprep.subr.bf16.mxu0 0
      %417 = vmatpush1.bf16.msra.mxu0 0
      %418 = vmatprep.subr.bf16.mxu0 0
      %419 = vmatpush1.bf16.msra.mxu0 0
      %420 = vmatprep.subr.bf16.mxu0 0
      %421 = vmatpush1.bf16.msra.mxu0 0
      %422 = vmatprep.subr.bf16.mxu0 0
      %423 = vmatpush1.bf16.msra.mxu0 0
      %424 = vmatprep.subr.bf16.mxu0 0
      %425 = vmatpush1.bf16.msra.mxu0 0
      %426 = vmatprep.subr.bf16.mxu0 0
      %427 = vmatpush1.bf16.msra.mxu0 0
      %428 = vmatprep.subr.bf16.mxu0 0
      %429 = vmatpush1.bf16.msra.mxu0 0
      %430 = vmatprep.subr.bf16.mxu0 0
      %431 = vmatpush1.bf16.msra.mxu0 0
      %432 = vmatprep.subr.bf16.mxu0 0
      %433 = vmatpush1.bf16.msra.mxu0 0
      %434 = vmatprep.subr.bf16.mxu0 0
      %435 = vmatpush1.bf16.msra.mxu0 0
      %436 = vmatprep.subr.bf16.mxu0 0
      %437 = vmatpush1.bf16.msra.mxu0 0
      %438 = vmatprep.subr.bf16.mxu0 0
      %439 = vmatpush1.bf16.msra.mxu0 0
      %440 = vmatprep.subr.bf16.mxu0 0
      %441 = vmatpush1.bf16.msra.mxu0 0
      %442 = vmatprep.subr.bf16.mxu0 0
      %443 = vmatpush1.bf16.msra.mxu0 0
      %444 = vmatprep.subr.bf16.mxu0 0
      %445 = vmatpush1.bf16.msra.mxu0 0
      %446 = vmatprep.mubr.bf16.mxu0 0
      %447 = vmatmul.mubr.bf16.gmra.mrb[0].mxu0 %v408
      %v448 = vpop.f32.mrb[0].mxu0
      %v449 = vadd.f32 0.0, %v448
      %v450 = vpop.f32.mrb[0].mxu0
      %v451 = vpop.f32.mrb[0].mxu0
      %v452 = vpop.f32.mrb[0].mxu0
      %453 = vdwg.mxu0
      %v455 = vsel %vm392, %v387, 0
      %v458 = vsel %vm410, %v386, 0
      %460 = vmatprep.subr.bf16.mxu0 0
      %461 = vmatpush1.bf16.msra.mxu0 %v458
      %462 = vmatprep.subr.bf16.mxu0 0
      %463 = vmatpush1.bf16.msra.mxu0 0
      %464 = vmatprep.subr.bf16.mxu0 0
      %465 = vmatpush1.bf16.msra.mxu0 0
      %466 = vmatprep.subr.bf16.mxu0 0
      %467 = vmatpush1.bf16.msra.mxu0 0
      %468 = vmatprep.subr.bf16.mxu0 0
      %469 = vmatpush1.bf16.msra.mxu0 0
      %470 = vmatprep.subr.bf16.mxu0 0
      %471 = vmatpush1.bf16.msra.mxu0 0
      %472 = vmatprep.subr.bf16.mxu0 0
      %473 = vmatpush1.bf16.msra.mxu0 0
      %474 = vmatprep.subr.bf16.mxu0 0
      %475 = vmatpush1.bf16.msra.mxu0 0
      %476 = vmatprep.subr.bf16.mxu0 0
      %477 = vmatpush1.bf16.msra.mxu0 0
      %478 = vmatprep.subr.bf16.mxu0 0
      %479 = vmatpush1.bf16.msra.mxu0 0
      %480 = vmatprep.subr.bf16.mxu0 0
      %481 = vmatpush1.bf16.msra.mxu0 0
      %482 = vmatprep.subr.bf16.mxu0 0
      %483 = vmatpush1.bf16.msra.mxu0 0
      %484 = vmatprep.subr.bf16.mxu0 0
      %485 = vmatpush1.bf16.msra.mxu0 0
      %486 = vmatprep.subr.bf16.mxu0 0
      %487 = vmatpush1.bf16.msra.mxu0 0
      %488 = vmatprep.subr.bf16.mxu0 0
      %489 = vmatpush1.bf16.msra.mxu0 0
      %490 = vmatprep.subr.bf16.mxu0 0
      %491 = vmatpush1.bf16.msra.mxu0 0
      %492 = vmatprep.mubr.bf16.mxu0 0
      %493 = vmatmul.mubr.bf16.gmra.mrb[0].mxu0 %v455
      %v494 = vpop.f32.mrb[0].mxu0
      %v495 = vadd.f32 %v449, %v494
      %v496 = vpop.f32.mrb[0].mxu0
      %v497 = vpop.f32.mrb[0].mxu0
      %v498 = vpop.f32.mrb[0].mxu0
      %499 = vdwg.mxu0
      %500 = vrot.lane.b32.xlu0 %v368, 115
      %v501 = vpop.permute.xlu0 %500
      %502 = vrot.lane.b32.xlu0 %v368, 3
      %v503 = vpop.permute.xlu0 %502
      %vm504 = vcmask 23552
      %v507 = vsel %vm504, %v501, %v503
      %v509 = vld [vmem:[%s2] sm:$0x2]
      %v511 = vpack.i.b16 %v509, %v509
      %v513 = vlaneseq
      %v514 = vshrl.u32 %v513, 7
      %v515 = vsub.s32 1, %v514
      %v516 = vrot.slane %v511, %v515
      %v517 = vmul.bf16 %v507, %v516
      %s518 = scalar_lea.vmem %s0, 4
      %v519 = vld [vmem:[%s518] sm:$0x3]
      %v521 = vsel %vm392, %v519, 0
      %v524 = vsel %vm410, %v517, 0
      %526 = vmatprep.subr.bf16.mxu0 0
      %527 = vmatpush1.bf16.msra.mxu0 %v524
      %528 = vmatprep.subr.bf16.mxu0 0
      %529 = vmatpush1.bf16.msra.mxu0 0
      %530 = vmatprep.subr.bf16.mxu0 0
      %531 = vmatpush1.bf16.msra.mxu0 0
      %532 = vmatprep.subr.bf16.mxu0 0
      %533 = vmatpush1.bf16.msra.mxu0 0
      %534 = vmatprep.subr.bf16.mxu0 0
      %535 = vmatpush1.bf16.msra.mxu0 0
      %536 = vmatprep.subr.bf16.mxu0 0
      %537 = vmatpush1.bf16.msra.mxu0 0
      %538 = vmatprep.subr.bf16.mxu0 0
      %539 = vmatpush1.bf16.msra.mxu0 0
      %540 = vmatprep.subr.bf16.mxu0 0
      %541 = vmatpush1.bf16.msra.mxu0 0
      %542 = vmatprep.subr.bf16.mxu0 0
      %543 = vmatpush1.bf16.msra.mxu0 0
      %544 = vmatprep.subr.bf16.mxu0 0
      %545 = vmatpush1.bf16.msra.mxu0 0
      %546 = vmatprep.subr.bf16.mxu0 0
      %547 = vmatpush1.bf16.msra.mxu0 0
      %548 = vmatprep.subr.bf16.mxu0 0
      %549 = vmatpush1.bf16.msra.mxu0 0
      %550 = vmatprep.subr.bf16.mxu0 0
      %551 = vmatpush1.bf16.msra.mxu0 0
      %552 = vmatprep.subr.bf16.mxu0 0
      %553 = vmatpush1.bf16.msra.mxu0 0
      %554 = vmatprep.subr.bf16.mxu0 0
      %555 = vmatpush1.bf16.msra.mxu0 0
      %556 = vmatprep.subr.bf16.mxu0 0
      %557 = vmatpush1.bf16.msra.mxu0 0
      %558 = vmatprep.mubr.bf16.mxu0 0
      %559 = vmatmul.mubr.bf16.gmra.mrb[0].mxu0 %v521
      %v560 = vpop.f32.mrb[0].mxu0
      %v561 = vadd.f32 0.0, %v560
      %v562 = vpop.f32.mrb[0].mxu0
      %v563 = vpop.f32.mrb[0].mxu0
      %v564 = vpop.f32.mrb[0].mxu0
      %565 = vdwg.mxu0
      %v566 = vadd.f32 %v495, %v561
      %567 = vrot.lane.b32.xlu0 %v368, 113
      %v568 = vpop.permute.xlu0 %567
      %569 = vrot.lane.b32.xlu0 %v368, 1
      %v570 = vpop.permute.xlu0 %569
      %vm571 = vcmask 7168
      %v574 = vsel %vm571, %v568, %v570
      %v576 = vld [vmem:[%s2] sm:$0x2]
      %v578 = vshrl.u32 %v576, 16
      %v579 = vpack.i.b16 %v578, %v578
      %v581 = vlaneseq
      %v582 = vshrl.u32 %v581, 7
      %v583 = vsub.s32 1, %v582
      %v584 = vrot.slane %v579, %v583
      %v585 = vmul.bf16 %v574, %v584
      %s586 = scalar_lea.vmem %s0, 6
      %v587 = vld [vmem:[%s586] sm:$0x3]
      %v589 = vsel %vm392, %v587, 0
      %v592 = vsel %vm410, %v585, 0
      %594 = vmatprep.subr.bf16.mxu0 0
      %595 = vmatpush1.bf16.msra.mxu0 %v592
      %596 = vmatprep.subr.bf16.mxu0 0
      %597 = vmatpush1.bf16.msra.mxu0 0
      %598 = vmatprep.subr.bf16.mxu0 0
      %599 = vmatpush1.bf16.msra.mxu0 0
      %600 = vmatprep.subr.bf16.mxu0 0
      %601 = vmatpush1.bf16.msra.mxu0 0
      %602 = vmatprep.subr.bf16.mxu0 0
      %603 = vmatpush1.bf16.msra.mxu0 0
      %604 = vmatprep.subr.bf16.mxu0 0
      %605 = vmatpush1.bf16.msra.mxu0 0
      %606 = vmatprep.subr.bf16.mxu0 0
      %607 = vmatpush1.bf16.msra.mxu0 0
      %608 = vmatprep.subr.bf16.mxu0 0
      %609 = vmatpush1.bf16.msra.mxu0 0
      %610 = vmatprep.subr.bf16.mxu0 0
      %611 = vmatpush1.bf16.msra.mxu0 0
      %612 = vmatprep.subr.bf16.mxu0 0
      %613 = vmatpush1.bf16.msra.mxu0 0
      %614 = vmatprep.subr.bf16.mxu0 0
      %615 = vmatpush1.bf16.msra.mxu0 0
      %616 = vmatprep.subr.bf16.mxu0 0
      %617 = vmatpush1.bf16.msra.mxu0 0
      %618 = vmatprep.subr.bf16.mxu0 0
      %619 = vmatpush1.bf16.msra.mxu0 0
      %620 = vmatprep.subr.bf16.mxu0 0
      %621 = vmatpush1.bf16.msra.mxu0 0
      %622 = vmatprep.subr.bf16.mxu0 0
      %623 = vmatpush1.bf16.msra.mxu0 0
      %624 = vmatprep.subr.bf16.mxu0 0
      %625 = vmatpush1.bf16.msra.mxu0 0
      %626 = vmatprep.mubr.bf16.mxu0 0
      %627 = vmatmul.mubr.bf16.gmra.mrb[0].mxu0 %v589
      %v628 = vpop.f32.mrb[0].mxu0
      %v629 = vadd.f32 0.0, %v628
      %v630 = vpop.f32.mrb[0].mxu0
      %v631 = vpop.f32.mrb[0].mxu0
      %v632 = vpop.f32.mrb[0].mxu0
      %633 = vdwg.mxu0
      %v634 = vadd.f32 %v566, %v629
      %s635 = scalar_lea.vmem %s0, 8
      %v636 = vld [vmem:[%s635] sm:$0x3]
      %v638 = vsel %vm392, %v636, 0
      %v641 = vsel %vm410, %v360, 0
      %643 = vmatprep.subr.bf16.mxu0 0
      %644 = vmatpush1.bf16.msra.mxu0 %v641
      %645 = vmatprep.subr.bf16.mxu0 0
      %646 = vmatpush1.bf16.msra.mxu0 0
      %647 = vmatprep.subr.bf16.mxu0 0
      %648 = vmatpush1.bf16.msra.mxu0 0
      %649 = vmatprep.subr.bf16.mxu0 0
      %650 = vmatpush1.bf16.msra.mxu0 0
      %651 = vmatprep.subr.bf16.mxu0 0
      %652 = vmatpush1.bf16.msra.mxu0 0
      %653 = vmatprep.subr.bf16.mxu0 0
      %654 = vmatpush1.bf16.msra.mxu0 0
      %655 = vmatprep.subr.bf16.mxu0 0
      %656 = vmatpush1.bf16.msra.mxu0 0
      %657 = vmatprep.subr.bf16.mxu0 0
      %658 = vmatpush1.bf16.msra.mxu0 0
      %659 = vmatprep.subr.bf16.mxu0 0
      %660 = vmatpush1.bf16.msra.mxu0 0
      %661 = vmatprep.subr.bf16.mxu0 0
      %662 = vmatpush1.bf16.msra.mxu0 0
      %663 = vmatprep.subr.bf16.mxu0 0
      %664 = vmatpush1.bf16.msra.mxu0 0
      %665 = vmatprep.subr.bf16.mxu0 0
      %666 = vmatpush1.bf16.msra.mxu0 0
      %667 = vmatprep.subr.bf16.mxu0 0
      %668 = vmatpush1.bf16.msra.mxu0 0
      %669 = vmatprep.subr.bf16.mxu0 0
      %670 = vmatpush1.bf16.msra.mxu0 0
      %671 = vmatprep.subr.bf16.mxu0 0
      %672 = vmatpush1.bf16.msra.mxu0 0
      %673 = vmatprep.subr.bf16.mxu0 0
      %674 = vmatpush1.bf16.msra.mxu0 0
      %675 = vmatprep.mubr.bf16.mxu0 0
      %676 = vmatmul.mubr.bf16.gmra.mrb[0].mxu0 %v638
      %v677 = vpop.f32.mrb[0].mxu0
      %v678 = vadd.f32 0.0, %v677
      %v679 = vpop.f32.mrb[0].mxu0
      %v680 = vpop.f32.mrb[0].mxu0
      %v681 = vpop.f32.mrb[0].mxu0
      %682 = vdwg.mxu0
      %v683 = vadd.f32 %v634, %v678
      %684 = vrot.lane.b32.xlu0 %v368, 127
      %v685 = vpop.permute.xlu0 %684
      %686 = vrot.lane.b32.xlu0 %v368, 15
      %v687 = vpop.permute.xlu0 %686
      %vm688 = vcmask 121856
      %v691 = vsel %vm688, %v685, %v687
      %v693 = vld [vmem:[%s2] sm:$0x4]
      %v695 = vshrl.u32 %v693, 16
      %v696 = vpack.i.b16 %v695, %v695
      %v698 = vlaneseq
      %v699 = vshrl.u32 %v698, 7
      %v700 = vsub.s32 2, %v699
      %v701 = vrot.slane %v696, %v700
      %v702 = vmul.bf16 %v691, %v701
      %s703 = scalar_lea.vmem %s0, 10
      %v704 = vld [vmem:[%s703] sm:$0x3]
      %v706 = vsel %vm392, %v704, 0
      %v709 = vsel %vm410, %v702, 0
      %711 = vmatprep.subr.bf16.mxu0 0
      %712 = vmatpush1.bf16.msra.mxu0 %v709
      %713 = vmatprep.subr.bf16.mxu0 0
      %714 = vmatpush1.bf16.msra.mxu0 0
      %715 = vmatprep.subr.bf16.mxu0 0
      %716 = vmatpush1.bf16.msra.mxu0 0
      %717 = vmatprep.subr.bf16.mxu0 0
      %718 = vmatpush1.bf16.msra.mxu0 0
      %719 = vmatprep.subr.bf16.mxu0 0
      %720 = vmatpush1.bf16.msra.mxu0 0
      %721 = vmatprep.subr.bf16.mxu0 0
      %722 = vmatpush1.bf16.msra.mxu0 0
      %723 = vmatprep.subr.bf16.mxu0 0
      %724 = vmatpush1.bf16.msra.mxu0 0
      %725 = vmatprep.subr.bf16.mxu0 0
      %726 = vmatpush1.bf16.msra.mxu0 0
      %727 = vmatprep.subr.bf16.mxu0 0
      %728 = vmatpush1.bf16.msra.mxu0 0
      %729 = vmatprep.subr.bf16.mxu0 0
      %730 = vmatpush1.bf16.msra.mxu0 0
      %731 = vmatprep.subr.bf16.mxu0 0
      %732 = vmatpush1.bf16.msra.mxu0 0
      %733 = vmatprep.subr.bf16.mxu0 0
      %734 = vmatpush1.bf16.msra.mxu0 0
      %735 = vmatprep.subr.bf16.mxu0 0
      %736 = vmatpush1.bf16.msra.mxu0 0
      %737 = vmatprep.subr.bf16.mxu0 0
      %738 = vmatpush1.bf16.msra.mxu0 0
      %739 = vmatprep.subr.bf16.mxu0 0
      %740 = vmatpush1.bf16.msra.mxu0 0
      %741 = vmatprep.subr.bf16.mxu0 0
      %742 = vmatpush1.bf16.msra.mxu0 0
      %743 = vmatprep.mubr.bf16.mxu0 0
      %744 = vmatmul.mubr.bf16.gmra.mrb[0].mxu0 %v706
      %v745 = vpop.f32.mrb[0].mxu0
      %v746 = vadd.f32 0.0, %v745
      %v747 = vpop.f32.mrb[0].mxu0
      %v748 = vpop.f32.mrb[0].mxu0
      %v749 = vpop.f32.mrb[0].mxu0
      %750 = vdwg.mxu0
      %v751 = vadd.f32 %v683, %v746
      %752 = vrot.lane.b32.xlu0 %v368, 125
      %v753 = vpop.permute.xlu0 %752
      %754 = vrot.lane.b32.xlu0 %v368, 13
      %v755 = vpop.permute.xlu0 %754
      %vm756 = vcmask 105472
      %v759 = vsel %vm756, %v753, %v755
      %v761 = vld [vmem:[%s2] sm:$0x8]
      %v763 = vpack.i.b16 %v761, %v761
      %v765 = vlaneseq
      %v766 = vshrl.u32 %v765, 7
      %v767 = vsub.s32 3, %v766
      %v768 = vrot.slane %v763, %v767
      %v769 = vmul.bf16 %v759, %v768
      %s770 = scalar_lea.vmem %s0, 12
      %v771 = vld [vmem:[%s770] sm:$0x3]
      %v773 = vsel %vm392, %v771, 0
      %v776 = vsel %vm410, %v769, 0
      %778 = vmatprep.subr.bf16.mxu0 0
      %779 = vmatpush1.bf16.msra.mxu0 %v776
      %780 = vmatprep.subr.bf16.mxu0 0
      %781 = vmatpush1.bf16.msra.mxu0 0
      %782 = vmatprep.subr.bf16.mxu0 0
      %783 = vmatpush1.bf16.msra.mxu0 0
      %784 = vmatprep.subr.bf16.mxu0 0
      %785 = vmatpush1.bf16.msra.mxu0 0
      %786 = vmatprep.subr.bf16.mxu0 0
      %787 = vmatpush1.bf16.msra.mxu0 0
      %788 = vmatprep.subr.bf16.mxu0 0
      %789 = vmatpush1.bf16.msra.mxu0 0
      %790 = vmatprep.subr.bf16.mxu0 0
      %791 = vmatpush1.bf16.msra.mxu0 0
      %792 = vmatprep.subr.bf16.mxu0 0
      %793 = vmatpush1.bf16.msra.mxu0 0
      %794 = vmatprep.subr.bf16.mxu0 0
      %795 = vmatpush1.bf16.msra.mxu0 0
      %796 = vmatprep.subr.bf16.mxu0 0
      %797 = vmatpush1.bf16.msra.mxu0 0
      %798 = vmatprep.subr.bf16.mxu0 0
      %799 = vmatpush1.bf16.msra.mxu0 0
      %800 = vmatprep.subr.bf16.mxu0 0
      %801 = vmatpush1.bf16.msra.mxu0 0
      %802 = vmatprep.subr.bf16.mxu0 0
      %803 = vmatpush1.bf16.msra.mxu0 0
      %804 = vmatprep.subr.bf16.mxu0 0
      %805 = vmatpush1.bf16.msra.mxu0 0
      %806 = vmatprep.subr.bf16.mxu0 0
      %807 = vmatpush1.bf16.msra.mxu0 0
      %808 = vmatprep.subr.bf16.mxu0 0
      %809 = vmatpush1.bf16.msra.mxu0 0
      %810 = vmatprep.mubr.bf16.mxu0 0
      %811 = vmatmul.mubr.bf16.gmra.mrb[0].mxu0 %v773
      %v812 = vpop.f32.mrb[0].mxu0
      %v813 = vadd.f32 0.0, %v812
      %v814 = vpop.f32.mrb[0].mxu0
      %v815 = vpop.f32.mrb[0].mxu0
      %v816 = vpop.f32.mrb[0].mxu0
      %817 = vdwg.mxu0
      %v818 = vadd.f32 %v751, %v813
      %819 = vrot.lane.b32.xlu0 %v368, 124
      %v820 = vpop.permute.xlu0 %819
      %821 = vrot.lane.b32.xlu0 %v368, 12
      %v822 = vpop.permute.xlu0 %821
      %vm823 = vcmask 97280
      %v826 = vsel %vm823, %v820, %v822
      %v828 = vld [vmem:[%s2] sm:$0x8]
      %v830 = vshrl.u32 %v828, 16
      %v831 = vpack.i.b16 %v830, %v830
      %v833 = vlaneseq
      %v834 = vshrl.u32 %v833, 7
      %v835 = vsub.s32 3, %v834
      %v836 = vrot.slane %v831, %v835
      %v837 = vmul.bf16 %v826, %v836
      %s838 = scalar_lea.vmem %s0, 14
      %v839 = vld [vmem:[%s838] sm:$0x3]
      %v841 = vsel %vm392, %v839, 0
      %v844 = vsel %vm410, %v837, 0
      %846 = vmatprep.subr.bf16.mxu0 0
      %847 = vmatpush1.bf16.msra.mxu0 %v844
      %848 = vmatprep.subr.bf16.mxu0 0
      %849 = vmatpush1.bf16.msra.mxu0 0
      %850 = vmatprep.subr.bf16.mxu0 0
      %851 = vmatpush1.bf16.msra.mxu0 0
      %852 = vmatprep.subr.bf16.mxu0 0
      %853 = vmatpush1.bf16.msra.mxu0 0
      %854 = vmatprep.subr.bf16.mxu0 0
      %855 = vmatpush1.bf16.msra.mxu0 0
      %856 = vmatprep.subr.bf16.mxu0 0
      %857 = vmatpush1.bf16.msra.mxu0 0
      %858 = vmatprep.subr.bf16.mxu0 0
      %859 = vmatpush1.bf16.msra.mxu0 0
      %860 = vmatprep.subr.bf16.mxu0 0
      %861 = vmatpush1.bf16.msra.mxu0 0
      %862 = vmatprep.subr.bf16.mxu0 0
      %863 = vmatpush1.bf16.msra.mxu0 0
      %864 = vmatprep.subr.bf16.mxu0 0
      %865 = vmatpush1.bf16.msra.mxu0 0
      %866 = vmatprep.subr.bf16.mxu0 0
      %867 = vmatpush1.bf16.msra.mxu0 0
      %868 = vmatprep.subr.bf16.mxu0 0
      %869 = vmatpush1.bf16.msra.mxu0 0
      %870 = vmatprep.subr.bf16.mxu0 0
      %871 = vmatpush1.bf16.msra.mxu0 0
      %872 = vmatprep.subr.bf16.mxu0 0
      %873 = vmatpush1.bf16.msra.mxu0 0
      %874 = vmatprep.subr.bf16.mxu0 0
      %875 = vmatpush1.bf16.msra.mxu0 0
      %876 = vmatprep.subr.bf16.mxu0 0
      %877 = vmatpush1.bf16.msra.mxu0 0
      %878 = vmatprep.mubr.bf16.mxu0 0
      %879 = vmatmul.mubr.bf16.gmra.mrb[0].mxu0 %v841
      %v880 = vpop.f32.mrb[0].mxu0
      %v881 = vadd.f32 0.0, %v880
      %v882 = vpop.f32.mrb[0].mxu0
      %v883 = vpop.f32.mrb[0].mxu0
      %v884 = vpop.f32.mrb[0].mxu0
      %885 = vdwg.mxu0
      %v886 = vadd.f32 %v818, %v881
      %887 = vrot.lane.b32.xlu0 %v368, 123
      %v888 = vpop.permute.xlu0 %887
      %889 = vrot.lane.b32.xlu0 %v368, 11
      %v890 = vpop.permute.xlu0 %889
      %vm891 = vcmask 89088
      %v894 = vsel %vm891, %v888, %v890
      %v896 = vld [vmem:[%s2 + $0x4] sm:$0x1]
      %v898 = vpack.i.b16 %v896, %v896
      %v900 = vlaneseq
      %v901 = vshrl.u32 %v900, 7
      %v902 = vsub.s32 0, %v901
      %v903 = vrot.slane %v898, %v902
      %v904 = vmul.bf16 %v894, %v903
      %s905 = scalar_lea.vmem %s0, 16
      %v906 = vld [vmem:[%s905] sm:$0x3]
      %v908 = vsel %vm392, %v906, 0
      %v911 = vsel %vm410, %v904, 0
      %913 = vmatprep.subr.bf16.mxu0 0
      %914 = vmatpush1.bf16.msra.mxu0 %v911
      %915 = vmatprep.subr.bf16.mxu0 0
      %916 = vmatpush1.bf16.msra.mxu0 0
      %917 = vmatprep.subr.bf16.mxu0 0
      %918 = vmatpush1.bf16.msra.mxu0 0
      %919 = vmatprep.subr.bf16.mxu0 0
      %920 = vmatpush1.bf16.msra.mxu0 0
      %921 = vmatprep.subr.bf16.mxu0 0
      %922 = vmatpush1.bf16.msra.mxu0 0
      %923 = vmatprep.subr.bf16.mxu0 0
      %924 = vmatpush1.bf16.msra.mxu0 0
      %925 = vmatprep.subr.bf16.mxu0 0
      %926 = vmatpush1.bf16.msra.mxu0 0
      %927 = vmatprep.subr.bf16.mxu0 0
      %928 = vmatpush1.bf16.msra.mxu0 0
      %929 = vmatprep.subr.bf16.mxu0 0
      %930 = vmatpush1.bf16.msra.mxu0 0
      %931 = vmatprep.subr.bf16.mxu0 0
      %932 = vmatpush1.bf16.msra.mxu0 0
      %933 = vmatprep.subr.bf16.mxu0 0
      %934 = vmatpush1.bf16.msra.mxu0 0
      %935 = vmatprep.subr.bf16.mxu0 0
      %936 = vmatpush1.bf16.msra.mxu0 0
      %937 = vmatprep.subr.bf16.mxu0 0
      %938 = vmatpush1.bf16.msra.mxu0 0
      %939 = vmatprep.subr.bf16.mxu0 0
      %940 = vmatpush1.bf16.msra.mxu0 0
      %941 = vmatprep.subr.bf16.mxu0 0
      %942 = vmatpush1.bf16.msra.mxu0 0
      %943 = vmatprep.subr.bf16.mxu0 0
      %944 = vmatpush1.bf16.msra.mxu0 0
      %945 = vmatprep.mubr.bf16.mxu0 0
      %946 = vmatmul.mubr.bf16.gmra.mrb[0].mxu0 %v908
      %v947 = vpop.f32.mrb[0].mxu0
      %v948 = vadd.f32 0.0, %v947
      %v949 = vpop.f32.mrb[0].mxu0
      %v950 = vpop.f32.mrb[0].mxu0
      %v951 = vpop.f32.mrb[0].mxu0
      %952 = vdwg.mxu0
      %v953 = vadd.f32 %v886, %v948
      %v954 = vld [vmem:[%s339] sm:$0x3]
      %v957 = vunpack.c.l.s4 1983009808
      %v958 = vunpack.c.0.s8 %v957
      %v959 = vlaneseq
      %v960 = vshrl.u32 %v959, 7
      %v961 = vsub.s32 %v958, %v960
      %v962 = vrot.slane %v954, %v961
      %963 = vrot.lane.b32.xlu0 %v962, 117
      %v964 = vpop.permute.xlu0 %963
      %965 = vrot.lane.b32.xlu0 %v962, 5
      %v966 = vpop.permute.xlu0 %965
      %v969 = vsel %vm373, %v964, %v966
      %v971 = vmul.bf16 %v969, %v385
      %s972 = scalar_lea.vmem %s0, 18
      %v973 = vld [vmem:[%s972] sm:$0x3]
      %v975 = vsel %vm392, %v973, 0
      %v978 = vsel %vm410, %v971, 0
      %980 = vmatprep.subr.bf16.mxu0 0
      %981 = vmatpush1.bf16.msra.mxu0 %v978
      %982 = vmatprep.subr.bf16.mxu0 0
      %983 = vmatpush1.bf16.msra.mxu0 0
      %984 = vmatprep.subr.bf16.mxu0 0
      %985 = vmatpush1.bf16.msra.mxu0 0
      %986 = vmatprep.subr.bf16.mxu0 0
      %987 = vmatpush1.bf16.msra.mxu0 0
      %988 = vmatprep.subr.bf16.mxu0 0
      %989 = vmatpush1.bf16.msra.mxu0 0
      %990 = vmatprep.subr.bf16.mxu0 0
      %991 = vmatpush1.bf16.msra.mxu0 0
      %992 = vmatprep.subr.bf16.mxu0 0
      %993 = vmatpush1.bf16.msra.mxu0 0
      %994 = vmatprep.subr.bf16.mxu0 0
      %995 = vmatpush1.bf16.msra.mxu0 0
      %996 = vmatprep.subr.bf16.mxu0 0
      %997 = vmatpush1.bf16.msra.mxu0 0
      %998 = vmatprep.subr.bf16.mxu0 0
      %999 = vmatpush1.bf16.msra.mxu0 0
      %1000 = vmatprep.subr.bf16.mxu0 0
      %1001 = vmatpush1.bf16.msra.mxu0 0
      %1002 = vmatprep.subr.bf16.mxu0 0
      %1003 = vmatpush1.bf16.msra.mxu0 0
      %1004 = vmatprep.subr.bf16.mxu0 0
      %1005 = vmatpush1.bf16.msra.mxu0 0
      %1006 = vmatprep.subr.bf16.mxu0 0
      %1007 = vmatpush1.bf16.msra.mxu0 0
      %1008 = vmatprep.subr.bf16.mxu0 0
      %1009 = vmatpush1.bf16.msra.mxu0 0
      %1010 = vmatprep.subr.bf16.mxu0 0
      %1011 = vmatpush1.bf16.msra.mxu0 0
      %1012 = vmatprep.mubr.bf16.mxu0 0
      %1013 = vmatmul.mubr.bf16.gmra.mrb[0].mxu0 %v975
      %v1014 = vpop.f32.mrb[0].mxu0
      %v1015 = vadd.f32 0.0, %v1014
      %v1016 = vpop.f32.mrb[0].mxu0
      %v1017 = vpop.f32.mrb[0].mxu0
      %v1018 = vpop.f32.mrb[0].mxu0
      %1019 = vdwg.mxu0
      %v1020 = vadd.f32 %v953, %v1015
      %1021 = vrot.lane.b32.xlu0 %v962, 116
      %v1022 = vpop.permute.xlu0 %1021
      %1023 = vrot.lane.b32.xlu0 %v962, 4
      %v1024 = vpop.permute.xlu0 %1023
      %v1027 = vsel %vm392, %v1022, %v1024
      %v1029 = vmul.bf16 %v1027, %v403
      %s1030 = scalar_lea.vmem %s0, 20
      %v1031 = vld [vmem:[%s1030] sm:$0x3]
      %v1033 = vsel %vm392, %v1031, 0
      %v1036 = vsel %vm410, %v1029, 0
      %1038 = vmatprep.subr.bf16.mxu0 0
      %1039 = vmatpush1.bf16.msra.mxu0 %v1036
      %1040 = vmatprep.subr.bf16.mxu0 0
      %1041 = vmatpush1.bf16.msra.mxu0 0
      %1042 = vmatprep.subr.bf16.mxu0 0
      %1043 = vmatpush1.bf16.msra.mxu0 0
      %1044 = vmatprep.subr.bf16.mxu0 0
      %1045 = vmatpush1.bf16.msra.mxu0 0
      %1046 = vmatprep.subr.bf16.mxu0 0
      %1047 = vmatpush1.bf16.msra.mxu0 0
      %1048 = vmatprep.subr.bf16.mxu0 0
      %1049 = vmatpush1.bf16.msra.mxu0 0
      %1050 = vmatprep.subr.bf16.mxu0 0
      %1051 = vmatpush1.bf16.msra.mxu0 0
      %1052 = vmatprep.subr.bf16.mxu0 0
      %1053 = vmatpush1.bf16.msra.mxu0 0
      %1054 = vmatprep.subr.bf16.mxu0 0
      %1055 = vmatpush1.bf16.msra.mxu0 0
      %1056 = vmatprep.subr.bf16.mxu0 0
      %1057 = vmatpush1.bf16.msra.mxu0 0
      %1058 = vmatprep.subr.bf16.mxu0 0
      %1059 = vmatpush1.bf16.msra.mxu0 0
      %1060 = vmatprep.subr.bf16.mxu0 0
      %1061 = vmatpush1.bf16.msra.mxu0 0
      %1062 = vmatprep.subr.bf16.mxu0 0
      %1063 = vmatpush1.bf16.msra.mxu0 0
      %1064 = vmatprep.subr.bf16.mxu0 0
      %1065 = vmatpush1.bf16.msra.mxu0 0
      %1066 = vmatprep.subr.bf16.mxu0 0
      %1067 = vmatpush1.bf16.msra.mxu0 0
      %1068 = vmatprep.subr.bf16.mxu0 0
      %1069 = vmatpush1.bf16.msra.mxu0 0
      %1070 = vmatprep.mubr.bf16.mxu0 0
      %1071 = vmatmul.mubr.bf16.gmra.mrb[0].mxu0 %v1033
      %v1072 = vpop.f32.mrb[0].mxu0
      %v1073 = vadd.f32 0.0, %v1072
      %v1074 = vpop.f32.mrb[0].mxu0
      %v1075 = vpop.f32.mrb[0].mxu0
      %v1076 = vpop.f32.mrb[0].mxu0
      %1077 = vdwg.mxu0
      %v1078 = vadd.f32 %v1020, %v1073
      %1079 = vrot.lane.b32.xlu0 %v962, 115
      %v1080 = vpop.permute.xlu0 %1079
      %1081 = vrot.lane.b32.xlu0 %v962, 3
      %v1082 = vpop.permute.xlu0 %1081
      %v1085 = vsel %vm504, %v1080, %v1082
      %v1087 = vmul.bf16 %v1085, %v516
      %s1088 = scalar_lea.vmem %s0, 22
      %v1089 = vld [vmem:[%s1088] sm:$0x3]
      %v1091 = vsel %vm392, %v1089, 0
      %v1094 = vsel %vm410, %v1087, 0
      %1096 = vmatprep.subr.bf16.mxu0 0
      %1097 = vmatpush1.bf16.msra.mxu0 %v1094
      %1098 = vmatprep.subr.bf16.mxu0 0
      %1099 = vmatpush1.bf16.msra.mxu0 0
      %1100 = vmatprep.subr.bf16.mxu0 0
      %1101 = vmatpush1.bf16.msra.mxu0 0
      %1102 = vmatprep.subr.bf16.mxu0 0
      %1103 = vmatpush1.bf16.msra.mxu0 0
      %1104 = vmatprep.subr.bf16.mxu0 0
      %1105 = vmatpush1.bf16.msra.mxu0 0
      %1106 = vmatprep.subr.bf16.mxu0 0
      %1107 = vmatpush1.bf16.msra.mxu0 0
      %1108 = vmatprep.subr.bf16.mxu0 0
      %1109 = vmatpush1.bf16.msra.mxu0 0
      %1110 = vmatprep.subr.bf16.mxu0 0
      %1111 = vmatpush1.bf16.msra.mxu0 0
      %1112 = vmatprep.subr.bf16.mxu0 0
      %1113 = vmatpush1.bf16.msra.mxu0 0
      %1114 = vmatprep.subr.bf16.mxu0 0
      %1115 = vmatpush1.bf16.msra.mxu0 0
      %1116 = vmatprep.subr.bf16.mxu0 0
      %1117 = vmatpush1.bf16.msra.mxu0 0
      %1118 = vmatprep.subr.bf16.mxu0 0
      %1119 = vmatpush1.bf16.msra.mxu0 0
      %1120 = vmatprep.subr.bf16.mxu0 0
      %1121 = vmatpush1.bf16.msra.mxu0 0
      %1122 = vmatprep.subr.bf16.mxu0 0
      %1123 = vmatpush1.bf16.msra.mxu0 0
      %1124 = vmatprep.subr.bf16.mxu0 0
      %1125 = vmatpush1.bf16.msra.mxu0 0
      %1126 = vmatprep.subr.bf16.mxu0 0
      %1127 = vmatpush1.bf16.msra.mxu0 0
      %1128 = vmatprep.mubr.bf16.mxu0 0
      %1129 = vmatmul.mubr.bf16.gmra.mrb[0].mxu0 %v1091
      %v1130 = vpop.f32.mrb[0].mxu0
      %v1131 = vadd.f32 0.0, %v1130
      %v1132 = vpop.f32.mrb[0].mxu0
      %v1133 = vpop.f32.mrb[0].mxu0
      %v1134 = vpop.f32.mrb[0].mxu0
      %1135 = vdwg.mxu0
      %v1136 = vadd.f32 %v1078, %v1131
      %1137 = vrot.lane.b32.xlu0 %v962, 113
      %v1138 = vpop.permute.xlu0 %1137
      %1139 = vrot.lane.b32.xlu0 %v962, 1
      %v1140 = vpop.permute.xlu0 %1139
      %v1143 = vsel %vm571, %v1138, %v1140
      %v1145 = vmul.bf16 %v1143, %v584
      %s1146 = scalar_lea.vmem %s0, 24
      %v1147 = vld [vmem:[%s1146] sm:$0x3]
      %v1149 = vsel %vm392, %v1147, 0
      %v1152 = vsel %vm410, %v1145, 0
      %1154 = vmatprep.subr.bf16.mxu0 0
      %1155 = vmatpush1.bf16.msra.mxu0 %v1152
      %1156 = vmatprep.subr.bf16.mxu0 0
      %1157 = vmatpush1.bf16.msra.mxu0 0
      %1158 = vmatprep.subr.bf16.mxu0 0
      %1159 = vmatpush1.bf16.msra.mxu0 0
      %1160 = vmatprep.subr.bf16.mxu0 0
      %1161 = vmatpush1.bf16.msra.mxu0 0
      %1162 = vmatprep.subr.bf16.mxu0 0
      %1163 = vmatpush1.bf16.msra.mxu0 0
      %1164 = vmatprep.subr.bf16.mxu0 0
      %1165 = vmatpush1.bf16.msra.mxu0 0
      %1166 = vmatprep.subr.bf16.mxu0 0
      %1167 = vmatpush1.bf16.msra.mxu0 0
      %1168 = vmatprep.subr.bf16.mxu0 0
      %1169 = vmatpush1.bf16.msra.mxu0 0
      %1170 = vmatprep.subr.bf16.mxu0 0
      %1171 = vmatpush1.bf16.msra.mxu0 0
      %1172 = vmatprep.subr.bf16.mxu0 0
      %1173 = vmatpush1.bf16.msra.mxu0 0
      %1174 = vmatprep.subr.bf16.mxu0 0
      %1175 = vmatpush1.bf16.msra.mxu0 0
      %1176 = vmatprep.subr.bf16.mxu0 0
      %1177 = vmatpush1.bf16.msra.mxu0 0
      %1178 = vmatprep.subr.bf16.mxu0 0
      %1179 = vmatpush1.bf16.msra.mxu0 0
      %1180 = vmatprep.subr.bf16.mxu0 0
      %1181 = vmatpush1.bf16.msra.mxu0 0
      %1182 = vmatprep.subr.bf16.mxu0 0
      %1183 = vmatpush1.bf16.msra.mxu0 0
      %1184 = vmatprep.subr.bf16.mxu0 0
      %1185 = vmatpush1.bf16.msra.mxu0 0
      %1186 = vmatprep.mubr.bf16.mxu0 0
      %1187 = vmatmul.mubr.bf16.gmra.mrb[0].mxu0 %v1149
      %v1188 = vpop.f32.mrb[0].mxu0
      %v1189 = vadd.f32 0.0, %v1188
      %v1190 = vpop.f32.mrb[0].mxu0
      %v1191 = vpop.f32.mrb[0].mxu0
      %v1192 = vpop.f32.mrb[0].mxu0
      %1193 = vdwg.mxu0
      %v1194 = vadd.f32 %v1136, %v1189
      %s1195 = scalar_lea.vmem %s0, 26
      %v1196 = vld [vmem:[%s1195] sm:$0x3]
      %v1198 = vsel %vm392, %v1196, 0
      %v1201 = vsel %vm410, %v954, 0
      %1203 = vmatprep.subr.bf16.mxu0 0
      %1204 = vmatpush1.bf16.msra.mxu0 %v1201
      %1205 = vmatprep.subr.bf16.mxu0 0
      %1206 = vmatpush1.bf16.msra.mxu0 0
      %1207 = vmatprep.subr.bf16.mxu0 0
      %1208 = vmatpush1.bf16.msra.mxu0 0
      %1209 = vmatprep.subr.bf16.mxu0 0
      %1210 = vmatpush1.bf16.msra.mxu0 0
      %1211 = vmatprep.subr.bf16.mxu0 0
      %1212 = vmatpush1.bf16.msra.mxu0 0
      %1213 = vmatprep.subr.bf16.mxu0 0
      %1214 = vmatpush1.bf16.msra.mxu0 0
      %1215 = vmatprep.subr.bf16.mxu0 0
      %1216 = vmatpush1.bf16.msra.mxu0 0
      %1217 = vmatprep.subr.bf16.mxu0 0
      %1218 = vmatpush1.bf16.msra.mxu0 0
      %1219 = vmatprep.subr.bf16.mxu0 0
      %1220 = vmatpush1.bf16.msra.mxu0 0
      %1221 = vmatprep.subr.bf16.mxu0 0
      %1222 = vmatpush1.bf16.msra.mxu0 0
      %1223 = vmatprep.subr.bf16.mxu0 0
      %1224 = vmatpush1.bf16.msra.mxu0 0
      %1225 = vmatprep.subr.bf16.mxu0 0
      %1226 = vmatpush1.bf16.msra.mxu0 0
      %1227 = vmatprep.subr.bf16.mxu0 0
      %1228 = vmatpush1.bf16.msra.mxu0 0
      %1229 = vmatprep.subr.bf16.mxu0 0
      %1230 = vmatpush1.bf16.msra.mxu0 0
      %1231 = vmatprep.subr.bf16.mxu0 0
      %1232 = vmatpush1.bf16.msra.mxu0 0
      %1233 = vmatprep.subr.bf16.mxu0 0
      %1234 = vmatpush1.bf16.msra.mxu0 0
      %1235 = vmatprep.mubr.bf16.mxu0 0
      %1236 = vmatmul.mubr.bf16.gmra.mrb[0].mxu0 %v1198
      %v1237 = vpop.f32.mrb[0].mxu0
      %v1238 = vadd.f32 0.0, %v1237
      %v1239 = vpop.f32.mrb[0].mxu0
      %v1240 = vpop.f32.mrb[0].mxu0
      %v1241 = vpop.f32.mrb[0].mxu0
      %1242 = vdwg.mxu0
      %v1243 = vadd.f32 %v1194, %v1238
      %1244 = vrot.lane.b32.xlu0 %v962, 127
      %v1245 = vpop.permute.xlu0 %1244
      %1246 = vrot.lane.b32.xlu0 %v962, 15
      %v1247 = vpop.permute.xlu0 %1246
      %v1250 = vsel %vm688, %v1245, %v1247
      %v1252 = vmul.bf16 %v1250, %v701
      %s1253 = scalar_lea.vmem %s0, 28
      %v1254 = vld [vmem:[%s1253] sm:$0x3]
      %v1256 = vsel %vm392, %v1254, 0
      %v1259 = vsel %vm410, %v1252, 0
      %1261 = vmatprep.subr.bf16.mxu0 0
      %1262 = vmatpush1.bf16.msra.mxu0 %v1259
      %1263 = vmatprep.subr.bf16.mxu0 0
      %1264 = vmatpush1.bf16.msra.mxu0 0
      %1265 = vmatprep.subr.bf16.mxu0 0
      %1266 = vmatpush1.bf16.msra.mxu0 0
      %1267 = vmatprep.subr.bf16.mxu0 0
      %1268 = vmatpush1.bf16.msra.mxu0 0
      %1269 = vmatprep.subr.bf16.mxu0 0
      %1270 = vmatpush1.bf16.msra.mxu0 0
      %1271 = vmatprep.subr.bf16.mxu0 0
      %1272 = vmatpush1.bf16.msra.mxu0 0
      %1273 = vmatprep.subr.bf16.mxu0 0
      %1274 = vmatpush1.bf16.msra.mxu0 0
      %1275 = vmatprep.subr.bf16.mxu0 0
      %1276 = vmatpush1.bf16.msra.mxu0 0
      %1277 = vmatprep.subr.bf16.mxu0 0
      %1278 = vmatpush1.bf16.msra.mxu0 0
      %1279 = vmatprep.subr.bf16.mxu0 0
      %1280 = vmatpush1.bf16.msra.mxu0 0
      %1281 = vmatprep.subr.bf16.mxu0 0
      %1282 = vmatpush1.bf16.msra.mxu0 0
      %1283 = vmatprep.subr.bf16.mxu0 0
      %1284 = vmatpush1.bf16.msra.mxu0 0
      %1285 = vmatprep.subr.bf16.mxu0 0
      %1286 = vmatpush1.bf16.msra.mxu0 0
      %1287 = vmatprep.subr.bf16.mxu0 0
      %1288 = vmatpush1.bf16.msra.mxu0 0
      %1289 = vmatprep.subr.bf16.mxu0 0
      %1290 = vmatpush1.bf16.msra.mxu0 0
      %1291 = vmatprep.subr.bf16.mxu0 0
      %1292 = vmatpush1.bf16.msra.mxu0 0
      %1293 = vmatprep.mubr.bf16.mxu0 0
      %1294 = vmatmul.mubr.bf16.gmra.mrb[0].mxu0 %v1256
      %v1295 = vpop.f32.mrb[0].mxu0
      %v1296 = vadd.f32 0.0, %v1295
      %v1297 = vpop.f32.mrb[0].mxu0
      %v1298 = vpop.f32.mrb[0].mxu0
      %v1299 = vpop.f32.mrb[0].mxu0
      %1300 = vdwg.mxu0
      %v1301 = vadd.f32 %v1243, %v1296
      %1302 = vrot.lane.b32.xlu0 %v962, 125
      %v1303 = vpop.permute.xlu0 %1302
      %1304 = vrot.lane.b32.xlu0 %v962, 13
      %v1305 = vpop.permute.xlu0 %1304
      %v1308 = vsel %vm756, %v1303, %v1305
      %v1310 = vmul.bf16 %v1308, %v768
      %s1311 = scalar_lea.vmem %s0, 30
      %v1312 = vld [vmem:[%s1311] sm:$0x3]
      %v1314 = vsel %vm392, %v1312, 0
      %v1317 = vsel %vm410, %v1310, 0
      %1319 = vmatprep.subr.bf16.mxu0 0
      %1320 = vmatpush1.bf16.msra.mxu0 %v1317
      %1321 = vmatprep.subr.bf16.mxu0 0
      %1322 = vmatpush1.bf16.msra.mxu0 0
      %1323 = vmatprep.subr.bf16.mxu0 0
      %1324 = vmatpush1.bf16.msra.mxu0 0
      %1325 = vmatprep.subr.bf16.mxu0 0
      %1326 = vmatpush1.bf16.msra.mxu0 0
      %1327 = vmatprep.subr.bf16.mxu0 0
      %1328 = vmatpush1.bf16.msra.mxu0 0
      %1329 = vmatprep.subr.bf16.mxu0 0
      %1330 = vmatpush1.bf16.msra.mxu0 0
      %1331 = vmatprep.subr.bf16.mxu0 0
      %1332 = vmatpush1.bf16.msra.mxu0 0
      %1333 = vmatprep.subr.bf16.mxu0 0
      %1334 = vmatpush1.bf16.msra.mxu0 0
      %1335 = vmatprep.subr.bf16.mxu0 0
      %1336 = vmatpush1.bf16.msra.mxu0 0
      %1337 = vmatprep.subr.bf16.mxu0 0
      %1338 = vmatpush1.bf16.msra.mxu0 0
      %1339 = vmatprep.subr.bf16.mxu0 0
      %1340 = vmatpush1.bf16.msra.mxu0 0
      %1341 = vmatprep.subr.bf16.mxu0 0
      %1342 = vmatpush1.bf16.msra.mxu0 0
      %1343 = vmatprep.subr.bf16.mxu0 0
      %1344 = vmatpush1.bf16.msra.mxu0 0
      %1345 = vmatprep.subr.bf16.mxu0 0
      %1346 = vmatpush1.bf16.msra.mxu0 0
      %1347 = vmatprep.subr.bf16.mxu0 0
      %1348 = vmatpush1.bf16.msra.mxu0 0
      %1349 = vmatprep.subr.bf16.mxu0 0
      %1350 = vmatpush1.bf16.msra.mxu0 0
      %1351 = vmatprep.mubr.bf16.mxu0 0
      %1352 = vmatmul.mubr.bf16.gmra.mrb[0].mxu0 %v1314
      %v1353 = vpop.f32.mrb[0].mxu0
      %v1354 = vadd.f32 0.0, %v1353
      %v1355 = vpop.f32.mrb[0].mxu0
      %v1356 = vpop.f32.mrb[0].mxu0
      %v1357 = vpop.f32.mrb[0].mxu0
      %1358 = vdwg.mxu0
      %v1359 = vadd.f32 %v1301, %v1354
      %1360 = vrot.lane.b32.xlu0 %v962, 124
      %v1361 = vpop.permute.xlu0 %1360
      %1362 = vrot.lane.b32.xlu0 %v962, 12
      %v1363 = vpop.permute.xlu0 %1362
      %v1366 = vsel %vm823, %v1361, %v1363
      %v1368 = vmul.bf16 %v1366, %v836
      %s1369 = scalar_lea.vmem %s0, 32
      %v1370 = vld [vmem:[%s1369] sm:$0x3]
      %v1372 = vsel %vm392, %v1370, 0
      %v1375 = vsel %vm410, %v1368, 0
      %1377 = vmatprep.subr.bf16.mxu0 0
      %1378 = vmatpush1.bf16.msra.mxu0 %v1375
      %1379 = vmatprep.subr.bf16.mxu0 0
      %1380 = vmatpush1.bf16.msra.mxu0 0
      %1381 = vmatprep.subr.bf16.mxu0 0
      %1382 = vmatpush1.bf16.msra.mxu0 0
      %1383 = vmatprep.subr.bf16.mxu0 0
      %1384 = vmatpush1.bf16.msra.mxu0 0
      %1385 = vmatprep.subr.bf16.mxu0 0
      %1386 = vmatpush1.bf16.msra.mxu0 0
      %1387 = vmatprep.subr.bf16.mxu0 0
      %1388 = vmatpush1.bf16.msra.mxu0 0
      %1389 = vmatprep.subr.bf16.mxu0 0
      %1390 = vmatpush1.bf16.msra.mxu0 0
      %1391 = vmatprep.subr.bf16.mxu0 0
      %1392 = vmatpush1.bf16.msra.mxu0 0
      %1393 = vmatprep.subr.bf16.mxu0 0
      %1394 = vmatpush1.bf16.msra.mxu0 0
      %1395 = vmatprep.subr.bf16.mxu0 0
      %1396 = vmatpush1.bf16.msra.mxu0 0
      %1397 = vmatprep.subr.bf16.mxu0 0
      %1398 = vmatpush1.bf16.msra.mxu0 0
      %1399 = vmatprep.subr.bf16.mxu0 0
      %1400 = vmatpush1.bf16.msra.mxu0 0
      %1401 = vmatprep.subr.bf16.mxu0 0
      %1402 = vmatpush1.bf16.msra.mxu0 0
      %1403 = vmatprep.subr.bf16.mxu0 0
      %1404 = vmatpush1.bf16.msra.mxu0 0
      %1405 = vmatprep.subr.bf16.mxu0 0
      %1406 = vmatpush1.bf16.msra.mxu0 0
      %1407 = vmatprep.subr.bf16.mxu0 0
      %1408 = vmatpush1.bf16.msra.mxu0 0
      %1409 = vmatprep.mubr.bf16.mxu0 0
      %1410 = vmatmul.mubr.bf16.gmra.mrb[0].mxu0 %v1372
      %v1411 = vpop.f32.mrb[0].mxu0
      %v1412 = vadd.f32 0.0, %v1411
      %v1413 = vpop.f32.mrb[0].mxu0
      %v1414 = vpop.f32.mrb[0].mxu0
      %v1415 = vpop.f32.mrb[0].mxu0
      %1416 = vdwg.mxu0
      %v1417 = vadd.f32 %v1359, %v1412
      %1418 = vrot.lane.b32.xlu0 %v962, 123
      %v1419 = vpop.permute.xlu0 %1418
      %1420 = vrot.lane.b32.xlu0 %v962, 11
      %v1421 = vpop.permute.xlu0 %1420
      %v1424 = vsel %vm891, %v1419, %v1421
      %v1426 = vmul.bf16 %v1424, %v903
      %s1427 = scalar_lea.vmem %s0, 34
      %v1428 = vld [vmem:[%s1427] sm:$0x3]
      %v1430 = vsel %vm392, %v1428, 0
      %v1433 = vsel %vm410, %v1426, 0
      %1435 = vmatprep.subr.bf16.mxu0 0
      %1436 = vmatpush1.bf16.msra.mxu0 %v1433
      %1437 = vmatprep.subr.bf16.mxu0 0
      %1438 = vmatpush1.bf16.msra.mxu0 0
      %1439 = vmatprep.subr.bf16.mxu0 0
      %1440 = vmatpush1.bf16.msra.mxu0 0
      %1441 = vmatprep.subr.bf16.mxu0 0
      %1442 = vmatpush1.bf16.msra.mxu0 0
      %1443 = vmatprep.subr.bf16.mxu0 0
      %1444 = vmatpush1.bf16.msra.mxu0 0
      %1445 = vmatprep.subr.bf16.mxu0 0
      %1446 = vmatpush1.bf16.msra.mxu0 0
      %1447 = vmatprep.subr.bf16.mxu0 0
      %1448 = vmatpush1.bf16.msra.mxu0 0
      %1449 = vmatprep.subr.bf16.mxu0 0
      %1450 = vmatpush1.bf16.msra.mxu0 0
      %1451 = vmatprep.subr.bf16.mxu0 0
      %1452 = vmatpush1.bf16.msra.mxu0 0
      %1453 = vmatprep.subr.bf16.mxu0 0
      %1454 = vmatpush1.bf16.msra.mxu0 0
      %1455 = vmatprep.subr.bf16.mxu0 0
      %1456 = vmatpush1.bf16.msra.mxu0 0
      %1457 = vmatprep.subr.bf16.mxu0 0
      %1458 = vmatpush1.bf16.msra.mxu0 0
      %1459 = vmatprep.subr.bf16.mxu0 0
      %1460 = vmatpush1.bf16.msra.mxu0 0
      %1461 = vmatprep.subr.bf16.mxu0 0
      %1462 = vmatpush1.bf16.msra.mxu0 0
      %1463 = vmatprep.subr.bf16.mxu0 0
      %1464 = vmatpush1.bf16.msra.mxu0 0
      %1465 = vmatprep.subr.bf16.mxu0 0
      %1466 = vmatpush1.bf16.msra.mxu0 0
      %1467 = vmatprep.mubr.bf16.mxu0 0
      %1468 = vmatmul.mubr.bf16.gmra.mrb[0].mxu0 %v1430
      %v1469 = vpop.f32.mrb[0].mxu0
      %v1470 = vadd.f32 0.0, %v1469
      %v1471 = vpop.f32.mrb[0].mxu0
      %v1472 = vpop.f32.mrb[0].mxu0
      %v1473 = vpop.f32.mrb[0].mxu0
      %1474 = vdwg.mxu0
      %v1475 = vadd.f32 %v1417, %v1470
      %v1476 = vld [vmem:[%s349] sm:$0x3]
      %v1479 = vunpack.c.l.s4 1983009808
      %v1480 = vunpack.c.0.s8 %v1479
      %v1481 = vlaneseq
      %v1482 = vshrl.u32 %v1481, 7
      %v1483 = vsub.s32 %v1480, %v1482
      %v1484 = vrot.slane %v1476, %v1483
      %1485 = vrot.lane.b32.xlu0 %v1484, 117
      %v1486 = vpop.permute.xlu0 %1485
      %1487 = vrot.lane.b32.xlu0 %v1484, 5
      %v1488 = vpop.permute.xlu0 %1487
      %v1491 = vsel %vm373, %v1486, %v1488
      %v1493 = vmul.bf16 %v1491, %v385
      %s1494 = scalar_lea.vmem %s0, 36
      %v1495 = vld [vmem:[%s1494] sm:$0x3]
      %v1497 = vsel %vm392, %v1495, 0
      %v1500 = vsel %vm410, %v1493, 0
      %1502 = vmatprep.subr.bf16.mxu0 0
      %1503 = vmatpush1.bf16.msra.mxu0 %v1500
      %1504 = vmatprep.subr.bf16.mxu0 0
      %1505 = vmatpush1.bf16.msra.mxu0 0
      %1506 = vmatprep.subr.bf16.mxu0 0
      %1507 = vmatpush1.bf16.msra.mxu0 0
      %1508 = vmatprep.subr.bf16.mxu0 0
      %1509 = vmatpush1.bf16.msra.mxu0 0
      %1510 = vmatprep.subr.bf16.mxu0 0
      %1511 = vmatpush1.bf16.msra.mxu0 0
      %1512 = vmatprep.subr.bf16.mxu0 0
      %1513 = vmatpush1.bf16.msra.mxu0 0
      %1514 = vmatprep.subr.bf16.mxu0 0
      %1515 = vmatpush1.bf16.msra.mxu0 0
      %1516 = vmatprep.subr.bf16.mxu0 0
      %1517 = vmatpush1.bf16.msra.mxu0 0
      %1518 = vmatprep.subr.bf16.mxu0 0
      %1519 = vmatpush1.bf16.msra.mxu0 0
      %1520 = vmatprep.subr.bf16.mxu0 0
      %1521 = vmatpush1.bf16.msra.mxu0 0
      %1522 = vmatprep.subr.bf16.mxu0 0
      %1523 = vmatpush1.bf16.msra.mxu0 0
      %1524 = vmatprep.subr.bf16.mxu0 0
      %1525 = vmatpush1.bf16.msra.mxu0 0
      %1526 = vmatprep.subr.bf16.mxu0 0
      %1527 = vmatpush1.bf16.msra.mxu0 0
      %1528 = vmatprep.subr.bf16.mxu0 0
      %1529 = vmatpush1.bf16.msra.mxu0 0
      %1530 = vmatprep.subr.bf16.mxu0 0
      %1531 = vmatpush1.bf16.msra.mxu0 0
      %1532 = vmatprep.subr.bf16.mxu0 0
      %1533 = vmatpush1.bf16.msra.mxu0 0
      %1534 = vmatprep.mubr.bf16.mxu0 0
      %1535 = vmatmul.mubr.bf16.gmra.mrb[0].mxu0 %v1497
      %v1536 = vpop.f32.mrb[0].mxu0
      %v1537 = vadd.f32 0.0, %v1536
      %v1538 = vpop.f32.mrb[0].mxu0
      %v1539 = vpop.f32.mrb[0].mxu0
      %v1540 = vpop.f32.mrb[0].mxu0
      %1541 = vdwg.mxu0
      %v1542 = vadd.f32 %v1475, %v1537
      %1543 = vrot.lane.b32.xlu0 %v1484, 116
      %v1544 = vpop.permute.xlu0 %1543
      %1545 = vrot.lane.b32.xlu0 %v1484, 4
      %v1546 = vpop.permute.xlu0 %1545
      %v1549 = vsel %vm392, %v1544, %v1546
      %v1551 = vmul.bf16 %v1549, %v403
      %s1552 = scalar_lea.vmem %s0, 38
      %v1553 = vld [vmem:[%s1552] sm:$0x3]
      %v1555 = vsel %vm392, %v1553, 0
      %v1558 = vsel %vm410, %v1551, 0
      %1560 = vmatprep.subr.bf16.mxu0 0
      %1561 = vmatpush1.bf16.msra.mxu0 %v1558
      %1562 = vmatprep.subr.bf16.mxu0 0
      %1563 = vmatpush1.bf16.msra.mxu0 0
      %1564 = vmatprep.subr.bf16.mxu0 0
      %1565 = vmatpush1.bf16.msra.mxu0 0
      %1566 = vmatprep.subr.bf16.mxu0 0
      %1567 = vmatpush1.bf16.msra.mxu0 0
      %1568 = vmatprep.subr.bf16.mxu0 0
      %1569 = vmatpush1.bf16.msra.mxu0 0
      %1570 = vmatprep.subr.bf16.mxu0 0
      %1571 = vmatpush1.bf16.msra.mxu0 0
      %1572 = vmatprep.subr.bf16.mxu0 0
      %1573 = vmatpush1.bf16.msra.mxu0 0
      %1574 = vmatprep.subr.bf16.mxu0 0
      %1575 = vmatpush1.bf16.msra.mxu0 0
      %1576 = vmatprep.subr.bf16.mxu0 0
      %1577 = vmatpush1.bf16.msra.mxu0 0
      %1578 = vmatprep.subr.bf16.mxu0 0
      %1579 = vmatpush1.bf16.msra.mxu0 0
      %1580 = vmatprep.subr.bf16.mxu0 0
      %1581 = vmatpush1.bf16.msra.mxu0 0
      %1582 = vmatprep.subr.bf16.mxu0 0
      %1583 = vmatpush1.bf16.msra.mxu0 0
      %1584 = vmatprep.subr.bf16.mxu0 0
      %1585 = vmatpush1.bf16.msra.mxu0 0
      %1586 = vmatprep.subr.bf16.mxu0 0
      %1587 = vmatpush1.bf16.msra.mxu0 0
      %1588 = vmatprep.subr.bf16.mxu0 0
      %1589 = vmatpush1.bf16.msra.mxu0 0
      %1590 = vmatprep.subr.bf16.mxu0 0
      %1591 = vmatpush1.bf16.msra.mxu0 0
      %1592 = vmatprep.mubr.bf16.mxu0 0
      %1593 = vmatmul.mubr.bf16.gmra.mrb[0].mxu0 %v1555
      %v1594 = vpop.f32.mrb[0].mxu0
      %v1595 = vadd.f32 0.0, %v1594
      %v1596 = vpop.f32.mrb[0].mxu0
      %v1597 = vpop.f32.mrb[0].mxu0
      %v1598 = vpop.f32.mrb[0].mxu0
      %1599 = vdwg.mxu0
      %v1600 = vadd.f32 %v1542, %v1595
      %1601 = vrot.lane.b32.xlu0 %v1484, 115
      %v1602 = vpop.permute.xlu0 %1601
      %1603 = vrot.lane.b32.xlu0 %v1484, 3
      %v1604 = vpop.permute.xlu0 %1603
      %v1607 = vsel %vm504, %v1602, %v1604
      %v1609 = vmul.bf16 %v1607, %v516
      %s1610 = scalar_lea.vmem %s0, 40
      %v1611 = vld [vmem:[%s1610] sm:$0x3]
      %v1613 = vsel %vm392, %v1611, 0
      %v1616 = vsel %vm410, %v1609, 0
      %1618 = vmatprep.subr.bf16.mxu0 0
      %1619 = vmatpush1.bf16.msra.mxu0 %v1616
      %1620 = vmatprep.subr.bf16.mxu0 0
      %1621 = vmatpush1.bf16.msra.mxu0 0
      %1622 = vmatprep.subr.bf16.mxu0 0
      %1623 = vmatpush1.bf16.msra.mxu0 0
      %1624 = vmatprep.subr.bf16.mxu0 0
      %1625 = vmatpush1.bf16.msra.mxu0 0
      %1626 = vmatprep.subr.bf16.mxu0 0
      %1627 = vmatpush1.bf16.msra.mxu0 0
      %1628 = vmatprep.subr.bf16.mxu0 0
      %1629 = vmatpush1.bf16.msra.mxu0 0
      %1630 = vmatprep.subr.bf16.mxu0 0
      %1631 = vmatpush1.bf16.msra.mxu0 0
      %1632 = vmatprep.subr.bf16.mxu0 0
      %1633 = vmatpush1.bf16.msra.mxu0 0
      %1634 = vmatprep.subr.bf16.mxu0 0
      %1635 = vmatpush1.bf16.msra.mxu0 0
      %1636 = vmatprep.subr.bf16.mxu0 0
      %1637 = vmatpush1.bf16.msra.mxu0 0
      %1638 = vmatprep.subr.bf16.mxu0 0
      %1639 = vmatpush1.bf16.msra.mxu0 0
      %1640 = vmatprep.subr.bf16.mxu0 0
      %1641 = vmatpush1.bf16.msra.mxu0 0
      %1642 = vmatprep.subr.bf16.mxu0 0
      %1643 = vmatpush1.bf16.msra.mxu0 0
      %1644 = vmatprep.subr.bf16.mxu0 0
      %1645 = vmatpush1.bf16.msra.mxu0 0
      %1646 = vmatprep.subr.bf16.mxu0 0
      %1647 = vmatpush1.bf16.msra.mxu0 0
      %1648 = vmatprep.subr.bf16.mxu0 0
      %1649 = vmatpush1.bf16.msra.mxu0 0
      %1650 = vmatprep.mubr.bf16.mxu0 0
      %1651 = vmatmul.mubr.bf16.gmra.mrb[0].mxu0 %v1613
      %v1652 = vpop.f32.mrb[0].mxu0
      %v1653 = vadd.f32 0.0, %v1652
      %v1654 = vpop.f32.mrb[0].mxu0
      %v1655 = vpop.f32.mrb[0].mxu0
      %v1656 = vpop.f32.mrb[0].mxu0
      %1657 = vdwg.mxu0
      %v1658 = vadd.f32 %v1600, %v1653
      %1659 = vrot.lane.b32.xlu0 %v1484, 113
      %v1660 = vpop.permute.xlu0 %1659
      %1661 = vrot.lane.b32.xlu0 %v1484, 1
      %v1662 = vpop.permute.xlu0 %1661
      %v1665 = vsel %vm571, %v1660, %v1662
      %v1667 = vmul.bf16 %v1665, %v584
      %s1668 = scalar_lea.vmem %s0, 42
      %v1669 = vld [vmem:[%s1668] sm:$0x3]
      %v1671 = vsel %vm392, %v1669, 0
      %v1674 = vsel %vm410, %v1667, 0
      %1676 = vmatprep.subr.bf16.mxu0 0
      %1677 = vmatpush1.bf16.msra.mxu0 %v1674
      %1678 = vmatprep.subr.bf16.mxu0 0
      %1679 = vmatpush1.bf16.msra.mxu0 0
      %1680 = vmatprep.subr.bf16.mxu0 0
      %1681 = vmatpush1.bf16.msra.mxu0 0
      %1682 = vmatprep.subr.bf16.mxu0 0
      %1683 = vmatpush1.bf16.msra.mxu0 0
      %1684 = vmatprep.subr.bf16.mxu0 0
      %1685 = vmatpush1.bf16.msra.mxu0 0
      %1686 = vmatprep.subr.bf16.mxu0 0
      %1687 = vmatpush1.bf16.msra.mxu0 0
      %1688 = vmatprep.subr.bf16.mxu0 0
      %1689 = vmatpush1.bf16.msra.mxu0 0
      %1690 = vmatprep.subr.bf16.mxu0 0
      %1691 = vmatpush1.bf16.msra.mxu0 0
      %1692 = vmatprep.subr.bf16.mxu0 0
      %1693 = vmatpush1.bf16.msra.mxu0 0
      %1694 = vmatprep.subr.bf16.mxu0 0
      %1695 = vmatpush1.bf16.msra.mxu0 0
      %1696 = vmatprep.subr.bf16.mxu0 0
      %1697 = vmatpush1.bf16.msra.mxu0 0
      %1698 = vmatprep.subr.bf16.mxu0 0
      %1699 = vmatpush1.bf16.msra.mxu0 0
      %1700 = vmatprep.subr.bf16.mxu0 0
      %1701 = vmatpush1.bf16.msra.mxu0 0
      %1702 = vmatprep.subr.bf16.mxu0 0
      %1703 = vmatpush1.bf16.msra.mxu0 0
      %1704 = vmatprep.subr.bf16.mxu0 0
      %1705 = vmatpush1.bf16.msra.mxu0 0
      %1706 = vmatprep.subr.bf16.mxu0 0
      %1707 = vmatpush1.bf16.msra.mxu0 0
      %1708 = vmatprep.mubr.bf16.mxu0 0
      %1709 = vmatmul.mubr.bf16.gmra.mrb[0].mxu0 %v1671
      %v1710 = vpop.f32.mrb[0].mxu0
      %v1711 = vadd.f32 0.0, %v1710
      %v1712 = vpop.f32.mrb[0].mxu0
      %v1713 = vpop.f32.mrb[0].mxu0
      %v1714 = vpop.f32.mrb[0].mxu0
      %1715 = vdwg.mxu0
      %v1716 = vadd.f32 %v1658, %v1711
      %s1717 = scalar_lea.vmem %s0, 44
      %v1718 = vld [vmem:[%s1717] sm:$0x3]
      %v1720 = vsel %vm392, %v1718, 0
      %v1723 = vsel %vm410, %v1476, 0
      %1725 = vmatprep.subr.bf16.mxu0 0
      %1726 = vmatpush1.bf16.msra.mxu0 %v1723
      %1727 = vmatprep.subr.bf16.mxu0 0
      %1728 = vmatpush1.bf16.msra.mxu0 0
      %1729 = vmatprep.subr.bf16.mxu0 0
      %1730 = vmatpush1.bf16.msra.mxu0 0
      %1731 = vmatprep.subr.bf16.mxu0 0
      %1732 = vmatpush1.bf16.msra.mxu0 0
      %1733 = vmatprep.subr.bf16.mxu0 0
      %1734 = vmatpush1.bf16.msra.mxu0 0
      %1735 = vmatprep.subr.bf16.mxu0 0
      %1736 = vmatpush1.bf16.msra.mxu0 0
      %1737 = vmatprep.subr.bf16.mxu0 0
      %1738 = vmatpush1.bf16.msra.mxu0 0
      %1739 = vmatprep.subr.bf16.mxu0 0
      %1740 = vmatpush1.bf16.msra.mxu0 0
      %1741 = vmatprep.subr.bf16.mxu0 0
      %1742 = vmatpush1.bf16.msra.mxu0 0
      %1743 = vmatprep.subr.bf16.mxu0 0
      %1744 = vmatpush1.bf16.msra.mxu0 0
      %1745 = vmatprep.subr.bf16.mxu0 0
      %1746 = vmatpush1.bf16.msra.mxu0 0
      %1747 = vmatprep.subr.bf16.mxu0 0
      %1748 = vmatpush1.bf16.msra.mxu0 0
      %1749 = vmatprep.subr.bf16.mxu0 0
      %1750 = vmatpush1.bf16.msra.mxu0 0
      %1751 = vmatprep.subr.bf16.mxu0 0
      %1752 = vmatpush1.bf16.msra.mxu0 0
      %1753 = vmatprep.subr.bf16.mxu0 0
      %1754 = vmatpush1.bf16.msra.mxu0 0
      %1755 = vmatprep.subr.bf16.mxu0 0
      %1756 = vmatpush1.bf16.msra.mxu0 0
      %1757 = vmatprep.mubr.bf16.mxu0 0
      %1758 = vmatmul.mubr.bf16.gmra.mrb[0].mxu0 %v1720
      %v1759 = vpop.f32.mrb[0].mxu0
      %v1760 = vadd.f32 0.0, %v1759
      %v1761 = vpop.f32.mrb[0].mxu0
      %v1762 = vpop.f32.mrb[0].mxu0
      %v1763 = vpop.f32.mrb[0].mxu0
      %1764 = vdwg.mxu0
      %v1765 = vadd.f32 %v1716, %v1760
      %1766 = vrot.lane.b32.xlu0 %v1484, 127
      %v1767 = vpop.permute.xlu0 %1766
      %1768 = vrot.lane.b32.xlu0 %v1484, 15
      %v1769 = vpop.permute.xlu0 %1768
      %v1772 = vsel %vm688, %v1767, %v1769
      %v1774 = vmul.bf16 %v1772, %v701
      %s1775 = scalar_lea.vmem %s0, 46
      %v1776 = vld [vmem:[%s1775] sm:$0x3]
      %v1778 = vsel %vm392, %v1776, 0
      %v1781 = vsel %vm410, %v1774, 0
      %1783 = vmatprep.subr.bf16.mxu0 0
      %1784 = vmatpush1.bf16.msra.mxu0 %v1781
      %1785 = vmatprep.subr.bf16.mxu0 0
      %1786 = vmatpush1.bf16.msra.mxu0 0
      %1787 = vmatprep.subr.bf16.mxu0 0
      %1788 = vmatpush1.bf16.msra.mxu0 0
      %1789 = vmatprep.subr.bf16.mxu0 0
      %1790 = vmatpush1.bf16.msra.mxu0 0
      %1791 = vmatprep.subr.bf16.mxu0 0
      %1792 = vmatpush1.bf16.msra.mxu0 0
      %1793 = vmatprep.subr.bf16.mxu0 0
      %1794 = vmatpush1.bf16.msra.mxu0 0
      %1795 = vmatprep.subr.bf16.mxu0 0
      %1796 = vmatpush1.bf16.msra.mxu0 0
      %1797 = vmatprep.subr.bf16.mxu0 0
      %1798 = vmatpush1.bf16.msra.mxu0 0
      %1799 = vmatprep.subr.bf16.mxu0 0
      %1800 = vmatpush1.bf16.msra.mxu0 0
      %1801 = vmatprep.subr.bf16.mxu0 0
      %1802 = vmatpush1.bf16.msra.mxu0 0
      %1803 = vmatprep.subr.bf16.mxu0 0
      %1804 = vmatpush1.bf16.msra.mxu0 0
      %1805 = vmatprep.subr.bf16.mxu0 0
      %1806 = vmatpush1.bf16.msra.mxu0 0
      %1807 = vmatprep.subr.bf16.mxu0 0
      %1808 = vmatpush1.bf16.msra.mxu0 0
      %1809 = vmatprep.subr.bf16.mxu0 0
      %1810 = vmatpush1.bf16.msra.mxu0 0
      %1811 = vmatprep.subr.bf16.mxu0 0
      %1812 = vmatpush1.bf16.msra.mxu0 0
      %1813 = vmatprep.subr.bf16.mxu0 0
      %1814 = vmatpush1.bf16.msra.mxu0 0
      %1815 = vmatprep.mubr.bf16.mxu0 0
      %1816 = vmatmul.mubr.bf16.gmra.mrb[0].mxu0 %v1778
      %v1817 = vpop.f32.mrb[0].mxu0
      %v1818 = vadd.f32 0.0, %v1817
      %v1819 = vpop.f32.mrb[0].mxu0
      %v1820 = vpop.f32.mrb[0].mxu0
      %v1821 = vpop.f32.mrb[0].mxu0
      %1822 = vdwg.mxu0
      %v1823 = vadd.f32 %v1765, %v1818
      %1824 = vrot.lane.b32.xlu0 %v1484, 125
      %v1825 = vpop.permute.xlu0 %1824
      %1826 = vrot.lane.b32.xlu0 %v1484, 13
      %v1827 = vpop.permute.xlu0 %1826
      %v1830 = vsel %vm756, %v1825, %v1827
      %v1832 = vmul.bf16 %v1830, %v768
      %s1833 = scalar_lea.vmem %s0, 48
      %v1834 = vld [vmem:[%s1833] sm:$0x3]
      %v1836 = vsel %vm392, %v1834, 0
      %v1839 = vsel %vm410, %v1832, 0
      %1841 = vmatprep.subr.bf16.mxu0 0
      %1842 = vmatpush1.bf16.msra.mxu0 %v1839
      %1843 = vmatprep.subr.bf16.mxu0 0
      %1844 = vmatpush1.bf16.msra.mxu0 0
      %1845 = vmatprep.subr.bf16.mxu0 0
      %1846 = vmatpush1.bf16.msra.mxu0 0
      %1847 = vmatprep.subr.bf16.mxu0 0
      %1848 = vmatpush1.bf16.msra.mxu0 0
      %1849 = vmatprep.subr.bf16.mxu0 0
      %1850 = vmatpush1.bf16.msra.mxu0 0
      %1851 = vmatprep.subr.bf16.mxu0 0
      %1852 = vmatpush1.bf16.msra.mxu0 0
      %1853 = vmatprep.subr.bf16.mxu0 0
      %1854 = vmatpush1.bf16.msra.mxu0 0
      %1855 = vmatprep.subr.bf16.mxu0 0
      %1856 = vmatpush1.bf16.msra.mxu0 0
      %1857 = vmatprep.subr.bf16.mxu0 0
      %1858 = vmatpush1.bf16.msra.mxu0 0
      %1859 = vmatprep.subr.bf16.mxu0 0
      %1860 = vmatpush1.bf16.msra.mxu0 0
      %1861 = vmatprep.subr.bf16.mxu0 0
      %1862 = vmatpush1.bf16.msra.mxu0 0
      %1863 = vmatprep.subr.bf16.mxu0 0
      %1864 = vmatpush1.bf16.msra.mxu0 0
      %1865 = vmatprep.subr.bf16.mxu0 0
      %1866 = vmatpush1.bf16.msra.mxu0 0
      %1867 = vmatprep.subr.bf16.mxu0 0
      %1868 = vmatpush1.bf16.msra.mxu0 0
      %1869 = vmatprep.subr.bf16.mxu0 0
      %1870 = vmatpush1.bf16.msra.mxu0 0
      %1871 = vmatprep.subr.bf16.mxu0 0
      %1872 = vmatpush1.bf16.msra.mxu0 0
      %1873 = vmatprep.mubr.bf16.mxu0 0
      %1874 = vmatmul.mubr.bf16.gmra.mrb[0].mxu0 %v1836
      %v1875 = vpop.f32.mrb[0].mxu0
      %v1876 = vadd.f32 0.0, %v1875
      %v1877 = vpop.f32.mrb[0].mxu0
      %v1878 = vpop.f32.mrb[0].mxu0
      %v1879 = vpop.f32.mrb[0].mxu0
      %1880 = vdwg.mxu0
      %v1881 = vadd.f32 %v1823, %v1876
      %1882 = vrot.lane.b32.xlu0 %v1484, 124
      %v1883 = vpop.permute.xlu0 %1882
      %1884 = vrot.lane.b32.xlu0 %v1484, 12
      %v1885 = vpop.permute.xlu0 %1884
      %v1888 = vsel %vm823, %v1883, %v1885
      %v1890 = vmul.bf16 %v1888, %v836
      %s1891 = scalar_lea.vmem %s0, 50
      %v1892 = vld [vmem:[%s1891] sm:$0x3]
      %v1894 = vsel %vm392, %v1892, 0
      %v1897 = vsel %vm410, %v1890, 0
      %1899 = vmatprep.subr.bf16.mxu0 0
      %1900 = vmatpush1.bf16.msra.mxu0 %v1897
      %1901 = vmatprep.subr.bf16.mxu0 0
      %1902 = vmatpush1.bf16.msra.mxu0 0
      %1903 = vmatprep.subr.bf16.mxu0 0
      %1904 = vmatpush1.bf16.msra.mxu0 0
      %1905 = vmatprep.subr.bf16.mxu0 0
      %1906 = vmatpush1.bf16.msra.mxu0 0
      %1907 = vmatprep.subr.bf16.mxu0 0
      %1908 = vmatpush1.bf16.msra.mxu0 0
      %1909 = vmatprep.subr.bf16.mxu0 0
      %1910 = vmatpush1.bf16.msra.mxu0 0
      %1911 = vmatprep.subr.bf16.mxu0 0
      %1912 = vmatpush1.bf16.msra.mxu0 0
      %1913 = vmatprep.subr.bf16.mxu0 0
      %1914 = vmatpush1.bf16.msra.mxu0 0
      %1915 = vmatprep.subr.bf16.mxu0 0
      %1916 = vmatpush1.bf16.msra.mxu0 0
      %1917 = vmatprep.subr.bf16.mxu0 0
      %1918 = vmatpush1.bf16.msra.mxu0 0
      %1919 = vmatprep.subr.bf16.mxu0 0
      %1920 = vmatpush1.bf16.msra.mxu0 0
      %1921 = vmatprep.subr.bf16.mxu0 0
      %1922 = vmatpush1.bf16.msra.mxu0 0
      %1923 = vmatprep.subr.bf16.mxu0 0
      %1924 = vmatpush1.bf16.msra.mxu0 0
      %1925 = vmatprep.subr.bf16.mxu0 0
      %1926 = vmatpush1.bf16.msra.mxu0 0
      %1927 = vmatprep.subr.bf16.mxu0 0
      %1928 = vmatpush1.bf16.msra.mxu0 0
      %1929 = vmatprep.subr.bf16.mxu0 0
      %1930 = vmatpush1.bf16.msra.mxu0 0
      %1931 = vmatprep.mubr.bf16.mxu0 0
      %1932 = vmatmul.mubr.bf16.gmra.mrb[0].mxu0 %v1894
      %v1933 = vpop.f32.mrb[0].mxu0
      %v1934 = vadd.f32 0.0, %v1933
      %v1935 = vpop.f32.mrb[0].mxu0
      %v1936 = vpop.f32.mrb[0].mxu0
      %v1937 = vpop.f32.mrb[0].mxu0
      %1938 = vdwg.mxu0
      %v1939 = vadd.f32 %v1881, %v1934
      %1940 = vrot.lane.b32.xlu0 %v1484, 123
      %v1941 = vpop.permute.xlu0 %1940
      %1942 = vrot.lane.b32.xlu0 %v1484, 11
      %v1943 = vpop.permute.xlu0 %1942
      %v1946 = vsel %vm891, %v1941, %v1943
      %v1948 = vmul.bf16 %v1946, %v903
      %s1949 = scalar_lea.vmem %s0, 52
      %v1950 = vld [vmem:[%s1949] sm:$0x3]
      %v1952 = vsel %vm392, %v1950, 0
      %v1955 = vsel %vm410, %v1948, 0
      %1957 = vmatprep.subr.bf16.mxu0 0
      %1958 = vmatpush1.bf16.msra.mxu0 %v1955
      %1959 = vmatprep.subr.bf16.mxu0 0
      %1960 = vmatpush1.bf16.msra.mxu0 0
      %1961 = vmatprep.subr.bf16.mxu0 0
      %1962 = vmatpush1.bf16.msra.mxu0 0
      %1963 = vmatprep.subr.bf16.mxu0 0
      %1964 = vmatpush1.bf16.msra.mxu0 0
      %1965 = vmatprep.subr.bf16.mxu0 0
      %1966 = vmatpush1.bf16.msra.mxu0 0
      %1967 = vmatprep.subr.bf16.mxu0 0
      %1968 = vmatpush1.bf16.msra.mxu0 0
      %1969 = vmatprep.subr.bf16.mxu0 0
      %1970 = vmatpush1.bf16.msra.mxu0 0
      %1971 = vmatprep.subr.bf16.mxu0 0
      %1972 = vmatpush1.bf16.msra.mxu0 0
      %1973 = vmatprep.subr.bf16.mxu0 0
      %1974 = vmatpush1.bf16.msra.mxu0 0
      %1975 = vmatprep.subr.bf16.mxu0 0
      %1976 = vmatpush1.bf16.msra.mxu0 0
      %1977 = vmatprep.subr.bf16.mxu0 0
      %1978 = vmatpush1.bf16.msra.mxu0 0
      %1979 = vmatprep.subr.bf16.mxu0 0
      %1980 = vmatpush1.bf16.msra.mxu0 0
      %1981 = vmatprep.subr.bf16.mxu0 0
      %1982 = vmatpush1.bf16.msra.mxu0 0
      %1983 = vmatprep.subr.bf16.mxu0 0
      %1984 = vmatpush1.bf16.msra.mxu0 0
      %1985 = vmatprep.subr.bf16.mxu0 0
      %1986 = vmatpush1.bf16.msra.mxu0 0
      %1987 = vmatprep.subr.bf16.mxu0 0
      %1988 = vmatpush1.bf16.msra.mxu0 0
      %1989 = vmatprep.mubr.bf16.mxu0 0
      %1990 = vmatmul.mubr.bf16.gmra.mrb[0].mxu0 %v1952
      %v1991 = vpop.f32.mrb[0].mxu0
      %v1992 = vadd.f32 0.0, %v1991
      %v1993 = vpop.f32.mrb[0].mxu0
      %v1994 = vpop.f32.mrb[0].mxu0
      %v1995 = vpop.f32.mrb[0].mxu0
      %1996 = vdwg.mxu0
      %v1997 = vadd.f32 %v1939, %v1992
      %v1998 = vld [vmem:[%s1] sm:$0xf]
      %2000 = vset.pattern.permute.xlu0 0
      %2001 = vperm.xlu0 %2000, %v1998
      %v2002 = vpop.permute.xlu0 %2001
      %v2004 = vadd.f32 %v1997, %v2002
      %v2005 = vpack.c.bf16 %v2004, %v2004
      %vm2006 = vcmask 123904
      %2007 = vst.msk [vmem:[%s358] sm:$0x3] %vm2006, %v2005
      %p2008 = scmp.lt.s32.totalorder %s21, 1
      %s2009 = scalar_select %p2008, %s21, 1
      %p2010 = scmp.lt.s32.totalorder %s22, 3
      %s2011 = scalar_select %p2010, %s22, 3
      %s2012 = smul.addr %s2009, 4
      %s2013 = sadd.s32 %s2011, %s2012
      %s2014 = smul.addr %s2013, 2
      %s2015 = scalar_lea.vmem %s6, %s2014
      // Predicated region
      $region45: #{_lambda_.3} parent=43 // pred_check
        %p2016 = pneg %p200
      $region46: #{_lambda_.3} parent=43 // pred_check_branch
        %2018 = sbr.rel (%p2016) target = $region48
      $region47: #{_lambda_.3} parent=43 // pred_region
        _
      $region48: #{_lambda_.3} parent=43 // pred_fallthru
        _
    $region44: #{_lambda_.3} parent=5 // pred_fallthru
      _
    %p2019 = scmp.le.s32.totalorder 2, %s12
    // Predicated region
    $region49: #{_lambda_.3} parent=5 // pred_check
      %p2020 = pneg %p2019
    $region50: #{_lambda_.3} parent=5 // pred_check_branch
      %2022 = sbr.rel (%p2020) target = $region52
    $region51: #{_lambda_.3} parent=5 // pred_region
      %s2023 = ssub.s32 %s12, 2
      // Predicated region
      $region53: #{_lambda_.3} parent=51 // pred_check
        %p2024 = pneg %p206
      $region54: #{_lambda_.3} parent=51 // pred_check_branch
        %2026 = sbr.rel (%p2024) target = $region56
      $region55: #{_lambda_.3} parent=51 // pred_region
        %p2027 = scmp.lt.s32.totalorder %s23, 1
        %s2028 = scalar_select %p2027, %s23, 1
        %p2029 = scmp.lt.s32.totalorder %s24, 3
        %s2030 = scalar_select %p2029, %s24, 3
        %s2031 = smul.addr %s2028, 4
        %s2032 = sadd.s32 %s2030, %s2031
        %s2033 = smul.addr %s2032, 2
        %s2034 = scalar_lea.vmem %s6, %s2033
      $region56: #{_lambda_.3} parent=51 // pred_fallthru
        _
    $region52: #{_lambda_.3} parent=5 // pred_fallthru
      _
  $region6: #{_lambda_.3} parent=0 // loop_footer
    %s16 = sadd.s32 1, %s12
  $region7: #{_lambda_.3} parent=0 // loop_footer_branch
    %11 = sbr.rel target = $region3
  $region8: #{_lambda_.3} parent=0 // loop_exit
    _

// kernel: _lambda_.4
$region0: #{_lambda_.4}
  #allocation0 [shape = 'u32[]', space=smem, size = 0x4, offset = 0x4, fixed_abs, tag = 'smem constant byte address 0x4 - core index']
  #allocation1 [shape = 'u32[144,128]{1,0:T(1,128)}', space=vmem, size = 0x12000, scoped, tag = 'internal scratch']
  %s0 = inlined_call_operand.vmem [shape: bf16[27,4,4], index: 0, kind: input, shape index: {}]
  %s1 = inlined_call_operand.vmem [shape: f32[4,1], index: 1, kind: input, shape index: {}]
  %s2 = inlined_call_operand.vmem [shape: bf16[9,4], index: 2, kind: input, shape index: {}]
  %s3 = inlined_call_operand.vmem [shape: bf16[2,4,4,4], index: 3, kind: input, shape index: {}, may-alias: {3,4,5}]
  %s4 = inlined_call_operand.vmem [shape: bf16[2,4,4,4], index: 4, kind: input, shape index: {}, may-alias: {3,4,5}]
  %s5 = inlined_call_operand.vmem [shape: bf16[2,4,4,4], index: 5, kind: input, shape index: {}, may-alias: {3,4,5}]
  %s6 = inlined_call_operand.vmem [shape: bf16[2,2,4,4], index: 6, kind: output, shape index: {}]
  %s7 = sld [smem:[#allocation0]]
  $region57: #{_lambda_.4} parent=0
    _
  %s9 = ssub.s32 1, %s7
  %s10 = scalar_select 0, %s9, %s7
  loop: start=0, step=1, limit=6
  $region2: #{_lambda_.4} parent=0 // loop_pre_header
    _
  $region3: #{_lambda_.4} parent=0 // loop_header
    %s12 = sphi 0, %s16
    %p13 = scmp.ge.s32.totalorder %s12, 6
    %s19 = sphi 0, %s31
    %s20 = sphi 0, %s27
    %s21 = sphi 0, %s19
    %s22 = sphi 0, %s20
    %s23 = sphi 0, %s21
    %s24 = sphi 0, %s22
    %s32 = sphi 0, %s32
    %s34 = sphi 0, %s32
    %s35 = sphi 0, %s34
    %s49 = sphi 0, %s35
    %s53 = sphi 0, %s53
    %s55 = sphi 0, %s53
    %s56 = sphi 0, %s55
    %s70 = sphi 0, %s56
    %s74 = sphi 0, %s74
    %s76 = sphi 0, %s74
    %s77 = sphi 0, %s76
    %s91 = sphi 0, %s77
    %s99 = sphi 0, %s101
    %s102 = sphi 0, %s99
    %s103 = sphi 0, %s102
    %s119 = sphi 0, %s103
    %s129 = sphi 0, %s131
    %s132 = sphi 0, %s129
    %s133 = sphi 0, %s132
    %s149 = sphi 0, %s133
    %s159 = sphi 0, %s161
    %s162 = sphi 0, %s159
    %s163 = sphi 0, %s162
    %s179 = sphi 0, %s163
    %s187 = sphi 0, %s189
    %s190 = sphi 0, %s187
    %s191 = sphi 0, %s190
    %s207 = sphi 0, %s191
  $region4: #{_lambda_.4} parent=0 // loop_header_branch
    %15 = sbr.rel (%p13) target = $region8
  $region5: #{_lambda_.4} parent=0 // loop_body
    %s17 = ssub.s32 %s12, 1
    %s18 = ssub.s32 %s12, 2
    %s25 = sadd.s32 1, %s20
    %p26 = scmp.ge.s32.totalorder %s25, 2
    %s27 = scalar_select %p26, 0, %s25
    %s28 = sadd.s32 1, %s19
    %s29 = scalar_select %p26, %s28, %s19
    %p30 = scmp.ge.s32.totalorder %s29, 2
    %s31 = scalar_select %p30, 0, %s29
    %s33 = sadd.s32 %s32, 1
    %p36 = scmp.eq.s32.totalorder %s12, 3
    %p37 = scmp.ne.s32.totalorder %s32, %s34
    %p38 = scmp.eq.s32.totalorder %s12, 0
    %p39 = por %p37, %p38
    %p40 = scmp.ne.s32.totalorder %s32, %s34
    %p41 = scmp.eq.s32.totalorder %s17, 3
    %p42 = por %p40, %p41
    %p43 = scmp.ne.s32.totalorder %s34, %s35
    %p44 = scmp.eq.s32.totalorder %s17, 0
    %p45 = por %p43, %p44
    %p46 = scmp.ne.s32.totalorder %s34, %s35
    %p47 = scmp.eq.s32.totalorder %s18, 3
    %p48 = por %p46, %p47
    %p50 = scmp.ne.s32.totalorder %s35, %s49
    %p51 = scmp.eq.s32.totalorder %s18, 0
    %p52 = por %p50, %p51
    %s54 = sadd.s32 %s53, 1
    %p57 = scmp.eq.s32.totalorder %s12, 3
    %p58 = scmp.ne.s32.totalorder %s53, %s55
    %p59 = scmp.eq.s32.totalorder %s12, 0
    %p60 = por %p58, %p59
    %p61 = scmp.ne.s32.totalorder %s53, %s55
    %p62 = scmp.eq.s32.totalorder %s17, 3
    %p63 = por %p61, %p62
    %p64 = scmp.ne.s32.totalorder %s55, %s56
    %p65 = scmp.eq.s32.totalorder %s17, 0
    %p66 = por %p64, %p65
    %p67 = scmp.ne.s32.totalorder %s55, %s56
    %p68 = scmp.eq.s32.totalorder %s18, 3
    %p69 = por %p67, %p68
    %p71 = scmp.ne.s32.totalorder %s56, %s70
    %p72 = scmp.eq.s32.totalorder %s18, 0
    %p73 = por %p71, %p72
    %s75 = sadd.s32 %s74, 1
    %p78 = scmp.eq.s32.totalorder %s12, 3
    %p79 = scmp.ne.s32.totalorder %s74, %s76
    %p80 = scmp.eq.s32.totalorder %s12, 0
    %p81 = por %p79, %p80
    %p82 = scmp.ne.s32.totalorder %s74, %s76
    %p83 = scmp.eq.s32.totalorder %s17, 3
    %p84 = por %p82, %p83
    %p85 = scmp.ne.s32.totalorder %s76, %s77
    %p86 = scmp.eq.s32.totalorder %s17, 0
    %p87 = por %p85, %p86
    %p88 = scmp.ne.s32.totalorder %s76, %s77
    %p89 = scmp.eq.s32.totalorder %s18, 3
    %p90 = por %p88, %p89
    %p92 = scmp.ne.s32.totalorder %s77, %s91
    %p93 = scmp.eq.s32.totalorder %s18, 0
    %p94 = por %p92, %p93
    %s95 = ssub.s32 %s19, %s31
    %s96 = ssub.s32 %s20, %s27
    %s97 = sor.u32 %s95, %s96
    %p98 = scmp.eq.s32.totalorder %s97, 0
    %s100 = sadd.s32 %s99, 1
    %s101 = scalar_select %p98, %s99, %s100
    %p104 = pneg %p98
    %p105 = scmp.eq.s32.totalorder %s12, 3
    %p106 = por %p104, %p105
    %p107 = scmp.ne.s32.totalorder %s99, %s102
    %p108 = scmp.eq.s32.totalorder %s12, 0
    %p109 = por %p107, %p108
    %p110 = scmp.ne.s32.totalorder %s99, %s102
    %p111 = scmp.eq.s32.totalorder %s17, 3
    %p112 = por %p110, %p111
    %p113 = scmp.ne.s32.totalorder %s102, %s103
    %p114 = scmp.eq.s32.totalorder %s17, 0
    %p115 = por %p113, %p114
    %p116 = scmp.ne.s32.totalorder %s102, %s103
    %p117 = scmp.eq.s32.totalorder %s18, 3
    %p118 = por %p116, %p117
    %p120 = scmp.ne.s32.totalorder %s103, %s119
    %p121 = scmp.eq.s32.totalorder %s18, 0
    %p122 = por %p120, %p121
    %s123 = sadd.s32 %s20, 1
    %s124 = sadd.s32 %s27, 1
    %s125 = ssub.s32 %s19, %s31
    %s126 = ssub.s32 %s123, %s124
    %s127 = sor.u32 %s125, %s126
    %p128 = scmp.eq.s32.totalorder %s127, 0
    %s130 = sadd.s32 %s129, 1
    %s131 = scalar_select %p128, %s129, %s130
    %p134 = pneg %p128
    %p135 = scmp.eq.s32.totalorder %s12, 3
    %p136 = por %p134, %p135
    %p137 = scmp.ne.s32.totalorder %s129, %s132
    %p138 = scmp.eq.s32.totalorder %s12, 0
    %p139 = por %p137, %p138
    %p140 = scmp.ne.s32.totalorder %s129, %s132
    %p141 = scmp.eq.s32.totalorder %s17, 3
    %p142 = por %p140, %p141
    %p143 = scmp.ne.s32.totalorder %s132, %s133
    %p144 = scmp.eq.s32.totalorder %s17, 0
    %p145 = por %p143, %p144
    %p146 = scmp.ne.s32.totalorder %s132, %s133
    %p147 = scmp.eq.s32.totalorder %s18, 3
    %p148 = por %p146, %p147
    %p150 = scmp.ne.s32.totalorder %s133, %s149
    %p151 = scmp.eq.s32.totalorder %s18, 0
    %p152 = por %p150, %p151
    %s153 = sadd.s32 %s20, 2
    %s154 = sadd.s32 %s27, 2
    %s155 = ssub.s32 %s19, %s31
    %s156 = ssub.s32 %s153, %s154
    %s157 = sor.u32 %s155, %s156
    %p158 = scmp.eq.s32.totalorder %s157, 0
    %s160 = sadd.s32 %s159, 1
    %s161 = scalar_select %p158, %s159, %s160
    %p164 = pneg %p158
    %p165 = scmp.eq.s32.totalorder %s12, 3
    %p166 = por %p164, %p165
    %p167 = scmp.ne.s32.totalorder %s159, %s162
    %p168 = scmp.eq.s32.totalorder %s12, 0
    %p169 = por %p167, %p168
    %p170 = scmp.ne.s32.totalorder %s159, %s162
    %p171 = scmp.eq.s32.totalorder %s17, 3
    %p172 = por %p170, %p171
    %p173 = scmp.ne.s32.totalorder %s162, %s163
    %p174 = scmp.eq.s32.totalorder %s17, 0
    %p175 = por %p173, %p174
    %p176 = scmp.ne.s32.totalorder %s162, %s163
    %p177 = scmp.eq.s32.totalorder %s18, 3
    %p178 = por %p176, %p177
    %p180 = scmp.ne.s32.totalorder %s163, %s179
    %p181 = scmp.eq.s32.totalorder %s18, 0
    %p182 = por %p180, %p181
    %s183 = ssub.s32 %s19, %s31
    %s184 = ssub.s32 %s20, %s27
    %s185 = sor.u32 %s183, %s184
    %p186 = scmp.eq.s32.totalorder %s185, 0
    %s188 = sadd.s32 %s187, 1
    %s189 = scalar_select %p186, %s187, %s188
    %p192 = pneg %p186
    %p193 = scmp.eq.s32.totalorder %s12, 3
    %p194 = por %p192, %p193
    %p195 = scmp.ne.s32.totalorder %s187, %s190
    %p196 = scmp.eq.s32.totalorder %s12, 0
    %p197 = por %p195, %p196
    %p198 = scmp.ne.s32.totalorder %s187, %s190
    %p199 = scmp.eq.s32.totalorder %s17, 3
    %p200 = por %p198, %p199
    %p201 = scmp.ne.s32.totalorder %s190, %s191
    %p202 = scmp.eq.s32.totalorder %s17, 0
    %p203 = por %p201, %p202
    %p204 = scmp.ne.s32.totalorder %s190, %s191
    %p205 = scmp.eq.s32.totalorder %s18, 3
    %p206 = por %p204, %p205
    %p208 = scmp.ne.s32.totalorder %s191, %s207
    %p209 = scmp.eq.s32.totalorder %s18, 0
    %p210 = por %p208, %p209
    %p211 = scmp.le.s32.totalorder 1, %s12
    %p212 = scmp.lt.s32.totalorder %s12, 5
    %p213 = pnand %p211, %p212
    %p214 = pneg %p213
    // Predicated region
    $region9: #{_lambda_.4} parent=5 // pred_check
      _
    $region10: #{_lambda_.4} parent=5 // pred_check_branch
      %216 = sbr.rel (%p213) target = $region12
    $region11: #{_lambda_.4} parent=5 // pred_region
      %s217 = ssub.s32 %s12, 1
      // Predicated region
      $region13: #{_lambda_.4} parent=11 // pred_check
        %p218 = pneg %p45
      $region14: #{_lambda_.4} parent=11 // pred_check_branch
        %220 = sbr.rel (%p218) target = $region16
      $region15: #{_lambda_.4} parent=11 // pred_region
        _
      $region16: #{_lambda_.4} parent=11 // pred_fallthru
        _
      // Predicated region
      $region17: #{_lambda_.4} parent=11 // pred_check
        %p221 = pneg %p66
      $region18: #{_lambda_.4} parent=11 // pred_check_branch
        %223 = sbr.rel (%p221) target = $region20
      $region19: #{_lambda_.4} parent=11 // pred_region
        _
      $region20: #{_lambda_.4} parent=11 // pred_fallthru
        _
      // Predicated region
      $region21: #{_lambda_.4} parent=11 // pred_check
        %p224 = pneg %p87
      $region22: #{_lambda_.4} parent=11 // pred_check_branch
        %226 = sbr.rel (%p224) target = $region24
      $region23: #{_lambda_.4} parent=11 // pred_region
        _
      $region24: #{_lambda_.4} parent=11 // pred_fallthru
        _
    $region12: #{_lambda_.4} parent=5 // pred_fallthru
      _
    %p227 = scmp.lt.s32.totalorder %s12, 4
    // Predicated region
    $region25: #{_lambda_.4} parent=5 // pred_check
      %p228 = pneg %p227
    $region26: #{_lambda_.4} parent=5 // pred_check_branch
      %230 = sbr.rel (%p228) target = $region28
    $region27: #{_lambda_.4} parent=5 // pred_region
      // Predicated region
      $region29: #{_lambda_.4} parent=27 // pred_check
        %p231 = pneg %p109
      $region30: #{_lambda_.4} parent=27 // pred_check_branch
        %233 = sbr.rel (%p231) target = $region32
      $region31: #{_lambda_.4} parent=27 // pred_region
        %p234 = scmp.lt.s32.totalorder %s19, 1
        %s235 = scalar_select %p234, %s19, 1
        %p236 = scmp.lt.s32.totalorder %s20, 3
        %s237 = scalar_select %p236, %s20, 3
        %s238 = smul.addr %s235, 4
        %s239 = sadd.s32 %s237, %s238
        %s240 = smul.addr %s239, 2
        %s241 = scalar_lea.vmem %s3, %s240
      $region32: #{_lambda_.4} parent=27 // pred_fallthru
        _
      // Predicated region
      $region33: #{_lambda_.4} parent=27 // pred_check
        %p242 = pneg %p139
      $region34: #{_lambda_.4} parent=27 // pred_check_branch
        %244 = sbr.rel (%p242) target = $region36
      $region35: #{_lambda_.4} parent=27 // pred_region
        %s245 = sadd.s32 %s20, 1
        %p246 = scmp.lt.s32.totalorder %s19, 1
        %s247 = scalar_select %p246, %s19, 1
        %p248 = scmp.lt.s32.totalorder %s245, 3
        %s249 = scalar_select %p248, %s245, 3
        %s250 = smul.addr %s247, 4
        %s251 = sadd.s32 %s249, %s250
        %s252 = smul.addr %s251, 2
        %s253 = scalar_lea.vmem %s4, %s252
        %s254 = sadd.s32 %s20, 1
      $region36: #{_lambda_.4} parent=27 // pred_fallthru
        _
      // Predicated region
      $region37: #{_lambda_.4} parent=27 // pred_check
        %p255 = pneg %p169
      $region38: #{_lambda_.4} parent=27 // pred_check_branch
        %257 = sbr.rel (%p255) target = $region40
      $region39: #{_lambda_.4} parent=27 // pred_region
        %s258 = sadd.s32 %s20, 2
        %p259 = scmp.lt.s32.totalorder %s19, 1
        %s260 = scalar_select %p259, %s19, 1
        %p261 = scmp.lt.s32.totalorder %s258, 3
        %s262 = scalar_select %p261, %s258, 3
        %s263 = smul.addr %s260, 4
        %s264 = sadd.s32 %s262, %s263
        %s265 = smul.addr %s264, 2
        %s266 = scalar_lea.vmem %s5, %s265
        %s267 = sadd.s32 %s20, 2
      $region40: #{_lambda_.4} parent=27 // pred_fallthru
        _
    $region28: #{_lambda_.4} parent=5 // pred_fallthru
      _
    %p268 = scmp.le.s32.totalorder 1, %s12
    %p269 = scmp.lt.s32.totalorder %s12, 5
    %p270 = pnand %p268, %p269
    %p271 = pneg %p270
    // Predicated region
    $region41: #{_lambda_.4} parent=5 // pred_check
      _
    $region42: #{_lambda_.4} parent=5 // pred_check_branch
      %273 = sbr.rel (%p270) target = $region44
    $region43: #{_lambda_.4} parent=5 // pred_region
      %s274 = ssub.s32 %s12, 1
      %p275 = pneg %p45
      %p276 = pneg %p42
      %p277 = pneg %p66
      %p278 = pneg %p63
      %p279 = pneg %p87
      %p280 = pneg %p84
      %p281 = scmp.lt.s32.totalorder %s21, 1
      %s282 = scalar_select %p281, %s21, 1
      %p283 = scmp.lt.s32.totalorder %s22, 3
      %s284 = scalar_select %p283, %s22, 3
      %s285 = smul.addr %s282, 4
      %s286 = sadd.s32 %s284, %s285
      %s287 = smul.addr %s286, 2
      %s288 = scalar_lea.vmem %s3, %s287
      %p289 = pneg %p115
      %p290 = pneg %p112
      %s291 = sadd.s32 %s22, 1
      %p292 = scmp.lt.s32.totalorder %s21, 1
      %s293 = scalar_select %p292, %s21, 1
      %p294 = scmp.lt.s32.totalorder %s291, 3
      %s295 = scalar_select %p294, %s291, 3
      %s296 = smul.addr %s293, 4
      %s297 = sadd.s32 %s295, %s296
      %s298 = smul.addr %s297, 2
      %s299 = scalar_lea.vmem %s4, %s298
      %p300 = pneg %p145
      %p301 = pneg %p142
      %s302 = sadd.s32 %s22, 2
      %p303 = scmp.lt.s32.totalorder %s21, 1
      %s304 = scalar_select %p303, %s21, 1
      %p305 = scmp.lt.s32.totalorder %s302, 3
      %s306 = scalar_select %p305, %s302, 3
      %s307 = smul.addr %s304, 4
      %s308 = sadd.s32 %s306, %s307
      %s309 = smul.addr %s308, 2
      %s310 = scalar_lea.vmem %s5, %s309
      %p311 = pneg %p175
      %p312 = pneg %p172
      %p313 = pneg %p203
      %p314 = pneg %p200
      %p315 = scmp.lt.s32.totalorder %s21, 1
      %s316 = scalar_select %p315, %s21, 1
      %p317 = scmp.lt.s32.totalorder %s22, 1
      %s318 = scalar_select %p317, %s22, 1
      %s319 = smul.addr %s316, 2
      %s320 = sadd.s32 %s318, %s319
      %s321 = smul.addr %s320, 2
      %s322 = scalar_lea.vmem %s6, %s321
      %p323 = scmp.lt.s32.totalorder %s21, 1
      %s324 = scalar_select %p323, %s21, 1
      %p325 = scmp.lt.s32.totalorder %s22, 3
      %s326 = scalar_select %p325, %s22, 3
      %s327 = smul.addr %s324, 4
      %s328 = sadd.s32 %s326, %s327
      %s329 = smul.addr %s328, 2
      %s330 = scalar_lea.vmem %s3, %s329
      %s331 = sadd.s32 %s22, 1
      %p332 = scmp.lt.s32.totalorder %s21, 1
      %s333 = scalar_select %p332, %s21, 1
      %p334 = scmp.lt.s32.totalorder %s331, 3
      %s335 = scalar_select %p334, %s331, 3
      %s336 = smul.addr %s333, 4
      %s337 = sadd.s32 %s335, %s336
      %s338 = smul.addr %s337, 2
      %s339 = scalar_lea.vmem %s4, %s338
      %s340 = sadd.s32 %s22, 1
      %s341 = sadd.s32 %s22, 2
      %p342 = scmp.lt.s32.totalorder %s21, 1
      %s343 = scalar_select %p342, %s21, 1
      %p344 = scmp.lt.s32.totalorder %s341, 3
      %s345 = scalar_select %p344, %s341, 3
      %s346 = smul.addr %s343, 4
      %s347 = sadd.s32 %s345, %s346
      %s348 = smul.addr %s347, 2
      %s349 = scalar_lea.vmem %s5, %s348
      %s350 = sadd.s32 %s22, 2
      %p351 = scmp.lt.s32.totalorder %s21, 1
      %s352 = scalar_select %p351, %s21, 1
      %p353 = scmp.lt.s32.totalorder %s22, 1
      %s354 = scalar_select %p353, %s22, 1
      %s355 = smul.addr %s352, 2
      %s356 = sadd.s32 %s354, %s355
      %s357 = smul.addr %s356, 2
      %s358 = scalar_lea.vmem %s6, %s357
      %v360 = vld [vmem:[%s330] sm:$0x3]
      %v363 = vunpack.c.l.s4 1983009808
      %v364 = vunpack.c.0.s8 %v363
      %v365 = vlaneseq
      %v366 = vshrl.u32 %v365, 7
      %v367 = vsub.s32 %v364, %v366
      %v368 = vrot.slane %v360, %v367
      %369 = vrot.lane.b32.xlu0 %v368, 127
      %v370 = vpop.permute.xlu0 %369
      %371 = vrot.lane.b32.xlu0 %v368, 3
      %v372 = vpop.permute.xlu0 %371
      %vm373 = vcmask 23552
      %v376 = vsel %vm373, %v370, %v372
      %v378 = vld [vmem:[%s2] sm:$0x1]
      %v380 = vpack.i.b16 %v378, %v378
      %v382 = vlaneseq
      %v383 = vshrl.u32 %v382, 7
      %v384 = vsub.s32 0, %v383
      %v385 = vrot.slane %v380, %v384
      %v386 = vmul.bf16 %v376, %v385
      %v387 = vld [vmem:[%s0] sm:$0x3]
      %388 = vrot.lane.b32.xlu0 %v368, 126
      %v389 = vpop.permute.xlu0 %388
      %390 = vrot.lane.b32.xlu0 %v368, 2
      %v391 = vpop.permute.xlu0 %390
      %vm392 = vcmask 15360
      %v395 = vsel %vm392, %v389, %v391
      %v397 = vshrl.u32 %v378, 16
      %v398 = vpack.i.b16 %v397, %v397
      %v400 = vlaneseq
      %v401 = vshrl.u32 %v400, 7
      %v402 = vsub.s32 0, %v401
      %v403 = vrot.slane %v398, %v402
      %v404 = vmul.bf16 %v395, %v403
      %s405 = scalar_lea.vmem %s0, 2
      %v406 = vld [vmem:[%s405] sm:$0x3]
      %vm407 = vcmask 31744
      %v409 = vsel %vm407, %v406, 0
      %vm411 = vcmask 1041408
      %v413 = vsel %vm411, %v404, 0
      %415 = vmatprep.subr.bf16.mxu0 0
      %416 = vmatpush1.bf16.msra.mxu0 %v413
      %417 = vmatprep.subr.bf16.mxu0 0
      %418 = vmatpush1.bf16.msra.mxu0 0
      %419 = vmatprep.subr.bf16.mxu0 0
      %420 = vmatpush1.bf16.msra.mxu0 0
      %421 = vmatprep.subr.bf16.mxu0 0
      %422 = vmatpush1.bf16.msra.mxu0 0
      %423 = vmatprep.subr.bf16.mxu0 0
      %424 = vmatpush1.bf16.msra.mxu0 0
      %425 = vmatprep.subr.bf16.mxu0 0
      %426 = vmatpush1.bf16.msra.mxu0 0
      %427 = vmatprep.subr.bf16.mxu0 0
      %428 = vmatpush1.bf16.msra.mxu0 0
      %429 = vmatprep.subr.bf16.mxu0 0
      %430 = vmatpush1.bf16.msra.mxu0 0
      %431 = vmatprep.subr.bf16.mxu0 0
      %432 = vmatpush1.bf16.msra.mxu0 0
      %433 = vmatprep.subr.bf16.mxu0 0
      %434 = vmatpush1.bf16.msra.mxu0 0
      %435 = vmatprep.subr.bf16.mxu0 0
      %436 = vmatpush1.bf16.msra.mxu0 0
      %437 = vmatprep.subr.bf16.mxu0 0
      %438 = vmatpush1.bf16.msra.mxu0 0
      %439 = vmatprep.subr.bf16.mxu0 0
      %440 = vmatpush1.bf16.msra.mxu0 0
      %441 = vmatprep.subr.bf16.mxu0 0
      %442 = vmatpush1.bf16.msra.mxu0 0
      %443 = vmatprep.subr.bf16.mxu0 0
      %444 = vmatpush1.bf16.msra.mxu0 0
      %445 = vmatprep.subr.bf16.mxu0 0
      %446 = vmatpush1.bf16.msra.mxu0 0
      %447 = vmatprep.mubr.bf16.mxu0 0
      %448 = vmatmul.mubr.bf16.gmra.mrb[0].mxu0 %v409
      %v449 = vpop.f32.mrb[0].mxu0
      %v450 = vadd.f32 0.0, %v449
      %v451 = vpop.f32.mrb[0].mxu0
      %v452 = vpop.f32.mrb[0].mxu0
      %v453 = vpop.f32.mrb[0].mxu0
      %454 = vdwg.mxu0
      %v456 = vsel %vm407, %v387, 0
      %v459 = vsel %vm411, %v386, 0
      %461 = vmatprep.subr.bf16.mxu0 0
      %462 = vmatpush1.bf16.msra.mxu0 %v459
      %463 = vmatprep.subr.bf16.mxu0 0
      %464 = vmatpush1.bf16.msra.mxu0 0
      %465 = vmatprep.subr.bf16.mxu0 0
      %466 = vmatpush1.bf16.msra.mxu0 0
      %467 = vmatprep.subr.bf16.mxu0 0
      %468 = vmatpush1.bf16.msra.mxu0 0
      %469 = vmatprep.subr.bf16.mxu0 0
      %470 = vmatpush1.bf16.msra.mxu0 0
      %471 = vmatprep.subr.bf16.mxu0 0
      %472 = vmatpush1.bf16.msra.mxu0 0
      %473 = vmatprep.subr.bf16.mxu0 0
      %474 = vmatpush1.bf16.msra.mxu0 0
      %475 = vmatprep.subr.bf16.mxu0 0
      %476 = vmatpush1.bf16.msra.mxu0 0
      %477 = vmatprep.subr.bf16.mxu0 0
      %478 = vmatpush1.bf16.msra.mxu0 0
      %479 = vmatprep.subr.bf16.mxu0 0
      %480 = vmatpush1.bf16.msra.mxu0 0
      %481 = vmatprep.subr.bf16.mxu0 0
      %482 = vmatpush1.bf16.msra.mxu0 0
      %483 = vmatprep.subr.bf16.mxu0 0
      %484 = vmatpush1.bf16.msra.mxu0 0
      %485 = vmatprep.subr.bf16.mxu0 0
      %486 = vmatpush1.bf16.msra.mxu0 0
      %487 = vmatprep.subr.bf16.mxu0 0
      %488 = vmatpush1.bf16.msra.mxu0 0
      %489 = vmatprep.subr.bf16.mxu0 0
      %490 = vmatpush1.bf16.msra.mxu0 0
      %491 = vmatprep.subr.bf16.mxu0 0
      %492 = vmatpush1.bf16.msra.mxu0 0
      %493 = vmatprep.mubr.bf16.mxu0 0
      %494 = vmatmul.mubr.bf16.gmra.mrb[0].mxu0 %v456
      %v495 = vpop.f32.mrb[0].mxu0
      %v496 = vadd.f32 %v450, %v495
      %v497 = vpop.f32.mrb[0].mxu0
      %v498 = vpop.f32.mrb[0].mxu0
      %v499 = vpop.f32.mrb[0].mxu0
      %500 = vdwg.mxu0
      %501 = vrot.lane.b32.xlu0 %v368, 125
      %v502 = vpop.permute.xlu0 %501
      %503 = vrot.lane.b32.xlu0 %v368, 1
      %v504 = vpop.permute.xlu0 %503
      %vm505 = vcmask 7168
      %v508 = vsel %vm505, %v502, %v504
      %v510 = vld [vmem:[%s2] sm:$0x2]
      %v512 = vpack.i.b16 %v510, %v510
      %v514 = vlaneseq
      %v515 = vshrl.u32 %v514, 7
      %v516 = vsub.s32 1, %v515
      %v517 = vrot.slane %v512, %v516
      %v518 = vmul.bf16 %v508, %v517
      %s519 = scalar_lea.vmem %s0, 4
      %v520 = vld [vmem:[%s519] sm:$0x3]
      %v522 = vsel %vm407, %v520, 0
      %v525 = vsel %vm411, %v518, 0
      %527 = vmatprep.subr.bf16.mxu0 0
      %528 = vmatpush1.bf16.msra.mxu0 %v525
      %529 = vmatprep.subr.bf16.mxu0 0
      %530 = vmatpush1.bf16.msra.mxu0 0
      %531 = vmatprep.subr.bf16.mxu0 0
      %532 = vmatpush1.bf16.msra.mxu0 0
      %533 = vmatprep.subr.bf16.mxu0 0
      %534 = vmatpush1.bf16.msra.mxu0 0
      %535 = vmatprep.subr.bf16.mxu0 0
      %536 = vmatpush1.bf16.msra.mxu0 0
      %537 = vmatprep.subr.bf16.mxu0 0
      %538 = vmatpush1.bf16.msra.mxu0 0
      %539 = vmatprep.subr.bf16.mxu0 0
      %540 = vmatpush1.bf16.msra.mxu0 0
      %541 = vmatprep.subr.bf16.mxu0 0
      %542 = vmatpush1.bf16.msra.mxu0 0
      %543 = vmatprep.subr.bf16.mxu0 0
      %544 = vmatpush1.bf16.msra.mxu0 0
      %545 = vmatprep.subr.bf16.mxu0 0
      %546 = vmatpush1.bf16.msra.mxu0 0
      %547 = vmatprep.subr.bf16.mxu0 0
      %548 = vmatpush1.bf16.msra.mxu0 0
      %549 = vmatprep.subr.bf16.mxu0 0
      %550 = vmatpush1.bf16.msra.mxu0 0
      %551 = vmatprep.subr.bf16.mxu0 0
      %552 = vmatpush1.bf16.msra.mxu0 0
      %553 = vmatprep.subr.bf16.mxu0 0
      %554 = vmatpush1.bf16.msra.mxu0 0
      %555 = vmatprep.subr.bf16.mxu0 0
      %556 = vmatpush1.bf16.msra.mxu0 0
      %557 = vmatprep.subr.bf16.mxu0 0
      %558 = vmatpush1.bf16.msra.mxu0 0
      %559 = vmatprep.mubr.bf16.mxu0 0
      %560 = vmatmul.mubr.bf16.gmra.mrb[0].mxu0 %v522
      %v561 = vpop.f32.mrb[0].mxu0
      %v562 = vadd.f32 0.0, %v561
      %v563 = vpop.f32.mrb[0].mxu0
      %v564 = vpop.f32.mrb[0].mxu0
      %v565 = vpop.f32.mrb[0].mxu0
      %566 = vdwg.mxu0
      %v567 = vadd.f32 %v496, %v562
      %v568 = vshrl.u32 %v510, 16
      %v569 = vpack.i.b16 %v568, %v568
      %v571 = vlaneseq
      %v572 = vshrl.u32 %v571, 7
      %v573 = vsub.s32 1, %v572
      %v574 = vrot.slane %v569, %v573
      %v575 = vmul.bf16 %v508, %v574
      %s576 = scalar_lea.vmem %s0, 6
      %v577 = vld [vmem:[%s576] sm:$0x3]
      %v579 = vsel %vm407, %v577, 0
      %v582 = vsel %vm411, %v575, 0
      %584 = vmatprep.subr.bf16.mxu0 0
      %585 = vmatpush1.bf16.msra.mxu0 %v582
      %586 = vmatprep.subr.bf16.mxu0 0
      %587 = vmatpush1.bf16.msra.mxu0 0
      %588 = vmatprep.subr.bf16.mxu0 0
      %589 = vmatpush1.bf16.msra.mxu0 0
      %590 = vmatprep.subr.bf16.mxu0 0
      %591 = vmatpush1.bf16.msra.mxu0 0
      %592 = vmatprep.subr.bf16.mxu0 0
      %593 = vmatpush1.bf16.msra.mxu0 0
      %594 = vmatprep.subr.bf16.mxu0 0
      %595 = vmatpush1.bf16.msra.mxu0 0
      %596 = vmatprep.subr.bf16.mxu0 0
      %597 = vmatpush1.bf16.msra.mxu0 0
      %598 = vmatprep.subr.bf16.mxu0 0
      %599 = vmatpush1.bf16.msra.mxu0 0
      %600 = vmatprep.subr.bf16.mxu0 0
      %601 = vmatpush1.bf16.msra.mxu0 0
      %602 = vmatprep.subr.bf16.mxu0 0
      %603 = vmatpush1.bf16.msra.mxu0 0
      %604 = vmatprep.subr.bf16.mxu0 0
      %605 = vmatpush1.bf16.msra.mxu0 0
      %606 = vmatprep.subr.bf16.mxu0 0
      %607 = vmatpush1.bf16.msra.mxu0 0
      %608 = vmatprep.subr.bf16.mxu0 0
      %609 = vmatpush1.bf16.msra.mxu0 0
      %610 = vmatprep.subr.bf16.mxu0 0
      %611 = vmatpush1.bf16.msra.mxu0 0
      %612 = vmatprep.subr.bf16.mxu0 0
      %613 = vmatpush1.bf16.msra.mxu0 0
      %614 = vmatprep.subr.bf16.mxu0 0
      %615 = vmatpush1.bf16.msra.mxu0 0
      %616 = vmatprep.mubr.bf16.mxu0 0
      %617 = vmatmul.mubr.bf16.gmra.mrb[0].mxu0 %v579
      %v618 = vpop.f32.mrb[0].mxu0
      %v619 = vadd.f32 0.0, %v618
      %v620 = vpop.f32.mrb[0].mxu0
      %v621 = vpop.f32.mrb[0].mxu0
      %v622 = vpop.f32.mrb[0].mxu0
      %623 = vdwg.mxu0
      %v624 = vadd.f32 %v567, %v619
      %s625 = scalar_lea.vmem %s0, 8
      %v626 = vld [vmem:[%s625] sm:$0x3]
      %v628 = vsel %vm407, %v626, 0
      %v631 = vsel %vm411, %v360, 0
      %633 = vmatprep.subr.bf16.mxu0 0
      %634 = vmatpush1.bf16.msra.mxu0 %v631
      %635 = vmatprep.subr.bf16.mxu0 0
      %636 = vmatpush1.bf16.msra.mxu0 0
      %637 = vmatprep.subr.bf16.mxu0 0
      %638 = vmatpush1.bf16.msra.mxu0 0
      %639 = vmatprep.subr.bf16.mxu0 0
      %640 = vmatpush1.bf16.msra.mxu0 0
      %641 = vmatprep.subr.bf16.mxu0 0
      %642 = vmatpush1.bf16.msra.mxu0 0
      %643 = vmatprep.subr.bf16.mxu0 0
      %644 = vmatpush1.bf16.msra.mxu0 0
      %645 = vmatprep.subr.bf16.mxu0 0
      %646 = vmatpush1.bf16.msra.mxu0 0
      %647 = vmatprep.subr.bf16.mxu0 0
      %648 = vmatpush1.bf16.msra.mxu0 0
      %649 = vmatprep.subr.bf16.mxu0 0
      %650 = vmatpush1.bf16.msra.mxu0 0
      %651 = vmatprep.subr.bf16.mxu0 0
      %652 = vmatpush1.bf16.msra.mxu0 0
      %653 = vmatprep.subr.bf16.mxu0 0
      %654 = vmatpush1.bf16.msra.mxu0 0
      %655 = vmatprep.subr.bf16.mxu0 0
      %656 = vmatpush1.bf16.msra.mxu0 0
      %657 = vmatprep.subr.bf16.mxu0 0
      %658 = vmatpush1.bf16.msra.mxu0 0
      %659 = vmatprep.subr.bf16.mxu0 0
      %660 = vmatpush1.bf16.msra.mxu0 0
      %661 = vmatprep.subr.bf16.mxu0 0
      %662 = vmatpush1.bf16.msra.mxu0 0
      %663 = vmatprep.subr.bf16.mxu0 0
      %664 = vmatpush1.bf16.msra.mxu0 0
      %665 = vmatprep.mubr.bf16.mxu0 0
      %666 = vmatmul.mubr.bf16.gmra.mrb[0].mxu0 %v628
      %v667 = vpop.f32.mrb[0].mxu0
      %v668 = vadd.f32 0.0, %v667
      %v669 = vpop.f32.mrb[0].mxu0
      %v670 = vpop.f32.mrb[0].mxu0
      %v671 = vpop.f32.mrb[0].mxu0
      %672 = vdwg.mxu0
      %v673 = vadd.f32 %v624, %v668
      %v674 = vld [vmem:[%s2] sm:$0x4]
      %v676 = vshrl.u32 %v674, 16
      %v677 = vpack.i.b16 %v676, %v676
      %v679 = vlaneseq
      %v680 = vshrl.u32 %v679, 7
      %v681 = vsub.s32 2, %v680
      %v682 = vrot.slane %v677, %v681
      %v683 = vmul.bf16 %v376, %v682
      %s684 = scalar_lea.vmem %s0, 10
      %v685 = vld [vmem:[%s684] sm:$0x3]
      %v687 = vsel %vm407, %v685, 0
      %v690 = vsel %vm411, %v683, 0
      %692 = vmatprep.subr.bf16.mxu0 0
      %693 = vmatpush1.bf16.msra.mxu0 %v690
      %694 = vmatprep.subr.bf16.mxu0 0
      %695 = vmatpush1.bf16.msra.mxu0 0
      %696 = vmatprep.subr.bf16.mxu0 0
      %697 = vmatpush1.bf16.msra.mxu0 0
      %698 = vmatprep.subr.bf16.mxu0 0
      %699 = vmatpush1.bf16.msra.mxu0 0
      %700 = vmatprep.subr.bf16.mxu0 0
      %701 = vmatpush1.bf16.msra.mxu0 0
      %702 = vmatprep.subr.bf16.mxu0 0
      %703 = vmatpush1.bf16.msra.mxu0 0
      %704 = vmatprep.subr.bf16.mxu0 0
      %705 = vmatpush1.bf16.msra.mxu0 0
      %706 = vmatprep.subr.bf16.mxu0 0
      %707 = vmatpush1.bf16.msra.mxu0 0
      %708 = vmatprep.subr.bf16.mxu0 0
      %709 = vmatpush1.bf16.msra.mxu0 0
      %710 = vmatprep.subr.bf16.mxu0 0
      %711 = vmatpush1.bf16.msra.mxu0 0
      %712 = vmatprep.subr.bf16.mxu0 0
      %713 = vmatpush1.bf16.msra.mxu0 0
      %714 = vmatprep.subr.bf16.mxu0 0
      %715 = vmatpush1.bf16.msra.mxu0 0
      %716 = vmatprep.subr.bf16.mxu0 0
      %717 = vmatpush1.bf16.msra.mxu0 0
      %718 = vmatprep.subr.bf16.mxu0 0
      %719 = vmatpush1.bf16.msra.mxu0 0
      %720 = vmatprep.subr.bf16.mxu0 0
      %721 = vmatpush1.bf16.msra.mxu0 0
      %722 = vmatprep.subr.bf16.mxu0 0
      %723 = vmatpush1.bf16.msra.mxu0 0
      %724 = vmatprep.mubr.bf16.mxu0 0
      %725 = vmatmul.mubr.bf16.gmra.mrb[0].mxu0 %v687
      %v726 = vpop.f32.mrb[0].mxu0
      %v727 = vadd.f32 0.0, %v726
      %v728 = vpop.f32.mrb[0].mxu0
      %v729 = vpop.f32.mrb[0].mxu0
      %v730 = vpop.f32.mrb[0].mxu0
      %731 = vdwg.mxu0
      %v732 = vadd.f32 %v673, %v727
      %v733 = vld [vmem:[%s2] sm:$0x8]
      %v735 = vpack.i.b16 %v733, %v733
      %v737 = vlaneseq
      %v738 = vshrl.u32 %v737, 7
      %v739 = vsub.s32 3, %v738
      %v740 = vrot.slane %v735, %v739
      %v741 = vmul.bf16 %v376, %v740
      %s742 = scalar_lea.vmem %s0, 12
      %v743 = vld [vmem:[%s742] sm:$0x3]
      %v745 = vsel %vm407, %v743, 0
      %v748 = vsel %vm411, %v741, 0
      %750 = vmatprep.subr.bf16.mxu0 0
      %751 = vmatpush1.bf16.msra.mxu0 %v748
      %752 = vmatprep.subr.bf16.mxu0 0
      %753 = vmatpush1.bf16.msra.mxu0 0
      %754 = vmatprep.subr.bf16.mxu0 0
      %755 = vmatpush1.bf16.msra.mxu0 0
      %756 = vmatprep.subr.bf16.mxu0 0
      %757 = vmatpush1.bf16.msra.mxu0 0
      %758 = vmatprep.subr.bf16.mxu0 0
      %759 = vmatpush1.bf16.msra.mxu0 0
      %760 = vmatprep.subr.bf16.mxu0 0
      %761 = vmatpush1.bf16.msra.mxu0 0
      %762 = vmatprep.subr.bf16.mxu0 0
      %763 = vmatpush1.bf16.msra.mxu0 0
      %764 = vmatprep.subr.bf16.mxu0 0
      %765 = vmatpush1.bf16.msra.mxu0 0
      %766 = vmatprep.subr.bf16.mxu0 0
      %767 = vmatpush1.bf16.msra.mxu0 0
      %768 = vmatprep.subr.bf16.mxu0 0
      %769 = vmatpush1.bf16.msra.mxu0 0
      %770 = vmatprep.subr.bf16.mxu0 0
      %771 = vmatpush1.bf16.msra.mxu0 0
      %772 = vmatprep.subr.bf16.mxu0 0
      %773 = vmatpush1.bf16.msra.mxu0 0
      %774 = vmatprep.subr.bf16.mxu0 0
      %775 = vmatpush1.bf16.msra.mxu0 0
      %776 = vmatprep.subr.bf16.mxu0 0
      %777 = vmatpush1.bf16.msra.mxu0 0
      %778 = vmatprep.subr.bf16.mxu0 0
      %779 = vmatpush1.bf16.msra.mxu0 0
      %780 = vmatprep.subr.bf16.mxu0 0
      %781 = vmatpush1.bf16.msra.mxu0 0
      %782 = vmatprep.mubr.bf16.mxu0 0
      %783 = vmatmul.mubr.bf16.gmra.mrb[0].mxu0 %v745
      %v784 = vpop.f32.mrb[0].mxu0
      %v785 = vadd.f32 0.0, %v784
      %v786 = vpop.f32.mrb[0].mxu0
      %v787 = vpop.f32.mrb[0].mxu0
      %v788 = vpop.f32.mrb[0].mxu0
      %789 = vdwg.mxu0
      %v790 = vadd.f32 %v732, %v785
      %v791 = vshrl.u32 %v733, 16
      %v792 = vpack.i.b16 %v791, %v791
      %v794 = vlaneseq
      %v795 = vshrl.u32 %v794, 7
      %v796 = vsub.s32 3, %v795
      %v797 = vrot.slane %v792, %v796
      %v798 = vmul.bf16 %v395, %v797
      %s799 = scalar_lea.vmem %s0, 14
      %v800 = vld [vmem:[%s799] sm:$0x3]
      %v802 = vsel %vm407, %v800, 0
      %v805 = vsel %vm411, %v798, 0
      %807 = vmatprep.subr.bf16.mxu0 0
      %808 = vmatpush1.bf16.msra.mxu0 %v805
      %809 = vmatprep.subr.bf16.mxu0 0
      %810 = vmatpush1.bf16.msra.mxu0 0
      %811 = vmatprep.subr.bf16.mxu0 0
      %812 = vmatpush1.bf16.msra.mxu0 0
      %813 = vmatprep.subr.bf16.mxu0 0
      %814 = vmatpush1.bf16.msra.mxu0 0
      %815 = vmatprep.subr.bf16.mxu0 0
      %816 = vmatpush1.bf16.msra.mxu0 0
      %817 = vmatprep.subr.bf16.mxu0 0
      %818 = vmatpush1.bf16.msra.mxu0 0
      %819 = vmatprep.subr.bf16.mxu0 0
      %820 = vmatpush1.bf16.msra.mxu0 0
      %821 = vmatprep.subr.bf16.mxu0 0
      %822 = vmatpush1.bf16.msra.mxu0 0
      %823 = vmatprep.subr.bf16.mxu0 0
      %824 = vmatpush1.bf16.msra.mxu0 0
      %825 = vmatprep.subr.bf16.mxu0 0
      %826 = vmatpush1.bf16.msra.mxu0 0
      %827 = vmatprep.subr.bf16.mxu0 0
      %828 = vmatpush1.bf16.msra.mxu0 0
      %829 = vmatprep.subr.bf16.mxu0 0
      %830 = vmatpush1.bf16.msra.mxu0 0
      %831 = vmatprep.subr.bf16.mxu0 0
      %832 = vmatpush1.bf16.msra.mxu0 0
      %833 = vmatprep.subr.bf16.mxu0 0
      %834 = vmatpush1.bf16.msra.mxu0 0
      %835 = vmatprep.subr.bf16.mxu0 0
      %836 = vmatpush1.bf16.msra.mxu0 0
      %837 = vmatprep.subr.bf16.mxu0 0
      %838 = vmatpush1.bf16.msra.mxu0 0
      %839 = vmatprep.mubr.bf16.mxu0 0
      %840 = vmatmul.mubr.bf16.gmra.mrb[0].mxu0 %v802
      %v841 = vpop.f32.mrb[0].mxu0
      %v842 = vadd.f32 0.0, %v841
      %v843 = vpop.f32.mrb[0].mxu0
      %v844 = vpop.f32.mrb[0].mxu0
      %v845 = vpop.f32.mrb[0].mxu0
      %846 = vdwg.mxu0
      %v847 = vadd.f32 %v790, %v842
      %v848 = vld [vmem:[%s2 + $0x4] sm:$0x1]
      %v850 = vpack.i.b16 %v848, %v848
      %v852 = vlaneseq
      %v853 = vshrl.u32 %v852, 7
      %v854 = vsub.s32 0, %v853
      %v855 = vrot.slane %v850, %v854
      %v856 = vmul.bf16 %v508, %v855
      %s857 = scalar_lea.vmem %s0, 16
      %v858 = vld [vmem:[%s857] sm:$0x3]
      %v860 = vsel %vm407, %v858, 0
      %v863 = vsel %vm411, %v856, 0
      %865 = vmatprep.subr.bf16.mxu0 0
      %866 = vmatpush1.bf16.msra.mxu0 %v863
      %867 = vmatprep.subr.bf16.mxu0 0
      %868 = vmatpush1.bf16.msra.mxu0 0
      %869 = vmatprep.subr.bf16.mxu0 0
      %870 = vmatpush1.bf16.msra.mxu0 0
      %871 = vmatprep.subr.bf16.mxu0 0
      %872 = vmatpush1.bf16.msra.mxu0 0
      %873 = vmatprep.subr.bf16.mxu0 0
      %874 = vmatpush1.bf16.msra.mxu0 0
      %875 = vmatprep.subr.bf16.mxu0 0
      %876 = vmatpush1.bf16.msra.mxu0 0
      %877 = vmatprep.subr.bf16.mxu0 0
      %878 = vmatpush1.bf16.msra.mxu0 0
      %879 = vmatprep.subr.bf16.mxu0 0
      %880 = vmatpush1.bf16.msra.mxu0 0
      %881 = vmatprep.subr.bf16.mxu0 0
      %882 = vmatpush1.bf16.msra.mxu0 0
      %883 = vmatprep.subr.bf16.mxu0 0
      %884 = vmatpush1.bf16.msra.mxu0 0
      %885 = vmatprep.subr.bf16.mxu0 0
      %886 = vmatpush1.bf16.msra.mxu0 0
      %887 = vmatprep.subr.bf16.mxu0 0
      %888 = vmatpush1.bf16.msra.mxu0 0
      %889 = vmatprep.subr.bf16.mxu0 0
      %890 = vmatpush1.bf16.msra.mxu0 0
      %891 = vmatprep.subr.bf16.mxu0 0
      %892 = vmatpush1.bf16.msra.mxu0 0
      %893 = vmatprep.subr.bf16.mxu0 0
      %894 = vmatpush1.bf16.msra.mxu0 0
      %895 = vmatprep.subr.bf16.mxu0 0
      %896 = vmatpush1.bf16.msra.mxu0 0
      %897 = vmatprep.mubr.bf16.mxu0 0
      %898 = vmatmul.mubr.bf16.gmra.mrb[0].mxu0 %v860
      %v899 = vpop.f32.mrb[0].mxu0
      %v900 = vadd.f32 0.0, %v899
      %v901 = vpop.f32.mrb[0].mxu0
      %v902 = vpop.f32.mrb[0].mxu0
      %v903 = vpop.f32.mrb[0].mxu0
      %904 = vdwg.mxu0
      %v905 = vadd.f32 %v847, %v900
      %v906 = vld [vmem:[%s339] sm:$0x3]
      %v909 = vunpack.c.l.s4 1983009808
      %v910 = vunpack.c.0.s8 %v909
      %v911 = vlaneseq
      %v912 = vshrl.u32 %v911, 7
      %v913 = vsub.s32 %v910, %v912
      %v914 = vrot.slane %v906, %v913
      %915 = vrot.lane.b32.xlu0 %v914, 127
      %v916 = vpop.permute.xlu0 %915
      %917 = vrot.lane.b32.xlu0 %v914, 3
      %v918 = vpop.permute.xlu0 %917
      %v921 = vsel %vm373, %v916, %v918
      %v923 = vmul.bf16 %v921, %v385
      %s924 = scalar_lea.vmem %s0, 18
      %v925 = vld [vmem:[%s924] sm:$0x3]
      %v927 = vsel %vm407, %v925, 0
      %v930 = vsel %vm411, %v923, 0
      %932 = vmatprep.subr.bf16.mxu0 0
      %933 = vmatpush1.bf16.msra.mxu0 %v930
      %934 = vmatprep.subr.bf16.mxu0 0
      %935 = vmatpush1.bf16.msra.mxu0 0
      %936 = vmatprep.subr.bf16.mxu0 0
      %937 = vmatpush1.bf16.msra.mxu0 0
      %938 = vmatprep.subr.bf16.mxu0 0
      %939 = vmatpush1.bf16.msra.mxu0 0
      %940 = vmatprep.subr.bf16.mxu0 0
      %941 = vmatpush1.bf16.msra.mxu0 0
      %942 = vmatprep.subr.bf16.mxu0 0
      %943 = vmatpush1.bf16.msra.mxu0 0
      %944 = vmatprep.subr.bf16.mxu0 0
      %945 = vmatpush1.bf16.msra.mxu0 0
      %946 = vmatprep.subr.bf16.mxu0 0
      %947 = vmatpush1.bf16.msra.mxu0 0
      %948 = vmatprep.subr.bf16.mxu0 0
      %949 = vmatpush1.bf16.msra.mxu0 0
      %950 = vmatprep.subr.bf16.mxu0 0
      %951 = vmatpush1.bf16.msra.mxu0 0
      %952 = vmatprep.subr.bf16.mxu0 0
      %953 = vmatpush1.bf16.msra.mxu0 0
      %954 = vmatprep.subr.bf16.mxu0 0
      %955 = vmatpush1.bf16.msra.mxu0 0
      %956 = vmatprep.subr.bf16.mxu0 0
      %957 = vmatpush1.bf16.msra.mxu0 0
      %958 = vmatprep.subr.bf16.mxu0 0
      %959 = vmatpush1.bf16.msra.mxu0 0
      %960 = vmatprep.subr.bf16.mxu0 0
      %961 = vmatpush1.bf16.msra.mxu0 0
      %962 = vmatprep.subr.bf16.mxu0 0
      %963 = vmatpush1.bf16.msra.mxu0 0
      %964 = vmatprep.mubr.bf16.mxu0 0
      %965 = vmatmul.mubr.bf16.gmra.mrb[0].mxu0 %v927
      %v966 = vpop.f32.mrb[0].mxu0
      %v967 = vadd.f32 0.0, %v966
      %v968 = vpop.f32.mrb[0].mxu0
      %v969 = vpop.f32.mrb[0].mxu0
      %v970 = vpop.f32.mrb[0].mxu0
      %971 = vdwg.mxu0
      %v972 = vadd.f32 %v905, %v967
      %973 = vrot.lane.b32.xlu0 %v914, 126
      %v974 = vpop.permute.xlu0 %973
      %975 = vrot.lane.b32.xlu0 %v914, 2
      %v976 = vpop.permute.xlu0 %975
      %v979 = vsel %vm392, %v974, %v976
      %v981 = vmul.bf16 %v979, %v403
      %s982 = scalar_lea.vmem %s0, 20
      %v983 = vld [vmem:[%s982] sm:$0x3]
      %v985 = vsel %vm407, %v983, 0
      %v988 = vsel %vm411, %v981, 0
      %990 = vmatprep.subr.bf16.mxu0 0
      %991 = vmatpush1.bf16.msra.mxu0 %v988
      %992 = vmatprep.subr.bf16.mxu0 0
      %993 = vmatpush1.bf16.msra.mxu0 0
      %994 = vmatprep.subr.bf16.mxu0 0
      %995 = vmatpush1.bf16.msra.mxu0 0
      %996 = vmatprep.subr.bf16.mxu0 0
      %997 = vmatpush1.bf16.msra.mxu0 0
      %998 = vmatprep.subr.bf16.mxu0 0
      %999 = vmatpush1.bf16.msra.mxu0 0
      %1000 = vmatprep.subr.bf16.mxu0 0
      %1001 = vmatpush1.bf16.msra.mxu0 0
      %1002 = vmatprep.subr.bf16.mxu0 0
      %1003 = vmatpush1.bf16.msra.mxu0 0
      %1004 = vmatprep.subr.bf16.mxu0 0
      %1005 = vmatpush1.bf16.msra.mxu0 0
      %1006 = vmatprep.subr.bf16.mxu0 0
      %1007 = vmatpush1.bf16.msra.mxu0 0
      %1008 = vmatprep.subr.bf16.mxu0 0
      %1009 = vmatpush1.bf16.msra.mxu0 0
      %1010 = vmatprep.subr.bf16.mxu0 0
      %1011 = vmatpush1.bf16.msra.mxu0 0
      %1012 = vmatprep.subr.bf16.mxu0 0
      %1013 = vmatpush1.bf16.msra.mxu0 0
      %1014 = vmatprep.subr.bf16.mxu0 0
      %1015 = vmatpush1.bf16.msra.mxu0 0
      %1016 = vmatprep.subr.bf16.mxu0 0
      %1017 = vmatpush1.bf16.msra.mxu0 0
      %1018 = vmatprep.subr.bf16.mxu0 0
      %1019 = vmatpush1.bf16.msra.mxu0 0
      %1020 = vmatprep.subr.bf16.mxu0 0
      %1021 = vmatpush1.bf16.msra.mxu0 0
      %1022 = vmatprep.mubr.bf16.mxu0 0
      %1023 = vmatmul.mubr.bf16.gmra.mrb[0].mxu0 %v985
      %v1024 = vpop.f32.mrb[0].mxu0
      %v1025 = vadd.f32 0.0, %v1024
      %v1026 = vpop.f32.mrb[0].mxu0
      %v1027 = vpop.f32.mrb[0].mxu0
      %v1028 = vpop.f32.mrb[0].mxu0
      %1029 = vdwg.mxu0
      %v1030 = vadd.f32 %v972, %v1025
      %1031 = vrot.lane.b32.xlu0 %v914, 125
      %v1032 = vpop.permute.xlu0 %1031
      %1033 = vrot.lane.b32.xlu0 %v914, 1
      %v1034 = vpop.permute.xlu0 %1033
      %v1037 = vsel %vm505, %v1032, %v1034
      %v1039 = vmul.bf16 %v1037, %v517
      %s1040 = scalar_lea.vmem %s0, 22
      %v1041 = vld [vmem:[%s1040] sm:$0x3]
      %v1043 = vsel %vm407, %v1041, 0
      %v1046 = vsel %vm411, %v1039, 0
      %1048 = vmatprep.subr.bf16.mxu0 0
      %1049 = vmatpush1.bf16.msra.mxu0 %v1046
      %1050 = vmatprep.subr.bf16.mxu0 0
      %1051 = vmatpush1.bf16.msra.mxu0 0
      %1052 = vmatprep.subr.bf16.mxu0 0
      %1053 = vmatpush1.bf16.msra.mxu0 0
      %1054 = vmatprep.subr.bf16.mxu0 0
      %1055 = vmatpush1.bf16.msra.mxu0 0
      %1056 = vmatprep.subr.bf16.mxu0 0
      %1057 = vmatpush1.bf16.msra.mxu0 0
      %1058 = vmatprep.subr.bf16.mxu0 0
      %1059 = vmatpush1.bf16.msra.mxu0 0
      %1060 = vmatprep.subr.bf16.mxu0 0
      %1061 = vmatpush1.bf16.msra.mxu0 0
      %1062 = vmatprep.subr.bf16.mxu0 0
      %1063 = vmatpush1.bf16.msra.mxu0 0
      %1064 = vmatprep.subr.bf16.mxu0 0
      %1065 = vmatpush1.bf16.msra.mxu0 0
      %1066 = vmatprep.subr.bf16.mxu0 0
      %1067 = vmatpush1.bf16.msra.mxu0 0
      %1068 = vmatprep.subr.bf16.mxu0 0
      %1069 = vmatpush1.bf16.msra.mxu0 0
      %1070 = vmatprep.subr.bf16.mxu0 0
      %1071 = vmatpush1.bf16.msra.mxu0 0
      %1072 = vmatprep.subr.bf16.mxu0 0
      %1073 = vmatpush1.bf16.msra.mxu0 0
      %1074 = vmatprep.subr.bf16.mxu0 0
      %1075 = vmatpush1.bf16.msra.mxu0 0
      %1076 = vmatprep.subr.bf16.mxu0 0
      %1077 = vmatpush1.bf16.msra.mxu0 0
      %1078 = vmatprep.subr.bf16.mxu0 0
      %1079 = vmatpush1.bf16.msra.mxu0 0
      %1080 = vmatprep.mubr.bf16.mxu0 0
      %1081 = vmatmul.mubr.bf16.gmra.mrb[0].mxu0 %v1043
      %v1082 = vpop.f32.mrb[0].mxu0
      %v1083 = vadd.f32 0.0, %v1082
      %v1084 = vpop.f32.mrb[0].mxu0
      %v1085 = vpop.f32.mrb[0].mxu0
      %v1086 = vpop.f32.mrb[0].mxu0
      %1087 = vdwg.mxu0
      %v1088 = vadd.f32 %v1030, %v1083
      %v1089 = vmul.bf16 %v1037, %v574
      %s1090 = scalar_lea.vmem %s0, 24
      %v1091 = vld [vmem:[%s1090] sm:$0x3]
      %v1093 = vsel %vm407, %v1091, 0
      %v1096 = vsel %vm411, %v1089, 0
      %1098 = vmatprep.subr.bf16.mxu0 0
      %1099 = vmatpush1.bf16.msra.mxu0 %v1096
      %1100 = vmatprep.subr.bf16.mxu0 0
      %1101 = vmatpush1.bf16.msra.mxu0 0
      %1102 = vmatprep.subr.bf16.mxu0 0
      %1103 = vmatpush1.bf16.msra.mxu0 0
      %1104 = vmatprep.subr.bf16.mxu0 0
      %1105 = vmatpush1.bf16.msra.mxu0 0
      %1106 = vmatprep.subr.bf16.mxu0 0
      %1107 = vmatpush1.bf16.msra.mxu0 0
      %1108 = vmatprep.subr.bf16.mxu0 0
      %1109 = vmatpush1.bf16.msra.mxu0 0
      %1110 = vmatprep.subr.bf16.mxu0 0
      %1111 = vmatpush1.bf16.msra.mxu0 0
      %1112 = vmatprep.subr.bf16.mxu0 0
      %1113 = vmatpush1.bf16.msra.mxu0 0
      %1114 = vmatprep.subr.bf16.mxu0 0
      %1115 = vmatpush1.bf16.msra.mxu0 0
      %1116 = vmatprep.subr.bf16.mxu0 0
      %1117 = vmatpush1.bf16.msra.mxu0 0
      %1118 = vmatprep.subr.bf16.mxu0 0
      %1119 = vmatpush1.bf16.msra.mxu0 0
      %1120 = vmatprep.subr.bf16.mxu0 0
      %1121 = vmatpush1.bf16.msra.mxu0 0
      %1122 = vmatprep.subr.bf16.mxu0 0
      %1123 = vmatpush1.bf16.msra.mxu0 0
      %1124 = vmatprep.subr.bf16.mxu0 0
      %1125 = vmatpush1.bf16.msra.mxu0 0
      %1126 = vmatprep.subr.bf16.mxu0 0
      %1127 = vmatpush1.bf16.msra.mxu0 0
      %1128 = vmatprep.subr.bf16.mxu0 0
      %1129 = vmatpush1.bf16.msra.mxu0 0
      %1130 = vmatprep.mubr.bf16.mxu0 0
      %1131 = vmatmul.mubr.bf16.gmra.mrb[0].mxu0 %v1093
      %v1132 = vpop.f32.mrb[0].mxu0
      %v1133 = vadd.f32 0.0, %v1132
      %v1134 = vpop.f32.mrb[0].mxu0
      %v1135 = vpop.f32.mrb[0].mxu0
      %v1136 = vpop.f32.mrb[0].mxu0
      %1137 = vdwg.mxu0
      %v1138 = vadd.f32 %v1088, %v1133
      %s1139 = scalar_lea.vmem %s0, 26
      %v1140 = vld [vmem:[%s1139] sm:$0x3]
      %v1142 = vsel %vm407, %v1140, 0
      %v1145 = vsel %vm411, %v906, 0
      %1147 = vmatprep.subr.bf16.mxu0 0
      %1148 = vmatpush1.bf16.msra.mxu0 %v1145
      %1149 = vmatprep.subr.bf16.mxu0 0
      %1150 = vmatpush1.bf16.msra.mxu0 0
      %1151 = vmatprep.subr.bf16.mxu0 0
      %1152 = vmatpush1.bf16.msra.mxu0 0
      %1153 = vmatprep.subr.bf16.mxu0 0
      %1154 = vmatpush1.bf16.msra.mxu0 0
      %1155 = vmatprep.subr.bf16.mxu0 0
      %1156 = vmatpush1.bf16.msra.mxu0 0
      %1157 = vmatprep.subr.bf16.mxu0 0
      %1158 = vmatpush1.bf16.msra.mxu0 0
      %1159 = vmatprep.subr.bf16.mxu0 0
      %1160 = vmatpush1.bf16.msra.mxu0 0
      %1161 = vmatprep.subr.bf16.mxu0 0
      %1162 = vmatpush1.bf16.msra.mxu0 0
      %1163 = vmatprep.subr.bf16.mxu0 0
      %1164 = vmatpush1.bf16.msra.mxu0 0
      %1165 = vmatprep.subr.bf16.mxu0 0
      %1166 = vmatpush1.bf16.msra.mxu0 0
      %1167 = vmatprep.subr.bf16.mxu0 0
      %1168 = vmatpush1.bf16.msra.mxu0 0
      %1169 = vmatprep.subr.bf16.mxu0 0
      %1170 = vmatpush1.bf16.msra.mxu0 0
      %1171 = vmatprep.subr.bf16.mxu0 0
      %1172 = vmatpush1.bf16.msra.mxu0 0
      %1173 = vmatprep.subr.bf16.mxu0 0
      %1174 = vmatpush1.bf16.msra.mxu0 0
      %1175 = vmatprep.subr.bf16.mxu0 0
      %1176 = vmatpush1.bf16.msra.mxu0 0
      %1177 = vmatprep.subr.bf16.mxu0 0
      %1178 = vmatpush1.bf16.msra.mxu0 0
      %1179 = vmatprep.mubr.bf16.mxu0 0
      %1180 = vmatmul.mubr.bf16.gmra.mrb[0].mxu0 %v1142
      %v1181 = vpop.f32.mrb[0].mxu0
      %v1182 = vadd.f32 0.0, %v1181
      %v1183 = vpop.f32.mrb[0].mxu0
      %v1184 = vpop.f32.mrb[0].mxu0
      %v1185 = vpop.f32.mrb[0].mxu0
      %1186 = vdwg.mxu0
      %v1187 = vadd.f32 %v1138, %v1182
      %v1188 = vmul.bf16 %v921, %v682
      %s1189 = scalar_lea.vmem %s0, 28
      %v1190 = vld [vmem:[%s1189] sm:$0x3]
      %v1192 = vsel %vm407, %v1190, 0
      %v1195 = vsel %vm411, %v1188, 0
      %1197 = vmatprep.subr.bf16.mxu0 0
      %1198 = vmatpush1.bf16.msra.mxu0 %v1195
      %1199 = vmatprep.subr.bf16.mxu0 0
      %1200 = vmatpush1.bf16.msra.mxu0 0
      %1201 = vmatprep.subr.bf16.mxu0 0
      %1202 = vmatpush1.bf16.msra.mxu0 0
      %1203 = vmatprep.subr.bf16.mxu0 0
      %1204 = vmatpush1.bf16.msra.mxu0 0
      %1205 = vmatprep.subr.bf16.mxu0 0
      %1206 = vmatpush1.bf16.msra.mxu0 0
      %1207 = vmatprep.subr.bf16.mxu0 0
      %1208 = vmatpush1.bf16.msra.mxu0 0
      %1209 = vmatprep.subr.bf16.mxu0 0
      %1210 = vmatpush1.bf16.msra.mxu0 0
      %1211 = vmatprep.subr.bf16.mxu0 0
      %1212 = vmatpush1.bf16.msra.mxu0 0
      %1213 = vmatprep.subr.bf16.mxu0 0
      %1214 = vmatpush1.bf16.msra.mxu0 0
      %1215 = vmatprep.subr.bf16.mxu0 0
      %1216 = vmatpush1.bf16.msra.mxu0 0
      %1217 = vmatprep.subr.bf16.mxu0 0
      %1218 = vmatpush1.bf16.msra.mxu0 0
      %1219 = vmatprep.subr.bf16.mxu0 0
      %1220 = vmatpush1.bf16.msra.mxu0 0
      %1221 = vmatprep.subr.bf16.mxu0 0
      %1222 = vmatpush1.bf16.msra.mxu0 0
      %1223 = vmatprep.subr.bf16.mxu0 0
      %1224 = vmatpush1.bf16.msra.mxu0 0
      %1225 = vmatprep.subr.bf16.mxu0 0
      %1226 = vmatpush1.bf16.msra.mxu0 0
      %1227 = vmatprep.subr.bf16.mxu0 0
      %1228 = vmatpush1.bf16.msra.mxu0 0
      %1229 = vmatprep.mubr.bf16.mxu0 0
      %1230 = vmatmul.mubr.bf16.gmra.mrb[0].mxu0 %v1192
      %v1231 = vpop.f32.mrb[0].mxu0
      %v1232 = vadd.f32 0.0, %v1231
      %v1233 = vpop.f32.mrb[0].mxu0
      %v1234 = vpop.f32.mrb[0].mxu0
      %v1235 = vpop.f32.mrb[0].mxu0
      %1236 = vdwg.mxu0
      %v1237 = vadd.f32 %v1187, %v1232
      %v1238 = vmul.bf16 %v921, %v740
      %s1239 = scalar_lea.vmem %s0, 30
      %v1240 = vld [vmem:[%s1239] sm:$0x3]
      %v1242 = vsel %vm407, %v1240, 0
      %v1245 = vsel %vm411, %v1238, 0
      %1247 = vmatprep.subr.bf16.mxu0 0
      %1248 = vmatpush1.bf16.msra.mxu0 %v1245
      %1249 = vmatprep.subr.bf16.mxu0 0
      %1250 = vmatpush1.bf16.msra.mxu0 0
      %1251 = vmatprep.subr.bf16.mxu0 0
      %1252 = vmatpush1.bf16.msra.mxu0 0
      %1253 = vmatprep.subr.bf16.mxu0 0
      %1254 = vmatpush1.bf16.msra.mxu0 0
      %1255 = vmatprep.subr.bf16.mxu0 0
      %1256 = vmatpush1.bf16.msra.mxu0 0
      %1257 = vmatprep.subr.bf16.mxu0 0
      %1258 = vmatpush1.bf16.msra.mxu0 0
      %1259 = vmatprep.subr.bf16.mxu0 0
      %1260 = vmatpush1.bf16.msra.mxu0 0
      %1261 = vmatprep.subr.bf16.mxu0 0
      %1262 = vmatpush1.bf16.msra.mxu0 0
      %1263 = vmatprep.subr.bf16.mxu0 0
      %1264 = vmatpush1.bf16.msra.mxu0 0
      %1265 = vmatprep.subr.bf16.mxu0 0
      %1266 = vmatpush1.bf16.msra.mxu0 0
      %1267 = vmatprep.subr.bf16.mxu0 0
      %1268 = vmatpush1.bf16.msra.mxu0 0
      %1269 = vmatprep.subr.bf16.mxu0 0
      %1270 = vmatpush1.bf16.msra.mxu0 0
      %1271 = vmatprep.subr.bf16.mxu0 0
      %1272 = vmatpush1.bf16.msra.mxu0 0
      %1273 = vmatprep.subr.bf16.mxu0 0
      %1274 = vmatpush1.bf16.msra.mxu0 0
      %1275 = vmatprep.subr.bf16.mxu0 0
      %1276 = vmatpush1.bf16.msra.mxu0 0
      %1277 = vmatprep.subr.bf16.mxu0 0
      %1278 = vmatpush1.bf16.msra.mxu0 0
      %1279 = vmatprep.mubr.bf16.mxu0 0
      %1280 = vmatmul.mubr.bf16.gmra.mrb[0].mxu0 %v1242
      %v1281 = vpop.f32.mrb[0].mxu0
      %v1282 = vadd.f32 0.0, %v1281
      %v1283 = vpop.f32.mrb[0].mxu0
      %v1284 = vpop.f32.mrb[0].mxu0
      %v1285 = vpop.f32.mrb[0].mxu0
      %1286 = vdwg.mxu0
      %v1287 = vadd.f32 %v1237, %v1282
      %v1288 = vmul.bf16 %v979, %v797
      %s1289 = scalar_lea.vmem %s0, 32
      %v1290 = vld [vmem:[%s1289] sm:$0x3]
      %v1292 = vsel %vm407, %v1290, 0
      %v1295 = vsel %vm411, %v1288, 0
      %1297 = vmatprep.subr.bf16.mxu0 0
      %1298 = vmatpush1.bf16.msra.mxu0 %v1295
      %1299 = vmatprep.subr.bf16.mxu0 0
      %1300 = vmatpush1.bf16.msra.mxu0 0
      %1301 = vmatprep.subr.bf16.mxu0 0
      %1302 = vmatpush1.bf16.msra.mxu0 0
      %1303 = vmatprep.subr.bf16.mxu0 0
      %1304 = vmatpush1.bf16.msra.mxu0 0
      %1305 = vmatprep.subr.bf16.mxu0 0
      %1306 = vmatpush1.bf16.msra.mxu0 0
      %1307 = vmatprep.subr.bf16.mxu0 0
      %1308 = vmatpush1.bf16.msra.mxu0 0
      %1309 = vmatprep.subr.bf16.mxu0 0
      %1310 = vmatpush1.bf16.msra.mxu0 0
      %1311 = vmatprep.subr.bf16.mxu0 0
      %1312 = vmatpush1.bf16.msra.mxu0 0
      %1313 = vmatprep.subr.bf16.mxu0 0
      %1314 = vmatpush1.bf16.msra.mxu0 0
      %1315 = vmatprep.subr.bf16.mxu0 0
      %1316 = vmatpush1.bf16.msra.mxu0 0
      %1317 = vmatprep.subr.bf16.mxu0 0
      %1318 = vmatpush1.bf16.msra.mxu0 0
      %1319 = vmatprep.subr.bf16.mxu0 0
      %1320 = vmatpush1.bf16.msra.mxu0 0
      %1321 = vmatprep.subr.bf16.mxu0 0
      %1322 = vmatpush1.bf16.msra.mxu0 0
      %1323 = vmatprep.subr.bf16.mxu0 0
      %1324 = vmatpush1.bf16.msra.mxu0 0
      %1325 = vmatprep.subr.bf16.mxu0 0
      %1326 = vmatpush1.bf16.msra.mxu0 0
      %1327 = vmatprep.subr.bf16.mxu0 0
      %1328 = vmatpush1.bf16.msra.mxu0 0
      %1329 = vmatprep.mubr.bf16.mxu0 0
      %1330 = vmatmul.mubr.bf16.gmra.mrb[0].mxu0 %v1292
      %v1331 = vpop.f32.mrb[0].mxu0
      %v1332 = vadd.f32 0.0, %v1331
      %v1333 = vpop.f32.mrb[0].mxu0
      %v1334 = vpop.f32.mrb[0].mxu0
      %v1335 = vpop.f32.mrb[0].mxu0
      %1336 = vdwg.mxu0
      %v1337 = vadd.f32 %v1287, %v1332
      %v1338 = vmul.bf16 %v1037, %v855
      %s1339 = scalar_lea.vmem %s0, 34
      %v1340 = vld [vmem:[%s1339] sm:$0x3]
      %v1342 = vsel %vm407, %v1340, 0
      %v1345 = vsel %vm411, %v1338, 0
      %1347 = vmatprep.subr.bf16.mxu0 0
      %1348 = vmatpush1.bf16.msra.mxu0 %v1345
      %1349 = vmatprep.subr.bf16.mxu0 0
      %1350 = vmatpush1.bf16.msra.mxu0 0
      %1351 = vmatprep.subr.bf16.mxu0 0
      %1352 = vmatpush1.bf16.msra.mxu0 0
      %1353 = vmatprep.subr.bf16.mxu0 0
      %1354 = vmatpush1.bf16.msra.mxu0 0
      %1355 = vmatprep.subr.bf16.mxu0 0
      %1356 = vmatpush1.bf16.msra.mxu0 0
      %1357 = vmatprep.subr.bf16.mxu0 0
      %1358 = vmatpush1.bf16.msra.mxu0 0
      %1359 = vmatprep.subr.bf16.mxu0 0
      %1360 = vmatpush1.bf16.msra.mxu0 0
      %1361 = vmatprep.subr.bf16.mxu0 0
      %1362 = vmatpush1.bf16.msra.mxu0 0
      %1363 = vmatprep.subr.bf16.mxu0 0
      %1364 = vmatpush1.bf16.msra.mxu0 0
      %1365 = vmatprep.subr.bf16.mxu0 0
      %1366 = vmatpush1.bf16.msra.mxu0 0
      %1367 = vmatprep.subr.bf16.mxu0 0
      %1368 = vmatpush1.bf16.msra.mxu0 0
      %1369 = vmatprep.subr.bf16.mxu0 0
      %1370 = vmatpush1.bf16.msra.mxu0 0
      %1371 = vmatprep.subr.bf16.mxu0 0
      %1372 = vmatpush1.bf16.msra.mxu0 0
      %1373 = vmatprep.subr.bf16.mxu0 0
      %1374 = vmatpush1.bf16.msra.mxu0 0
      %1375 = vmatprep.subr.bf16.mxu0 0
      %1376 = vmatpush1.bf16.msra.mxu0 0
      %1377 = vmatprep.subr.bf16.mxu0 0
      %1378 = vmatpush1.bf16.msra.mxu0 0
      %1379 = vmatprep.mubr.bf16.mxu0 0
      %1380 = vmatmul.mubr.bf16.gmra.mrb[0].mxu0 %v1342
      %v1381 = vpop.f32.mrb[0].mxu0
      %v1382 = vadd.f32 0.0, %v1381
      %v1383 = vpop.f32.mrb[0].mxu0
      %v1384 = vpop.f32.mrb[0].mxu0
      %v1385 = vpop.f32.mrb[0].mxu0
      %1386 = vdwg.mxu0
      %v1387 = vadd.f32 %v1337, %v1382
      %v1388 = vld [vmem:[%s349] sm:$0x3]
      %v1391 = vunpack.c.l.s4 1983009808
      %v1392 = vunpack.c.0.s8 %v1391
      %v1393 = vlaneseq
      %v1394 = vshrl.u32 %v1393, 7
      %v1395 = vsub.s32 %v1392, %v1394
      %v1396 = vrot.slane %v1388, %v1395
      %1397 = vrot.lane.b32.xlu0 %v1396, 127
      %v1398 = vpop.permute.xlu0 %1397
      %1399 = vrot.lane.b32.xlu0 %v1396, 3
      %v1400 = vpop.permute.xlu0 %1399
      %v1403 = vsel %vm373, %v1398, %v1400
      %v1405 = vmul.bf16 %v1403, %v385
      %s1406 = scalar_lea.vmem %s0, 36
      %v1407 = vld [vmem:[%s1406] sm:$0x3]
      %v1409 = vsel %vm407, %v1407, 0
      %v1412 = vsel %vm411, %v1405, 0
      %1414 = vmatprep.subr.bf16.mxu0 0
      %1415 = vmatpush1.bf16.msra.mxu0 %v1412
      %1416 = vmatprep.subr.bf16.mxu0 0
      %1417 = vmatpush1.bf16.msra.mxu0 0
      %1418 = vmatprep.subr.bf16.mxu0 0
      %1419 = vmatpush1.bf16.msra.mxu0 0
      %1420 = vmatprep.subr.bf16.mxu0 0
      %1421 = vmatpush1.bf16.msra.mxu0 0
      %1422 = vmatprep.subr.bf16.mxu0 0
      %1423 = vmatpush1.bf16.msra.mxu0 0
      %1424 = vmatprep.subr.bf16.mxu0 0
      %1425 = vmatpush1.bf16.msra.mxu0 0
      %1426 = vmatprep.subr.bf16.mxu0 0
      %1427 = vmatpush1.bf16.msra.mxu0 0
      %1428 = vmatprep.subr.bf16.mxu0 0
      %1429 = vmatpush1.bf16.msra.mxu0 0
      %1430 = vmatprep.subr.bf16.mxu0 0
      %1431 = vmatpush1.bf16.msra.mxu0 0
      %1432 = vmatprep.subr.bf16.mxu0 0
      %1433 = vmatpush1.bf16.msra.mxu0 0
      %1434 = vmatprep.subr.bf16.mxu0 0
      %1435 = vmatpush1.bf16.msra.mxu0 0
      %1436 = vmatprep.subr.bf16.mxu0 0
      %1437 = vmatpush1.bf16.msra.mxu0 0
      %1438 = vmatprep.subr.bf16.mxu0 0
      %1439 = vmatpush1.bf16.msra.mxu0 0
      %1440 = vmatprep.subr.bf16.mxu0 0
      %1441 = vmatpush1.bf16.msra.mxu0 0
      %1442 = vmatprep.subr.bf16.mxu0 0
      %1443 = vmatpush1.bf16.msra.mxu0 0
      %1444 = vmatprep.subr.bf16.mxu0 0
      %1445 = vmatpush1.bf16.msra.mxu0 0
      %1446 = vmatprep.mubr.bf16.mxu0 0
      %1447 = vmatmul.mubr.bf16.gmra.mrb[0].mxu0 %v1409
      %v1448 = vpop.f32.mrb[0].mxu0
      %v1449 = vadd.f32 0.0, %v1448
      %v1450 = vpop.f32.mrb[0].mxu0
      %v1451 = vpop.f32.mrb[0].mxu0
      %v1452 = vpop.f32.mrb[0].mxu0
      %1453 = vdwg.mxu0
      %v1454 = vadd.f32 %v1387, %v1449
      %1455 = vrot.lane.b32.xlu0 %v1396, 126
      %v1456 = vpop.permute.xlu0 %1455
      %1457 = vrot.lane.b32.xlu0 %v1396, 2
      %v1458 = vpop.permute.xlu0 %1457
      %v1461 = vsel %vm392, %v1456, %v1458
      %v1463 = vmul.bf16 %v1461, %v403
      %s1464 = scalar_lea.vmem %s0, 38
      %v1465 = vld [vmem:[%s1464] sm:$0x3]
      %v1467 = vsel %vm407, %v1465, 0
      %v1470 = vsel %vm411, %v1463, 0
      %1472 = vmatprep.subr.bf16.mxu0 0
      %1473 = vmatpush1.bf16.msra.mxu0 %v1470
      %1474 = vmatprep.subr.bf16.mxu0 0
      %1475 = vmatpush1.bf16.msra.mxu0 0
      %1476 = vmatprep.subr.bf16.mxu0 0
      %1477 = vmatpush1.bf16.msra.mxu0 0
      %1478 = vmatprep.subr.bf16.mxu0 0
      %1479 = vmatpush1.bf16.msra.mxu0 0
      %1480 = vmatprep.subr.bf16.mxu0 0
      %1481 = vmatpush1.bf16.msra.mxu0 0
      %1482 = vmatprep.subr.bf16.mxu0 0
      %1483 = vmatpush1.bf16.msra.mxu0 0
      %1484 = vmatprep.subr.bf16.mxu0 0
      %1485 = vmatpush1.bf16.msra.mxu0 0
      %1486 = vmatprep.subr.bf16.mxu0 0
      %1487 = vmatpush1.bf16.msra.mxu0 0
      %1488 = vmatprep.subr.bf16.mxu0 0
      %1489 = vmatpush1.bf16.msra.mxu0 0
      %1490 = vmatprep.subr.bf16.mxu0 0
      %1491 = vmatpush1.bf16.msra.mxu0 0
      %1492 = vmatprep.subr.bf16.mxu0 0
      %1493 = vmatpush1.bf16.msra.mxu0 0
      %1494 = vmatprep.subr.bf16.mxu0 0
      %1495 = vmatpush1.bf16.msra.mxu0 0
      %1496 = vmatprep.subr.bf16.mxu0 0
      %1497 = vmatpush1.bf16.msra.mxu0 0
      %1498 = vmatprep.subr.bf16.mxu0 0
      %1499 = vmatpush1.bf16.msra.mxu0 0
      %1500 = vmatprep.subr.bf16.mxu0 0
      %1501 = vmatpush1.bf16.msra.mxu0 0
      %1502 = vmatprep.subr.bf16.mxu0 0
      %1503 = vmatpush1.bf16.msra.mxu0 0
      %1504 = vmatprep.mubr.bf16.mxu0 0
      %1505 = vmatmul.mubr.bf16.gmra.mrb[0].mxu0 %v1467
      %v1506 = vpop.f32.mrb[0].mxu0
      %v1507 = vadd.f32 0.0, %v1506
      %v1508 = vpop.f32.mrb[0].mxu0
      %v1509 = vpop.f32.mrb[0].mxu0
      %v1510 = vpop.f32.mrb[0].mxu0
      %1511 = vdwg.mxu0
      %v1512 = vadd.f32 %v1454, %v1507
      %1513 = vrot.lane.b32.xlu0 %v1396, 125
      %v1514 = vpop.permute.xlu0 %1513
      %1515 = vrot.lane.b32.xlu0 %v1396, 1
      %v1516 = vpop.permute.xlu0 %1515
      %v1519 = vsel %vm505, %v1514, %v1516
      %v1521 = vmul.bf16 %v1519, %v517
      %s1522 = scalar_lea.vmem %s0, 40
      %v1523 = vld [vmem:[%s1522] sm:$0x3]
      %v1525 = vsel %vm407, %v1523, 0
      %v1528 = vsel %vm411, %v1521, 0
      %1530 = vmatprep.subr.bf16.mxu0 0
      %1531 = vmatpush1.bf16.msra.mxu0 %v1528
      %1532 = vmatprep.subr.bf16.mxu0 0
      %1533 = vmatpush1.bf16.msra.mxu0 0
      %1534 = vmatprep.subr.bf16.mxu0 0
      %1535 = vmatpush1.bf16.msra.mxu0 0
      %1536 = vmatprep.subr.bf16.mxu0 0
      %1537 = vmatpush1.bf16.msra.mxu0 0
      %1538 = vmatprep.subr.bf16.mxu0 0
      %1539 = vmatpush1.bf16.msra.mxu0 0
      %1540 = vmatprep.subr.bf16.mxu0 0
      %1541 = vmatpush1.bf16.msra.mxu0 0
      %1542 = vmatprep.subr.bf16.mxu0 0
      %1543 = vmatpush1.bf16.msra.mxu0 0
      %1544 = vmatprep.subr.bf16.mxu0 0
      %1545 = vmatpush1.bf16.msra.mxu0 0
      %1546 = vmatprep.subr.bf16.mxu0 0
      %1547 = vmatpush1.bf16.msra.mxu0 0
      %1548 = vmatprep.subr.bf16.mxu0 0
      %1549 = vmatpush1.bf16.msra.mxu0 0
      %1550 = vmatprep.subr.bf16.mxu0 0
      %1551 = vmatpush1.bf16.msra.mxu0 0
      %1552 = vmatprep.subr.bf16.mxu0 0
      %1553 = vmatpush1.bf16.msra.mxu0 0
      %1554 = vmatprep.subr.bf16.mxu0 0
      %1555 = vmatpush1.bf16.msra.mxu0 0
      %1556 = vmatprep.subr.bf16.mxu0 0
      %1557 = vmatpush1.bf16.msra.mxu0 0
      %1558 = vmatprep.subr.bf16.mxu0 0
      %1559 = vmatpush1.bf16.msra.mxu0 0
      %1560 = vmatprep.subr.bf16.mxu0 0
      %1561 = vmatpush1.bf16.msra.mxu0 0
      %1562 = vmatprep.mubr.bf16.mxu0 0
      %1563 = vmatmul.mubr.bf16.gmra.mrb[0].mxu0 %v1525
      %v1564 = vpop.f32.mrb[0].mxu0
      %v1565 = vadd.f32 0.0, %v1564
      %v1566 = vpop.f32.mrb[0].mxu0
      %v1567 = vpop.f32.mrb[0].mxu0
      %v1568 = vpop.f32.mrb[0].mxu0
      %1569 = vdwg.mxu0
      %v1570 = vadd.f32 %v1512, %v1565
      %v1571 = vmul.bf16 %v1519, %v574
      %s1572 = scalar_lea.vmem %s0, 42
      %v1573 = vld [vmem:[%s1572] sm:$0x3]
      %v1575 = vsel %vm407, %v1573, 0
      %v1578 = vsel %vm411, %v1571, 0
      %1580 = vmatprep.subr.bf16.mxu0 0
      %1581 = vmatpush1.bf16.msra.mxu0 %v1578
      %1582 = vmatprep.subr.bf16.mxu0 0
      %1583 = vmatpush1.bf16.msra.mxu0 0
      %1584 = vmatprep.subr.bf16.mxu0 0
      %1585 = vmatpush1.bf16.msra.mxu0 0
      %1586 = vmatprep.subr.bf16.mxu0 0
      %1587 = vmatpush1.bf16.msra.mxu0 0
      %1588 = vmatprep.subr.bf16.mxu0 0
      %1589 = vmatpush1.bf16.msra.mxu0 0
      %1590 = vmatprep.subr.bf16.mxu0 0
      %1591 = vmatpush1.bf16.msra.mxu0 0
      %1592 = vmatprep.subr.bf16.mxu0 0
      %1593 = vmatpush1.bf16.msra.mxu0 0
      %1594 = vmatprep.subr.bf16.mxu0 0
      %1595 = vmatpush1.bf16.msra.mxu0 0
      %1596 = vmatprep.subr.bf16.mxu0 0
      %1597 = vmatpush1.bf16.msra.mxu0 0
      %1598 = vmatprep.subr.bf16.mxu0 0
      %1599 = vmatpush1.bf16.msra.mxu0 0
      %1600 = vmatprep.subr.bf16.mxu0 0
      %1601 = vmatpush1.bf16.msra.mxu0 0
      %1602 = vmatprep.subr.bf16.mxu0 0
      %1603 = vmatpush1.bf16.msra.mxu0 0
      %1604 = vmatprep.subr.bf16.mxu0 0
      %1605 = vmatpush1.bf16.msra.mxu0 0
      %1606 = vmatprep.subr.bf16.mxu0 0
      %1607 = vmatpush1.bf16.msra.mxu0 0
      %1608 = vmatprep.subr.bf16.mxu0 0
      %1609 = vmatpush1.bf16.msra.mxu0 0
      %1610 = vmatprep.subr.bf16.mxu0 0
      %1611 = vmatpush1.bf16.msra.mxu0 0
      %1612 = vmatprep.mubr.bf16.mxu0 0
      %1613 = vmatmul.mubr.bf16.gmra.mrb[0].mxu0 %v1575
      %v1614 = vpop.f32.mrb[0].mxu0
      %v1615 = vadd.f32 0.0, %v1614
      %v1616 = vpop.f32.mrb[0].mxu0
      %v1617 = vpop.f32.mrb[0].mxu0
      %v1618 = vpop.f32.mrb[0].mxu0
      %1619 = vdwg.mxu0
      %v1620 = vadd.f32 %v1570, %v1615
      %s1621 = scalar_lea.vmem %s0, 44
      %v1622 = vld [vmem:[%s1621] sm:$0x3]
      %v1624 = vsel %vm407, %v1622, 0
      %v1627 = vsel %vm411, %v1388, 0
      %1629 = vmatprep.subr.bf16.mxu0 0
      %1630 = vmatpush1.bf16.msra.mxu0 %v1627
      %1631 = vmatprep.subr.bf16.mxu0 0
      %1632 = vmatpush1.bf16.msra.mxu0 0
      %1633 = vmatprep.subr.bf16.mxu0 0
      %1634 = vmatpush1.bf16.msra.mxu0 0
      %1635 = vmatprep.subr.bf16.mxu0 0
      %1636 = vmatpush1.bf16.msra.mxu0 0
      %1637 = vmatprep.subr.bf16.mxu0 0
      %1638 = vmatpush1.bf16.msra.mxu0 0
      %1639 = vmatprep.subr.bf16.mxu0 0
      %1640 = vmatpush1.bf16.msra.mxu0 0
      %1641 = vmatprep.subr.bf16.mxu0 0
      %1642 = vmatpush1.bf16.msra.mxu0 0
      %1643 = vmatprep.subr.bf16.mxu0 0
      %1644 = vmatpush1.bf16.msra.mxu0 0
      %1645 = vmatprep.subr.bf16.mxu0 0
      %1646 = vmatpush1.bf16.msra.mxu0 0
      %1647 = vmatprep.subr.bf16.mxu0 0
      %1648 = vmatpush1.bf16.msra.mxu0 0
      %1649 = vmatprep.subr.bf16.mxu0 0
      %1650 = vmatpush1.bf16.msra.mxu0 0
      %1651 = vmatprep.subr.bf16.mxu0 0
      %1652 = vmatpush1.bf16.msra.mxu0 0
      %1653 = vmatprep.subr.bf16.mxu0 0
      %1654 = vmatpush1.bf16.msra.mxu0 0
      %1655 = vmatprep.subr.bf16.mxu0 0
      %1656 = vmatpush1.bf16.msra.mxu0 0
      %1657 = vmatprep.subr.bf16.mxu0 0
      %1658 = vmatpush1.bf16.msra.mxu0 0
      %1659 = vmatprep.subr.bf16.mxu0 0
      %1660 = vmatpush1.bf16.msra.mxu0 0
      %1661 = vmatprep.mubr.bf16.mxu0 0
      %1662 = vmatmul.mubr.bf16.gmra.mrb[0].mxu0 %v1624
      %v1663 = vpop.f32.mrb[0].mxu0
      %v1664 = vadd.f32 0.0, %v1663
      %v1665 = vpop.f32.mrb[0].mxu0
      %v1666 = vpop.f32.mrb[0].mxu0
      %v1667 = vpop.f32.mrb[0].mxu0
      %1668 = vdwg.mxu0
      %v1669 = vadd.f32 %v1620, %v1664
      %v1670 = vmul.bf16 %v1403, %v682
      %s1671 = scalar_lea.vmem %s0, 46
      %v1672 = vld [vmem:[%s1671] sm:$0x3]
      %v1674 = vsel %vm407, %v1672, 0
      %v1677 = vsel %vm411, %v1670, 0
      %1679 = vmatprep.subr.bf16.mxu0 0
      %1680 = vmatpush1.bf16.msra.mxu0 %v1677
      %1681 = vmatprep.subr.bf16.mxu0 0
      %1682 = vmatpush1.bf16.msra.mxu0 0
      %1683 = vmatprep.subr.bf16.mxu0 0
      %1684 = vmatpush1.bf16.msra.mxu0 0
      %1685 = vmatprep.subr.bf16.mxu0 0
      %1686 = vmatpush1.bf16.msra.mxu0 0
      %1687 = vmatprep.subr.bf16.mxu0 0
      %1688 = vmatpush1.bf16.msra.mxu0 0
      %1689 = vmatprep.subr.bf16.mxu0 0
      %1690 = vmatpush1.bf16.msra.mxu0 0
      %1691 = vmatprep.subr.bf16.mxu0 0
      %1692 = vmatpush1.bf16.msra.mxu0 0
      %1693 = vmatprep.subr.bf16.mxu0 0
      %1694 = vmatpush1.bf16.msra.mxu0 0
      %1695 = vmatprep.subr.bf16.mxu0 0
      %1696 = vmatpush1.bf16.msra.mxu0 0
      %1697 = vmatprep.subr.bf16.mxu0 0
      %1698 = vmatpush1.bf16.msra.mxu0 0
      %1699 = vmatprep.subr.bf16.mxu0 0
      %1700 = vmatpush1.bf16.msra.mxu0 0
      %1701 = vmatprep.subr.bf16.mxu0 0
      %1702 = vmatpush1.bf16.msra.mxu0 0
      %1703 = vmatprep.subr.bf16.mxu0 0
      %1704 = vmatpush1.bf16.msra.mxu0 0
      %1705 = vmatprep.subr.bf16.mxu0 0
      %1706 = vmatpush1.bf16.msra.mxu0 0
      %1707 = vmatprep.subr.bf16.mxu0 0
      %1708 = vmatpush1.bf16.msra.mxu0 0
      %1709 = vmatprep.subr.bf16.mxu0 0
      %1710 = vmatpush1.bf16.msra.mxu0 0
      %1711 = vmatprep.mubr.bf16.mxu0 0
      %1712 = vmatmul.mubr.bf16.gmra.mrb[0].mxu0 %v1674
      %v1713 = vpop.f32.mrb[0].mxu0
      %v1714 = vadd.f32 0.0, %v1713
      %v1715 = vpop.f32.mrb[0].mxu0
      %v1716 = vpop.f32.mrb[0].mxu0
      %v1717 = vpop.f32.mrb[0].mxu0
      %1718 = vdwg.mxu0
      %v1719 = vadd.f32 %v1669, %v1714
      %v1720 = vmul.bf16 %v1403, %v740
      %s1721 = scalar_lea.vmem %s0, 48
      %v1722 = vld [vmem:[%s1721] sm:$0x3]
      %v1724 = vsel %vm407, %v1722, 0
      %v1727 = vsel %vm411, %v1720, 0
      %1729 = vmatprep.subr.bf16.mxu0 0
      %1730 = vmatpush1.bf16.msra.mxu0 %v1727
      %1731 = vmatprep.subr.bf16.mxu0 0
      %1732 = vmatpush1.bf16.msra.mxu0 0
      %1733 = vmatprep.subr.bf16.mxu0 0
      %1734 = vmatpush1.bf16.msra.mxu0 0
      %1735 = vmatprep.subr.bf16.mxu0 0
      %1736 = vmatpush1.bf16.msra.mxu0 0
      %1737 = vmatprep.subr.bf16.mxu0 0
      %1738 = vmatpush1.bf16.msra.mxu0 0
      %1739 = vmatprep.subr.bf16.mxu0 0
      %1740 = vmatpush1.bf16.msra.mxu0 0
      %1741 = vmatprep.subr.bf16.mxu0 0
      %1742 = vmatpush1.bf16.msra.mxu0 0
      %1743 = vmatprep.subr.bf16.mxu0 0
      %1744 = vmatpush1.bf16.msra.mxu0 0
      %1745 = vmatprep.subr.bf16.mxu0 0
      %1746 = vmatpush1.bf16.msra.mxu0 0
      %1747 = vmatprep.subr.bf16.mxu0 0
      %1748 = vmatpush1.bf16.msra.mxu0 0
      %1749 = vmatprep.subr.bf16.mxu0 0
      %1750 = vmatpush1.bf16.msra.mxu0 0
      %1751 = vmatprep.subr.bf16.mxu0 0
      %1752 = vmatpush1.bf16.msra.mxu0 0
      %1753 = vmatprep.subr.bf16.mxu0 0
      %1754 = vmatpush1.bf16.msra.mxu0 0
      %1755 = vmatprep.subr.bf16.mxu0 0
      %1756 = vmatpush1.bf16.msra.mxu0 0
      %1757 = vmatprep.subr.bf16.mxu0 0
      %1758 = vmatpush1.bf16.msra.mxu0 0
      %1759 = vmatprep.subr.bf16.mxu0 0
      %1760 = vmatpush1.bf16.msra.mxu0 0
      %1761 = vmatprep.mubr.bf16.mxu0 0
      %1762 = vmatmul.mubr.bf16.gmra.mrb[0].mxu0 %v1724
      %v1763 = vpop.f32.mrb[0].mxu0
      %v1764 = vadd.f32 0.0, %v1763
      %v1765 = vpop.f32.mrb[0].mxu0
      %v1766 = vpop.f32.mrb[0].mxu0
      %v1767 = vpop.f32.mrb[0].mxu0
      %1768 = vdwg.mxu0
      %v1769 = vadd.f32 %v1719, %v1764
      %v1770 = vmul.bf16 %v1461, %v797
      %s1771 = scalar_lea.vmem %s0, 50
      %v1772 = vld [vmem:[%s1771] sm:$0x3]
      %v1774 = vsel %vm407, %v1772, 0
      %v1777 = vsel %vm411, %v1770, 0
      %1779 = vmatprep.subr.bf16.mxu0 0
      %1780 = vmatpush1.bf16.msra.mxu0 %v1777
      %1781 = vmatprep.subr.bf16.mxu0 0
      %1782 = vmatpush1.bf16.msra.mxu0 0
      %1783 = vmatprep.subr.bf16.mxu0 0
      %1784 = vmatpush1.bf16.msra.mxu0 0
      %1785 = vmatprep.subr.bf16.mxu0 0
      %1786 = vmatpush1.bf16.msra.mxu0 0
      %1787 = vmatprep.subr.bf16.mxu0 0
      %1788 = vmatpush1.bf16.msra.mxu0 0
      %1789 = vmatprep.subr.bf16.mxu0 0
      %1790 = vmatpush1.bf16.msra.mxu0 0
      %1791 = vmatprep.subr.bf16.mxu0 0
      %1792 = vmatpush1.bf16.msra.mxu0 0
      %1793 = vmatprep.subr.bf16.mxu0 0
      %1794 = vmatpush1.bf16.msra.mxu0 0
      %1795 = vmatprep.subr.bf16.mxu0 0
      %1796 = vmatpush1.bf16.msra.mxu0 0
      %1797 = vmatprep.subr.bf16.mxu0 0
      %1798 = vmatpush1.bf16.msra.mxu0 0
      %1799 = vmatprep.subr.bf16.mxu0 0
      %1800 = vmatpush1.bf16.msra.mxu0 0
      %1801 = vmatprep.subr.bf16.mxu0 0
      %1802 = vmatpush1.bf16.msra.mxu0 0
      %1803 = vmatprep.subr.bf16.mxu0 0
      %1804 = vmatpush1.bf16.msra.mxu0 0
      %1805 = vmatprep.subr.bf16.mxu0 0
      %1806 = vmatpush1.bf16.msra.mxu0 0
      %1807 = vmatprep.subr.bf16.mxu0 0
      %1808 = vmatpush1.bf16.msra.mxu0 0
      %1809 = vmatprep.subr.bf16.mxu0 0
      %1810 = vmatpush1.bf16.msra.mxu0 0
      %1811 = vmatprep.mubr.bf16.mxu0 0
      %1812 = vmatmul.mubr.bf16.gmra.mrb[0].mxu0 %v1774
      %v1813 = vpop.f32.mrb[0].mxu0
      %v1814 = vadd.f32 0.0, %v1813
      %v1815 = vpop.f32.mrb[0].mxu0
      %v1816 = vpop.f32.mrb[0].mxu0
      %v1817 = vpop.f32.mrb[0].mxu0
      %1818 = vdwg.mxu0
      %v1819 = vadd.f32 %v1769, %v1814
      %v1820 = vmul.bf16 %v1519, %v855
      %s1821 = scalar_lea.vmem %s0, 52
      %v1822 = vld [vmem:[%s1821] sm:$0x3]
      %v1824 = vsel %vm407, %v1822, 0
      %v1827 = vsel %vm411, %v1820, 0
      %1829 = vmatprep.subr.bf16.mxu0 0
      %1830 = vmatpush1.bf16.msra.mxu0 %v1827
      %1831 = vmatprep.subr.bf16.mxu0 0
      %1832 = vmatpush1.bf16.msra.mxu0 0
      %1833 = vmatprep.subr.bf16.mxu0 0
      %1834 = vmatpush1.bf16.msra.mxu0 0
      %1835 = vmatprep.subr.bf16.mxu0 0
      %1836 = vmatpush1.bf16.msra.mxu0 0
      %1837 = vmatprep.subr.bf16.mxu0 0
      %1838 = vmatpush1.bf16.msra.mxu0 0
      %1839 = vmatprep.subr.bf16.mxu0 0
      %1840 = vmatpush1.bf16.msra.mxu0 0
      %1841 = vmatprep.subr.bf16.mxu0 0
      %1842 = vmatpush1.bf16.msra.mxu0 0
      %1843 = vmatprep.subr.bf16.mxu0 0
      %1844 = vmatpush1.bf16.msra.mxu0 0
      %1845 = vmatprep.subr.bf16.mxu0 0
      %1846 = vmatpush1.bf16.msra.mxu0 0
      %1847 = vmatprep.subr.bf16.mxu0 0
      %1848 = vmatpush1.bf16.msra.mxu0 0
      %1849 = vmatprep.subr.bf16.mxu0 0
      %1850 = vmatpush1.bf16.msra.mxu0 0
      %1851 = vmatprep.subr.bf16.mxu0 0
      %1852 = vmatpush1.bf16.msra.mxu0 0
      %1853 = vmatprep.subr.bf16.mxu0 0
      %1854 = vmatpush1.bf16.msra.mxu0 0
      %1855 = vmatprep.subr.bf16.mxu0 0
      %1856 = vmatpush1.bf16.msra.mxu0 0
      %1857 = vmatprep.subr.bf16.mxu0 0
      %1858 = vmatpush1.bf16.msra.mxu0 0
      %1859 = vmatprep.subr.bf16.mxu0 0
      %1860 = vmatpush1.bf16.msra.mxu0 0
      %1861 = vmatprep.mubr.bf16.mxu0 0
      %1862 = vmatmul.mubr.bf16.gmra.mrb[0].mxu0 %v1824
      %v1863 = vpop.f32.mrb[0].mxu0
      %v1864 = vadd.f32 0.0, %v1863
      %v1865 = vpop.f32.mrb[0].mxu0
      %v1866 = vpop.f32.mrb[0].mxu0
      %v1867 = vpop.f32.mrb[0].mxu0
      %1868 = vdwg.mxu0
      %v1869 = vadd.f32 %v1819, %v1864
      %v1870 = vld [vmem:[%s1] sm:$0xf]
      %1872 = vset.pattern.permute.xlu0 0
      %1873 = vperm.xlu0 %1872, %v1870
      %v1874 = vpop.permute.xlu0 %1873
      %v1876 = vadd.f32 %v1869, %v1874
      %v1877 = vpack.c.bf16 %v1876, %v1876
      %vm1878 = vcmask 25600
      %1879 = vst.msk [vmem:[%s358] sm:$0x3] %vm1878, %v1877
      %p1880 = scmp.lt.s32.totalorder %s21, 1
      %s1881 = scalar_select %p1880, %s21, 1
      %p1882 = scmp.lt.s32.totalorder %s22, 1
      %s1883 = scalar_select %p1882, %s22, 1
      %s1884 = smul.addr %s1881, 2
      %s1885 = sadd.s32 %s1883, %s1884
      %s1886 = smul.addr %s1885, 2
      %s1887 = scalar_lea.vmem %s6, %s1886
      // Predicated region
      $region45: #{_lambda_.4} parent=43 // pred_check
        %p1888 = pneg %p200
      $region46: #{_lambda_.4} parent=43 // pred_check_branch
        %1890 = sbr.rel (%p1888) target = $region48
      $region47: #{_lambda_.4} parent=43 // pred_region
        _
      $region48: #{_lambda_.4} parent=43 // pred_fallthru
        _
    $region44: #{_lambda_.4} parent=5 // pred_fallthru
      _
    %p1891 = scmp.le.s32.totalorder 2, %s12
    // Predicated region
    $region49: #{_lambda_.4} parent=5 // pred_check
      %p1892 = pneg %p1891
    $region50: #{_lambda_.4} parent=5 // pred_check_branch
      %1894 = sbr.rel (%p1892) target = $region52
    $region51: #{_lambda_.4} parent=5 // pred_region
      %s1895 = ssub.s32 %s12, 2
      // Predicated region
      $region53: #{_lambda_.4} parent=51 // pred_check
        %p1896 = pneg %p206
      $region54: #{_lambda_.4} parent=51 // pred_check_branch
        %1898 = sbr.rel (%p1896) target = $region56
      $region55: #{_lambda_.4} parent=51 // pred_region
        %p1899 = scmp.lt.s32.totalorder %s23, 1
        %s1900 = scalar_select %p1899, %s23, 1
        %p1901 = scmp.lt.s32.totalorder %s24, 1
        %s1902 = scalar_select %p1901, %s24, 1
        %s1903 = smul.addr %s1900, 2
        %s1904 = sadd.s32 %s1902, %s1903
        %s1905 = smul.addr %s1904, 2
        %s1906 = scalar_lea.vmem %s6, %s1905
      $region56: #{_lambda_.4} parent=51 // pred_fallthru
        _
    $region52: #{_lambda_.4} parent=5 // pred_fallthru
      _
  $region6: #{_lambda_.4} parent=0 // loop_footer
    %s16 = sadd.s32 1, %s12
  $region7: #{_lambda_.4} parent=0 // loop_footer_branch
    %11 = sbr.rel target = $region3
  $region8: #{_lambda_.4} parent=0 // loop_exit
    _

// kernel: _lambda_.5
$region0: #{_lambda_.5}
  #allocation0 [shape = 'u32[]', space=smem, size = 0x4, offset = 0x4, fixed_abs, tag = 'smem constant byte address 0x4 - core index']
  #allocation1 [shape = 'u32[144,128]{1,0:T(1,128)}', space=vmem, size = 0x12000, scoped, tag = 'internal scratch']
  %s0 = inlined_call_operand.vmem [shape: bf16[27,4,4], index: 0, kind: input, shape index: {}]
  %s1 = inlined_call_operand.vmem [shape: f32[4,4], index: 1, kind: input, shape index: {}]
  %s2 = inlined_call_operand.vmem [shape: f32[4,1], index: 2, kind: input, shape index: {}]
  %s3 = inlined_call_operand.vmem [shape: bf16[9,64], index: 3, kind: input, shape index: {}]
  %s4 = inlined_call_operand.vmem [shape: bf16[2,10,4,64], index: 4, kind: input, shape index: {}, may-alias: {4,5,6}]
  %s5 = inlined_call_operand.vmem [shape: bf16[2,10,4,64], index: 5, kind: input, shape index: {}, may-alias: {4,5,6}]
  %s6 = inlined_call_operand.vmem [shape: bf16[2,10,4,64], index: 6, kind: input, shape index: {}, may-alias: {4,5,6}]
  %s7 = inlined_call_operand.vmem [shape: bf16[2,8,4,64], index: 7, kind: input, shape index: {}]
  %s8 = inlined_call_operand.vmem [shape: f32[2,8,4,64], index: 8, kind: output, shape index: {}]
  %s9 = sld [smem:[#allocation0]]
  $region65: #{_lambda_.5} parent=0
    _
  %s11 = ssub.s32 1, %s9
  %s12 = scalar_select 0, %s11, %s9
  loop: start=0, step=1, limit=18
  $region2: #{_lambda_.5} parent=0 // loop_pre_header
    _
  $region3: #{_lambda_.5} parent=0 // loop_header
    %s14 = sphi 0, %s18
    %p15 = scmp.ge.s32.totalorder %s14, 18
    %s21 = sphi 0, %s33
    %s22 = sphi 0, %s29
    %s23 = sphi 0, %s21
    %s24 = sphi 0, %s22
    %s25 = sphi 0, %s23
    %s26 = sphi 0, %s24
    %s34 = sphi 0, %s34
    %s36 = sphi 0, %s34
    %s37 = sphi 0, %s36
    %s51 = sphi 0, %s37
    %s55 = sphi 0, %s55
    %s57 = sphi 0, %s55
    %s58 = sphi 0, %s57
    %s72 = sphi 0, %s58
    %s76 = sphi 0, %s76
    %s78 = sphi 0, %s76
    %s79 = sphi 0, %s78
    %s93 = sphi 0, %s79
    %s97 = sphi 0, %s97
    %s99 = sphi 0, %s97
    %s100 = sphi 0, %s99
    %s114 = sphi 0, %s100
    %s122 = sphi 0, %s124
    %s125 = sphi 0, %s122
    %s126 = sphi 0, %s125
    %s142 = sphi 0, %s126
    %s152 = sphi 0, %s154
    %s155 = sphi 0, %s152
    %s156 = sphi 0, %s155
    %s172 = sphi 0, %s156
    %s182 = sphi 0, %s184
    %s185 = sphi 0, %s182
    %s186 = sphi 0, %s185
    %s202 = sphi 0, %s186
    %s210 = sphi 0, %s212
    %s213 = sphi 0, %s210
    %s214 = sphi 0, %s213
    %s230 = sphi 0, %s214
    %s238 = sphi 0, %s240
    %s241 = sphi 0, %s238
    %s242 = sphi 0, %s241
    %s258 = sphi 0, %s242
  $region4: #{_lambda_.5} parent=0 // loop_header_branch
    %17 = sbr.rel (%p15) target = $region8
  $region5: #{_lambda_.5} parent=0 // loop_body
    %s19 = ssub.s32 %s14, 1
    %s20 = ssub.s32 %s14, 2
    %s27 = sadd.s32 1, %s22
    %p28 = scmp.ge.s32.totalorder %s27, 8
    %s29 = scalar_select %p28, 0, %s27
    %s30 = sadd.s32 1, %s21
    %s31 = scalar_select %p28, %s30, %s21
    %p32 = scmp.ge.s32.totalorder %s31, 2
    %s33 = scalar_select %p32, 0, %s31
    %s35 = sadd.s32 %s34, 1
    %p38 = scmp.eq.s32.totalorder %s14, 15
    %p39 = scmp.ne.s32.totalorder %s34, %s36
    %p40 = scmp.eq.s32.totalorder %s14, 0
    %p41 = por %p39, %p40
    %p42 = scmp.ne.s32.totalorder %s34, %s36
    %p43 = scmp.eq.s32.totalorder %s19, 15
    %p44 = por %p42, %p43
    %p45 = scmp.ne.s32.totalorder %s36, %s37
    %p46 = scmp.eq.s32.totalorder %s19, 0
    %p47 = por %p45, %p46
    %p48 = scmp.ne.s32.totalorder %s36, %s37
    %p49 = scmp.eq.s32.totalorder %s20, 15
    %p50 = por %p48, %p49
    %p52 = scmp.ne.s32.totalorder %s37, %s51
    %p53 = scmp.eq.s32.totalorder %s20, 0
    %p54 = por %p52, %p53
    %s56 = sadd.s32 %s55, 1
    %p59 = scmp.eq.s32.totalorder %s14, 15
    %p60 = scmp.ne.s32.totalorder %s55, %s57
    %p61 = scmp.eq.s32.totalorder %s14, 0
    %p62 = por %p60, %p61
    %p63 = scmp.ne.s32.totalorder %s55, %s57
    %p64 = scmp.eq.s32.totalorder %s19, 15
    %p65 = por %p63, %p64
    %p66 = scmp.ne.s32.totalorder %s57, %s58
    %p67 = scmp.eq.s32.totalorder %s19, 0
    %p68 = por %p66, %p67
    %p69 = scmp.ne.s32.totalorder %s57, %s58
    %p70 = scmp.eq.s32.totalorder %s20, 15
    %p71 = por %p69, %p70
    %p73 = scmp.ne.s32.totalorder %s58, %s72
    %p74 = scmp.eq.s32.totalorder %s20, 0
    %p75 = por %p73, %p74
    %s77 = sadd.s32 %s76, 1
    %p80 = scmp.eq.s32.totalorder %s14, 15
    %p81 = scmp.ne.s32.totalorder %s76, %s78
    %p82 = scmp.eq.s32.totalorder %s14, 0
    %p83 = por %p81, %p82
    %p84 = scmp.ne.s32.totalorder %s76, %s78
    %p85 = scmp.eq.s32.totalorder %s19, 15
    %p86 = por %p84, %p85
    %p87 = scmp.ne.s32.totalorder %s78, %s79
    %p88 = scmp.eq.s32.totalorder %s19, 0
    %p89 = por %p87, %p88
    %p90 = scmp.ne.s32.totalorder %s78, %s79
    %p91 = scmp.eq.s32.totalorder %s20, 15
    %p92 = por %p90, %p91
    %p94 = scmp.ne.s32.totalorder %s79, %s93
    %p95 = scmp.eq.s32.totalorder %s20, 0
    %p96 = por %p94, %p95
    %s98 = sadd.s32 %s97, 1
    %p101 = scmp.eq.s32.totalorder %s14, 15
    %p102 = scmp.ne.s32.totalorder %s97, %s99
    %p103 = scmp.eq.s32.totalorder %s14, 0
    %p104 = por %p102, %p103
    %p105 = scmp.ne.s32.totalorder %s97, %s99
    %p106 = scmp.eq.s32.totalorder %s19, 15
    %p107 = por %p105, %p106
    %p108 = scmp.ne.s32.totalorder %s99, %s100
    %p109 = scmp.eq.s32.totalorder %s19, 0
    %p110 = por %p108, %p109
    %p111 = scmp.ne.s32.totalorder %s99, %s100
    %p112 = scmp.eq.s32.totalorder %s20, 15
    %p113 = por %p111, %p112
    %p115 = scmp.ne.s32.totalorder %s100, %s114
    %p116 = scmp.eq.s32.totalorder %s20, 0
    %p117 = por %p115, %p116
    %s118 = ssub.s32 %s21, %s33
    %s119 = ssub.s32 %s22, %s29
    %s120 = sor.u32 %s118, %s119
    %p121 = scmp.eq.s32.totalorder %s120, 0
    %s123 = sadd.s32 %s122, 1
    %s124 = scalar_select %p121, %s122, %s123
    %p127 = pneg %p121
    %p128 = scmp.eq.s32.totalorder %s14, 15
    %p129 = por %p127, %p128
    %p130 = scmp.ne.s32.totalorder %s122, %s125
    %p131 = scmp.eq.s32.totalorder %s14, 0
    %p132 = por %p130, %p131
    %p133 = scmp.ne.s32.totalorder %s122, %s125
    %p134 = scmp.eq.s32.totalorder %s19, 15
    %p135 = por %p133, %p134
    %p136 = scmp.ne.s32.totalorder %s125, %s126
    %p137 = scmp.eq.s32.totalorder %s19, 0
    %p138 = por %p136, %p137
    %p139 = scmp.ne.s32.totalorder %s125, %s126
    %p140 = scmp.eq.s32.totalorder %s20, 15
    %p141 = por %p139, %p140
    %p143 = scmp.ne.s32.totalorder %s126, %s142
    %p144 = scmp.eq.s32.totalorder %s20, 0
    %p145 = por %p143, %p144
    %s146 = sadd.s32 %s22, 1
    %s147 = sadd.s32 %s29, 1
    %s148 = ssub.s32 %s21, %s33
    %s149 = ssub.s32 %s146, %s147
    %s150 = sor.u32 %s148, %s149
    %p151 = scmp.eq.s32.totalorder %s150, 0
    %s153 = sadd.s32 %s152, 1
    %s154 = scalar_select %p151, %s152, %s153
    %p157 = pneg %p151
    %p158 = scmp.eq.s32.totalorder %s14, 15
    %p159 = por %p157, %p158
    %p160 = scmp.ne.s32.totalorder %s152, %s155
    %p161 = scmp.eq.s32.totalorder %s14, 0
    %p162 = por %p160, %p161
    %p163 = scmp.ne.s32.totalorder %s152, %s155
    %p164 = scmp.eq.s32.totalorder %s19, 15
    %p165 = por %p163, %p164
    %p166 = scmp.ne.s32.totalorder %s155, %s156
    %p167 = scmp.eq.s32.totalorder %s19, 0
    %p168 = por %p166, %p167
    %p169 = scmp.ne.s32.totalorder %s155, %s156
    %p170 = scmp.eq.s32.totalorder %s20, 15
    %p171 = por %p169, %p170
    %p173 = scmp.ne.s32.totalorder %s156, %s172
    %p174 = scmp.eq.s32.totalorder %s20, 0
    %p175 = por %p173, %p174
    %s176 = sadd.s32 %s22, 2
    %s177 = sadd.s32 %s29, 2
    %s178 = ssub.s32 %s21, %s33
    %s179 = ssub.s32 %s176, %s177
    %s180 = sor.u32 %s178, %s179
    %p181 = scmp.eq.s32.totalorder %s180, 0
    %s183 = sadd.s32 %s182, 1
    %s184 = scalar_select %p181, %s182, %s183
    %p187 = pneg %p181
    %p188 = scmp.eq.s32.totalorder %s14, 15
    %p189 = por %p187, %p188
    %p190 = scmp.ne.s32.totalorder %s182, %s185
    %p191 = scmp.eq.s32.totalorder %s14, 0
    %p192 = por %p190, %p191
    %p193 = scmp.ne.s32.totalorder %s182, %s185
    %p194 = scmp.eq.s32.totalorder %s19, 15
    %p195 = por %p193, %p194
    %p196 = scmp.ne.s32.totalorder %s185, %s186
    %p197 = scmp.eq.s32.totalorder %s19, 0
    %p198 = por %p196, %p197
    %p199 = scmp.ne.s32.totalorder %s185, %s186
    %p200 = scmp.eq.s32.totalorder %s20, 15
    %p201 = por %p199, %p200
    %p203 = scmp.ne.s32.totalorder %s186, %s202
    %p204 = scmp.eq.s32.totalorder %s20, 0
    %p205 = por %p203, %p204
    %s206 = ssub.s32 %s21, %s33
    %s207 = ssub.s32 %s22, %s29
    %s208 = sor.u32 %s206, %s207
    %p209 = scmp.eq.s32.totalorder %s208, 0
    %s211 = sadd.s32 %s210, 1
    %s212 = scalar_select %p209, %s210, %s211
    %p215 = pneg %p209
    %p216 = scmp.eq.s32.totalorder %s14, 15
    %p217 = por %p215, %p216
    %p218 = scmp.ne.s32.totalorder %s210, %s213
    %p219 = scmp.eq.s32.totalorder %s14, 0
    %p220 = por %p218, %p219
    %p221 = scmp.ne.s32.totalorder %s210, %s213
    %p222 = scmp.eq.s32.totalorder %s19, 15
    %p223 = por %p221, %p222
    %p224 = scmp.ne.s32.totalorder %s213, %s214
    %p225 = scmp.eq.s32.totalorder %s19, 0
    %p226 = por %p224, %p225
    %p227 = scmp.ne.s32.totalorder %s213, %s214
    %p228 = scmp.eq.s32.totalorder %s20, 15
    %p229 = por %p227, %p228
    %p231 = scmp.ne.s32.totalorder %s214, %s230
    %p232 = scmp.eq.s32.totalorder %s20, 0
    %p233 = por %p231, %p232
    %s234 = ssub.s32 %s21, %s33
    %s235 = ssub.s32 %s22, %s29
    %s236 = sor.u32 %s234, %s235
    %p237 = scmp.eq.s32.totalorder %s236, 0
    %s239 = sadd.s32 %s238, 1
    %s240 = scalar_select %p237, %s238, %s239
    %p243 = pneg %p237
    %p244 = scmp.eq.s32.totalorder %s14, 15
    %p245 = por %p243, %p244
    %p246 = scmp.ne.s32.totalorder %s238, %s241
    %p247 = scmp.eq.s32.totalorder %s14, 0
    %p248 = por %p246, %p247
    %p249 = scmp.ne.s32.totalorder %s238, %s241
    %p250 = scmp.eq.s32.totalorder %s19, 15
    %p251 = por %p249, %p250
    %p252 = scmp.ne.s32.totalorder %s241, %s242
    %p253 = scmp.eq.s32.totalorder %s19, 0
    %p254 = por %p252, %p253
    %p255 = scmp.ne.s32.totalorder %s241, %s242
    %p256 = scmp.eq.s32.totalorder %s20, 15
    %p257 = por %p255, %p256
    %p259 = scmp.ne.s32.totalorder %s242, %s258
    %p260 = scmp.eq.s32.totalorder %s20, 0
    %p261 = por %p259, %p260
    %p262 = scmp.le.s32.totalorder 1, %s14
    %p263 = scmp.lt.s32.totalorder %s14, 17
    %p264 = pnand %p262, %p263
    %p265 = pneg %p264
    // Predicated region
    $region9: #{_lambda_.5} parent=5 // pred_check
      _
    $region10: #{_lambda_.5} parent=5 // pred_check_branch
      %267 = sbr.rel (%p264) target = $region12
    $region11: #{_lambda_.5} parent=5 // pred_region
      %s268 = ssub.s32 %s14, 1
      // Predicated region
      $region13: #{_lambda_.5} parent=11 // pred_check
        %p269 = pneg %p47
      $region14: #{_lambda_.5} parent=11 // pred_check_branch
        %271 = sbr.rel (%p269) target = $region16
      $region15: #{_lambda_.5} parent=11 // pred_region
        _
      $region16: #{_lambda_.5} parent=11 // pred_fallthru
        _
      // Predicated region
      $region17: #{_lambda_.5} parent=11 // pred_check
        %p272 = pneg %p68
      $region18: #{_lambda_.5} parent=11 // pred_check_branch
        %274 = sbr.rel (%p272) target = $region20
      $region19: #{_lambda_.5} parent=11 // pred_region
        _
      $region20: #{_lambda_.5} parent=11 // pred_fallthru
        _
      // Predicated region
      $region21: #{_lambda_.5} parent=11 // pred_check
        %p275 = pneg %p89
      $region22: #{_lambda_.5} parent=11 // pred_check_branch
        %277 = sbr.rel (%p275) target = $region24
      $region23: #{_lambda_.5} parent=11 // pred_region
        _
      $region24: #{_lambda_.5} parent=11 // pred_fallthru
        _
      // Predicated region
      $region25: #{_lambda_.5} parent=11 // pred_check
        %p278 = pneg %p110
      $region26: #{_lambda_.5} parent=11 // pred_check_branch
        %280 = sbr.rel (%p278) target = $region28
      $region27: #{_lambda_.5} parent=11 // pred_region
        _
      $region28: #{_lambda_.5} parent=11 // pred_fallthru
        _
    $region12: #{_lambda_.5} parent=5 // pred_fallthru
      _
    %p281 = scmp.lt.s32.totalorder %s14, 16
    // Predicated region
    $region29: #{_lambda_.5} parent=5 // pred_check
      %p282 = pneg %p281
    $region30: #{_lambda_.5} parent=5 // pred_check_branch
      %284 = sbr.rel (%p282) target = $region32
    $region31: #{_lambda_.5} parent=5 // pred_region
      // Predicated region
      $region33: #{_lambda_.5} parent=31 // pred_check
        %p285 = pneg %p132
      $region34: #{_lambda_.5} parent=31 // pred_check_branch
        %287 = sbr.rel (%p285) target = $region36
      $region35: #{_lambda_.5} parent=31 // pred_region
        %p288 = scmp.lt.s32.totalorder %s21, 1
        %s289 = scalar_select %p288, %s21, 1
        %p290 = scmp.lt.s32.totalorder %s22, 9
        %s291 = scalar_select %p290, %s22, 9
        %s292 = smul.addr %s289, 10
        %s293 = sadd.s32 %s291, %s292
        %s294 = smul.addr %s293, 2
        %s295 = scalar_lea.vmem %s4, %s294
      $region36: #{_lambda_.5} parent=31 // pred_fallthru
        _
      // Predicated region
      $region37: #{_lambda_.5} parent=31 // pred_check
        %p296 = pneg %p162
      $region38: #{_lambda_.5} parent=31 // pred_check_branch
        %298 = sbr.rel (%p296) target = $region40
      $region39: #{_lambda_.5} parent=31 // pred_region
        %s299 = sadd.s32 %s22, 1
        %p300 = scmp.lt.s32.totalorder %s21, 1
        %s301 = scalar_select %p300, %s21, 1
        %p302 = scmp.lt.s32.totalorder %s299, 9
        %s303 = scalar_select %p302, %s299, 9
        %s304 = smul.addr %s301, 10
        %s305 = sadd.s32 %s303, %s304
        %s306 = smul.addr %s305, 2
        %s307 = scalar_lea.vmem %s5, %s306
        %s308 = sadd.s32 %s22, 1
      $region40: #{_lambda_.5} parent=31 // pred_fallthru
        _
      // Predicated region
      $region41: #{_lambda_.5} parent=31 // pred_check
        %p309 = pneg %p192
      $region42: #{_lambda_.5} parent=31 // pred_check_branch
        %311 = sbr.rel (%p309) target = $region44
      $region43: #{_lambda_.5} parent=31 // pred_region
        %s312 = sadd.s32 %s22, 2
        %p313 = scmp.lt.s32.totalorder %s21, 1
        %s314 = scalar_select %p313, %s21, 1
        %p315 = scmp.lt.s32.totalorder %s312, 9
        %s316 = scalar_select %p315, %s312, 9
        %s317 = smul.addr %s314, 10
        %s318 = sadd.s32 %s316, %s317
        %s319 = smul.addr %s318, 2
        %s320 = scalar_lea.vmem %s6, %s319
        %s321 = sadd.s32 %s22, 2
      $region44: #{_lambda_.5} parent=31 // pred_fallthru
        _
      // Predicated region
      $region45: #{_lambda_.5} parent=31 // pred_check
        %p322 = pneg %p220
      $region46: #{_lambda_.5} parent=31 // pred_check_branch
        %324 = sbr.rel (%p322) target = $region48
      $region47: #{_lambda_.5} parent=31 // pred_region
        %p325 = scmp.lt.s32.totalorder %s21, 1
        %s326 = scalar_select %p325, %s21, 1
        %p327 = scmp.lt.s32.totalorder %s22, 7
        %s328 = scalar_select %p327, %s22, 7
        %s329 = smul.addr %s326, 8
        %s330 = sadd.s32 %s328, %s329
        %s331 = smul.addr %s330, 2
        %s332 = scalar_lea.vmem %s7, %s331
      $region48: #{_lambda_.5} parent=31 // pred_fallthru
        _
    $region32: #{_lambda_.5} parent=5 // pred_fallthru
      _
    %p333 = scmp.le.s32.totalorder 1, %s14
    %p334 = scmp.lt.s32.totalorder %s14, 17
    %p335 = pnand %p333, %p334
    %p336 = pneg %p335
    // Predicated region
    $region49: #{_lambda_.5} parent=5 // pred_check
      _
    $region50: #{_lambda_.5} parent=5 // pred_check_branch
      %338 = sbr.rel (%p335) target = $region52
    $region51: #{_lambda_.5} parent=5 // pred_region
      %s339 = ssub.s32 %s14, 1
      %p340 = pneg %p47
      %p341 = pneg %p44
      %p342 = pneg %p68
      %p343 = pneg %p65
      %p344 = pneg %p89
      %p345 = pneg %p86
      %p346 = pneg %p110
      %p347 = pneg %p107
      %p348 = scmp.lt.s32.totalorder %s23, 1
      %s349 = scalar_select %p348, %s23, 1
      %p350 = scmp.lt.s32.totalorder %s24, 9
      %s351 = scalar_select %p350, %s24, 9
      %s352 = smul.addr %s349, 10
      %s353 = sadd.s32 %s351, %s352
      %s354 = smul.addr %s353, 2
      %s355 = scalar_lea.vmem %s4, %s354
      %p356 = pneg %p138
      %p357 = pneg %p135
      %s358 = sadd.s32 %s24, 1
      %p359 = scmp.lt.s32.totalorder %s23, 1
      %s360 = scalar_select %p359, %s23, 1
      %p361 = scmp.lt.s32.totalorder %s358, 9
      %s362 = scalar_select %p361, %s358, 9
      %s363 = smul.addr %s360, 10
      %s364 = sadd.s32 %s362, %s363
      %s365 = smul.addr %s364, 2
      %s366 = scalar_lea.vmem %s5, %s365
      %p367 = pneg %p168
      %p368 = pneg %p165
      %s369 = sadd.s32 %s24, 2
      %p370 = scmp.lt.s32.totalorder %s23, 1
      %s371 = scalar_select %p370, %s23, 1
      %p372 = scmp.lt.s32.totalorder %s369, 9
      %s373 = scalar_select %p372, %s369, 9
      %s374 = smul.addr %s371, 10
      %s375 = sadd.s32 %s373, %s374
      %s376 = smul.addr %s375, 2
      %s377 = scalar_lea.vmem %s6, %s376
      %p378 = pneg %p198
      %p379 = pneg %p195
      %p380 = scmp.lt.s32.totalorder %s23, 1
      %s381 = scalar_select %p380, %s23, 1
      %p382 = scmp.lt.s32.totalorder %s24, 7
      %s383 = scalar_select %p382, %s24, 7
      %s384 = smul.addr %s381, 8
      %s385 = sadd.s32 %s383, %s384
      %s386 = smul.addr %s385, 2
      %s387 = scalar_lea.vmem %s7, %s386
      %p388 = pneg %p226
      %p389 = pneg %p223
      %p390 = pneg %p254
      %p391 = pneg %p251
      %p392 = scmp.lt.s32.totalorder %s23, 1
      %s393 = scalar_select %p392, %s23, 1
      %p394 = scmp.lt.s32.totalorder %s24, 7
      %s395 = scalar_select %p394, %s24, 7
      %s396 = smul.addr %s393, 8
      %s397 = sadd.s32 %s395, %s396
      %s398 = smul.addr %s397, 4
      %s399 = scalar_lea.vmem %s8, %s398
      %p400 = scmp.lt.s32.totalorder %s23, 1
      %s401 = scalar_select %p400, %s23, 1
      %p402 = scmp.lt.s32.totalorder %s24, 9
      %s403 = scalar_select %p402, %s24, 9
      %s404 = smul.addr %s401, 10
      %s405 = sadd.s32 %s403, %s404
      %s406 = smul.addr %s405, 2
      %s407 = scalar_lea.vmem %s4, %s406
      %s408 = sadd.s32 %s24, 1
      %p409 = scmp.lt.s32.totalorder %s23, 1
      %s410 = scalar_select %p409, %s23, 1
      %p411 = scmp.lt.s32.totalorder %s408, 9
      %s412 = scalar_select %p411, %s408, 9
      %s413 = smul.addr %s410, 10
      %s414 = sadd.s32 %s412, %s413
      %s415 = smul.addr %s414, 2
      %s416 = scalar_lea.vmem %s5, %s415
      %s417 = sadd.s32 %s24, 1
      %s418 = sadd.s32 %s24, 2
      %p419 = scmp.lt.s32.totalorder %s23, 1
      %s420 = scalar_select %p419, %s23, 1
      %p421 = scmp.lt.s32.totalorder %s418, 9
      %s422 = scalar_select %p421, %s418, 9
      %s423 = smul.addr %s420, 10
      %s424 = sadd.s32 %s422, %s423
      %s425 = smul.addr %s424, 2
      %s426 = scalar_lea.vmem %s6, %s425
      %s427 = sadd.s32 %s24, 2
      %p428 = scmp.lt.s32.totalorder %s23, 1
      %s429 = scalar_select %p428, %s23, 1
      %p430 = scmp.lt.s32.totalorder %s24, 7
      %s431 = scalar_select %p430, %s24, 7
      %s432 = smul.addr %s429, 8
      %s433 = sadd.s32 %s431, %s432
      %s434 = smul.addr %s433, 2
      %s435 = scalar_lea.vmem %s7, %s434
      %p436 = scmp.lt.s32.totalorder %s23, 1
      %s437 = scalar_select %p436, %s23, 1
      %p438 = scmp.lt.s32.totalorder %s24, 7
      %s439 = scalar_select %p438, %s24, 7
      %s440 = smul.addr %s437, 8
      %s441 = sadd.s32 %s439, %s440
      %s442 = smul.addr %s441, 4
      %s443 = scalar_lea.vmem %s8, %s442
      %v445 = vld [vmem:[%s407] sm:$0x3]
      %v448 = vunpack.c.l.s4 1983009808
      %v449 = vunpack.c.0.s8 %v448
      %v450 = vlaneseq
      %v451 = vshrl.u32 %v450, 7
      %v452 = vsub.s32 %v449, %v451
      %v453 = vrot.slane %v445, %v452
      %454 = vrot.lane.b32.xlu0 %v453, 73
      %v455 = vpop.permute.xlu0 %454
      %456 = vrot.lane.b32.xlu0 %v453, 9
      %v457 = vpop.permute.xlu0 %456
      %vm458 = vcmask 72704
      %v461 = vsel %vm458, %v455, %v457
      %v463 = vld [vmem:[%s3] sm:$0x1]
      %v465 = vpack.i.b16 %v463, %v463
      %v467 = vlaneseq
      %v468 = vshrl.u32 %v467, 7
      %v469 = vsub.s32 0, %v468
      %v470 = vrot.slane %v465, %v469
      %v471 = vmul.bf16 %v461, %v470
      %v472 = vld [vmem:[%s0] sm:$0x3]
      %473 = vrot.lane.b32.xlu0 %v453, 72
      %v474 = vpop.permute.xlu0 %473
      %475 = vrot.lane.b32.xlu0 %v453, 8
      %v476 = vpop.permute.xlu0 %475
      %vm477 = vcmask 64512
      %v480 = vsel %vm477, %v474, %v476
      %v482 = vshrl.u32 %v463, 16
      %v483 = vpack.i.b16 %v482, %v482
      %v485 = vlaneseq
      %v486 = vshrl.u32 %v485, 7
      %v487 = vsub.s32 0, %v486
      %v488 = vrot.slane %v483, %v487
      %v489 = vmul.bf16 %v480, %v488
      %s490 = scalar_lea.vmem %s0, 2
      %v491 = vld [vmem:[%s490] sm:$0x3]
      %vm492 = vcmask 31744
      %v494 = vsel %vm492, %v491, 0
      %vm496 = vcmask 1041408
      %v498 = vsel %vm496, %v489, 0
      %500 = vmatprep.subr.bf16.mxu0 0
      %501 = vmatpush1.bf16.msra.mxu0 %v498
      %502 = vmatprep.subr.bf16.mxu0 0
      %503 = vmatpush1.bf16.msra.mxu0 0
      %504 = vmatprep.subr.bf16.mxu0 0
      %505 = vmatpush1.bf16.msra.mxu0 0
      %506 = vmatprep.subr.bf16.mxu0 0
      %507 = vmatpush1.bf16.msra.mxu0 0
      %508 = vmatprep.subr.bf16.mxu0 0
      %509 = vmatpush1.bf16.msra.mxu0 0
      %510 = vmatprep.subr.bf16.mxu0 0
      %511 = vmatpush1.bf16.msra.mxu0 0
      %512 = vmatprep.subr.bf16.mxu0 0
      %513 = vmatpush1.bf16.msra.mxu0 0
      %514 = vmatprep.subr.bf16.mxu0 0
      %515 = vmatpush1.bf16.msra.mxu0 0
      %516 = vmatprep.subr.bf16.mxu0 0
      %517 = vmatpush1.bf16.msra.mxu0 0
      %518 = vmatprep.subr.bf16.mxu0 0
      %519 = vmatpush1.bf16.msra.mxu0 0
      %520 = vmatprep.subr.bf16.mxu0 0
      %521 = vmatpush1.bf16.msra.mxu0 0
      %522 = vmatprep.subr.bf16.mxu0 0
      %523 = vmatpush1.bf16.msra.mxu0 0
      %524 = vmatprep.subr.bf16.mxu0 0
      %525 = vmatpush1.bf16.msra.mxu0 0
      %526 = vmatprep.subr.bf16.mxu0 0
      %527 = vmatpush1.bf16.msra.mxu0 0
      %528 = vmatprep.subr.bf16.mxu0 0
      %529 = vmatpush1.bf16.msra.mxu0 0
      %530 = vmatprep.subr.bf16.mxu0 0
      %531 = vmatpush1.bf16.msra.mxu0 0
      %532 = vmatprep.mubr.bf16.mxu0 0
      %533 = vmatmul.mubr.bf16.gmra.mrb[0].mxu0 %v494
      %v534 = vpop.f32.mrb[0].mxu0
      %v535 = vadd.f32 0.0, %v534
      %v536 = vpop.f32.mrb[0].mxu0
      %v537 = vpop.f32.mrb[0].mxu0
      %v538 = vpop.f32.mrb[0].mxu0
      %539 = vdwg.mxu0
      %v541 = vsel %vm492, %v472, 0
      %v544 = vsel %vm496, %v471, 0
      %546 = vmatprep.subr.bf16.mxu0 0
      %547 = vmatpush1.bf16.msra.mxu0 %v544
      %548 = vmatprep.subr.bf16.mxu0 0
      %549 = vmatpush1.bf16.msra.mxu0 0
      %550 = vmatprep.subr.bf16.mxu0 0
      %551 = vmatpush1.bf16.msra.mxu0 0
      %552 = vmatprep.subr.bf16.mxu0 0
      %553 = vmatpush1.bf16.msra.mxu0 0
      %554 = vmatprep.subr.bf16.mxu0 0
      %555 = vmatpush1.bf16.msra.mxu0 0
      %556 = vmatprep.subr.bf16.mxu0 0
      %557 = vmatpush1.bf16.msra.mxu0 0
      %558 = vmatprep.subr.bf16.mxu0 0
      %559 = vmatpush1.bf16.msra.mxu0 0
      %560 = vmatprep.subr.bf16.mxu0 0
      %561 = vmatpush1.bf16.msra.mxu0 0
      %562 = vmatprep.subr.bf16.mxu0 0
      %563 = vmatpush1.bf16.msra.mxu0 0
      %564 = vmatprep.subr.bf16.mxu0 0
      %565 = vmatpush1.bf16.msra.mxu0 0
      %566 = vmatprep.subr.bf16.mxu0 0
      %567 = vmatpush1.bf16.msra.mxu0 0
      %568 = vmatprep.subr.bf16.mxu0 0
      %569 = vmatpush1.bf16.msra.mxu0 0
      %570 = vmatprep.subr.bf16.mxu0 0
      %571 = vmatpush1.bf16.msra.mxu0 0
      %572 = vmatprep.subr.bf16.mxu0 0
      %573 = vmatpush1.bf16.msra.mxu0 0
      %574 = vmatprep.subr.bf16.mxu0 0
      %575 = vmatpush1.bf16.msra.mxu0 0
      %576 = vmatprep.subr.bf16.mxu0 0
      %577 = vmatpush1.bf16.msra.mxu0 0
      %578 = vmatprep.mubr.bf16.mxu0 0
      %579 = vmatmul.mubr.bf16.gmra.mrb[0].mxu0 %v541
      %v580 = vpop.f32.mrb[0].mxu0
      %v581 = vadd.f32 %v535, %v580
      %v582 = vpop.f32.mrb[0].mxu0
      %v583 = vpop.f32.mrb[0].mxu0
      %v584 = vpop.f32.mrb[0].mxu0
      %585 = vdwg.mxu0
      %586 = vrot.lane.b32.xlu0 %v453, 71
      %v587 = vpop.permute.xlu0 %586
      %588 = vrot.lane.b32.xlu0 %v453, 7
      %v589 = vpop.permute.xlu0 %588
      %vm590 = vcmask 56320
      %v593 = vsel %vm590, %v587, %v589
      %v595 = vld [vmem:[%s3] sm:$0x2]
      %v597 = vpack.i.b16 %v595, %v595
      %v599 = vlaneseq
      %v600 = vshrl.u32 %v599, 7
      %v601 = vsub.s32 1, %v600
      %v602 = vrot.slane %v597, %v601
      %v603 = vmul.bf16 %v593, %v602
      %s604 = scalar_lea.vmem %s0, 4
      %v605 = vld [vmem:[%s604] sm:$0x3]
      %v607 = vsel %vm492, %v605, 0
      %v610 = vsel %vm496, %v603, 0
      %612 = vmatprep.subr.bf16.mxu0 0
      %613 = vmatpush1.bf16.msra.mxu0 %v610
      %614 = vmatprep.subr.bf16.mxu0 0
      %615 = vmatpush1.bf16.msra.mxu0 0
      %616 = vmatprep.subr.bf16.mxu0 0
      %617 = vmatpush1.bf16.msra.mxu0 0
      %618 = vmatprep.subr.bf16.mxu0 0
      %619 = vmatpush1.bf16.msra.mxu0 0
      %620 = vmatprep.subr.bf16.mxu0 0
      %621 = vmatpush1.bf16.msra.mxu0 0
      %622 = vmatprep.subr.bf16.mxu0 0
      %623 = vmatpush1.bf16.msra.mxu0 0
      %624 = vmatprep.subr.bf16.mxu0 0
      %625 = vmatpush1.bf16.msra.mxu0 0
      %626 = vmatprep.subr.bf16.mxu0 0
      %627 = vmatpush1.bf16.msra.mxu0 0
      %628 = vmatprep.subr.bf16.mxu0 0
      %629 = vmatpush1.bf16.msra.mxu0 0
      %630 = vmatprep.subr.bf16.mxu0 0
      %631 = vmatpush1.bf16.msra.mxu0 0
      %632 = vmatprep.subr.bf16.mxu0 0
      %633 = vmatpush1.bf16.msra.mxu0 0
      %634 = vmatprep.subr.bf16.mxu0 0
      %635 = vmatpush1.bf16.msra.mxu0 0
      %636 = vmatprep.subr.bf16.mxu0 0
      %637 = vmatpush1.bf16.msra.mxu0 0
      %638 = vmatprep.subr.bf16.mxu0 0
      %639 = vmatpush1.bf16.msra.mxu0 0
      %640 = vmatprep.subr.bf16.mxu0 0
      %641 = vmatpush1.bf16.msra.mxu0 0
      %642 = vmatprep.subr.bf16.mxu0 0
      %643 = vmatpush1.bf16.msra.mxu0 0
      %644 = vmatprep.mubr.bf16.mxu0 0
      %645 = vmatmul.mubr.bf16.gmra.mrb[0].mxu0 %v607
      %v646 = vpop.f32.mrb[0].mxu0
      %v647 = vadd.f32 0.0, %v646
      %v648 = vpop.f32.mrb[0].mxu0
      %v649 = vpop.f32.mrb[0].mxu0
      %v650 = vpop.f32.mrb[0].mxu0
      %651 = vdwg.mxu0
      %v652 = vadd.f32 %v581, %v647
      %653 = vrot.lane.b32.xlu0 %v453, 65
      %v654 = vpop.permute.xlu0 %653
      %655 = vrot.lane.b32.xlu0 %v453, 1
      %v656 = vpop.permute.xlu0 %655
      %vm657 = vcmask 7168
      %v660 = vsel %vm657, %v654, %v656
      %v662 = vld [vmem:[%s3] sm:$0x2]
      %v664 = vshrl.u32 %v662, 16
      %v665 = vpack.i.b16 %v664, %v664
      %v667 = vlaneseq
      %v668 = vshrl.u32 %v667, 7
      %v669 = vsub.s32 1, %v668
      %v670 = vrot.slane %v665, %v669
      %v671 = vmul.bf16 %v660, %v670
      %s672 = scalar_lea.vmem %s0, 6
      %v673 = vld [vmem:[%s672] sm:$0x3]
      %v675 = vsel %vm492, %v673, 0
      %v678 = vsel %vm496, %v671, 0
      %680 = vmatprep.subr.bf16.mxu0 0
      %681 = vmatpush1.bf16.msra.mxu0 %v678
      %682 = vmatprep.subr.bf16.mxu0 0
      %683 = vmatpush1.bf16.msra.mxu0 0
      %684 = vmatprep.subr.bf16.mxu0 0
      %685 = vmatpush1.bf16.msra.mxu0 0
      %686 = vmatprep.subr.bf16.mxu0 0
      %687 = vmatpush1.bf16.msra.mxu0 0
      %688 = vmatprep.subr.bf16.mxu0 0
      %689 = vmatpush1.bf16.msra.mxu0 0
      %690 = vmatprep.subr.bf16.mxu0 0
      %691 = vmatpush1.bf16.msra.mxu0 0
      %692 = vmatprep.subr.bf16.mxu0 0
      %693 = vmatpush1.bf16.msra.mxu0 0
      %694 = vmatprep.subr.bf16.mxu0 0
      %695 = vmatpush1.bf16.msra.mxu0 0
      %696 = vmatprep.subr.bf16.mxu0 0
      %697 = vmatpush1.bf16.msra.mxu0 0
      %698 = vmatprep.subr.bf16.mxu0 0
      %699 = vmatpush1.bf16.msra.mxu0 0
      %700 = vmatprep.subr.bf16.mxu0 0
      %701 = vmatpush1.bf16.msra.mxu0 0
      %702 = vmatprep.subr.bf16.mxu0 0
      %703 = vmatpush1.bf16.msra.mxu0 0
      %704 = vmatprep.subr.bf16.mxu0 0
      %705 = vmatpush1.bf16.msra.mxu0 0
      %706 = vmatprep.subr.bf16.mxu0 0
      %707 = vmatpush1.bf16.msra.mxu0 0
      %708 = vmatprep.subr.bf16.mxu0 0
      %709 = vmatpush1.bf16.msra.mxu0 0
      %710 = vmatprep.subr.bf16.mxu0 0
      %711 = vmatpush1.bf16.msra.mxu0 0
      %712 = vmatprep.mubr.bf16.mxu0 0
      %713 = vmatmul.mubr.bf16.gmra.mrb[0].mxu0 %v675
      %v714 = vpop.f32.mrb[0].mxu0
      %v715 = vadd.f32 0.0, %v714
      %v716 = vpop.f32.mrb[0].mxu0
      %v717 = vpop.f32.mrb[0].mxu0
      %v718 = vpop.f32.mrb[0].mxu0
      %719 = vdwg.mxu0
      %v720 = vadd.f32 %v652, %v715
      %s721 = scalar_lea.vmem %s0, 8
      %v722 = vld [vmem:[%s721] sm:$0x3]
      %v724 = vsel %vm492, %v722, 0
      %v727 = vsel %vm496, %v445, 0
      %729 = vmatprep.subr.bf16.mxu0 0
      %730 = vmatpush1.bf16.msra.mxu0 %v727
      %731 = vmatprep.subr.bf16.mxu0 0
      %732 = vmatpush1.bf16.msra.mxu0 0
      %733 = vmatprep.subr.bf16.mxu0 0
      %734 = vmatpush1.bf16.msra.mxu0 0
      %735 = vmatprep.subr.bf16.mxu0 0
      %736 = vmatpush1.bf16.msra.mxu0 0
      %737 = vmatprep.subr.bf16.mxu0 0
      %738 = vmatpush1.bf16.msra.mxu0 0
      %739 = vmatprep.subr.bf16.mxu0 0
      %740 = vmatpush1.bf16.msra.mxu0 0
      %741 = vmatprep.subr.bf16.mxu0 0
      %742 = vmatpush1.bf16.msra.mxu0 0
      %743 = vmatprep.subr.bf16.mxu0 0
      %744 = vmatpush1.bf16.msra.mxu0 0
      %745 = vmatprep.subr.bf16.mxu0 0
      %746 = vmatpush1.bf16.msra.mxu0 0
      %747 = vmatprep.subr.bf16.mxu0 0
      %748 = vmatpush1.bf16.msra.mxu0 0
      %749 = vmatprep.subr.bf16.mxu0 0
      %750 = vmatpush1.bf16.msra.mxu0 0
      %751 = vmatprep.subr.bf16.mxu0 0
      %752 = vmatpush1.bf16.msra.mxu0 0
      %753 = vmatprep.subr.bf16.mxu0 0
      %754 = vmatpush1.bf16.msra.mxu0 0
      %755 = vmatprep.subr.bf16.mxu0 0
      %756 = vmatpush1.bf16.msra.mxu0 0
      %757 = vmatprep.subr.bf16.mxu0 0
      %758 = vmatpush1.bf16.msra.mxu0 0
      %759 = vmatprep.subr.bf16.mxu0 0
      %760 = vmatpush1.bf16.msra.mxu0 0
      %761 = vmatprep.mubr.bf16.mxu0 0
      %762 = vmatmul.mubr.bf16.gmra.mrb[0].mxu0 %v724
      %v763 = vpop.f32.mrb[0].mxu0
      %v764 = vadd.f32 0.0, %v763
      %v765 = vpop.f32.mrb[0].mxu0
      %v766 = vpop.f32.mrb[0].mxu0
      %v767 = vpop.f32.mrb[0].mxu0
      %768 = vdwg.mxu0
      %v769 = vadd.f32 %v720, %v764
      %770 = vrot.lane.b32.xlu0 %v453, 127
      %v771 = vpop.permute.xlu0 %770
      %772 = vrot.lane.b32.xlu0 %v453, 63
      %v773 = vpop.permute.xlu0 %772
      %vm774 = vcmask 515072
      %v777 = vsel %vm774, %v771, %v773
      %v779 = vld [vmem:[%s3] sm:$0x4]
      %v781 = vshrl.u32 %v779, 16
      %v782 = vpack.i.b16 %v781, %v781
      %v784 = vlaneseq
      %v785 = vshrl.u32 %v784, 7
      %v786 = vsub.s32 2, %v785
      %v787 = vrot.slane %v782, %v786
      %v788 = vmul.bf16 %v777, %v787
      %s789 = scalar_lea.vmem %s0, 10
      %v790 = vld [vmem:[%s789] sm:$0x3]
      %v792 = vsel %vm492, %v790, 0
      %v795 = vsel %vm496, %v788, 0
      %797 = vmatprep.subr.bf16.mxu0 0
      %798 = vmatpush1.bf16.msra.mxu0 %v795
      %799 = vmatprep.subr.bf16.mxu0 0
      %800 = vmatpush1.bf16.msra.mxu0 0
      %801 = vmatprep.subr.bf16.mxu0 0
      %802 = vmatpush1.bf16.msra.mxu0 0
      %803 = vmatprep.subr.bf16.mxu0 0
      %804 = vmatpush1.bf16.msra.mxu0 0
      %805 = vmatprep.subr.bf16.mxu0 0
      %806 = vmatpush1.bf16.msra.mxu0 0
      %807 = vmatprep.subr.bf16.mxu0 0
      %808 = vmatpush1.bf16.msra.mxu0 0
      %809 = vmatprep.subr.bf16.mxu0 0
      %810 = vmatpush1.bf16.msra.mxu0 0
      %811 = vmatprep.subr.bf16.mxu0 0
      %812 = vmatpush1.bf16.msra.mxu0 0
      %813 = vmatprep.subr.bf16.mxu0 0
      %814 = vmatpush1.bf16.msra.mxu0 0
      %815 = vmatprep.subr.bf16.mxu0 0
      %816 = vmatpush1.bf16.msra.mxu0 0
      %817 = vmatprep.subr.bf16.mxu0 0
      %818 = vmatpush1.bf16.msra.mxu0 0
      %819 = vmatprep.subr.bf16.mxu0 0
      %820 = vmatpush1.bf16.msra.mxu0 0
      %821 = vmatprep.subr.bf16.mxu0 0
      %822 = vmatpush1.bf16.msra.mxu0 0
      %823 = vmatprep.subr.bf16.mxu0 0
      %824 = vmatpush1.bf16.msra.mxu0 0
      %825 = vmatprep.subr.bf16.mxu0 0
      %826 = vmatpush1.bf16.msra.mxu0 0
      %827 = vmatprep.subr.bf16.mxu0 0
      %828 = vmatpush1.bf16.msra.mxu0 0
      %829 = vmatprep.mubr.bf16.mxu0 0
      %830 = vmatmul.mubr.bf16.gmra.mrb[0].mxu0 %v792
      %v831 = vpop.f32.mrb[0].mxu0
      %v832 = vadd.f32 0.0, %v831
      %v833 = vpop.f32.mrb[0].mxu0
      %v834 = vpop.f32.mrb[0].mxu0
      %v835 = vpop.f32.mrb[0].mxu0
      %836 = vdwg.mxu0
      %v837 = vadd.f32 %v769, %v832
      %838 = vrot.lane.b32.xlu0 %v453, 121
      %v839 = vpop.permute.xlu0 %838
      %840 = vrot.lane.b32.xlu0 %v453, 57
      %v841 = vpop.permute.xlu0 %840
      %vm842 = vcmask 465920
      %v845 = vsel %vm842, %v839, %v841
      %v847 = vld [vmem:[%s3] sm:$0x8]
      %v849 = vpack.i.b16 %v847, %v847
      %v851 = vlaneseq
      %v852 = vshrl.u32 %v851, 7
      %v853 = vsub.s32 3, %v852
      %v854 = vrot.slane %v849, %v853
      %v855 = vmul.bf16 %v845, %v854
      %s856 = scalar_lea.vmem %s0, 12
      %v857 = vld [vmem:[%s856] sm:$0x3]
      %v859 = vsel %vm492, %v857, 0
      %v862 = vsel %vm496, %v855, 0
      %864 = vmatprep.subr.bf16.mxu0 0
      %865 = vmatpush1.bf16.msra.mxu0 %v862
      %866 = vmatprep.subr.bf16.mxu0 0
      %867 = vmatpush1.bf16.msra.mxu0 0
      %868 = vmatprep.subr.bf16.mxu0 0
      %869 = vmatpush1.bf16.msra.mxu0 0
      %870 = vmatprep.subr.bf16.mxu0 0
      %871 = vmatpush1.bf16.msra.mxu0 0
      %872 = vmatprep.subr.bf16.mxu0 0
      %873 = vmatpush1.bf16.msra.mxu0 0
      %874 = vmatprep.subr.bf16.mxu0 0
      %875 = vmatpush1.bf16.msra.mxu0 0
      %876 = vmatprep.subr.bf16.mxu0 0
      %877 = vmatpush1.bf16.msra.mxu0 0
      %878 = vmatprep.subr.bf16.mxu0 0
      %879 = vmatpush1.bf16.msra.mxu0 0
      %880 = vmatprep.subr.bf16.mxu0 0
      %881 = vmatpush1.bf16.msra.mxu0 0
      %882 = vmatprep.subr.bf16.mxu0 0
      %883 = vmatpush1.bf16.msra.mxu0 0
      %884 = vmatprep.subr.bf16.mxu0 0
      %885 = vmatpush1.bf16.msra.mxu0 0
      %886 = vmatprep.subr.bf16.mxu0 0
      %887 = vmatpush1.bf16.msra.mxu0 0
      %888 = vmatprep.subr.bf16.mxu0 0
      %889 = vmatpush1.bf16.msra.mxu0 0
      %890 = vmatprep.subr.bf16.mxu0 0
      %891 = vmatpush1.bf16.msra.mxu0 0
      %892 = vmatprep.subr.bf16.mxu0 0
      %893 = vmatpush1.bf16.msra.mxu0 0
      %894 = vmatprep.subr.bf16.mxu0 0
      %895 = vmatpush1.bf16.msra.mxu0 0
      %896 = vmatprep.mubr.bf16.mxu0 0
      %897 = vmatmul.mubr.bf16.gmra.mrb[0].mxu0 %v859
      %v898 = vpop.f32.mrb[0].mxu0
      %v899 = vadd.f32 0.0, %v898
      %v900 = vpop.f32.mrb[0].mxu0
      %v901 = vpop.f32.mrb[0].mxu0
      %v902 = vpop.f32.mrb[0].mxu0
      %903 = vdwg.mxu0
      %v904 = vadd.f32 %v837, %v899
      %905 = vrot.lane.b32.xlu0 %v453, 120
      %v906 = vpop.permute.xlu0 %905
      %907 = vrot.lane.b32.xlu0 %v453, 56
      %v908 = vpop.permute.xlu0 %907
      %vm909 = vcmask 457728
      %v912 = vsel %vm909, %v906, %v908
      %v914 = vld [vmem:[%s3] sm:$0x8]
      %v916 = vshrl.u32 %v914, 16
      %v917 = vpack.i.b16 %v916, %v916
      %v919 = vlaneseq
      %v920 = vshrl.u32 %v919, 7
      %v921 = vsub.s32 3, %v920
      %v922 = vrot.slane %v917, %v921
      %v923 = vmul.bf16 %v912, %v922
      %s924 = scalar_lea.vmem %s0, 14
      %v925 = vld [vmem:[%s924] sm:$0x3]
      %v927 = vsel %vm492, %v925, 0
      %v930 = vsel %vm496, %v923, 0
      %932 = vmatprep.subr.bf16.mxu0 0
      %933 = vmatpush1.bf16.msra.mxu0 %v930
      %934 = vmatprep.subr.bf16.mxu0 0
      %935 = vmatpush1.bf16.msra.mxu0 0
      %936 = vmatprep.subr.bf16.mxu0 0
      %937 = vmatpush1.bf16.msra.mxu0 0
      %938 = vmatprep.subr.bf16.mxu0 0
      %939 = vmatpush1.bf16.msra.mxu0 0
      %940 = vmatprep.subr.bf16.mxu0 0
      %941 = vmatpush1.bf16.msra.mxu0 0
      %942 = vmatprep.subr.bf16.mxu0 0
      %943 = vmatpush1.bf16.msra.mxu0 0
      %944 = vmatprep.subr.bf16.mxu0 0
      %945 = vmatpush1.bf16.msra.mxu0 0
      %946 = vmatprep.subr.bf16.mxu0 0
      %947 = vmatpush1.bf16.msra.mxu0 0
      %948 = vmatprep.subr.bf16.mxu0 0
      %949 = vmatpush1.bf16.msra.mxu0 0
      %950 = vmatprep.subr.bf16.mxu0 0
      %951 = vmatpush1.bf16.msra.mxu0 0
      %952 = vmatprep.subr.bf16.mxu0 0
      %953 = vmatpush1.bf16.msra.mxu0 0
      %954 = vmatprep.subr.bf16.mxu0 0
      %955 = vmatpush1.bf16.msra.mxu0 0
      %956 = vmatprep.subr.bf16.mxu0 0
      %957 = vmatpush1.bf16.msra.mxu0 0
      %958 = vmatprep.subr.bf16.mxu0 0
      %959 = vmatpush1.bf16.msra.mxu0 0
      %960 = vmatprep.subr.bf16.mxu0 0
      %961 = vmatpush1.bf16.msra.mxu0 0
      %962 = vmatprep.subr.bf16.mxu0 0
      %963 = vmatpush1.bf16.msra.mxu0 0
      %964 = vmatprep.mubr.bf16.mxu0 0
      %965 = vmatmul.mubr.bf16.gmra.mrb[0].mxu0 %v927
      %v966 = vpop.f32.mrb[0].mxu0
      %v967 = vadd.f32 0.0, %v966
      %v968 = vpop.f32.mrb[0].mxu0
      %v969 = vpop.f32.mrb[0].mxu0
      %v970 = vpop.f32.mrb[0].mxu0
      %971 = vdwg.mxu0
      %v972 = vadd.f32 %v904, %v967
      %973 = vrot.lane.b32.xlu0 %v453, 119
      %v974 = vpop.permute.xlu0 %973
      %975 = vrot.lane.b32.xlu0 %v453, 55
      %v976 = vpop.permute.xlu0 %975
      %vm977 = vcmask 449536
      %v980 = vsel %vm977, %v974, %v976
      %v982 = vld [vmem:[%s3 + $0x4] sm:$0x1]
      %v984 = vpack.i.b16 %v982, %v982
      %v986 = vlaneseq
      %v987 = vshrl.u32 %v986, 7
      %v988 = vsub.s32 0, %v987
      %v989 = vrot.slane %v984, %v988
      %v990 = vmul.bf16 %v980, %v989
      %s991 = scalar_lea.vmem %s0, 16
      %v992 = vld [vmem:[%s991] sm:$0x3]
      %v994 = vsel %vm492, %v992, 0
      %v997 = vsel %vm496, %v990, 0
      %999 = vmatprep.subr.bf16.mxu0 0
      %1000 = vmatpush1.bf16.msra.mxu0 %v997
      %1001 = vmatprep.subr.bf16.mxu0 0
      %1002 = vmatpush1.bf16.msra.mxu0 0
      %1003 = vmatprep.subr.bf16.mxu0 0
      %1004 = vmatpush1.bf16.msra.mxu0 0
      %1005 = vmatprep.subr.bf16.mxu0 0
      %1006 = vmatpush1.bf16.msra.mxu0 0
      %1007 = vmatprep.subr.bf16.mxu0 0
      %1008 = vmatpush1.bf16.msra.mxu0 0
      %1009 = vmatprep.subr.bf16.mxu0 0
      %1010 = vmatpush1.bf16.msra.mxu0 0
      %1011 = vmatprep.subr.bf16.mxu0 0
      %1012 = vmatpush1.bf16.msra.mxu0 0
      %1013 = vmatprep.subr.bf16.mxu0 0
      %1014 = vmatpush1.bf16.msra.mxu0 0
      %1015 = vmatprep.subr.bf16.mxu0 0
      %1016 = vmatpush1.bf16.msra.mxu0 0
      %1017 = vmatprep.subr.bf16.mxu0 0
      %1018 = vmatpush1.bf16.msra.mxu0 0
      %1019 = vmatprep.subr.bf16.mxu0 0
      %1020 = vmatpush1.bf16.msra.mxu0 0
      %1021 = vmatprep.subr.bf16.mxu0 0
      %1022 = vmatpush1.bf16.msra.mxu0 0
      %1023 = vmatprep.subr.bf16.mxu0 0
      %1024 = vmatpush1.bf16.msra.mxu0 0
      %1025 = vmatprep.subr.bf16.mxu0 0
      %1026 = vmatpush1.bf16.msra.mxu0 0
      %1027 = vmatprep.subr.bf16.mxu0 0
      %1028 = vmatpush1.bf16.msra.mxu0 0
      %1029 = vmatprep.subr.bf16.mxu0 0
      %1030 = vmatpush1.bf16.msra.mxu0 0
      %1031 = vmatprep.mubr.bf16.mxu0 0
      %1032 = vmatmul.mubr.bf16.gmra.mrb[0].mxu0 %v994
      %v1033 = vpop.f32.mrb[0].mxu0
      %v1034 = vadd.f32 0.0, %v1033
      %v1035 = vpop.f32.mrb[0].mxu0
      %v1036 = vpop.f32.mrb[0].mxu0
      %v1037 = vpop.f32.mrb[0].mxu0
      %1038 = vdwg.mxu0
      %v1039 = vadd.f32 %v972, %v1034
      %v1040 = vld [vmem:[%s416] sm:$0x3]
      %v1043 = vunpack.c.l.s4 1983009808
      %v1044 = vunpack.c.0.s8 %v1043
      %v1045 = vlaneseq
      %v1046 = vshrl.u32 %v1045, 7
      %v1047 = vsub.s32 %v1044, %v1046
      %v1048 = vrot.slane %v1040, %v1047
      %1049 = vrot.lane.b32.xlu0 %v1048, 73
      %v1050 = vpop.permute.xlu0 %1049
      %1051 = vrot.lane.b32.xlu0 %v1048, 9
      %v1052 = vpop.permute.xlu0 %1051
      %v1055 = vsel %vm458, %v1050, %v1052
      %v1057 = vmul.bf16 %v1055, %v470
      %s1058 = scalar_lea.vmem %s0, 18
      %v1059 = vld [vmem:[%s1058] sm:$0x3]
      %v1061 = vsel %vm492, %v1059, 0
      %v1064 = vsel %vm496, %v1057, 0
      %1066 = vmatprep.subr.bf16.mxu0 0
      %1067 = vmatpush1.bf16.msra.mxu0 %v1064
      %1068 = vmatprep.subr.bf16.mxu0 0
      %1069 = vmatpush1.bf16.msra.mxu0 0
      %1070 = vmatprep.subr.bf16.mxu0 0
      %1071 = vmatpush1.bf16.msra.mxu0 0
      %1072 = vmatprep.subr.bf16.mxu0 0
      %1073 = vmatpush1.bf16.msra.mxu0 0
      %1074 = vmatprep.subr.bf16.mxu0 0
      %1075 = vmatpush1.bf16.msra.mxu0 0
      %1076 = vmatprep.subr.bf16.mxu0 0
      %1077 = vmatpush1.bf16.msra.mxu0 0
      %1078 = vmatprep.subr.bf16.mxu0 0
      %1079 = vmatpush1.bf16.msra.mxu0 0
      %1080 = vmatprep.subr.bf16.mxu0 0
      %1081 = vmatpush1.bf16.msra.mxu0 0
      %1082 = vmatprep.subr.bf16.mxu0 0
      %1083 = vmatpush1.bf16.msra.mxu0 0
      %1084 = vmatprep.subr.bf16.mxu0 0
      %1085 = vmatpush1.bf16.msra.mxu0 0
      %1086 = vmatprep.subr.bf16.mxu0 0
      %1087 = vmatpush1.bf16.msra.mxu0 0
      %1088 = vmatprep.subr.bf16.mxu0 0
      %1089 = vmatpush1.bf16.msra.mxu0 0
      %1090 = vmatprep.subr.bf16.mxu0 0
      %1091 = vmatpush1.bf16.msra.mxu0 0
      %1092 = vmatprep.subr.bf16.mxu0 0
      %1093 = vmatpush1.bf16.msra.mxu0 0
      %1094 = vmatprep.subr.bf16.mxu0 0
      %1095 = vmatpush1.bf16.msra.mxu0 0
      %1096 = vmatprep.subr.bf16.mxu0 0
      %1097 = vmatpush1.bf16.msra.mxu0 0
      %1098 = vmatprep.mubr.bf16.mxu0 0
      %1099 = vmatmul.mubr.bf16.gmra.mrb[0].mxu0 %v1061
      %v1100 = vpop.f32.mrb[0].mxu0
      %v1101 = vadd.f32 0.0, %v1100
      %v1102 = vpop.f32.mrb[0].mxu0
      %v1103 = vpop.f32.mrb[0].mxu0
      %v1104 = vpop.f32.mrb[0].mxu0
      %1105 = vdwg.mxu0
      %v1106 = vadd.f32 %v1039, %v1101
      %1107 = vrot.lane.b32.xlu0 %v1048, 72
      %v1108 = vpop.permute.xlu0 %1107
      %1109 = vrot.lane.b32.xlu0 %v1048, 8
      %v1110 = vpop.permute.xlu0 %1109
      %v1113 = vsel %vm477, %v1108, %v1110
      %v1115 = vmul.bf16 %v1113, %v488
      %s1116 = scalar_lea.vmem %s0, 20
      %v1117 = vld [vmem:[%s1116] sm:$0x3]
      %v1119 = vsel %vm492, %v1117, 0
      %v1122 = vsel %vm496, %v1115, 0
      %1124 = vmatprep.subr.bf16.mxu0 0
      %1125 = vmatpush1.bf16.msra.mxu0 %v1122
      %1126 = vmatprep.subr.bf16.mxu0 0
      %1127 = vmatpush1.bf16.msra.mxu0 0
      %1128 = vmatprep.subr.bf16.mxu0 0
      %1129 = vmatpush1.bf16.msra.mxu0 0
      %1130 = vmatprep.subr.bf16.mxu0 0
      %1131 = vmatpush1.bf16.msra.mxu0 0
      %1132 = vmatprep.subr.bf16.mxu0 0
      %1133 = vmatpush1.bf16.msra.mxu0 0
      %1134 = vmatprep.subr.bf16.mxu0 0
      %1135 = vmatpush1.bf16.msra.mxu0 0
      %1136 = vmatprep.subr.bf16.mxu0 0
      %1137 = vmatpush1.bf16.msra.mxu0 0
      %1138 = vmatprep.subr.bf16.mxu0 0
      %1139 = vmatpush1.bf16.msra.mxu0 0
      %1140 = vmatprep.subr.bf16.mxu0 0
      %1141 = vmatpush1.bf16.msra.mxu0 0
      %1142 = vmatprep.subr.bf16.mxu0 0
      %1143 = vmatpush1.bf16.msra.mxu0 0
      %1144 = vmatprep.subr.bf16.mxu0 0
      %1145 = vmatpush1.bf16.msra.mxu0 0
      %1146 = vmatprep.subr.bf16.mxu0 0
      %1147 = vmatpush1.bf16.msra.mxu0 0
      %1148 = vmatprep.subr.bf16.mxu0 0
      %1149 = vmatpush1.bf16.msra.mxu0 0
      %1150 = vmatprep.subr.bf16.mxu0 0
      %1151 = vmatpush1.bf16.msra.mxu0 0
      %1152 = vmatprep.subr.bf16.mxu0 0
      %1153 = vmatpush1.bf16.msra.mxu0 0
      %1154 = vmatprep.subr.bf16.mxu0 0
      %1155 = vmatpush1.bf16.msra.mxu0 0
      %1156 = vmatprep.mubr.bf16.mxu0 0
      %1157 = vmatmul.mubr.bf16.gmra.mrb[0].mxu0 %v1119
      %v1158 = vpop.f32.mrb[0].mxu0
      %v1159 = vadd.f32 0.0, %v1158
      %v1160 = vpop.f32.mrb[0].mxu0
      %v1161 = vpop.f32.mrb[0].mxu0
      %v1162 = vpop.f32.mrb[0].mxu0
      %1163 = vdwg.mxu0
      %v1164 = vadd.f32 %v1106, %v1159
      %1165 = vrot.lane.b32.xlu0 %v1048, 71
      %v1166 = vpop.permute.xlu0 %1165
      %1167 = vrot.lane.b32.xlu0 %v1048, 7
      %v1168 = vpop.permute.xlu0 %1167
      %v1171 = vsel %vm590, %v1166, %v1168
      %v1173 = vmul.bf16 %v1171, %v602
      %s1174 = scalar_lea.vmem %s0, 22
      %v1175 = vld [vmem:[%s1174] sm:$0x3]
      %v1177 = vsel %vm492, %v1175, 0
      %v1180 = vsel %vm496, %v1173, 0
      %1182 = vmatprep.subr.bf16.mxu0 0
      %1183 = vmatpush1.bf16.msra.mxu0 %v1180
      %1184 = vmatprep.subr.bf16.mxu0 0
      %1185 = vmatpush1.bf16.msra.mxu0 0
      %1186 = vmatprep.subr.bf16.mxu0 0
      %1187 = vmatpush1.bf16.msra.mxu0 0
      %1188 = vmatprep.subr.bf16.mxu0 0
      %1189 = vmatpush1.bf16.msra.mxu0 0
      %1190 = vmatprep.subr.bf16.mxu0 0
      %1191 = vmatpush1.bf16.msra.mxu0 0
      %1192 = vmatprep.subr.bf16.mxu0 0
      %1193 = vmatpush1.bf16.msra.mxu0 0
      %1194 = vmatprep.subr.bf16.mxu0 0
      %1195 = vmatpush1.bf16.msra.mxu0 0
      %1196 = vmatprep.subr.bf16.mxu0 0
      %1197 = vmatpush1.bf16.msra.mxu0 0
      %1198 = vmatprep.subr.bf16.mxu0 0
      %1199 = vmatpush1.bf16.msra.mxu0 0
      %1200 = vmatprep.subr.bf16.mxu0 0
      %1201 = vmatpush1.bf16.msra.mxu0 0
      %1202 = vmatprep.subr.bf16.mxu0 0
      %1203 = vmatpush1.bf16.msra.mxu0 0
      %1204 = vmatprep.subr.bf16.mxu0 0
      %1205 = vmatpush1.bf16.msra.mxu0 0
      %1206 = vmatprep.subr.bf16.mxu0 0
      %1207 = vmatpush1.bf16.msra.mxu0 0
      %1208 = vmatprep.subr.bf16.mxu0 0
      %1209 = vmatpush1.bf16.msra.mxu0 0
      %1210 = vmatprep.subr.bf16.mxu0 0
      %1211 = vmatpush1.bf16.msra.mxu0 0
      %1212 = vmatprep.subr.bf16.mxu0 0
      %1213 = vmatpush1.bf16.msra.mxu0 0
      %1214 = vmatprep.mubr.bf16.mxu0 0
      %1215 = vmatmul.mubr.bf16.gmra.mrb[0].mxu0 %v1177
      %v1216 = vpop.f32.mrb[0].mxu0
      %v1217 = vadd.f32 0.0, %v1216
      %v1218 = vpop.f32.mrb[0].mxu0
      %v1219 = vpop.f32.mrb[0].mxu0
      %v1220 = vpop.f32.mrb[0].mxu0
      %1221 = vdwg.mxu0
      %v1222 = vadd.f32 %v1164, %v1217
      %1223 = vrot.lane.b32.xlu0 %v1048, 65
      %v1224 = vpop.permute.xlu0 %1223
      %1225 = vrot.lane.b32.xlu0 %v1048, 1
      %v1226 = vpop.permute.xlu0 %1225
      %v1229 = vsel %vm657, %v1224, %v1226
      %v1231 = vmul.bf16 %v1229, %v670
      %s1232 = scalar_lea.vmem %s0, 24
      %v1233 = vld [vmem:[%s1232] sm:$0x3]
      %v1235 = vsel %vm492, %v1233, 0
      %v1238 = vsel %vm496, %v1231, 0
      %1240 = vmatprep.subr.bf16.mxu0 0
      %1241 = vmatpush1.bf16.msra.mxu0 %v1238
      %1242 = vmatprep.subr.bf16.mxu0 0
      %1243 = vmatpush1.bf16.msra.mxu0 0
      %1244 = vmatprep.subr.bf16.mxu0 0
      %1245 = vmatpush1.bf16.msra.mxu0 0
      %1246 = vmatprep.subr.bf16.mxu0 0
      %1247 = vmatpush1.bf16.msra.mxu0 0
      %1248 = vmatprep.subr.bf16.mxu0 0
      %1249 = vmatpush1.bf16.msra.mxu0 0
      %1250 = vmatprep.subr.bf16.mxu0 0
      %1251 = vmatpush1.bf16.msra.mxu0 0
      %1252 = vmatprep.subr.bf16.mxu0 0
      %1253 = vmatpush1.bf16.msra.mxu0 0
      %1254 = vmatprep.subr.bf16.mxu0 0
      %1255 = vmatpush1.bf16.msra.mxu0 0
      %1256 = vmatprep.subr.bf16.mxu0 0
      %1257 = vmatpush1.bf16.msra.mxu0 0
      %1258 = vmatprep.subr.bf16.mxu0 0
      %1259 = vmatpush1.bf16.msra.mxu0 0
      %1260 = vmatprep.subr.bf16.mxu0 0
      %1261 = vmatpush1.bf16.msra.mxu0 0
      %1262 = vmatprep.subr.bf16.mxu0 0
      %1263 = vmatpush1.bf16.msra.mxu0 0
      %1264 = vmatprep.subr.bf16.mxu0 0
      %1265 = vmatpush1.bf16.msra.mxu0 0
      %1266 = vmatprep.subr.bf16.mxu0 0
      %1267 = vmatpush1.bf16.msra.mxu0 0
      %1268 = vmatprep.subr.bf16.mxu0 0
      %1269 = vmatpush1.bf16.msra.mxu0 0
      %1270 = vmatprep.subr.bf16.mxu0 0
      %1271 = vmatpush1.bf16.msra.mxu0 0
      %1272 = vmatprep.mubr.bf16.mxu0 0
      %1273 = vmatmul.mubr.bf16.gmra.mrb[0].mxu0 %v1235
      %v1274 = vpop.f32.mrb[0].mxu0
      %v1275 = vadd.f32 0.0, %v1274
      %v1276 = vpop.f32.mrb[0].mxu0
      %v1277 = vpop.f32.mrb[0].mxu0
      %v1278 = vpop.f32.mrb[0].mxu0
      %1279 = vdwg.mxu0
      %v1280 = vadd.f32 %v1222, %v1275
      %s1281 = scalar_lea.vmem %s0, 26
      %v1282 = vld [vmem:[%s1281] sm:$0x3]
      %v1284 = vsel %vm492, %v1282, 0
      %v1287 = vsel %vm496, %v1040, 0
      %1289 = vmatprep.subr.bf16.mxu0 0
      %1290 = vmatpush1.bf16.msra.mxu0 %v1287
      %1291 = vmatprep.subr.bf16.mxu0 0
      %1292 = vmatpush1.bf16.msra.mxu0 0
      %1293 = vmatprep.subr.bf16.mxu0 0
      %1294 = vmatpush1.bf16.msra.mxu0 0
      %1295 = vmatprep.subr.bf16.mxu0 0
      %1296 = vmatpush1.bf16.msra.mxu0 0
      %1297 = vmatprep.subr.bf16.mxu0 0
      %1298 = vmatpush1.bf16.msra.mxu0 0
      %1299 = vmatprep.subr.bf16.mxu0 0
      %1300 = vmatpush1.bf16.msra.mxu0 0
      %1301 = vmatprep.subr.bf16.mxu0 0
      %1302 = vmatpush1.bf16.msra.mxu0 0
      %1303 = vmatprep.subr.bf16.mxu0 0
      %1304 = vmatpush1.bf16.msra.mxu0 0
      %1305 = vmatprep.subr.bf16.mxu0 0
      %1306 = vmatpush1.bf16.msra.mxu0 0
      %1307 = vmatprep.subr.bf16.mxu0 0
      %1308 = vmatpush1.bf16.msra.mxu0 0
      %1309 = vmatprep.subr.bf16.mxu0 0
      %1310 = vmatpush1.bf16.msra.mxu0 0
      %1311 = vmatprep.subr.bf16.mxu0 0
      %1312 = vmatpush1.bf16.msra.mxu0 0
      %1313 = vmatprep.subr.bf16.mxu0 0
      %1314 = vmatpush1.bf16.msra.mxu0 0
      %1315 = vmatprep.subr.bf16.mxu0 0
      %1316 = vmatpush1.bf16.msra.mxu0 0
      %1317 = vmatprep.subr.bf16.mxu0 0
      %1318 = vmatpush1.bf16.msra.mxu0 0
      %1319 = vmatprep.subr.bf16.mxu0 0
      %1320 = vmatpush1.bf16.msra.mxu0 0
      %1321 = vmatprep.mubr.bf16.mxu0 0
      %1322 = vmatmul.mubr.bf16.gmra.mrb[0].mxu0 %v1284
      %v1323 = vpop.f32.mrb[0].mxu0
      %v1324 = vadd.f32 0.0, %v1323
      %v1325 = vpop.f32.mrb[0].mxu0
      %v1326 = vpop.f32.mrb[0].mxu0
      %v1327 = vpop.f32.mrb[0].mxu0
      %1328 = vdwg.mxu0
      %v1329 = vadd.f32 %v1280, %v1324
      %1330 = vrot.lane.b32.xlu0 %v1048, 127
      %v1331 = vpop.permute.xlu0 %1330
      %1332 = vrot.lane.b32.xlu0 %v1048, 63
      %v1333 = vpop.permute.xlu0 %1332
      %v1336 = vsel %vm774, %v1331, %v1333
      %v1338 = vmul.bf16 %v1336, %v787
      %s1339 = scalar_lea.vmem %s0, 28
      %v1340 = vld [vmem:[%s1339] sm:$0x3]
      %v1342 = vsel %vm492, %v1340, 0
      %v1345 = vsel %vm496, %v1338, 0
      %1347 = vmatprep.subr.bf16.mxu0 0
      %1348 = vmatpush1.bf16.msra.mxu0 %v1345
      %1349 = vmatprep.subr.bf16.mxu0 0
      %1350 = vmatpush1.bf16.msra.mxu0 0
      %1351 = vmatprep.subr.bf16.mxu0 0
      %1352 = vmatpush1.bf16.msra.mxu0 0
      %1353 = vmatprep.subr.bf16.mxu0 0
      %1354 = vmatpush1.bf16.msra.mxu0 0
      %1355 = vmatprep.subr.bf16.mxu0 0
      %1356 = vmatpush1.bf16.msra.mxu0 0
      %1357 = vmatprep.subr.bf16.mxu0 0
      %1358 = vmatpush1.bf16.msra.mxu0 0
      %1359 = vmatprep.subr.bf16.mxu0 0
      %1360 = vmatpush1.bf16.msra.mxu0 0
      %1361 = vmatprep.subr.bf16.mxu0 0
      %1362 = vmatpush1.bf16.msra.mxu0 0
      %1363 = vmatprep.subr.bf16.mxu0 0
      %1364 = vmatpush1.bf16.msra.mxu0 0
      %1365 = vmatprep.subr.bf16.mxu0 0
      %1366 = vmatpush1.bf16.msra.mxu0 0
      %1367 = vmatprep.subr.bf16.mxu0 0
      %1368 = vmatpush1.bf16.msra.mxu0 0
      %1369 = vmatprep.subr.bf16.mxu0 0
      %1370 = vmatpush1.bf16.msra.mxu0 0
      %1371 = vmatprep.subr.bf16.mxu0 0
      %1372 = vmatpush1.bf16.msra.mxu0 0
      %1373 = vmatprep.subr.bf16.mxu0 0
      %1374 = vmatpush1.bf16.msra.mxu0 0
      %1375 = vmatprep.subr.bf16.mxu0 0
      %1376 = vmatpush1.bf16.msra.mxu0 0
      %1377 = vmatprep.subr.bf16.mxu0 0
      %1378 = vmatpush1.bf16.msra.mxu0 0
      %1379 = vmatprep.mubr.bf16.mxu0 0
      %1380 = vmatmul.mubr.bf16.gmra.mrb[0].mxu0 %v1342
      %v1381 = vpop.f32.mrb[0].mxu0
      %v1382 = vadd.f32 0.0, %v1381
      %v1383 = vpop.f32.mrb[0].mxu0
      %v1384 = vpop.f32.mrb[0].mxu0
      %v1385 = vpop.f32.mrb[0].mxu0
      %1386 = vdwg.mxu0
      %v1387 = vadd.f32 %v1329, %v1382
      %1388 = vrot.lane.b32.xlu0 %v1048, 121
      %v1389 = vpop.permute.xlu0 %1388
      %1390 = vrot.lane.b32.xlu0 %v1048, 57
      %v1391 = vpop.permute.xlu0 %1390
      %v1394 = vsel %vm842, %v1389, %v1391
      %v1396 = vmul.bf16 %v1394, %v854
      %s1397 = scalar_lea.vmem %s0, 30
      %v1398 = vld [vmem:[%s1397] sm:$0x3]
      %v1400 = vsel %vm492, %v1398, 0
      %v1403 = vsel %vm496, %v1396, 0
      %1405 = vmatprep.subr.bf16.mxu0 0
      %1406 = vmatpush1.bf16.msra.mxu0 %v1403
      %1407 = vmatprep.subr.bf16.mxu0 0
      %1408 = vmatpush1.bf16.msra.mxu0 0
      %1409 = vmatprep.subr.bf16.mxu0 0
      %1410 = vmatpush1.bf16.msra.mxu0 0
      %1411 = vmatprep.subr.bf16.mxu0 0
      %1412 = vmatpush1.bf16.msra.mxu0 0
      %1413 = vmatprep.subr.bf16.mxu0 0
      %1414 = vmatpush1.bf16.msra.mxu0 0
      %1415 = vmatprep.subr.bf16.mxu0 0
      %1416 = vmatpush1.bf16.msra.mxu0 0
      %1417 = vmatprep.subr.bf16.mxu0 0
      %1418 = vmatpush1.bf16.msra.mxu0 0
      %1419 = vmatprep.subr.bf16.mxu0 0
      %1420 = vmatpush1.bf16.msra.mxu0 0
      %1421 = vmatprep.subr.bf16.mxu0 0
      %1422 = vmatpush1.bf16.msra.mxu0 0
      %1423 = vmatprep.subr.bf16.mxu0 0
      %1424 = vmatpush1.bf16.msra.mxu0 0
      %1425 = vmatprep.subr.bf16.mxu0 0
      %1426 = vmatpush1.bf16.msra.mxu0 0
      %1427 = vmatprep.subr.bf16.mxu0 0
      %1428 = vmatpush1.bf16.msra.mxu0 0
      %1429 = vmatprep.subr.bf16.mxu0 0
      %1430 = vmatpush1.bf16.msra.mxu0 0
      %1431 = vmatprep.subr.bf16.mxu0 0
      %1432 = vmatpush1.bf16.msra.mxu0 0
      %1433 = vmatprep.subr.bf16.mxu0 0
      %1434 = vmatpush1.bf16.msra.mxu0 0
      %1435 = vmatprep.subr.bf16.mxu0 0
      %1436 = vmatpush1.bf16.msra.mxu0 0
      %1437 = vmatprep.mubr.bf16.mxu0 0
      %1438 = vmatmul.mubr.bf16.gmra.mrb[0].mxu0 %v1400
      %v1439 = vpop.f32.mrb[0].mxu0
      %v1440 = vadd.f32 0.0, %v1439
      %v1441 = vpop.f32.mrb[0].mxu0
      %v1442 = vpop.f32.mrb[0].mxu0
      %v1443 = vpop.f32.mrb[0].mxu0
      %1444 = vdwg.mxu0
      %v1445 = vadd.f32 %v1387, %v1440
      %1446 = vrot.lane.b32.xlu0 %v1048, 120
      %v1447 = vpop.permute.xlu0 %1446
      %1448 = vrot.lane.b32.xlu0 %v1048, 56
      %v1449 = vpop.permute.xlu0 %1448
      %v1452 = vsel %vm909, %v1447, %v1449
      %v1454 = vmul.bf16 %v1452, %v922
      %s1455 = scalar_lea.vmem %s0, 32
      %v1456 = vld [vmem:[%s1455] sm:$0x3]
      %v1458 = vsel %vm492, %v1456, 0
      %v1461 = vsel %vm496, %v1454, 0
      %1463 = vmatprep.subr.bf16.mxu0 0
      %1464 = vmatpush1.bf16.msra.mxu0 %v1461
      %1465 = vmatprep.subr.bf16.mxu0 0
      %1466 = vmatpush1.bf16.msra.mxu0 0
      %1467 = vmatprep.subr.bf16.mxu0 0
      %1468 = vmatpush1.bf16.msra.mxu0 0
      %1469 = vmatprep.subr.bf16.mxu0 0
      %1470 = vmatpush1.bf16.msra.mxu0 0
      %1471 = vmatprep.subr.bf16.mxu0 0
      %1472 = vmatpush1.bf16.msra.mxu0 0
      %1473 = vmatprep.subr.bf16.mxu0 0
      %1474 = vmatpush1.bf16.msra.mxu0 0
      %1475 = vmatprep.subr.bf16.mxu0 0
      %1476 = vmatpush1.bf16.msra.mxu0 0
      %1477 = vmatprep.subr.bf16.mxu0 0
      %1478 = vmatpush1.bf16.msra.mxu0 0
      %1479 = vmatprep.subr.bf16.mxu0 0
      %1480 = vmatpush1.bf16.msra.mxu0 0
      %1481 = vmatprep.subr.bf16.mxu0 0
      %1482 = vmatpush1.bf16.msra.mxu0 0
      %1483 = vmatprep.subr.bf16.mxu0 0
      %1484 = vmatpush1.bf16.msra.mxu0 0
      %1485 = vmatprep.subr.bf16.mxu0 0
      %1486 = vmatpush1.bf16.msra.mxu0 0
      %1487 = vmatprep.subr.bf16.mxu0 0
      %1488 = vmatpush1.bf16.msra.mxu0 0
      %1489 = vmatprep.subr.bf16.mxu0 0
      %1490 = vmatpush1.bf16.msra.mxu0 0
      %1491 = vmatprep.subr.bf16.mxu0 0
      %1492 = vmatpush1.bf16.msra.mxu0 0
      %1493 = vmatprep.subr.bf16.mxu0 0
      %1494 = vmatpush1.bf16.msra.mxu0 0
      %1495 = vmatprep.mubr.bf16.mxu0 0
      %1496 = vmatmul.mubr.bf16.gmra.mrb[0].mxu0 %v1458
      %v1497 = vpop.f32.mrb[0].mxu0
      %v1498 = vadd.f32 0.0, %v1497
      %v1499 = vpop.f32.mrb[0].mxu0
      %v1500 = vpop.f32.mrb[0].mxu0
      %v1501 = vpop.f32.mrb[0].mxu0
      %1502 = vdwg.mxu0
      %v1503 = vadd.f32 %v1445, %v1498
      %1504 = vrot.lane.b32.xlu0 %v1048, 119
      %v1505 = vpop.permute.xlu0 %1504
      %1506 = vrot.lane.b32.xlu0 %v1048, 55
      %v1507 = vpop.permute.xlu0 %1506
      %v1510 = vsel %vm977, %v1505, %v1507
      %v1512 = vmul.bf16 %v1510, %v989
      %s1513 = scalar_lea.vmem %s0, 34
      %v1514 = vld [vmem:[%s1513] sm:$0x3]
      %v1516 = vsel %vm492, %v1514, 0
      %v1519 = vsel %vm496, %v1512, 0
      %1521 = vmatprep.subr.bf16.mxu0 0
      %1522 = vmatpush1.bf16.msra.mxu0 %v1519
      %1523 = vmatprep.subr.bf16.mxu0 0
      %1524 = vmatpush1.bf16.msra.mxu0 0
      %1525 = vmatprep.subr.bf16.mxu0 0
      %1526 = vmatpush1.bf16.msra.mxu0 0
      %1527 = vmatprep.subr.bf16.mxu0 0
      %1528 = vmatpush1.bf16.msra.mxu0 0
      %1529 = vmatprep.subr.bf16.mxu0 0
      %1530 = vmatpush1.bf16.msra.mxu0 0
      %1531 = vmatprep.subr.bf16.mxu0 0
      %1532 = vmatpush1.bf16.msra.mxu0 0
      %1533 = vmatprep.subr.bf16.mxu0 0
      %1534 = vmatpush1.bf16.msra.mxu0 0
      %1535 = vmatprep.subr.bf16.mxu0 0
      %1536 = vmatpush1.bf16.msra.mxu0 0
      %1537 = vmatprep.subr.bf16.mxu0 0
      %1538 = vmatpush1.bf16.msra.mxu0 0
      %1539 = vmatprep.subr.bf16.mxu0 0
      %1540 = vmatpush1.bf16.msra.mxu0 0
      %1541 = vmatprep.subr.bf16.mxu0 0
      %1542 = vmatpush1.bf16.msra.mxu0 0
      %1543 = vmatprep.subr.bf16.mxu0 0
      %1544 = vmatpush1.bf16.msra.mxu0 0
      %1545 = vmatprep.subr.bf16.mxu0 0
      %1546 = vmatpush1.bf16.msra.mxu0 0
      %1547 = vmatprep.subr.bf16.mxu0 0
      %1548 = vmatpush1.bf16.msra.mxu0 0
      %1549 = vmatprep.subr.bf16.mxu0 0
      %1550 = vmatpush1.bf16.msra.mxu0 0
      %1551 = vmatprep.subr.bf16.mxu0 0
      %1552 = vmatpush1.bf16.msra.mxu0 0
      %1553 = vmatprep.mubr.bf16.mxu0 0
      %1554 = vmatmul.mubr.bf16.gmra.mrb[0].mxu0 %v1516
      %v1555 = vpop.f32.mrb[0].mxu0
      %v1556 = vadd.f32 0.0, %v1555
      %v1557 = vpop.f32.mrb[0].mxu0
      %v1558 = vpop.f32.mrb[0].mxu0
      %v1559 = vpop.f32.mrb[0].mxu0
      %1560 = vdwg.mxu0
      %v1561 = vadd.f32 %v1503, %v1556
      %v1562 = vld [vmem:[%s426] sm:$0x3]
      %v1565 = vunpack.c.l.s4 1983009808
      %v1566 = vunpack.c.0.s8 %v1565
      %v1567 = vlaneseq
      %v1568 = vshrl.u32 %v1567, 7
      %v1569 = vsub.s32 %v1566, %v1568
      %v1570 = vrot.slane %v1562, %v1569
      %1571 = vrot.lane.b32.xlu0 %v1570, 73
      %v1572 = vpop.permute.xlu0 %1571
      %1573 = vrot.lane.b32.xlu0 %v1570, 9
      %v1574 = vpop.permute.xlu0 %1573
      %v1577 = vsel %vm458, %v1572, %v1574
      %v1579 = vmul.bf16 %v1577, %v470
      %s1580 = scalar_lea.vmem %s0, 36
      %v1581 = vld [vmem:[%s1580] sm:$0x3]
      %v1583 = vsel %vm492, %v1581, 0
      %v1586 = vsel %vm496, %v1579, 0
      %1588 = vmatprep.subr.bf16.mxu0 0
      %1589 = vmatpush1.bf16.msra.mxu0 %v1586
      %1590 = vmatprep.subr.bf16.mxu0 0
      %1591 = vmatpush1.bf16.msra.mxu0 0
      %1592 = vmatprep.subr.bf16.mxu0 0
      %1593 = vmatpush1.bf16.msra.mxu0 0
      %1594 = vmatprep.subr.bf16.mxu0 0
      %1595 = vmatpush1.bf16.msra.mxu0 0
      %1596 = vmatprep.subr.bf16.mxu0 0
      %1597 = vmatpush1.bf16.msra.mxu0 0
      %1598 = vmatprep.subr.bf16.mxu0 0
      %1599 = vmatpush1.bf16.msra.mxu0 0
      %1600 = vmatprep.subr.bf16.mxu0 0
      %1601 = vmatpush1.bf16.msra.mxu0 0
      %1602 = vmatprep.subr.bf16.mxu0 0
      %1603 = vmatpush1.bf16.msra.mxu0 0
      %1604 = vmatprep.subr.bf16.mxu0 0
      %1605 = vmatpush1.bf16.msra.mxu0 0
      %1606 = vmatprep.subr.bf16.mxu0 0
      %1607 = vmatpush1.bf16.msra.mxu0 0
      %1608 = vmatprep.subr.bf16.mxu0 0
      %1609 = vmatpush1.bf16.msra.mxu0 0
      %1610 = vmatprep.subr.bf16.mxu0 0
      %1611 = vmatpush1.bf16.msra.mxu0 0
      %1612 = vmatprep.subr.bf16.mxu0 0
      %1613 = vmatpush1.bf16.msra.mxu0 0
      %1614 = vmatprep.subr.bf16.mxu0 0
      %1615 = vmatpush1.bf16.msra.mxu0 0
      %1616 = vmatprep.subr.bf16.mxu0 0
      %1617 = vmatpush1.bf16.msra.mxu0 0
      %1618 = vmatprep.subr.bf16.mxu0 0
      %1619 = vmatpush1.bf16.msra.mxu0 0
      %1620 = vmatprep.mubr.bf16.mxu0 0
      %1621 = vmatmul.mubr.bf16.gmra.mrb[0].mxu0 %v1583
      %v1622 = vpop.f32.mrb[0].mxu0
      %v1623 = vadd.f32 0.0, %v1622
      %v1624 = vpop.f32.mrb[0].mxu0
      %v1625 = vpop.f32.mrb[0].mxu0
      %v1626 = vpop.f32.mrb[0].mxu0
      %1627 = vdwg.mxu0
      %v1628 = vadd.f32 %v1561, %v1623
      %1629 = vrot.lane.b32.xlu0 %v1570, 72
      %v1630 = vpop.permute.xlu0 %1629
      %1631 = vrot.lane.b32.xlu0 %v1570, 8
      %v1632 = vpop.permute.xlu0 %1631
      %v1635 = vsel %vm477, %v1630, %v1632
      %v1637 = vmul.bf16 %v1635, %v488
      %s1638 = scalar_lea.vmem %s0, 38
      %v1639 = vld [vmem:[%s1638] sm:$0x3]
      %v1641 = vsel %vm492, %v1639, 0
      %v1644 = vsel %vm496, %v1637, 0
      %1646 = vmatprep.subr.bf16.mxu0 0
      %1647 = vmatpush1.bf16.msra.mxu0 %v1644
      %1648 = vmatprep.subr.bf16.mxu0 0
      %1649 = vmatpush1.bf16.msra.mxu0 0
      %1650 = vmatprep.subr.bf16.mxu0 0
      %1651 = vmatpush1.bf16.msra.mxu0 0
      %1652 = vmatprep.subr.bf16.mxu0 0
      %1653 = vmatpush1.bf16.msra.mxu0 0
      %1654 = vmatprep.subr.bf16.mxu0 0
      %1655 = vmatpush1.bf16.msra.mxu0 0
      %1656 = vmatprep.subr.bf16.mxu0 0
      %1657 = vmatpush1.bf16.msra.mxu0 0
      %1658 = vmatprep.subr.bf16.mxu0 0
      %1659 = vmatpush1.bf16.msra.mxu0 0
      %1660 = vmatprep.subr.bf16.mxu0 0
      %1661 = vmatpush1.bf16.msra.mxu0 0
      %1662 = vmatprep.subr.bf16.mxu0 0
      %1663 = vmatpush1.bf16.msra.mxu0 0
      %1664 = vmatprep.subr.bf16.mxu0 0
      %1665 = vmatpush1.bf16.msra.mxu0 0
      %1666 = vmatprep.subr.bf16.mxu0 0
      %1667 = vmatpush1.bf16.msra.mxu0 0
      %1668 = vmatprep.subr.bf16.mxu0 0
      %1669 = vmatpush1.bf16.msra.mxu0 0
      %1670 = vmatprep.subr.bf16.mxu0 0
      %1671 = vmatpush1.bf16.msra.mxu0 0
      %1672 = vmatprep.subr.bf16.mxu0 0
      %1673 = vmatpush1.bf16.msra.mxu0 0
      %1674 = vmatprep.subr.bf16.mxu0 0
      %1675 = vmatpush1.bf16.msra.mxu0 0
      %1676 = vmatprep.subr.bf16.mxu0 0
      %1677 = vmatpush1.bf16.msra.mxu0 0
      %1678 = vmatprep.mubr.bf16.mxu0 0
      %1679 = vmatmul.mubr.bf16.gmra.mrb[0].mxu0 %v1641
      %v1680 = vpop.f32.mrb[0].mxu0
      %v1681 = vadd.f32 0.0, %v1680
      %v1682 = vpop.f32.mrb[0].mxu0
      %v1683 = vpop.f32.mrb[0].mxu0
      %v1684 = vpop.f32.mrb[0].mxu0
      %1685 = vdwg.mxu0
      %v1686 = vadd.f32 %v1628, %v1681
      %1687 = vrot.lane.b32.xlu0 %v1570, 71
      %v1688 = vpop.permute.xlu0 %1687
      %1689 = vrot.lane.b32.xlu0 %v1570, 7
      %v1690 = vpop.permute.xlu0 %1689
      %v1693 = vsel %vm590, %v1688, %v1690
      %v1695 = vmul.bf16 %v1693, %v602
      %s1696 = scalar_lea.vmem %s0, 40
      %v1697 = vld [vmem:[%s1696] sm:$0x3]
      %v1699 = vsel %vm492, %v1697, 0
      %v1702 = vsel %vm496, %v1695, 0
      %1704 = vmatprep.subr.bf16.mxu0 0
      %1705 = vmatpush1.bf16.msra.mxu0 %v1702
      %1706 = vmatprep.subr.bf16.mxu0 0
      %1707 = vmatpush1.bf16.msra.mxu0 0
      %1708 = vmatprep.subr.bf16.mxu0 0
      %1709 = vmatpush1.bf16.msra.mxu0 0
      %1710 = vmatprep.subr.bf16.mxu0 0
      %1711 = vmatpush1.bf16.msra.mxu0 0
      %1712 = vmatprep.subr.bf16.mxu0 0
      %1713 = vmatpush1.bf16.msra.mxu0 0
      %1714 = vmatprep.subr.bf16.mxu0 0
      %1715 = vmatpush1.bf16.msra.mxu0 0
      %1716 = vmatprep.subr.bf16.mxu0 0
      %1717 = vmatpush1.bf16.msra.mxu0 0
      %1718 = vmatprep.subr.bf16.mxu0 0
      %1719 = vmatpush1.bf16.msra.mxu0 0
      %1720 = vmatprep.subr.bf16.mxu0 0
      %1721 = vmatpush1.bf16.msra.mxu0 0
      %1722 = vmatprep.subr.bf16.mxu0 0
      %1723 = vmatpush1.bf16.msra.mxu0 0
      %1724 = vmatprep.subr.bf16.mxu0 0
      %1725 = vmatpush1.bf16.msra.mxu0 0
      %1726 = vmatprep.subr.bf16.mxu0 0
      %1727 = vmatpush1.bf16.msra.mxu0 0
      %1728 = vmatprep.subr.bf16.mxu0 0
      %1729 = vmatpush1.bf16.msra.mxu0 0
      %1730 = vmatprep.subr.bf16.mxu0 0
      %1731 = vmatpush1.bf16.msra.mxu0 0
      %1732 = vmatprep.subr.bf16.mxu0 0
      %1733 = vmatpush1.bf16.msra.mxu0 0
      %1734 = vmatprep.subr.bf16.mxu0 0
      %1735 = vmatpush1.bf16.msra.mxu0 0
      %1736 = vmatprep.mubr.bf16.mxu0 0
      %1737 = vmatmul.mubr.bf16.gmra.mrb[0].mxu0 %v1699
      %v1738 = vpop.f32.mrb[0].mxu0
      %v1739 = vadd.f32 0.0, %v1738
      %v1740 = vpop.f32.mrb[0].mxu0
      %v1741 = vpop.f32.mrb[0].mxu0
      %v1742 = vpop.f32.mrb[0].mxu0
      %1743 = vdwg.mxu0
      %v1744 = vadd.f32 %v1686, %v1739
      %1745 = vrot.lane.b32.xlu0 %v1570, 65
      %v1746 = vpop.permute.xlu0 %1745
      %1747 = vrot.lane.b32.xlu0 %v1570, 1
      %v1748 = vpop.permute.xlu0 %1747
      %v1751 = vsel %vm657, %v1746, %v1748
      %v1753 = vmul.bf16 %v1751, %v670
      %s1754 = scalar_lea.vmem %s0, 42
      %v1755 = vld [vmem:[%s1754] sm:$0x3]
      %v1757 = vsel %vm492, %v1755, 0
      %v1760 = vsel %vm496, %v1753, 0
      %1762 = vmatprep.subr.bf16.mxu0 0
      %1763 = vmatpush1.bf16.msra.mxu0 %v1760
      %1764 = vmatprep.subr.bf16.mxu0 0
      %1765 = vmatpush1.bf16.msra.mxu0 0
      %1766 = vmatprep.subr.bf16.mxu0 0
      %1767 = vmatpush1.bf16.msra.mxu0 0
      %1768 = vmatprep.subr.bf16.mxu0 0
      %1769 = vmatpush1.bf16.msra.mxu0 0
      %1770 = vmatprep.subr.bf16.mxu0 0
      %1771 = vmatpush1.bf16.msra.mxu0 0
      %1772 = vmatprep.subr.bf16.mxu0 0
      %1773 = vmatpush1.bf16.msra.mxu0 0
      %1774 = vmatprep.subr.bf16.mxu0 0
      %1775 = vmatpush1.bf16.msra.mxu0 0
      %1776 = vmatprep.subr.bf16.mxu0 0
      %1777 = vmatpush1.bf16.msra.mxu0 0
      %1778 = vmatprep.subr.bf16.mxu0 0
      %1779 = vmatpush1.bf16.msra.mxu0 0
      %1780 = vmatprep.subr.bf16.mxu0 0
      %1781 = vmatpush1.bf16.msra.mxu0 0
      %1782 = vmatprep.subr.bf16.mxu0 0
      %1783 = vmatpush1.bf16.msra.mxu0 0
      %1784 = vmatprep.subr.bf16.mxu0 0
      %1785 = vmatpush1.bf16.msra.mxu0 0
      %1786 = vmatprep.subr.bf16.mxu0 0
      %1787 = vmatpush1.bf16.msra.mxu0 0
      %1788 = vmatprep.subr.bf16.mxu0 0
      %1789 = vmatpush1.bf16.msra.mxu0 0
      %1790 = vmatprep.subr.bf16.mxu0 0
      %1791 = vmatpush1.bf16.msra.mxu0 0
      %1792 = vmatprep.subr.bf16.mxu0 0
      %1793 = vmatpush1.bf16.msra.mxu0 0
      %1794 = vmatprep.mubr.bf16.mxu0 0
      %1795 = vmatmul.mubr.bf16.gmra.mrb[0].mxu0 %v1757
      %v1796 = vpop.f32.mrb[0].mxu0
      %v1797 = vadd.f32 0.0, %v1796
      %v1798 = vpop.f32.mrb[0].mxu0
      %v1799 = vpop.f32.mrb[0].mxu0
      %v1800 = vpop.f32.mrb[0].mxu0
      %1801 = vdwg.mxu0
      %v1802 = vadd.f32 %v1744, %v1797
      %s1803 = scalar_lea.vmem %s0, 44
      %v1804 = vld [vmem:[%s1803] sm:$0x3]
      %v1806 = vsel %vm492, %v1804, 0
      %v1809 = vsel %vm496, %v1562, 0
      %1811 = vmatprep.subr.bf16.mxu0 0
      %1812 = vmatpush1.bf16.msra.mxu0 %v1809
      %1813 = vmatprep.subr.bf16.mxu0 0
      %1814 = vmatpush1.bf16.msra.mxu0 0
      %1815 = vmatprep.subr.bf16.mxu0 0
      %1816 = vmatpush1.bf16.msra.mxu0 0
      %1817 = vmatprep.subr.bf16.mxu0 0
      %1818 = vmatpush1.bf16.msra.mxu0 0
      %1819 = vmatprep.subr.bf16.mxu0 0
      %1820 = vmatpush1.bf16.msra.mxu0 0
      %1821 = vmatprep.subr.bf16.mxu0 0
      %1822 = vmatpush1.bf16.msra.mxu0 0
      %1823 = vmatprep.subr.bf16.mxu0 0
      %1824 = vmatpush1.bf16.msra.mxu0 0
      %1825 = vmatprep.subr.bf16.mxu0 0
      %1826 = vmatpush1.bf16.msra.mxu0 0
      %1827 = vmatprep.subr.bf16.mxu0 0
      %1828 = vmatpush1.bf16.msra.mxu0 0
      %1829 = vmatprep.subr.bf16.mxu0 0
      %1830 = vmatpush1.bf16.msra.mxu0 0
      %1831 = vmatprep.subr.bf16.mxu0 0
      %1832 = vmatpush1.bf16.msra.mxu0 0
      %1833 = vmatprep.subr.bf16.mxu0 0
      %1834 = vmatpush1.bf16.msra.mxu0 0
      %1835 = vmatprep.subr.bf16.mxu0 0
      %1836 = vmatpush1.bf16.msra.mxu0 0
      %1837 = vmatprep.subr.bf16.mxu0 0
      %1838 = vmatpush1.bf16.msra.mxu0 0
      %1839 = vmatprep.subr.bf16.mxu0 0
      %1840 = vmatpush1.bf16.msra.mxu0 0
      %1841 = vmatprep.subr.bf16.mxu0 0
      %1842 = vmatpush1.bf16.msra.mxu0 0
      %1843 = vmatprep.mubr.bf16.mxu0 0
      %1844 = vmatmul.mubr.bf16.gmra.mrb[0].mxu0 %v1806
      %v1845 = vpop.f32.mrb[0].mxu0
      %v1846 = vadd.f32 0.0, %v1845
      %v1847 = vpop.f32.mrb[0].mxu0
      %v1848 = vpop.f32.mrb[0].mxu0
      %v1849 = vpop.f32.mrb[0].mxu0
      %1850 = vdwg.mxu0
      %v1851 = vadd.f32 %v1802, %v1846
      %1852 = vrot.lane.b32.xlu0 %v1570, 127
      %v1853 = vpop.permute.xlu0 %1852
      %1854 = vrot.lane.b32.xlu0 %v1570, 63
      %v1855 = vpop.permute.xlu0 %1854
      %v1858 = vsel %vm774, %v1853, %v1855
      %v1860 = vmul.bf16 %v1858, %v787
      %s1861 = scalar_lea.vmem %s0, 46
      %v1862 = vld [vmem:[%s1861] sm:$0x3]
      %v1864 = vsel %vm492, %v1862, 0
      %v1867 = vsel %vm496, %v1860, 0
      %1869 = vmatprep.subr.bf16.mxu0 0
      %1870 = vmatpush1.bf16.msra.mxu0 %v1867
      %1871 = vmatprep.subr.bf16.mxu0 0
      %1872 = vmatpush1.bf16.msra.mxu0 0
      %1873 = vmatprep.subr.bf16.mxu0 0
      %1874 = vmatpush1.bf16.msra.mxu0 0
      %1875 = vmatprep.subr.bf16.mxu0 0
      %1876 = vmatpush1.bf16.msra.mxu0 0
      %1877 = vmatprep.subr.bf16.mxu0 0
      %1878 = vmatpush1.bf16.msra.mxu0 0
      %1879 = vmatprep.subr.bf16.mxu0 0
      %1880 = vmatpush1.bf16.msra.mxu0 0
      %1881 = vmatprep.subr.bf16.mxu0 0
      %1882 = vmatpush1.bf16.msra.mxu0 0
      %1883 = vmatprep.subr.bf16.mxu0 0
      %1884 = vmatpush1.bf16.msra.mxu0 0
      %1885 = vmatprep.subr.bf16.mxu0 0
      %1886 = vmatpush1.bf16.msra.mxu0 0
      %1887 = vmatprep.subr.bf16.mxu0 0
      %1888 = vmatpush1.bf16.msra.mxu0 0
      %1889 = vmatprep.subr.bf16.mxu0 0
      %1890 = vmatpush1.bf16.msra.mxu0 0
      %1891 = vmatprep.subr.bf16.mxu0 0
      %1892 = vmatpush1.bf16.msra.mxu0 0
      %1893 = vmatprep.subr.bf16.mxu0 0
      %1894 = vmatpush1.bf16.msra.mxu0 0
      %1895 = vmatprep.subr.bf16.mxu0 0
      %1896 = vmatpush1.bf16.msra.mxu0 0
      %1897 = vmatprep.subr.bf16.mxu0 0
      %1898 = vmatpush1.bf16.msra.mxu0 0
      %1899 = vmatprep.subr.bf16.mxu0 0
      %1900 = vmatpush1.bf16.msra.mxu0 0
      %1901 = vmatprep.mubr.bf16.mxu0 0
      %1902 = vmatmul.mubr.bf16.gmra.mrb[0].mxu0 %v1864
      %v1903 = vpop.f32.mrb[0].mxu0
      %v1904 = vadd.f32 0.0, %v1903
      %v1905 = vpop.f32.mrb[0].mxu0
      %v1906 = vpop.f32.mrb[0].mxu0
      %v1907 = vpop.f32.mrb[0].mxu0
      %1908 = vdwg.mxu0
      %v1909 = vadd.f32 %v1851, %v1904
      %1910 = vrot.lane.b32.xlu0 %v1570, 121
      %v1911 = vpop.permute.xlu0 %1910
      %1912 = vrot.lane.b32.xlu0 %v1570, 57
      %v1913 = vpop.permute.xlu0 %1912
      %v1916 = vsel %vm842, %v1911, %v1913
      %v1918 = vmul.bf16 %v1916, %v854
      %s1919 = scalar_lea.vmem %s0, 48
      %v1920 = vld [vmem:[%s1919] sm:$0x3]
      %v1922 = vsel %vm492, %v1920, 0
      %v1925 = vsel %vm496, %v1918, 0
      %1927 = vmatprep.subr.bf16.mxu0 0
      %1928 = vmatpush1.bf16.msra.mxu0 %v1925
      %1929 = vmatprep.subr.bf16.mxu0 0
      %1930 = vmatpush1.bf16.msra.mxu0 0
      %1931 = vmatprep.subr.bf16.mxu0 0
      %1932 = vmatpush1.bf16.msra.mxu0 0
      %1933 = vmatprep.subr.bf16.mxu0 0
      %1934 = vmatpush1.bf16.msra.mxu0 0
      %1935 = vmatprep.subr.bf16.mxu0 0
      %1936 = vmatpush1.bf16.msra.mxu0 0
      %1937 = vmatprep.subr.bf16.mxu0 0
      %1938 = vmatpush1.bf16.msra.mxu0 0
      %1939 = vmatprep.subr.bf16.mxu0 0
      %1940 = vmatpush1.bf16.msra.mxu0 0
      %1941 = vmatprep.subr.bf16.mxu0 0
      %1942 = vmatpush1.bf16.msra.mxu0 0
      %1943 = vmatprep.subr.bf16.mxu0 0
      %1944 = vmatpush1.bf16.msra.mxu0 0
      %1945 = vmatprep.subr.bf16.mxu0 0
      %1946 = vmatpush1.bf16.msra.mxu0 0
      %1947 = vmatprep.subr.bf16.mxu0 0
      %1948 = vmatpush1.bf16.msra.mxu0 0
      %1949 = vmatprep.subr.bf16.mxu0 0
      %1950 = vmatpush1.bf16.msra.mxu0 0
      %1951 = vmatprep.subr.bf16.mxu0 0
      %1952 = vmatpush1.bf16.msra.mxu0 0
      %1953 = vmatprep.subr.bf16.mxu0 0
      %1954 = vmatpush1.bf16.msra.mxu0 0
      %1955 = vmatprep.subr.bf16.mxu0 0
      %1956 = vmatpush1.bf16.msra.mxu0 0
      %1957 = vmatprep.subr.bf16.mxu0 0
      %1958 = vmatpush1.bf16.msra.mxu0 0
      %1959 = vmatprep.mubr.bf16.mxu0 0
      %1960 = vmatmul.mubr.bf16.gmra.mrb[0].mxu0 %v1922
      %v1961 = vpop.f32.mrb[0].mxu0
      %v1962 = vadd.f32 0.0, %v1961
      %v1963 = vpop.f32.mrb[0].mxu0
      %v1964 = vpop.f32.mrb[0].mxu0
      %v1965 = vpop.f32.mrb[0].mxu0
      %1966 = vdwg.mxu0
      %v1967 = vadd.f32 %v1909, %v1962
      %1968 = vrot.lane.b32.xlu0 %v1570, 120
      %v1969 = vpop.permute.xlu0 %1968
      %1970 = vrot.lane.b32.xlu0 %v1570, 56
      %v1971 = vpop.permute.xlu0 %1970
      %v1974 = vsel %vm909, %v1969, %v1971
      %v1976 = vmul.bf16 %v1974, %v922
      %s1977 = scalar_lea.vmem %s0, 50
      %v1978 = vld [vmem:[%s1977] sm:$0x3]
      %v1980 = vsel %vm492, %v1978, 0
      %v1983 = vsel %vm496, %v1976, 0
      %1985 = vmatprep.subr.bf16.mxu0 0
      %1986 = vmatpush1.bf16.msra.mxu0 %v1983
      %1987 = vmatprep.subr.bf16.mxu0 0
      %1988 = vmatpush1.bf16.msra.mxu0 0
      %1989 = vmatprep.subr.bf16.mxu0 0
      %1990 = vmatpush1.bf16.msra.mxu0 0
      %1991 = vmatprep.subr.bf16.mxu0 0
      %1992 = vmatpush1.bf16.msra.mxu0 0
      %1993 = vmatprep.subr.bf16.mxu0 0
      %1994 = vmatpush1.bf16.msra.mxu0 0
      %1995 = vmatprep.subr.bf16.mxu0 0
      %1996 = vmatpush1.bf16.msra.mxu0 0
      %1997 = vmatprep.subr.bf16.mxu0 0
      %1998 = vmatpush1.bf16.msra.mxu0 0
      %1999 = vmatprep.subr.bf16.mxu0 0
      %2000 = vmatpush1.bf16.msra.mxu0 0
      %2001 = vmatprep.subr.bf16.mxu0 0
      %2002 = vmatpush1.bf16.msra.mxu0 0
      %2003 = vmatprep.subr.bf16.mxu0 0
      %2004 = vmatpush1.bf16.msra.mxu0 0
      %2005 = vmatprep.subr.bf16.mxu0 0
      %2006 = vmatpush1.bf16.msra.mxu0 0
      %2007 = vmatprep.subr.bf16.mxu0 0
      %2008 = vmatpush1.bf16.msra.mxu0 0
      %2009 = vmatprep.subr.bf16.mxu0 0
      %2010 = vmatpush1.bf16.msra.mxu0 0
      %2011 = vmatprep.subr.bf16.mxu0 0
      %2012 = vmatpush1.bf16.msra.mxu0 0
      %2013 = vmatprep.subr.bf16.mxu0 0
      %2014 = vmatpush1.bf16.msra.mxu0 0
      %2015 = vmatprep.subr.bf16.mxu0 0
      %2016 = vmatpush1.bf16.msra.mxu0 0
      %2017 = vmatprep.mubr.bf16.mxu0 0
      %2018 = vmatmul.mubr.bf16.gmra.mrb[0].mxu0 %v1980
      %v2019 = vpop.f32.mrb[0].mxu0
      %v2020 = vadd.f32 0.0, %v2019
      %v2021 = vpop.f32.mrb[0].mxu0
      %v2022 = vpop.f32.mrb[0].mxu0
      %v2023 = vpop.f32.mrb[0].mxu0
      %2024 = vdwg.mxu0
      %v2025 = vadd.f32 %v1967, %v2020
      %2026 = vrot.lane.b32.xlu0 %v1570, 119
      %v2027 = vpop.permute.xlu0 %2026
      %2028 = vrot.lane.b32.xlu0 %v1570, 55
      %v2029 = vpop.permute.xlu0 %2028
      %v2032 = vsel %vm977, %v2027, %v2029
      %v2034 = vmul.bf16 %v2032, %v989
      %s2035 = scalar_lea.vmem %s0, 52
      %v2036 = vld [vmem:[%s2035] sm:$0x3]
      %v2038 = vsel %vm492, %v2036, 0
      %v2041 = vsel %vm496, %v2034, 0
      %2043 = vmatprep.subr.bf16.mxu0 0
      %2044 = vmatpush1.bf16.msra.mxu0 %v2041
      %2045 = vmatprep.subr.bf16.mxu0 0
      %2046 = vmatpush1.bf16.msra.mxu0 0
      %2047 = vmatprep.subr.bf16.mxu0 0
      %2048 = vmatpush1.bf16.msra.mxu0 0
      %2049 = vmatprep.subr.bf16.mxu0 0
      %2050 = vmatpush1.bf16.msra.mxu0 0
      %2051 = vmatprep.subr.bf16.mxu0 0
      %2052 = vmatpush1.bf16.msra.mxu0 0
      %2053 = vmatprep.subr.bf16.mxu0 0
      %2054 = vmatpush1.bf16.msra.mxu0 0
      %2055 = vmatprep.subr.bf16.mxu0 0
      %2056 = vmatpush1.bf16.msra.mxu0 0
      %2057 = vmatprep.subr.bf16.mxu0 0
      %2058 = vmatpush1.bf16.msra.mxu0 0
      %2059 = vmatprep.subr.bf16.mxu0 0
      %2060 = vmatpush1.bf16.msra.mxu0 0
      %2061 = vmatprep.subr.bf16.mxu0 0
      %2062 = vmatpush1.bf16.msra.mxu0 0
      %2063 = vmatprep.subr.bf16.mxu0 0
      %2064 = vmatpush1.bf16.msra.mxu0 0
      %2065 = vmatprep.subr.bf16.mxu0 0
      %2066 = vmatpush1.bf16.msra.mxu0 0
      %2067 = vmatprep.subr.bf16.mxu0 0
      %2068 = vmatpush1.bf16.msra.mxu0 0
      %2069 = vmatprep.subr.bf16.mxu0 0
      %2070 = vmatpush1.bf16.msra.mxu0 0
      %2071 = vmatprep.subr.bf16.mxu0 0
      %2072 = vmatpush1.bf16.msra.mxu0 0
      %2073 = vmatprep.subr.bf16.mxu0 0
      %2074 = vmatpush1.bf16.msra.mxu0 0
      %2075 = vmatprep.mubr.bf16.mxu0 0
      %2076 = vmatmul.mubr.bf16.gmra.mrb[0].mxu0 %v2038
      %v2077 = vpop.f32.mrb[0].mxu0
      %v2078 = vadd.f32 0.0, %v2077
      %v2079 = vpop.f32.mrb[0].mxu0
      %v2080 = vpop.f32.mrb[0].mxu0
      %v2081 = vpop.f32.mrb[0].mxu0
      %2082 = vdwg.mxu0
      %v2083 = vadd.f32 %v2025, %v2078
      %v2084 = vld [vmem:[%s1] sm:$0xf]
      %v2085 = vunpack.c.l.bf16 %v1040
      %v2087 = vsel %vm492, %v2084, 0
      %vm2089 = vcmask 1043456
      %v2091 = vsel %vm2089, %v2085, 0
      %2093 = vmatprep.subr.mxu0 0.0
      %2094 = vmatpush1.msra.mxu0 %v2091
      %2095 = vmatprep.subr.mxu0 0.0
      %2096 = vmatpush1.msra.mxu0 0.0
      %2097 = vmatprep.subr.mxu0 0.0
      %2098 = vmatpush1.msra.mxu0 0.0
      %2099 = vmatprep.subr.mxu0 0.0
      %2100 = vmatpush1.msra.mxu0 0.0
      %2101 = vmatprep.subr.mxu0 0.0
      %2102 = vmatpush1.msra.mxu0 0.0
      %2103 = vmatprep.subr.mxu0 0.0
      %2104 = vmatpush1.msra.mxu0 0.0
      %2105 = vmatprep.subr.mxu0 0.0
      %2106 = vmatpush1.msra.mxu0 0.0
      %2107 = vmatprep.subr.mxu0 0.0
      %2108 = vmatpush1.msra.mxu0 0.0
      %2109 = vmatprep.subr.mxu0 0.0
      %2110 = vmatpush1.msra.mxu0 0.0
      %2111 = vmatprep.subr.mxu0 0.0
      %2112 = vmatpush1.msra.mxu0 0.0
      %2113 = vmatprep.subr.mxu0 0.0
      %2114 = vmatpush1.msra.mxu0 0.0
      %2115 = vmatprep.subr.mxu0 0.0
      %2116 = vmatpush1.msra.mxu0 0.0
      %2117 = vmatprep.subr.mxu0 0.0
      %2118 = vmatpush1.msra.mxu0 0.0
      %2119 = vmatprep.subr.mxu0 0.0
      %2120 = vmatpush1.msra.mxu0 0.0
      %2121 = vmatprep.subr.mxu0 0.0
      %2122 = vmatpush1.msra.mxu0 0.0
      %2123 = vmatprep.subr.mxu0 0.0
      %2124 = vmatpush1.msra.mxu0 0.0
      %2125 = vmatprep.subr.mxu0 0.0
      %2126 = vmatpush1.msra.mxu0 0.0
      %2127 = vmatprep.subr.mxu0 0.0
      %2128 = vmatpush1.msra.mxu0 0.0
      %2129 = vmatprep.subr.mxu0 0.0
      %2130 = vmatpush1.msra.mxu0 0.0
      %2131 = vmatprep.subr.mxu0 0.0
      %2132 = vmatpush1.msra.mxu0 0.0
      %2133 = vmatprep.subr.mxu0 0.0
      %2134 = vmatpush1.msra.mxu0 0.0
      %2135 = vmatprep.subr.mxu0 0.0
      %2136 = vmatpush1.msra.mxu0 0.0
      %2137 = vmatprep.subr.mxu0 0.0
      %2138 = vmatpush1.msra.mxu0 0.0
      %2139 = vmatprep.subr.mxu0 0.0
      %2140 = vmatpush1.msra.mxu0 0.0
      %2141 = vmatprep.subr.mxu0 0.0
      %2142 = vmatpush1.msra.mxu0 0.0
      %2143 = vmatprep.subr.mxu0 0.0
      %2144 = vmatpush1.msra.mxu0 0.0
      %2145 = vmatprep.subr.mxu0 0.0
      %2146 = vmatpush1.msra.mxu0 0.0
      %2147 = vmatprep.subr.mxu0 0.0
      %2148 = vmatpush1.msra.mxu0 0.0
      %2149 = vmatprep.subr.mxu0 0.0
      %2150 = vmatpush1.msra.mxu0 0.0
      %2151 = vmatprep.subr.mxu0 0.0
      %2152 = vmatpush1.msra.mxu0 0.0
      %2153 = vmatprep.subr.mxu0 0.0
      %2154 = vmatpush1.msra.mxu0 0.0
      %2155 = vmatprep.subr.mxu0 0.0
      %2156 = vmatpush1.msra.mxu0 0.0
      %2157 = vmatprep.mubr.f32.mxu0 0.0
      %2158 = vmatmul.mubr.f32.gmra.mrb[0].mxu0 %v2087
      %v2159 = vpop.f32.mrb[0].mxu0
      %v2160 = vadd.f32 0.0, %v2159
      %v2161 = vpop.f32.mrb[0].mxu0
      %2162 = vdwg.mxu0
      %v2163 = vadd.f32 %v2083, %v2160
      %v2164 = vld [vmem:[%s2] sm:$0xf]
      %2166 = vset.pattern.permute.xlu0 0
      %2167 = vperm.xlu0 %2166, %v2164
      %v2168 = vpop.permute.xlu0 %2167
      %v2170 = vadd.f32 %v2163, %v2168
      %v2171 = vld [vmem:[%s435] sm:$0x3]
      %v2172 = vunpack.c.l.bf16 %v2171
      %v2173 = vadd.f32 %v2170, %v2172
      %vm2174 = vcmask 519168
      %2175 = vst.msk [vmem:[%s443] sm:$0xf] %vm2174, %v2173
      %p2176 = scmp.lt.s32.totalorder %s23, 1
      %s2177 = scalar_select %p2176, %s23, 1
      %p2178 = scmp.lt.s32.totalorder %s24, 7
      %s2179 = scalar_select %p2178, %s24, 7
      %s2180 = smul.addr %s2177, 8
      %s2181 = sadd.s32 %s2179, %s2180
      %s2182 = smul.addr %s2181, 4
      %s2183 = scalar_lea.vmem %s8, %s2182
      // Predicated region
      $region53: #{_lambda_.5} parent=51 // pred_check
        %p2184 = pneg %p251
      $region54: #{_lambda_.5} parent=51 // pred_check_branch
        %2186 = sbr.rel (%p2184) target = $region56
      $region55: #{_lambda_.5} parent=51 // pred_region
        _
      $region56: #{_lambda_.5} parent=51 // pred_fallthru
        _
    $region52: #{_lambda_.5} parent=5 // pred_fallthru
      _
    %p2187 = scmp.le.s32.totalorder 2, %s14
    // Predicated region
    $region57: #{_lambda_.5} parent=5 // pred_check
      %p2188 = pneg %p2187
    $region58: #{_lambda_.5} parent=5 // pred_check_branch
      %2190 = sbr.rel (%p2188) target = $region60
    $region59: #{_lambda_.5} parent=5 // pred_region
      %s2191 = ssub.s32 %s14, 2
      // Predicated region
      $region61: #{_lambda_.5} parent=59 // pred_check
        %p2192 = pneg %p257
      $region62: #{_lambda_.5} parent=59 // pred_check_branch
        %2194 = sbr.rel (%p2192) target = $region64
      $region63: #{_lambda_.5} parent=59 // pred_region
        %p2195 = scmp.lt.s32.totalorder %s25, 1
        %s2196 = scalar_select %p2195, %s25, 1
        %p2197 = scmp.lt.s32.totalorder %s26, 7
        %s2198 = scalar_select %p2197, %s26, 7
        %s2199 = smul.addr %s2196, 8
        %s2200 = sadd.s32 %s2198, %s2199
        %s2201 = smul.addr %s2200, 4
        %s2202 = scalar_lea.vmem %s8, %s2201
      $region64: #{_lambda_.5} parent=59 // pred_fallthru
        _
    $region60: #{_lambda_.5} parent=5 // pred_fallthru
      _
  $region6: #{_lambda_.5} parent=0 // loop_footer
    %s18 = sadd.s32 1, %s14
  $region7: #{_lambda_.5} parent=0 // loop_footer_branch
    %13 = sbr.rel target = $region3
  $region8: #{_lambda_.5} parent=0 // loop_exit
    _

</llo_original>
